<compile_context>
chip_gen: v5e
topology: v5e:2x2
jax: 0.10.0
libtpu: 0.0.40
codegen_flags: <defaults>
</compile_context>

<pallas_src>
import jax
import jax.numpy as jnp
from jax import lax
from jax.experimental import pallas as pl
from jax.experimental.pallas import tpu as pltpu

BN_EPS = 1e-5
HEAD_DIM = 512          # embedding / hidden width of the projection head
LANE = 128              # TPU lane width


def _round_up(n, m):
    return ((n + m - 1) // m) * m


# ----------------------------------------------------------------------------
# Pallas kernel: the whole projection head fused into a single grid step.
# ----------------------------------------------------------------------------
def _fused_head_kernel(x_ref, wm_ref, bm_ref, wl_ref, bl_ref, wo_ref, bo_ref,
                       o_ref):
    """Single grid step: full head chain on resident VMEM blocks.

    x_ref:  (B_pad, 512)    bf16  embeddings (batch padded to a 16-multiple)
    wm_ref: (Lm, 512, 512)  bf16  uniform 512->512 layers, BN scale pre-folded
    bm_ref: (Lm, 1, 512)    f32   their biases (Linear bias folded through BN)
    wl_ref: (512, Dl)       bf16  512 -> head_layers[-1] layer (cols lane-padded)
    bl_ref: (1, Dl)         f32
    wo_ref: (Dl, C_pad)     bf16  classifier (cols lane-padded, no BN / no ReLU)
    bo_ref: (1, C_pad)      f32
    o_ref:  (B_pad, C_pad)  f32   lane-dense logits tile
    """
    n_main = wm_ref.shape[0]

    act = x_ref[...]                                        # (B_pad, 512) bf16
    # Fully unrolled layer chain with static indices into the resident stack.
    for l in range(n_main):
        y = jnp.dot(act, wm_ref[l], preferred_element_type=jnp.float32)
        y = y + bm_ref[l]
        act = jnp.maximum(y, 0.0).astype(jnp.bfloat16)      # (Linear+BN) -> ReLU

    # Narrow hidden layer 512 -> head_layers[-1]; padded cols/bias are exact
    # zeros so ReLU(0) = 0 propagates cleanly into the classifier.
    y = jnp.dot(act, wl_ref[...], preferred_element_type=jnp.float32) + bl_ref[...]
    h = jnp.maximum(y, 0.0).astype(jnp.bfloat16)

    # Classifier: no BN, no ReLU.  Lane-dense f32 store.
    o_ref[...] = (jnp.dot(h, wo_ref[...], preferred_element_type=jnp.float32)
                  + bo_ref[...])


def fused_head(embeds, hp, num_classes):
    """embeds: (B, 512) f32; hp: packed head params.  Returns (B, num_classes) f32."""
    B, K = embeds.shape
    assert K == HEAD_DIM
    w_main, b_main = hp["w_main"], hp["b_main"]
    w_last, b_last = hp["w_last"], hp["b_last"]
    w_out, b_out = hp["w_out"], hp["b_out"]
    lm = w_main.shape[0]
    d_last_pad = w_last.shape[1]
    c_pad = w_out.shape[1]

    # bf16 sublane packing is [16, 128]: pad the batch to a 16-multiple so the
    # activation vregs are fully populated and stores are unmasked.
    b_pad = max(16, _round_up(B, 16))
    x = jnp.pad(embeds, ((0, b_pad - B), (0, 0))).astype(jnp.bfloat16)

    weight_bytes = (w_main.size + w_last.size + w_out.size) * 2
    bias_bytes = (b_main.size + b_last.size + b_out.size) * 4

    out = pl.pallas_call(
        _fused_head_kernel,
        out_shape=jax.ShapeDtypeStruct((b_pad, c_pad), jnp.float32),
        grid=(1,),
        in_specs=[
            pl.BlockSpec((b_pad, HEAD_DIM), lambda i: (0, 0)),            # embeds
            pl.BlockSpec((lm, HEAD_DIM, HEAD_DIM), lambda i: (0, 0, 0)),  # 512x512 stack
            pl.BlockSpec((lm, 1, HEAD_DIM), lambda i: (0, 0, 0)),         # its biases
            pl.BlockSpec((HEAD_DIM, d_last_pad), lambda i: (0, 0)),       # 512->128 layer
            pl.BlockSpec((1, d_last_pad), lambda i: (0, 0)),
            pl.BlockSpec((d_last_pad, c_pad), lambda i: (0, 0)),          # classifier
            pl.BlockSpec((1, c_pad), lambda i: (0, 0)),
        ],
        out_specs=pl.BlockSpec((b_pad, c_pad), lambda i: (0, 0)),
        compiler_params=pltpu.CompilerParams(
            dimension_semantics=("arbitrary",),
            # ~4.3 MiB resident (x2 buffering ~8.6 MiB): safe on v5e/v6e/v7x.
            vmem_limit_bytes=32 * 1024 * 1024),
        cost_estimate=pl.CostEstimate(
            flops=2 * b_pad * (lm * HEAD_DIM * HEAD_DIM
                               + HEAD_DIM * d_last_pad + d_last_pad * c_pad),
            transcendentals=0,
            bytes_accessed=weight_bytes + bias_bytes + x.size * 2
                           + b_pad * c_pad * 4),
    )(x, w_main, b_main, w_last, b_last, w_out, b_out)
    return out[:B, :num_classes]


# ----------------------------------------------------------------------------
# Deterministic parameter construction (synthetic weights, no checkpoint load)
# ----------------------------------------------------------------------------
class Rng:
    def __init__(self, seed):
        self._key = jax.random.PRNGKey(seed)

    def next(self):
        self._key, sub = jax.random.split(self._key)
        return sub


def make_conv(rng, o, i, kh, kw):
    fan_in = i * kh * kw
    std = (2.0 / fan_in) ** 0.5
    return (std * jax.random.normal(rng.next(), (o, i, kh, kw))).astype(jnp.float32)


def make_bn_folded(rng, c):
    """Eval-mode BatchNorm folded to per-channel (scale, shift)."""
    gamma = 1.0 + 0.1 * jax.random.normal(rng.next(), (c,))
    beta = 0.1 * jax.random.normal(rng.next(), (c,))
    mean = 0.1 * jax.random.normal(rng.next(), (c,))
    var = 1.0 + 0.1 * jnp.abs(jax.random.normal(rng.next(), (c,)))
    s = gamma / jnp.sqrt(var + BN_EPS)
    b = beta - mean * s
    return s.astype(jnp.float32), b.astype(jnp.float32)


def _pad_to(a, shape):
    pads = [(0, t - s) for s, t in zip(a.shape, shape)]
    return jnp.pad(a, pads)


def _make_linear_bn_folded(rng, d_in, d_out):
    """Linear(d_in,d_out) followed by eval-mode BatchNorm1d(d_out), folded."""
    w = ((2.0 / d_in) ** 0.5 *
         jax.random.normal(rng.next(), (d_in, d_out))).astype(jnp.float32)
    b_lin = (0.01 * jax.random.normal(rng.next(), (d_out,))).astype(jnp.float32)
    s_bn, b_bn = make_bn_folded(rng, d_out)
    return w * s_bn[None, :], b_lin * s_bn + b_bn


def make_head_params(rng, head_layers, num_classes):
    """Build the packed head parameters used by the fused kernel.

    Returns dict with:
      w_main (Lm,512,512) bf16 / b_main (Lm,1,512) f32 : the uniform 512->512 layers
      w_last (512,Dl) bf16     / b_last (1,Dl) f32     : the 512->head_layers[-1] layer
      w_out  (Dl,Cp)  bf16     / b_out  (1,Cp) f32     : classifier (no BN, no ReLU)
    """
    assert len(head_layers) >= 2
    assert all(n == HEAD_DIM for n in head_layers[:-1]), \
        "fused kernel assumes all but the last hidden layer are 512-wide"
    d_last = head_layers[-1]
    d_last_pad = _round_up(d_last, LANE)
    c_pad = _round_up(num_classes, LANE)

    wm, bm = [], []
    last = HEAD_DIM
    for n in head_layers[:-1]:
        w, b = _make_linear_bn_folded(rng, last, n)
        wm.append(w)
        bm.append(b.reshape(1, n))
        last = n
    w_main = jnp.stack(wm).astype(jnp.bfloat16)          # (Lm, 512, 512)
    b_main = jnp.stack(bm).astype(jnp.float32)           # (Lm, 1, 512)

    wl, bl = _make_linear_bn_folded(rng, last, d_last)
    w_last = _pad_to(wl, (HEAD_DIM, d_last_pad)).astype(jnp.bfloat16)
    b_last = _pad_to(bl.reshape(1, d_last), (1, d_last_pad)).astype(jnp.float32)

    w_o = ((1.0 / d_last) ** 0.5 *
           jax.random.normal(rng.next(), (d_last, num_classes))).astype(jnp.float32)
    b_o = (0.01 * jax.random.normal(rng.next(), (num_classes,))).astype(jnp.float32)
    w_out = _pad_to(w_o, (d_last_pad, c_pad)).astype(jnp.bfloat16)
    b_out = _pad_to(b_o.reshape(1, num_classes), (1, c_pad)).astype(jnp.float32)

    # Padded weight/bias regions must be exactly zero so ReLU(0)=0 propagates
    # through the padded lanes into the classifier (guards future init changes).
    if d_last_pad > d_last:
        assert float(jnp.max(jnp.abs(w_last[:, d_last:]))) == 0.0
        assert float(jnp.max(jnp.abs(b_last[:, d_last:]))) == 0.0
    if c_pad > num_classes:
        assert float(jnp.max(jnp.abs(b_out[:, num_classes:]))) == 0.0

    return {"w_main": w_main, "b_main": b_main,
            "w_last": w_last, "b_last": b_last,
            "w_out": w_out, "b_out": b_out}


# ----------------------------------------------------------------------------
# ResNet18 backbone (plain JAX glue, NCHW, eval-mode BN folded)
# ----------------------------------------------------------------------------
RESNET18_CFG = {
    "layer1": [(64, 64, 1), (64, 64, 1)],
    "layer2": [(64, 128, 2), (128, 128, 1)],
    "layer3": [(128, 256, 2), (256, 256, 1)],
    "layer4": [(256, 512, 2), (512, 512, 1)],
}


def make_basic_block(rng, c_in, c_out, stride):
    p = {
        "conv1_w": make_conv(rng, c_out, c_in, 3, 3),
        "bn1": make_bn_folded(rng, c_out),
        "conv2_w": make_conv(rng, c_out, c_out, 3, 3),
        "bn2": make_bn_folded(rng, c_out),
        "down": None,
    }
    if stride != 1 or c_in != c_out:
        p["down"] = {
            "w": make_conv(rng, c_out, c_in, 1, 1),
            "bn": make_bn_folded(rng, c_out),
        }
    return p


def make_resnet18_params(rng):
    params = {
        "conv1_w": make_conv(rng, 64, 3, 7, 7),
        "bn1": make_bn_folded(rng, 64),
    }
    for name, blocks in RESNET18_CFG.items():
        params[name] = [make_basic_block(rng, ci, co, s) for ci, co, s in blocks]
    return params


def conv2d(x, w, stride, padding):
    return lax.conv_general_dilated(
        x, w,
        window_strides=(stride, stride),
        padding=((padding, padding), (padding, padding)),
        dimension_numbers=("NCHW", "OIHW", "NCHW"))


def apply_bn2d(x, bn):
    s, b = bn
    return x * s[None, :, None, None] + b[None, :, None, None]


def basic_block(x, p, stride):
    out = conv2d(x, p["conv1_w"], stride=stride, padding=1)
    out = jnp.maximum(apply_bn2d(out, p["bn1"]), 0.0)
    out = conv2d(out, p["conv2_w"], stride=1, padding=1)
    out = apply_bn2d(out, p["bn2"])
    if p["down"] is not None:
        identity = conv2d(x, p["down"]["w"], stride=stride, padding=0)
        identity = apply_bn2d(identity, p["down"]["bn"])
    else:
        identity = x
    return jnp.maximum(out + identity, 0.0)


def resnet18_forward(x, params):
    h = conv2d(x, params["conv1_w"], stride=2, padding=3)
    h = jnp.maximum(apply_bn2d(h, params["bn1"]), 0.0)
    h = lax.reduce_window(
        h, -jnp.inf, lax.max,
        window_dimensions=(1, 1, 3, 3),
        window_strides=(1, 1, 2, 2),
        padding=((0, 0), (0, 0), (1, 1), (1, 1)))
    for name in ("layer1", "layer2", "layer3", "layer4"):
        for blk_params, (_, _, stride) in zip(params[name], RESNET18_CFG[name]):
            h = basic_block(h, blk_params, stride)
    # adaptive avg pool to 1x1 + flatten -> (B, 512); resnet18.fc = Identity
    return jnp.mean(h, axis=(2, 3))


# ----------------------------------------------------------------------------
# Full ProjectionNet forward (backbone in JAX, head in one fused Pallas kernel)
# ----------------------------------------------------------------------------
def projection_net_forward(x, resnet_params, head_params, num_classes):
    embeds = resnet18_forward(x, resnet_params)                # (B, 512) f32
    logits = fused_head(embeds, head_params, num_classes)      # (B, num_classes)
    return embeds, logits


if __name__ == "__main__":
    head_layers = [512, 512, 512, 512, 512, 512, 512, 512, 128]
    num_classes = 2

    # Deterministic synthetic parameters.
    prng = Rng(seed=42)
    resnet_params = make_resnet18_params(prng)
    head_params = make_head_params(prng, head_layers, num_classes)

    # Deterministic example input (small shapes): batch=2, 3 channels, 32x32.
    x = jax.random.normal(jax.random.PRNGKey(0), (2, 3, 32, 32), jnp.float32)

    # Whole forward in one jit so XLA can schedule the head's weight DMA
    # behind the backbone compute.
    fwd = jax.jit(projection_net_forward, static_argnums=(3,))
    embeds, logits = fwd(x, resnet_params, head_params, num_classes)
    embeds = jax.block_until_ready(embeds)
    logits = jax.block_until_ready(logits)

    assert embeds.shape == (2, 512) and embeds.dtype == jnp.float32
    assert logits.shape == (2, num_classes) and logits.dtype == jnp.float32
    assert bool(jnp.all(jnp.isfinite(embeds))) and bool(jnp.all(jnp.isfinite(logits)))

    print("KERNEL_OK")
</pallas_src>

<mosaic_0001>
module attributes {stable_mosaic.version = 11 : i64} {
  func.func @_fused_head_kernel(%arg0: i32, %arg1: memref<16x512xbf16, #tpu.memory_space<vmem>>, %arg2: memref<8x512x512xbf16, #tpu.memory_space<vmem>>, %arg3: memref<8x1x512xf32, #tpu.memory_space<vmem>>, %arg4: memref<512x128xbf16, #tpu.memory_space<vmem>>, %arg5: memref<1x128xf32, #tpu.memory_space<vmem>>, %arg6: memref<128x128xbf16, #tpu.memory_space<vmem>>, %arg7: memref<1x128xf32, #tpu.memory_space<vmem>>, %arg8: memref<16x128xf32, #tpu.memory_space<vmem>>) attributes {dimension_semantics = [#tpu.dimension_semantics<arbitrary>], iteration_bounds = array<i64: 1>, scalar_prefetch = 0 : i64, scratch_operands = 0 : i64, tpu.core_type = #tpu.core_type<tc>, window_params = [{pipeline_mode = #tpu.pipeline_mode<synchronous>, transform_indices = @transform_0, window_bounds = array<i64: 16, 512>}, {pipeline_mode = #tpu.pipeline_mode<synchronous>, transform_indices = @transform_1, window_bounds = array<i64: 8, 512, 512>}, {pipeline_mode = #tpu.pipeline_mode<synchronous>, transform_indices = @transform_2, window_bounds = array<i64: 8, 1, 512>}, {pipeline_mode = #tpu.pipeline_mode<synchronous>, transform_indices = @transform_3, window_bounds = array<i64: 512, 128>}, {pipeline_mode = #tpu.pipeline_mode<synchronous>, transform_indices = @transform_4, window_bounds = array<i64: 1, 128>}, {pipeline_mode = #tpu.pipeline_mode<synchronous>, transform_indices = @transform_5, window_bounds = array<i64: 128, 128>}, {pipeline_mode = #tpu.pipeline_mode<synchronous>, transform_indices = @transform_6, window_bounds = array<i64: 1, 128>}, {pipeline_mode = #tpu.pipeline_mode<synchronous>, transform_indices = @transform_7, window_bounds = array<i64: 16, 128>}]} {
    %c0 = arith.constant 0 : index
    %c0_0 = arith.constant 0 : index
    %0 = vector.load %arg1[%c0, %c0_0] : memref<16x512xbf16, #tpu.memory_space<vmem>>, vector<16x512xbf16>
    %c0_1 = arith.constant 0 : index
    %c0_2 = arith.constant 0 : index
    %c0_3 = arith.constant 0 : index
    %1 = vector.load %arg2[%c0_1, %c0_2, %c0_3] : memref<8x512x512xbf16, #tpu.memory_space<vmem>>, vector<1x512x512xbf16>
    %2 = vector.shape_cast %1 : vector<1x512x512xbf16> to vector<512x512xbf16>
    %cst = arith.constant dense<0.000000e+00> : vector<16x512xf32>
    %3 = tpu.matmul %0, %2, %cst {dimension_numbers = #tpu.dot_dimension_numbers<[1], [0], [0], [1], [0, 0, 1, 1], [], []>} : vector<16x512xbf16>, vector<512x512xbf16>, vector<16x512xf32> -> vector<16x512xf32>
    %c0_4 = arith.constant 0 : index
    %c0_5 = arith.constant 0 : index
    %c0_6 = arith.constant 0 : index
    %4 = vector.load %arg3[%c0_4, %c0_5, %c0_6] : memref<8x1x512xf32, #tpu.memory_space<vmem>>, vector<1x1x512xf32>
    %5 = vector.shape_cast %4 : vector<1x1x512xf32> to vector<1x512xf32>
    %6 = vector.broadcast %5 : vector<1x512xf32> to vector<16x512xf32>
    %7 = arith.addf %3, %6 : vector<16x512xf32>
    %cst_7 = arith.constant 0.000000e+00 : f32
    %8 = vector.broadcast %cst_7 : f32 to vector<16x512xf32>
    %9 = arith.maximumf %7, %8 : vector<16x512xf32>
    %10 = arith.truncf %9 : vector<16x512xf32> to vector<16x512xbf16>
    %c1 = arith.constant 1 : index
    %c0_8 = arith.constant 0 : index
    %c0_9 = arith.constant 0 : index
    %11 = vector.load %arg2[%c1, %c0_8, %c0_9] : memref<8x512x512xbf16, #tpu.memory_space<vmem>>, vector<1x512x512xbf16>
    %12 = vector.shape_cast %11 : vector<1x512x512xbf16> to vector<512x512xbf16>
    %cst_10 = arith.constant dense<0.000000e+00> : vector<16x512xf32>
    %13 = tpu.matmul %10, %12, %cst_10 {dimension_numbers = #tpu.dot_dimension_numbers<[1], [0], [0], [1], [0, 0, 1, 1], [], []>} : vector<16x512xbf16>, vector<512x512xbf16>, vector<16x512xf32> -> vector<16x512xf32>
    %c1_11 = arith.constant 1 : index
    %c0_12 = arith.constant 0 : index
    %c0_13 = arith.constant 0 : index
    %14 = vector.load %arg3[%c1_11, %c0_12, %c0_13] : memref<8x1x512xf32, #tpu.memory_space<vmem>>, vector<1x1x512xf32>
    %15 = vector.shape_cast %14 : vector<1x1x512xf32> to vector<1x512xf32>
    %16 = vector.broadcast %15 : vector<1x512xf32> to vector<16x512xf32>
    %17 = arith.addf %13, %16 : vector<16x512xf32>
    %cst_14 = arith.constant 0.000000e+00 : f32
    %18 = vector.broadcast %cst_14 : f32 to vector<16x512xf32>
    %19 = arith.maximumf %17, %18 : vector<16x512xf32>
    %20 = arith.truncf %19 : vector<16x512xf32> to vector<16x512xbf16>
    %c2 = arith.constant 2 : index
    %c0_15 = arith.constant 0 : index
    %c0_16 = arith.constant 0 : index
    %21 = vector.load %arg2[%c2, %c0_15, %c0_16] : memref<8x512x512xbf16, #tpu.memory_space<vmem>>, vector<1x512x512xbf16>
    %22 = vector.shape_cast %21 : vector<1x512x512xbf16> to vector<512x512xbf16>
    %cst_17 = arith.constant dense<0.000000e+00> : vector<16x512xf32>
    %23 = tpu.matmul %20, %22, %cst_17 {dimension_numbers = #tpu.dot_dimension_numbers<[1], [0], [0], [1], [0, 0, 1, 1], [], []>} : vector<16x512xbf16>, vector<512x512xbf16>, vector<16x512xf32> -> vector<16x512xf32>
    %c2_18 = arith.constant 2 : index
    %c0_19 = arith.constant 0 : index
    %c0_20 = arith.constant 0 : index
    %24 = vector.load %arg3[%c2_18, %c0_19, %c0_20] : memref<8x1x512xf32, #tpu.memory_space<vmem>>, vector<1x1x512xf32>
    %25 = vector.shape_cast %24 : vector<1x1x512xf32> to vector<1x512xf32>
    %26 = vector.broadcast %25 : vector<1x512xf32> to vector<16x512xf32>
    %27 = arith.addf %23, %26 : vector<16x512xf32>
    %cst_21 = arith.constant 0.000000e+00 : f32
    %28 = vector.broadcast %cst_21 : f32 to vector<16x512xf32>
    %29 = arith.maximumf %27, %28 : vector<16x512xf32>
    %30 = arith.truncf %29 : vector<16x512xf32> to vector<16x512xbf16>
    %c3 = arith.constant 3 : index
    %c0_22 = arith.constant 0 : index
    %c0_23 = arith.constant 0 : index
    %31 = vector.load %arg2[%c3, %c0_22, %c0_23] : memref<8x512x512xbf16, #tpu.memory_space<vmem>>, vector<1x512x512xbf16>
    %32 = vector.shape_cast %31 : vector<1x512x512xbf16> to vector<512x512xbf16>
    %cst_24 = arith.constant dense<0.000000e+00> : vector<16x512xf32>
    %33 = tpu.matmul %30, %32, %cst_24 {dimension_numbers = #tpu.dot_dimension_numbers<[1], [0], [0], [1], [0, 0, 1, 1], [], []>} : vector<16x512xbf16>, vector<512x512xbf16>, vector<16x512xf32> -> vector<16x512xf32>
    %c3_25 = arith.constant 3 : index
    %c0_26 = arith.constant 0 : index
    %c0_27 = arith.constant 0 : index
    %34 = vector.load %arg3[%c3_25, %c0_26, %c0_27] : memref<8x1x512xf32, #tpu.memory_space<vmem>>, vector<1x1x512xf32>
    %35 = vector.shape_cast %34 : vector<1x1x512xf32> to vector<1x512xf32>
    %36 = vector.broadcast %35 : vector<1x512xf32> to vector<16x512xf32>
    %37 = arith.addf %33, %36 : vector<16x512xf32>
    %cst_28 = arith.constant 0.000000e+00 : f32
    %38 = vector.broadcast %cst_28 : f32 to vector<16x512xf32>
    %39 = arith.maximumf %37, %38 : vector<16x512xf32>
    %40 = arith.truncf %39 : vector<16x512xf32> to vector<16x512xbf16>
    %c4 = arith.constant 4 : index
    %c0_29 = arith.constant 0 : index
    %c0_30 = arith.constant 0 : index
    %41 = vector.load %arg2[%c4, %c0_29, %c0_30] : memref<8x512x512xbf16, #tpu.memory_space<vmem>>, vector<1x512x512xbf16>
    %42 = vector.shape_cast %41 : vector<1x512x512xbf16> to vector<512x512xbf16>
    %cst_31 = arith.constant dense<0.000000e+00> : vector<16x512xf32>
    %43 = tpu.matmul %40, %42, %cst_31 {dimension_numbers = #tpu.dot_dimension_numbers<[1], [0], [0], [1], [0, 0, 1, 1], [], []>} : vector<16x512xbf16>, vector<512x512xbf16>, vector<16x512xf32> -> vector<16x512xf32>
    %c4_32 = arith.constant 4 : index
    %c0_33 = arith.constant 0 : index
    %c0_34 = arith.constant 0 : index
    %44 = vector.load %arg3[%c4_32, %c0_33, %c0_34] : memref<8x1x512xf32, #tpu.memory_space<vmem>>, vector<1x1x512xf32>
    %45 = vector.shape_cast %44 : vector<1x1x512xf32> to vector<1x512xf32>
    %46 = vector.broadcast %45 : vector<1x512xf32> to vector<16x512xf32>
    %47 = arith.addf %43, %46 : vector<16x512xf32>
    %cst_35 = arith.constant 0.000000e+00 : f32
    %48 = vector.broadcast %cst_35 : f32 to vector<16x512xf32>
    %49 = arith.maximumf %47, %48 : vector<16x512xf32>
    %50 = arith.truncf %49 : vector<16x512xf32> to vector<16x512xbf16>
    %c5 = arith.constant 5 : index
    %c0_36 = arith.constant 0 : index
    %c0_37 = arith.constant 0 : index
    %51 = vector.load %arg2[%c5, %c0_36, %c0_37] : memref<8x512x512xbf16, #tpu.memory_space<vmem>>, vector<1x512x512xbf16>
    %52 = vector.shape_cast %51 : vector<1x512x512xbf16> to vector<512x512xbf16>
    %cst_38 = arith.constant dense<0.000000e+00> : vector<16x512xf32>
    %53 = tpu.matmul %50, %52, %cst_38 {dimension_numbers = #tpu.dot_dimension_numbers<[1], [0], [0], [1], [0, 0, 1, 1], [], []>} : vector<16x512xbf16>, vector<512x512xbf16>, vector<16x512xf32> -> vector<16x512xf32>
    %c5_39 = arith.constant 5 : index
    %c0_40 = arith.constant 0 : index
    %c0_41 = arith.constant 0 : index
    %54 = vector.load %arg3[%c5_39, %c0_40, %c0_41] : memref<8x1x512xf32, #tpu.memory_space<vmem>>, vector<1x1x512xf32>
    %55 = vector.shape_cast %54 : vector<1x1x512xf32> to vector<1x512xf32>
    %56 = vector.broadcast %55 : vector<1x512xf32> to vector<16x512xf32>
    %57 = arith.addf %53, %56 : vector<16x512xf32>
    %cst_42 = arith.constant 0.000000e+00 : f32
    %58 = vector.broadcast %cst_42 : f32 to vector<16x512xf32>
    %59 = arith.maximumf %57, %58 : vector<16x512xf32>
    %60 = arith.truncf %59 : vector<16x512xf32> to vector<16x512xbf16>
    %c6 = arith.constant 6 : index
    %c0_43 = arith.constant 0 : index
    %c0_44 = arith.constant 0 : index
    %61 = vector.load %arg2[%c6, %c0_43, %c0_44] : memref<8x512x512xbf16, #tpu.memory_space<vmem>>, vector<1x512x512xbf16>
    %62 = vector.shape_cast %61 : vector<1x512x512xbf16> to vector<512x512xbf16>
    %cst_45 = arith.constant dense<0.000000e+00> : vector<16x512xf32>
    %63 = tpu.matmul %60, %62, %cst_45 {dimension_numbers = #tpu.dot_dimension_numbers<[1], [0], [0], [1], [0, 0, 1, 1], [], []>} : vector<16x512xbf16>, vector<512x512xbf16>, vector<16x512xf32> -> vector<16x512xf32>
    %c6_46 = arith.constant 6 : index
    %c0_47 = arith.constant 0 : index
    %c0_48 = arith.constant 0 : index
    %64 = vector.load %arg3[%c6_46, %c0_47, %c0_48] : memref<8x1x512xf32, #tpu.memory_space<vmem>>, vector<1x1x512xf32>
    %65 = vector.shape_cast %64 : vector<1x1x512xf32> to vector<1x512xf32>
    %66 = vector.broadcast %65 : vector<1x512xf32> to vector<16x512xf32>
    %67 = arith.addf %63, %66 : vector<16x512xf32>
    %cst_49 = arith.constant 0.000000e+00 : f32
    %68 = vector.broadcast %cst_49 : f32 to vector<16x512xf32>
    %69 = arith.maximumf %67, %68 : vector<16x512xf32>
    %70 = arith.truncf %69 : vector<16x512xf32> to vector<16x512xbf16>
    %c7 = arith.constant 7 : index
    %c0_50 = arith.constant 0 : index
    %c0_51 = arith.constant 0 : index
    %71 = vector.load %arg2[%c7, %c0_50, %c0_51] : memref<8x512x512xbf16, #tpu.memory_space<vmem>>, vector<1x512x512xbf16>
    %72 = vector.shape_cast %71 : vector<1x512x512xbf16> to vector<512x512xbf16>
    %cst_52 = arith.constant dense<0.000000e+00> : vector<16x512xf32>
    %73 = tpu.matmul %70, %72, %cst_52 {dimension_numbers = #tpu.dot_dimension_numbers<[1], [0], [0], [1], [0, 0, 1, 1], [], []>} : vector<16x512xbf16>, vector<512x512xbf16>, vector<16x512xf32> -> vector<16x512xf32>
    %c7_53 = arith.constant 7 : index
    %c0_54 = arith.constant 0 : index
    %c0_55 = arith.constant 0 : index
    %74 = vector.load %arg3[%c7_53, %c0_54, %c0_55] : memref<8x1x512xf32, #tpu.memory_space<vmem>>, vector<1x1x512xf32>
    %75 = vector.shape_cast %74 : vector<1x1x512xf32> to vector<1x512xf32>
    %76 = vector.broadcast %75 : vector<1x512xf32> to vector<16x512xf32>
    %77 = arith.addf %73, %76 : vector<16x512xf32>
    %cst_56 = arith.constant 0.000000e+00 : f32
    %78 = vector.broadcast %cst_56 : f32 to vector<16x512xf32>
    %79 = arith.maximumf %77, %78 : vector<16x512xf32>
    %80 = arith.truncf %79 : vector<16x512xf32> to vector<16x512xbf16>
    %c0_57 = arith.constant 0 : index
    %c0_58 = arith.constant 0 : index
    %81 = vector.load %arg4[%c0_57, %c0_58] : memref<512x128xbf16, #tpu.memory_space<vmem>>, vector<512x128xbf16>
    %cst_59 = arith.constant dense<0.000000e+00> : vector<16x128xf32>
    %82 = tpu.matmul %80, %81, %cst_59 {dimension_numbers = #tpu.dot_dimension_numbers<[1], [0], [0], [1], [0, 0, 1, 1], [], []>} : vector<16x512xbf16>, vector<512x128xbf16>, vector<16x128xf32> -> vector<16x128xf32>
    %c0_60 = arith.constant 0 : index
    %c0_61 = arith.constant 0 : index
    %83 = vector.load %arg5[%c0_60, %c0_61] : memref<1x128xf32, #tpu.memory_space<vmem>>, vector<1x128xf32>
    %84 = vector.broadcast %83 : vector<1x128xf32> to vector<16x128xf32>
    %85 = arith.addf %82, %84 : vector<16x128xf32>
    %cst_62 = arith.constant 0.000000e+00 : f32
    %86 = vector.broadcast %cst_62 : f32 to vector<16x128xf32>
    %87 = arith.maximumf %85, %86 : vector<16x128xf32>
    %88 = arith.truncf %87 : vector<16x128xf32> to vector<16x128xbf16>
    %c0_63 = arith.constant 0 : index
    %c0_64 = arith.constant 0 : index
    %89 = vector.load %arg6[%c0_63, %c0_64] : memref<128x128xbf16, #tpu.memory_space<vmem>>, vector<128x128xbf16>
    %cst_65 = arith.constant dense<0.000000e+00> : vector<16x128xf32>
    %90 = tpu.matmul %88, %89, %cst_65 {dimension_numbers = #tpu.dot_dimension_numbers<[1], [0], [0], [1], [0, 0, 1, 1], [], []>} : vector<16x128xbf16>, vector<128x128xbf16>, vector<16x128xf32> -> vector<16x128xf32>
    %c0_66 = arith.constant 0 : index
    %c0_67 = arith.constant 0 : index
    %91 = vector.load %arg7[%c0_66, %c0_67] : memref<1x128xf32, #tpu.memory_space<vmem>>, vector<1x128xf32>
    %92 = vector.broadcast %91 : vector<1x128xf32> to vector<16x128xf32>
    %93 = arith.addf %90, %92 : vector<16x128xf32>
    %c0_68 = arith.constant 0 : index
    %c0_69 = arith.constant 0 : index
    %94 = vector.load %arg8[%c0_68, %c0_69] : memref<16x128xf32, #tpu.memory_space<vmem>>, vector<16x128xf32>
    tpu.vector_store %arg8[%c0_68, %c0_69], %93 {strides = array<i32>} : memref<16x128xf32, #tpu.memory_space<vmem>>, vector<16x128xf32>,
    return
  }
  func.func @transform_0(%arg0: i32) -> (i32, i32) {
    %c0_i32 = arith.constant 0 : i32
    %c0_i32_0 = arith.constant 0 : i32
    %c0_i32_1 = arith.constant 0 : i32
    return %c0_i32, %c0_i32_0 : i32, i32
  }
  func.func @transform_1(%arg0: i32) -> (i32, i32, i32) {
    %c0_i32 = arith.constant 0 : i32
    %c0_i32_0 = arith.constant 0 : i32
    %c0_i32_1 = arith.constant 0 : i32
    %c0_i32_2 = arith.constant 0 : i32
    return %c0_i32, %c0_i32_0, %c0_i32_1 : i32, i32, i32
  }
  func.func @transform_2(%arg0: i32) -> (i32, i32, i32) {
    %c0_i32 = arith.constant 0 : i32
    %c0_i32_0 = arith.constant 0 : i32
    %c0_i32_1 = arith.constant 0 : i32
    %c0_i32_2 = arith.constant 0 : i32
    return %c0_i32, %c0_i32_0, %c0_i32_1 : i32, i32, i32
  }
  func.func @transform_3(%arg0: i32) -> (i32, i32) {
    %c0_i32 = arith.constant 0 : i32
    %c0_i32_0 = arith.constant 0 : i32
    %c0_i32_1 = arith.constant 0 : i32
    return %c0_i32, %c0_i32_0 : i32, i32
  }
  func.func @transform_4(%arg0: i32) -> (i32, i32) {
    %c0_i32 = arith.constant 0 : i32
    %c0_i32_0 = arith.constant 0 : i32
    %c0_i32_1 = arith.constant 0 : i32
    return %c0_i32, %c0_i32_0 : i32, i32
  }
  func.func @transform_5(%arg0: i32) -> (i32, i32) {
    %c0_i32 = arith.constant 0 : i32
    %c0_i32_0 = arith.constant 0 : i32
    %c0_i32_1 = arith.constant 0 : i32
    return %c0_i32, %c0_i32_0 : i32, i32
  }
  func.func @transform_6(%arg0: i32) -> (i32, i32) {
    %c0_i32 = arith.constant 0 : i32
    %c0_i32_0 = arith.constant 0 : i32
    %c0_i32_1 = arith.constant 0 : i32
    return %c0_i32, %c0_i32_0 : i32, i32
  }
  func.func @transform_7(%arg0: i32) -> (i32, i32) {
    %c0_i32 = arith.constant 0 : i32
    %c0_i32_0 = arith.constant 0 : i32
    %c0_i32_1 = arith.constant 0 : i32
    return %c0_i32, %c0_i32_0 : i32, i32
  }
}

</mosaic_0001>

<llo_original>
// kernel: reverse
$region0: #{reverse}
  #allocation0 [shape = 's32[1]{0}', space=sflag, size = 0x4, scoped, tag = 'scoped memory for reverse']
  %s0 = inlined_call_operand.vmem [shape: f32[256,256,3,3], index: 0, kind: input, shape index: {}]
  %s1 = inlined_call_operand.vmem [shape: bf16[256,256,3,3], index: 1, kind: output, shape index: {}]
  %s2 = scalar_lea.vmem %s0, 4096
  %v3 = vld [vmem:[%s2] sm:$0xff]
  %s4 = scalar_lea.vmem %s0, 2560
  %v5 = vld [vmem:[%s4] sm:$0xff]
  %s6 = scalar_lea.vmem %s1, 768
  %s7 = scalar_lea.vmem %s0, 1024
  %v8 = vld [vmem:[%s7] sm:$0xff]
  %s9 = scalar_lea.vmem %s1, 1536
  %s10 = scalar_lea.vmem %s0, 3584
  %v11 = vld [vmem:[%s10] sm:$0xff]
  %s12 = scalar_lea.vmem %s1, 256
  %s13 = scalar_lea.vmem %s0, 2048
  %v14 = vld [vmem:[%s13] sm:$0xff]
  %s15 = scalar_lea.vmem %s1, 1024
  %s16 = scalar_lea.vmem %s0, 512
  %v17 = vld [vmem:[%s16] sm:$0xff]
  %s18 = scalar_lea.vmem %s1, 1792
  %s19 = scalar_lea.vmem %s0, 3072
  %v20 = vld [vmem:[%s19] sm:$0xff]
  %s21 = scalar_lea.vmem %s1, 512
  %s22 = scalar_lea.vmem %s0, 1536
  %v23 = vld [vmem:[%s22] sm:$0xff]
  %s24 = scalar_lea.vmem %s1, 1280
  %v25 = vld [vmem:[%s0] sm:$0xff]
  %s26 = scalar_lea.vmem %s1, 2048
  %s27 = scalar_lea.vmem %s0, 4112
  %v28 = vld [vmem:[%s27] sm:$0xff]
  %s29 = scalar_lea.vmem %s1, 8
  %s30 = scalar_lea.vmem %s0, 2576
  %v31 = vld [vmem:[%s30] sm:$0xff]
  %s32 = scalar_lea.vmem %s1, 776
  %s33 = scalar_lea.vmem %s0, 1040
  %v34 = vld [vmem:[%s33] sm:$0xff]
  %s35 = scalar_lea.vmem %s1, 1544
  %s36 = scalar_lea.vmem %s0, 3600
  %v37 = vld [vmem:[%s36] sm:$0xff]
  %s38 = scalar_lea.vmem %s1, 264
  %s39 = scalar_lea.vmem %s0, 2064
  %v40 = vld [vmem:[%s39] sm:$0xff]
  %s41 = scalar_lea.vmem %s1, 1032
  %s42 = scalar_lea.vmem %s0, 528
  %v43 = vld [vmem:[%s42] sm:$0xff]
  %s44 = scalar_lea.vmem %s1, 1800
  %s45 = scalar_lea.vmem %s0, 3088
  %v46 = vld [vmem:[%s45] sm:$0xff]
  %s47 = scalar_lea.vmem %s1, 520
  %s48 = scalar_lea.vmem %s0, 1552
  %v49 = vld [vmem:[%s48] sm:$0xff]
  %s50 = scalar_lea.vmem %s1, 1288
  %s51 = scalar_lea.vmem %s0, 16
  %v52 = vld [vmem:[%s51] sm:$0xff]
  %s53 = scalar_lea.vmem %s1, 2056
  %s54 = scalar_lea.vmem %s0, 4128
  %v55 = vld [vmem:[%s54] sm:$0xff]
  %s56 = scalar_lea.vmem %s1, 16
  %s57 = scalar_lea.vmem %s0, 2592
  %v58 = vld [vmem:[%s57] sm:$0xff]
  %s59 = scalar_lea.vmem %s1, 784
  %s60 = scalar_lea.vmem %s0, 1056
  %v61 = vld [vmem:[%s60] sm:$0xff]
  %s62 = scalar_lea.vmem %s1, 1552
  %s63 = scalar_lea.vmem %s0, 3616
  %v64 = vld [vmem:[%s63] sm:$0xff]
  %s65 = scalar_lea.vmem %s1, 272
  %s66 = scalar_lea.vmem %s0, 2080
  %v67 = vld [vmem:[%s66] sm:$0xff]
  %s68 = scalar_lea.vmem %s1, 1040
  %s69 = scalar_lea.vmem %s0, 544
  %v70 = vld [vmem:[%s69] sm:$0xff]
  %s71 = scalar_lea.vmem %s1, 1808
  %s72 = scalar_lea.vmem %s0, 3104
  %v73 = vld [vmem:[%s72] sm:$0xff]
  %s74 = scalar_lea.vmem %s1, 528
  %s75 = scalar_lea.vmem %s0, 1568
  %v76 = vld [vmem:[%s75] sm:$0xff]
  %s77 = scalar_lea.vmem %s1, 1296
  %s78 = scalar_lea.vmem %s0, 32
  %v79 = vld [vmem:[%s78] sm:$0xff]
  %s80 = scalar_lea.vmem %s1, 2064
  %s81 = scalar_lea.vmem %s0, 4144
  %v82 = vld [vmem:[%s81] sm:$0xff]
  %s83 = scalar_lea.vmem %s1, 24
  %s84 = scalar_lea.vmem %s0, 2608
  %v85 = vld [vmem:[%s84] sm:$0xff]
  %s86 = scalar_lea.vmem %s1, 792
  %s87 = scalar_lea.vmem %s0, 1072
  %v88 = vld [vmem:[%s87] sm:$0xff]
  %s89 = scalar_lea.vmem %s1, 1560
  %s90 = scalar_lea.vmem %s0, 3632
  %v91 = vld [vmem:[%s90] sm:$0xff]
  %s92 = scalar_lea.vmem %s1, 280
  %s93 = scalar_lea.vmem %s0, 2096
  %v94 = vld [vmem:[%s93] sm:$0xff]
  %s95 = scalar_lea.vmem %s1, 1048
  %s96 = scalar_lea.vmem %s0, 560
  %v97 = vld [vmem:[%s96] sm:$0xff]
  %s98 = scalar_lea.vmem %s1, 1816
  %s99 = scalar_lea.vmem %s0, 3120
  %v100 = vld [vmem:[%s99] sm:$0xff]
  %s101 = scalar_lea.vmem %s1, 536
  %s102 = scalar_lea.vmem %s0, 1584
  %v103 = vld [vmem:[%s102] sm:$0xff]
  %s104 = scalar_lea.vmem %s1, 1304
  %s105 = scalar_lea.vmem %s0, 48
  %v106 = vld [vmem:[%s105] sm:$0xff]
  %s107 = scalar_lea.vmem %s1, 2072
  %s108 = scalar_lea.vmem %s0, 4160
  %v109 = vld [vmem:[%s108] sm:$0xff]
  %s110 = scalar_lea.vmem %s1, 32
  %s111 = scalar_lea.vmem %s0, 2624
  %v112 = vld [vmem:[%s111] sm:$0xff]
  %s113 = scalar_lea.vmem %s1, 800
  %s114 = scalar_lea.vmem %s0, 1088
  %v115 = vld [vmem:[%s114] sm:$0xff]
  %s116 = scalar_lea.vmem %s1, 1568
  %s117 = scalar_lea.vmem %s0, 3648
  %v118 = vld [vmem:[%s117] sm:$0xff]
  %s119 = scalar_lea.vmem %s1, 288
  %s120 = scalar_lea.vmem %s0, 2112
  %v121 = vld [vmem:[%s120] sm:$0xff]
  %s122 = scalar_lea.vmem %s1, 1056
  %s123 = scalar_lea.vmem %s0, 576
  %v124 = vld [vmem:[%s123] sm:$0xff]
  %s125 = scalar_lea.vmem %s1, 1824
  %s126 = scalar_lea.vmem %s0, 3136
  %v127 = vld [vmem:[%s126] sm:$0xff]
  %s128 = scalar_lea.vmem %s1, 544
  %s129 = scalar_lea.vmem %s0, 1600
  %v130 = vld [vmem:[%s129] sm:$0xff]
  %s131 = scalar_lea.vmem %s1, 1312
  %s132 = scalar_lea.vmem %s0, 64
  %v133 = vld [vmem:[%s132] sm:$0xff]
  %s134 = scalar_lea.vmem %s1, 2080
  %s135 = scalar_lea.vmem %s0, 4176
  %v136 = vld [vmem:[%s135] sm:$0xff]
  %s137 = scalar_lea.vmem %s1, 40
  %s138 = scalar_lea.vmem %s0, 2640
  %v139 = vld [vmem:[%s138] sm:$0xff]
  %s140 = scalar_lea.vmem %s1, 808
  %s141 = scalar_lea.vmem %s0, 1104
  %v142 = vld [vmem:[%s141] sm:$0xff]
  %s143 = scalar_lea.vmem %s1, 1576
  %s144 = scalar_lea.vmem %s0, 3664
  %v145 = vld [vmem:[%s144] sm:$0xff]
  %s146 = scalar_lea.vmem %s1, 296
  %s147 = scalar_lea.vmem %s0, 2128
  %v148 = vld [vmem:[%s147] sm:$0xff]
  %s149 = scalar_lea.vmem %s1, 1064
  %s150 = scalar_lea.vmem %s0, 592
  %v151 = vld [vmem:[%s150] sm:$0xff]
  %s152 = scalar_lea.vmem %s1, 1832
  %s153 = scalar_lea.vmem %s0, 3152
  %v154 = vld [vmem:[%s153] sm:$0xff]
  %s155 = scalar_lea.vmem %s1, 552
  %s156 = scalar_lea.vmem %s0, 1616
  %v157 = vld [vmem:[%s156] sm:$0xff]
  %s158 = scalar_lea.vmem %s1, 1320
  %s159 = scalar_lea.vmem %s0, 80
  %v160 = vld [vmem:[%s159] sm:$0xff]
  %s161 = scalar_lea.vmem %s1, 2088
  %s162 = scalar_lea.vmem %s0, 4192
  %v163 = vld [vmem:[%s162] sm:$0xff]
  %s164 = scalar_lea.vmem %s1, 48
  %s165 = scalar_lea.vmem %s0, 2656
  %v166 = vld [vmem:[%s165] sm:$0xff]
  %s167 = scalar_lea.vmem %s1, 816
  %s168 = scalar_lea.vmem %s0, 1120
  %v169 = vld [vmem:[%s168] sm:$0xff]
  %s170 = scalar_lea.vmem %s1, 1584
  %s171 = scalar_lea.vmem %s0, 3680
  %v172 = vld [vmem:[%s171] sm:$0xff]
  %s173 = scalar_lea.vmem %s1, 304
  %s174 = scalar_lea.vmem %s0, 2144
  %v175 = vld [vmem:[%s174] sm:$0xff]
  %s176 = scalar_lea.vmem %s1, 1072
  %s177 = scalar_lea.vmem %s0, 608
  %v178 = vld [vmem:[%s177] sm:$0xff]
  %s179 = scalar_lea.vmem %s1, 1840
  %s180 = scalar_lea.vmem %s0, 3168
  %v181 = vld [vmem:[%s180] sm:$0xff]
  %s182 = scalar_lea.vmem %s1, 560
  %s183 = scalar_lea.vmem %s0, 1632
  %v184 = vld [vmem:[%s183] sm:$0xff]
  %s185 = scalar_lea.vmem %s1, 1328
  %s186 = scalar_lea.vmem %s0, 96
  %v187 = vld [vmem:[%s186] sm:$0xff]
  %s188 = scalar_lea.vmem %s1, 2096
  %s189 = scalar_lea.vmem %s0, 4208
  %v190 = vld [vmem:[%s189] sm:$0xff]
  %s191 = scalar_lea.vmem %s1, 56
  %s192 = scalar_lea.vmem %s0, 2672
  %v193 = vld [vmem:[%s192] sm:$0xff]
  %s194 = scalar_lea.vmem %s1, 824
  %s195 = scalar_lea.vmem %s0, 1136
  %v196 = vld [vmem:[%s195] sm:$0xff]
  %s197 = scalar_lea.vmem %s1, 1592
  %s198 = scalar_lea.vmem %s0, 3696
  %v199 = vld [vmem:[%s198] sm:$0xff]
  %s200 = scalar_lea.vmem %s1, 312
  %s201 = scalar_lea.vmem %s0, 2160
  %v202 = vld [vmem:[%s201] sm:$0xff]
  %s203 = scalar_lea.vmem %s1, 1080
  %s204 = scalar_lea.vmem %s0, 624
  %v205 = vld [vmem:[%s204] sm:$0xff]
  %s206 = scalar_lea.vmem %s1, 1848
  %s207 = scalar_lea.vmem %s0, 3184
  %v208 = vld [vmem:[%s207] sm:$0xff]
  %s209 = scalar_lea.vmem %s1, 568
  %s210 = scalar_lea.vmem %s0, 1648
  %v211 = vld [vmem:[%s210] sm:$0xff]
  %s212 = scalar_lea.vmem %s1, 1336
  %s213 = scalar_lea.vmem %s0, 112
  %v214 = vld [vmem:[%s213] sm:$0xff]
  %s215 = scalar_lea.vmem %s1, 2104
  %s216 = scalar_lea.vmem %s0, 4224
  %v217 = vld [vmem:[%s216] sm:$0xff]
  %s218 = scalar_lea.vmem %s1, 64
  %s219 = scalar_lea.vmem %s0, 2688
  %v220 = vld [vmem:[%s219] sm:$0xff]
  %s221 = scalar_lea.vmem %s1, 832
  %s222 = scalar_lea.vmem %s0, 1152
  %v223 = vld [vmem:[%s222] sm:$0xff]
  %s224 = scalar_lea.vmem %s1, 1600
  %s225 = scalar_lea.vmem %s0, 3712
  %v226 = vld [vmem:[%s225] sm:$0xff]
  %s227 = scalar_lea.vmem %s1, 320
  %s228 = scalar_lea.vmem %s0, 2176
  %v229 = vld [vmem:[%s228] sm:$0xff]
  %s230 = scalar_lea.vmem %s1, 1088
  %s231 = scalar_lea.vmem %s0, 640
  %v232 = vld [vmem:[%s231] sm:$0xff]
  %s233 = scalar_lea.vmem %s1, 1856
  %s234 = scalar_lea.vmem %s0, 3200
  %v235 = vld [vmem:[%s234] sm:$0xff]
  %s236 = scalar_lea.vmem %s1, 576
  %s237 = scalar_lea.vmem %s0, 1664
  %v238 = vld [vmem:[%s237] sm:$0xff]
  %s239 = scalar_lea.vmem %s1, 1344
  %s240 = scalar_lea.vmem %s0, 128
  %v241 = vld [vmem:[%s240] sm:$0xff]
  %s242 = scalar_lea.vmem %s1, 2112
  %s243 = scalar_lea.vmem %s0, 4240
  %v244 = vld [vmem:[%s243] sm:$0xff]
  %s245 = scalar_lea.vmem %s1, 72
  %s246 = scalar_lea.vmem %s0, 2704
  %v247 = vld [vmem:[%s246] sm:$0xff]
  %s248 = scalar_lea.vmem %s1, 840
  %s249 = scalar_lea.vmem %s0, 1168
  %v250 = vld [vmem:[%s249] sm:$0xff]
  %s251 = scalar_lea.vmem %s1, 1608
  %s252 = scalar_lea.vmem %s0, 3728
  %v253 = vld [vmem:[%s252] sm:$0xff]
  %s254 = scalar_lea.vmem %s1, 328
  %s255 = scalar_lea.vmem %s0, 2192
  %v256 = vld [vmem:[%s255] sm:$0xff]
  %s257 = scalar_lea.vmem %s1, 1096
  %s258 = scalar_lea.vmem %s0, 656
  %v259 = vld [vmem:[%s258] sm:$0xff]
  %s260 = scalar_lea.vmem %s1, 1864
  %s261 = scalar_lea.vmem %s0, 3216
  %v262 = vld [vmem:[%s261] sm:$0xff]
  %s263 = scalar_lea.vmem %s1, 584
  %s264 = scalar_lea.vmem %s0, 1680
  %v265 = vld [vmem:[%s264] sm:$0xff]
  %s266 = scalar_lea.vmem %s1, 1352
  %s267 = scalar_lea.vmem %s0, 144
  %v268 = vld [vmem:[%s267] sm:$0xff]
  %s269 = scalar_lea.vmem %s1, 2120
  %s270 = scalar_lea.vmem %s0, 4256
  %v271 = vld [vmem:[%s270] sm:$0xff]
  %s272 = scalar_lea.vmem %s1, 80
  %s273 = scalar_lea.vmem %s0, 2720
  %v274 = vld [vmem:[%s273] sm:$0xff]
  %s275 = scalar_lea.vmem %s1, 848
  %s276 = scalar_lea.vmem %s0, 1184
  %v277 = vld [vmem:[%s276] sm:$0xff]
  %s278 = scalar_lea.vmem %s1, 1616
  %s279 = scalar_lea.vmem %s0, 3744
  %v280 = vld [vmem:[%s279] sm:$0xff]
  %s281 = scalar_lea.vmem %s1, 336
  %s282 = scalar_lea.vmem %s0, 2208
  %v283 = vld [vmem:[%s282] sm:$0xff]
  %s284 = scalar_lea.vmem %s1, 1104
  %s285 = scalar_lea.vmem %s0, 672
  %v286 = vld [vmem:[%s285] sm:$0xff]
  %s287 = scalar_lea.vmem %s1, 1872
  %s288 = scalar_lea.vmem %s0, 3232
  %v289 = vld [vmem:[%s288] sm:$0xff]
  %s290 = scalar_lea.vmem %s1, 592
  %s291 = scalar_lea.vmem %s0, 1696
  %v292 = vld [vmem:[%s291] sm:$0xff]
  %s293 = scalar_lea.vmem %s1, 1360
  %s294 = scalar_lea.vmem %s0, 160
  %v295 = vld [vmem:[%s294] sm:$0xff]
  %s296 = scalar_lea.vmem %s1, 2128
  %s297 = scalar_lea.vmem %s0, 4272
  %v298 = vld [vmem:[%s297] sm:$0xff]
  %s299 = scalar_lea.vmem %s1, 88
  %s300 = scalar_lea.vmem %s0, 2736
  %v301 = vld [vmem:[%s300] sm:$0xff]
  %s302 = scalar_lea.vmem %s1, 856
  %s303 = scalar_lea.vmem %s0, 1200
  %v304 = vld [vmem:[%s303] sm:$0xff]
  %s305 = scalar_lea.vmem %s1, 1624
  %s306 = scalar_lea.vmem %s0, 3760
  %v307 = vld [vmem:[%s306] sm:$0xff]
  %s308 = scalar_lea.vmem %s1, 344
  %s309 = scalar_lea.vmem %s0, 2224
  %v310 = vld [vmem:[%s309] sm:$0xff]
  %s311 = scalar_lea.vmem %s1, 1112
  %s312 = scalar_lea.vmem %s0, 688
  %v313 = vld [vmem:[%s312] sm:$0xff]
  %s314 = scalar_lea.vmem %s1, 1880
  %s315 = scalar_lea.vmem %s0, 3248
  %v316 = vld [vmem:[%s315] sm:$0xff]
  %s317 = scalar_lea.vmem %s1, 600
  %s318 = scalar_lea.vmem %s0, 1712
  %v319 = vld [vmem:[%s318] sm:$0xff]
  %s320 = scalar_lea.vmem %s1, 1368
  %s321 = scalar_lea.vmem %s0, 176
  %v322 = vld [vmem:[%s321] sm:$0xff]
  %s323 = scalar_lea.vmem %s1, 2136
  %s324 = scalar_lea.vmem %s0, 4288
  %v325 = vld [vmem:[%s324] sm:$0xff]
  %s326 = scalar_lea.vmem %s1, 96
  %s327 = scalar_lea.vmem %s0, 2752
  %v328 = vld [vmem:[%s327] sm:$0xff]
  %s329 = scalar_lea.vmem %s1, 864
  %s330 = scalar_lea.vmem %s0, 1216
  %v331 = vld [vmem:[%s330] sm:$0xff]
  %s332 = scalar_lea.vmem %s1, 1632
  %s333 = scalar_lea.vmem %s0, 3776
  %v334 = vld [vmem:[%s333] sm:$0xff]
  %s335 = scalar_lea.vmem %s1, 352
  %s336 = scalar_lea.vmem %s0, 2240
  %v337 = vld [vmem:[%s336] sm:$0xff]
  %s338 = scalar_lea.vmem %s1, 1120
  %s339 = scalar_lea.vmem %s0, 704
  %v340 = vld [vmem:[%s339] sm:$0xff]
  %s341 = scalar_lea.vmem %s1, 1888
  %s342 = scalar_lea.vmem %s0, 3264
  %v343 = vld [vmem:[%s342] sm:$0xff]
  %s344 = scalar_lea.vmem %s1, 608
  %s345 = scalar_lea.vmem %s0, 1728
  %v346 = vld [vmem:[%s345] sm:$0xff]
  %s347 = scalar_lea.vmem %s1, 1376
  %s348 = scalar_lea.vmem %s0, 192
  %v349 = vld [vmem:[%s348] sm:$0xff]
  %s350 = scalar_lea.vmem %s1, 2144
  %s351 = scalar_lea.vmem %s0, 4304
  %v352 = vld [vmem:[%s351] sm:$0xff]
  %s353 = scalar_lea.vmem %s1, 104
  %s354 = scalar_lea.vmem %s0, 2768
  %v355 = vld [vmem:[%s354] sm:$0xff]
  %s356 = scalar_lea.vmem %s1, 872
  %s357 = scalar_lea.vmem %s0, 1232
  %v358 = vld [vmem:[%s357] sm:$0xff]
  %s359 = scalar_lea.vmem %s1, 1640
  %s360 = scalar_lea.vmem %s0, 3792
  %v361 = vld [vmem:[%s360] sm:$0xff]
  %s362 = scalar_lea.vmem %s1, 360
  %s363 = scalar_lea.vmem %s0, 2256
  %v364 = vld [vmem:[%s363] sm:$0xff]
  %s365 = scalar_lea.vmem %s1, 1128
  %s366 = scalar_lea.vmem %s0, 720
  %v367 = vld [vmem:[%s366] sm:$0xff]
  %s368 = scalar_lea.vmem %s1, 1896
  %s369 = scalar_lea.vmem %s0, 3280
  %v370 = vld [vmem:[%s369] sm:$0xff]
  %s371 = scalar_lea.vmem %s1, 616
  %s372 = scalar_lea.vmem %s0, 1744
  %v373 = vld [vmem:[%s372] sm:$0xff]
  %s374 = scalar_lea.vmem %s1, 1384
  %s375 = scalar_lea.vmem %s0, 208
  %v376 = vld [vmem:[%s375] sm:$0xff]
  %s377 = scalar_lea.vmem %s1, 2152
  %s378 = scalar_lea.vmem %s0, 4320
  %v379 = vld [vmem:[%s378] sm:$0xff]
  %s380 = scalar_lea.vmem %s1, 112
  %s381 = scalar_lea.vmem %s0, 2784
  %v382 = vld [vmem:[%s381] sm:$0xff]
  %s383 = scalar_lea.vmem %s1, 880
  %s384 = scalar_lea.vmem %s0, 1248
  %v385 = vld [vmem:[%s384] sm:$0xff]
  %s386 = scalar_lea.vmem %s1, 1648
  %s387 = scalar_lea.vmem %s0, 3808
  %v388 = vld [vmem:[%s387] sm:$0xff]
  %s389 = scalar_lea.vmem %s1, 368
  %s390 = scalar_lea.vmem %s0, 2272
  %v391 = vld [vmem:[%s390] sm:$0xff]
  %s392 = scalar_lea.vmem %s1, 1136
  %s393 = scalar_lea.vmem %s0, 736
  %v394 = vld [vmem:[%s393] sm:$0xff]
  %s395 = scalar_lea.vmem %s1, 1904
  %s396 = scalar_lea.vmem %s0, 3296
  %v397 = vld [vmem:[%s396] sm:$0xff]
  %s398 = scalar_lea.vmem %s1, 624
  %s399 = scalar_lea.vmem %s0, 1760
  %v400 = vld [vmem:[%s399] sm:$0xff]
  %s401 = scalar_lea.vmem %s1, 1392
  %s402 = scalar_lea.vmem %s0, 224
  %v403 = vld [vmem:[%s402] sm:$0xff]
  %s404 = scalar_lea.vmem %s1, 2160
  %s405 = scalar_lea.vmem %s0, 4336
  %v406 = vld [vmem:[%s405] sm:$0xff]
  %s407 = scalar_lea.vmem %s1, 120
  %s408 = scalar_lea.vmem %s0, 2800
  %v409 = vld [vmem:[%s408] sm:$0xff]
  %s410 = scalar_lea.vmem %s1, 888
  %s411 = scalar_lea.vmem %s0, 1264
  %v412 = vld [vmem:[%s411] sm:$0xff]
  %s413 = scalar_lea.vmem %s1, 1656
  %s414 = scalar_lea.vmem %s0, 3824
  %v415 = vld [vmem:[%s414] sm:$0xff]
  %s416 = scalar_lea.vmem %s1, 376
  %s417 = scalar_lea.vmem %s0, 2288
  %v418 = vld [vmem:[%s417] sm:$0xff]
  %s419 = scalar_lea.vmem %s1, 1144
  %s420 = scalar_lea.vmem %s0, 752
  %v421 = vld [vmem:[%s420] sm:$0xff]
  %s422 = scalar_lea.vmem %s1, 1912
  %s423 = scalar_lea.vmem %s0, 3312
  %v424 = vld [vmem:[%s423] sm:$0xff]
  %s425 = scalar_lea.vmem %s1, 632
  %s426 = scalar_lea.vmem %s0, 1776
  %v427 = vld [vmem:[%s426] sm:$0xff]
  %s428 = scalar_lea.vmem %s1, 1400
  %s429 = scalar_lea.vmem %s0, 240
  %v430 = vld [vmem:[%s429] sm:$0xff]
  %s431 = scalar_lea.vmem %s1, 2168
  %s432 = scalar_lea.vmem %s0, 4352
  %v433 = vld [vmem:[%s432] sm:$0xff]
  %s434 = scalar_lea.vmem %s1, 128
  %s435 = scalar_lea.vmem %s0, 2816
  %v436 = vld [vmem:[%s435] sm:$0xff]
  %s437 = scalar_lea.vmem %s1, 896
  %s438 = scalar_lea.vmem %s0, 1280
  %v439 = vld [vmem:[%s438] sm:$0xff]
  %s440 = scalar_lea.vmem %s1, 1664
  %s441 = scalar_lea.vmem %s0, 3840
  %v442 = vld [vmem:[%s441] sm:$0xff]
  %s443 = scalar_lea.vmem %s1, 384
  %s444 = scalar_lea.vmem %s0, 2304
  %v445 = vld [vmem:[%s444] sm:$0xff]
  %s446 = scalar_lea.vmem %s1, 1152
  %s447 = scalar_lea.vmem %s0, 768
  %v448 = vld [vmem:[%s447] sm:$0xff]
  %s449 = scalar_lea.vmem %s1, 1920
  %s450 = scalar_lea.vmem %s0, 3328
  %v451 = vld [vmem:[%s450] sm:$0xff]
  %s452 = scalar_lea.vmem %s1, 640
  %s453 = scalar_lea.vmem %s0, 1792
  %v454 = vld [vmem:[%s453] sm:$0xff]
  %s455 = scalar_lea.vmem %s1, 1408
  %s456 = scalar_lea.vmem %s0, 256
  %v457 = vld [vmem:[%s456] sm:$0xff]
  %s458 = scalar_lea.vmem %s1, 2176
  %s459 = scalar_lea.vmem %s0, 4368
  %v460 = vld [vmem:[%s459] sm:$0xff]
  %s461 = scalar_lea.vmem %s1, 136
  %s462 = scalar_lea.vmem %s0, 2832
  %v463 = vld [vmem:[%s462] sm:$0xff]
  %s464 = scalar_lea.vmem %s1, 904
  %s465 = scalar_lea.vmem %s0, 1296
  %v466 = vld [vmem:[%s465] sm:$0xff]
  %s467 = scalar_lea.vmem %s1, 1672
  %s468 = scalar_lea.vmem %s0, 3856
  %v469 = vld [vmem:[%s468] sm:$0xff]
  %s470 = scalar_lea.vmem %s1, 392
  %s471 = scalar_lea.vmem %s0, 2320
  %v472 = vld [vmem:[%s471] sm:$0xff]
  %s473 = scalar_lea.vmem %s1, 1160
  %s474 = scalar_lea.vmem %s0, 784
  %v475 = vld [vmem:[%s474] sm:$0xff]
  %s476 = scalar_lea.vmem %s1, 1928
  %s477 = scalar_lea.vmem %s0, 3344
  %v478 = vld [vmem:[%s477] sm:$0xff]
  %s479 = scalar_lea.vmem %s1, 648
  %s480 = scalar_lea.vmem %s0, 1808
  %v481 = vld [vmem:[%s480] sm:$0xff]
  %s482 = scalar_lea.vmem %s1, 1416
  %s483 = scalar_lea.vmem %s0, 272
  %v484 = vld [vmem:[%s483] sm:$0xff]
  %s485 = scalar_lea.vmem %s1, 2184
  %s486 = scalar_lea.vmem %s0, 4384
  %v487 = vld [vmem:[%s486] sm:$0xff]
  %s488 = scalar_lea.vmem %s1, 144
  %s489 = scalar_lea.vmem %s0, 2848
  %v490 = vld [vmem:[%s489] sm:$0xff]
  %s491 = scalar_lea.vmem %s1, 912
  %s492 = scalar_lea.vmem %s0, 1312
  %v493 = vld [vmem:[%s492] sm:$0xff]
  %s494 = scalar_lea.vmem %s1, 1680
  %s495 = scalar_lea.vmem %s0, 3872
  %v496 = vld [vmem:[%s495] sm:$0xff]
  %s497 = scalar_lea.vmem %s1, 400
  %s498 = scalar_lea.vmem %s0, 2336
  %v499 = vld [vmem:[%s498] sm:$0xff]
  %s500 = scalar_lea.vmem %s1, 1168
  %s501 = scalar_lea.vmem %s0, 800
  %v502 = vld [vmem:[%s501] sm:$0xff]
  %s503 = scalar_lea.vmem %s1, 1936
  %s504 = scalar_lea.vmem %s0, 3360
  %v505 = vld [vmem:[%s504] sm:$0xff]
  %s506 = scalar_lea.vmem %s1, 656
  %s507 = scalar_lea.vmem %s0, 1824
  %v508 = vld [vmem:[%s507] sm:$0xff]
  %s509 = scalar_lea.vmem %s1, 1424
  %s510 = scalar_lea.vmem %s0, 288
  %v511 = vld [vmem:[%s510] sm:$0xff]
  %s512 = scalar_lea.vmem %s1, 2192
  %s513 = scalar_lea.vmem %s0, 4400
  %v514 = vld [vmem:[%s513] sm:$0xff]
  %s515 = scalar_lea.vmem %s1, 152
  %s516 = scalar_lea.vmem %s0, 2864
  %v517 = vld [vmem:[%s516] sm:$0xff]
  %s518 = scalar_lea.vmem %s1, 920
  %s519 = scalar_lea.vmem %s0, 1328
  %v520 = vld [vmem:[%s519] sm:$0xff]
  %s521 = scalar_lea.vmem %s1, 1688
  %s522 = scalar_lea.vmem %s0, 3888
  %v523 = vld [vmem:[%s522] sm:$0xff]
  %s524 = scalar_lea.vmem %s1, 408
  %s525 = scalar_lea.vmem %s0, 2352
  %v526 = vld [vmem:[%s525] sm:$0xff]
  %s527 = scalar_lea.vmem %s1, 1176
  %s528 = scalar_lea.vmem %s0, 816
  %v529 = vld [vmem:[%s528] sm:$0xff]
  %s530 = scalar_lea.vmem %s1, 1944
  %s531 = scalar_lea.vmem %s0, 3376
  %v532 = vld [vmem:[%s531] sm:$0xff]
  %s533 = scalar_lea.vmem %s1, 664
  %s534 = scalar_lea.vmem %s0, 1840
  %v535 = vld [vmem:[%s534] sm:$0xff]
  %s536 = scalar_lea.vmem %s1, 1432
  %s537 = scalar_lea.vmem %s0, 304
  %v538 = vld [vmem:[%s537] sm:$0xff]
  %s539 = scalar_lea.vmem %s1, 2200
  %s540 = scalar_lea.vmem %s0, 4416
  %v541 = vld [vmem:[%s540] sm:$0xff]
  %s542 = scalar_lea.vmem %s1, 160
  %s543 = scalar_lea.vmem %s0, 2880
  %v544 = vld [vmem:[%s543] sm:$0xff]
  %s545 = scalar_lea.vmem %s1, 928
  %s546 = scalar_lea.vmem %s0, 1344
  %v547 = vld [vmem:[%s546] sm:$0xff]
  %s548 = scalar_lea.vmem %s1, 1696
  %s549 = scalar_lea.vmem %s0, 3904
  %v550 = vld [vmem:[%s549] sm:$0xff]
  %s551 = scalar_lea.vmem %s1, 416
  %s552 = scalar_lea.vmem %s0, 2368
  %v553 = vld [vmem:[%s552] sm:$0xff]
  %s554 = scalar_lea.vmem %s1, 1184
  %s555 = scalar_lea.vmem %s0, 832
  %v556 = vld [vmem:[%s555] sm:$0xff]
  %s557 = scalar_lea.vmem %s1, 1952
  %s558 = scalar_lea.vmem %s0, 3392
  %v559 = vld [vmem:[%s558] sm:$0xff]
  %s560 = scalar_lea.vmem %s1, 672
  %s561 = scalar_lea.vmem %s0, 1856
  %v562 = vld [vmem:[%s561] sm:$0xff]
  %s563 = scalar_lea.vmem %s1, 1440
  %s564 = scalar_lea.vmem %s0, 320
  %v565 = vld [vmem:[%s564] sm:$0xff]
  %s566 = scalar_lea.vmem %s1, 2208
  %s567 = scalar_lea.vmem %s0, 4432
  %v568 = vld [vmem:[%s567] sm:$0xff]
  %s569 = scalar_lea.vmem %s1, 168
  %s570 = scalar_lea.vmem %s0, 2896
  %v571 = vld [vmem:[%s570] sm:$0xff]
  %s572 = scalar_lea.vmem %s1, 936
  %s573 = scalar_lea.vmem %s0, 1360
  %v574 = vld [vmem:[%s573] sm:$0xff]
  %s575 = scalar_lea.vmem %s1, 1704
  %s576 = scalar_lea.vmem %s0, 3920
  %v577 = vld [vmem:[%s576] sm:$0xff]
  %s578 = scalar_lea.vmem %s1, 424
  %s579 = scalar_lea.vmem %s0, 2384
  %v580 = vld [vmem:[%s579] sm:$0xff]
  %s581 = scalar_lea.vmem %s1, 1192
  %s582 = scalar_lea.vmem %s0, 848
  %v583 = vld [vmem:[%s582] sm:$0xff]
  %s584 = scalar_lea.vmem %s1, 1960
  %s585 = scalar_lea.vmem %s0, 3408
  %v586 = vld [vmem:[%s585] sm:$0xff]
  %s587 = scalar_lea.vmem %s1, 680
  %s588 = scalar_lea.vmem %s0, 1872
  %v589 = vld [vmem:[%s588] sm:$0xff]
  %s590 = scalar_lea.vmem %s1, 1448
  %s591 = scalar_lea.vmem %s0, 336
  %v592 = vld [vmem:[%s591] sm:$0xff]
  %s593 = scalar_lea.vmem %s1, 2216
  %s594 = scalar_lea.vmem %s0, 4448
  %v595 = vld [vmem:[%s594] sm:$0xff]
  %s596 = scalar_lea.vmem %s1, 176
  %s597 = scalar_lea.vmem %s0, 2912
  %v598 = vld [vmem:[%s597] sm:$0xff]
  %s599 = scalar_lea.vmem %s1, 944
  %s600 = scalar_lea.vmem %s0, 1376
  %v601 = vld [vmem:[%s600] sm:$0xff]
  %s602 = scalar_lea.vmem %s1, 1712
  %s603 = scalar_lea.vmem %s0, 3936
  %v604 = vld [vmem:[%s603] sm:$0xff]
  %s605 = scalar_lea.vmem %s1, 432
  %s606 = scalar_lea.vmem %s0, 2400
  %v607 = vld [vmem:[%s606] sm:$0xff]
  %s608 = scalar_lea.vmem %s1, 1200
  %s609 = scalar_lea.vmem %s0, 864
  %v610 = vld [vmem:[%s609] sm:$0xff]
  %s611 = scalar_lea.vmem %s1, 1968
  %s612 = scalar_lea.vmem %s0, 3424
  %v613 = vld [vmem:[%s612] sm:$0xff]
  %s614 = scalar_lea.vmem %s1, 688
  %s615 = scalar_lea.vmem %s0, 1888
  %v616 = vld [vmem:[%s615] sm:$0xff]
  %s617 = scalar_lea.vmem %s1, 1456
  %s618 = scalar_lea.vmem %s0, 352
  %v619 = vld [vmem:[%s618] sm:$0xff]
  %s620 = scalar_lea.vmem %s1, 2224
  %s621 = scalar_lea.vmem %s0, 4464
  %v622 = vld [vmem:[%s621] sm:$0xff]
  %s623 = scalar_lea.vmem %s1, 184
  %s624 = scalar_lea.vmem %s0, 2928
  %v625 = vld [vmem:[%s624] sm:$0xff]
  %s626 = scalar_lea.vmem %s1, 952
  %s627 = scalar_lea.vmem %s0, 1392
  %v628 = vld [vmem:[%s627] sm:$0xff]
  %s629 = scalar_lea.vmem %s1, 1720
  %s630 = scalar_lea.vmem %s0, 3952
  %v631 = vld [vmem:[%s630] sm:$0xff]
  %s632 = scalar_lea.vmem %s1, 440
  %s633 = scalar_lea.vmem %s0, 2416
  %v634 = vld [vmem:[%s633] sm:$0xff]
  %s635 = scalar_lea.vmem %s1, 1208
  %s636 = scalar_lea.vmem %s0, 880
  %v637 = vld [vmem:[%s636] sm:$0xff]
  %s638 = scalar_lea.vmem %s1, 1976
  %s639 = scalar_lea.vmem %s0, 3440
  %v640 = vld [vmem:[%s639] sm:$0xff]
  %s641 = scalar_lea.vmem %s1, 696
  %s642 = scalar_lea.vmem %s0, 1904
  %v643 = vld [vmem:[%s642] sm:$0xff]
  %s644 = scalar_lea.vmem %s1, 1464
  %s645 = scalar_lea.vmem %s0, 368
  %v646 = vld [vmem:[%s645] sm:$0xff]
  %s647 = scalar_lea.vmem %s1, 2232
  %s648 = scalar_lea.vmem %s0, 4480
  %v649 = vld [vmem:[%s648] sm:$0xff]
  %s650 = scalar_lea.vmem %s1, 192
  %s651 = scalar_lea.vmem %s0, 2944
  %v652 = vld [vmem:[%s651] sm:$0xff]
  %s653 = scalar_lea.vmem %s1, 960
  %s654 = scalar_lea.vmem %s0, 1408
  %v655 = vld [vmem:[%s654] sm:$0xff]
  %s656 = scalar_lea.vmem %s1, 1728
  %s657 = scalar_lea.vmem %s0, 3968
  %v658 = vld [vmem:[%s657] sm:$0xff]
  %s659 = scalar_lea.vmem %s1, 448
  %s660 = scalar_lea.vmem %s0, 2432
  %v661 = vld [vmem:[%s660] sm:$0xff]
  %s662 = scalar_lea.vmem %s1, 1216
  %s663 = scalar_lea.vmem %s0, 896
  %v664 = vld [vmem:[%s663] sm:$0xff]
  %s665 = scalar_lea.vmem %s1, 1984
  %s666 = scalar_lea.vmem %s0, 3456
  %v667 = vld [vmem:[%s666] sm:$0xff]
  %s668 = scalar_lea.vmem %s1, 704
  %s669 = scalar_lea.vmem %s0, 1920
  %v670 = vld [vmem:[%s669] sm:$0xff]
  %s671 = scalar_lea.vmem %s1, 1472
  %s672 = scalar_lea.vmem %s0, 384
  %v673 = vld [vmem:[%s672] sm:$0xff]
  %s674 = scalar_lea.vmem %s1, 2240
  %s675 = scalar_lea.vmem %s0, 4496
  %v676 = vld [vmem:[%s675] sm:$0xff]
  %s677 = scalar_lea.vmem %s1, 200
  %s678 = scalar_lea.vmem %s0, 2960
  %v679 = vld [vmem:[%s678] sm:$0xff]
  %s680 = scalar_lea.vmem %s1, 968
  %s681 = scalar_lea.vmem %s0, 1424
  %v682 = vld [vmem:[%s681] sm:$0xff]
  %s683 = scalar_lea.vmem %s1, 1736
  %s684 = scalar_lea.vmem %s0, 3984
  %v685 = vld [vmem:[%s684] sm:$0xff]
  %s686 = scalar_lea.vmem %s1, 456
  %s687 = scalar_lea.vmem %s0, 2448
  %v688 = vld [vmem:[%s687] sm:$0xff]
  %s689 = scalar_lea.vmem %s1, 1224
  %s690 = scalar_lea.vmem %s0, 912
  %v691 = vld [vmem:[%s690] sm:$0xff]
  %s692 = scalar_lea.vmem %s1, 1992
  %s693 = scalar_lea.vmem %s0, 3472
  %v694 = vld [vmem:[%s693] sm:$0xff]
  %s695 = scalar_lea.vmem %s1, 712
  %s696 = scalar_lea.vmem %s0, 1936
  %v697 = vld [vmem:[%s696] sm:$0xff]
  %s698 = scalar_lea.vmem %s1, 1480
  %s699 = scalar_lea.vmem %s0, 400
  %v700 = vld [vmem:[%s699] sm:$0xff]
  %s701 = scalar_lea.vmem %s1, 2248
  %s702 = scalar_lea.vmem %s0, 4512
  %v703 = vld [vmem:[%s702] sm:$0xff]
  %s704 = scalar_lea.vmem %s1, 208
  %s705 = scalar_lea.vmem %s0, 2976
  %v706 = vld [vmem:[%s705] sm:$0xff]
  %s707 = scalar_lea.vmem %s1, 976
  %s708 = scalar_lea.vmem %s0, 1440
  %v709 = vld [vmem:[%s708] sm:$0xff]
  %s710 = scalar_lea.vmem %s1, 1744
  %s711 = scalar_lea.vmem %s0, 4000
  %v712 = vld [vmem:[%s711] sm:$0xff]
  %s713 = scalar_lea.vmem %s1, 464
  %s714 = scalar_lea.vmem %s0, 2464
  %v715 = vld [vmem:[%s714] sm:$0xff]
  %s716 = scalar_lea.vmem %s1, 1232
  %s717 = scalar_lea.vmem %s0, 928
  %v718 = vld [vmem:[%s717] sm:$0xff]
  %s719 = scalar_lea.vmem %s1, 2000
  %s720 = scalar_lea.vmem %s0, 3488
  %v721 = vld [vmem:[%s720] sm:$0xff]
  %s722 = scalar_lea.vmem %s1, 720
  %s723 = scalar_lea.vmem %s0, 1952
  %v724 = vld [vmem:[%s723] sm:$0xff]
  %s725 = scalar_lea.vmem %s1, 1488
  %s726 = scalar_lea.vmem %s0, 416
  %v727 = vld [vmem:[%s726] sm:$0xff]
  %s728 = scalar_lea.vmem %s1, 2256
  %s729 = scalar_lea.vmem %s0, 4528
  %v730 = vld [vmem:[%s729] sm:$0xff]
  %s731 = scalar_lea.vmem %s1, 216
  %s732 = scalar_lea.vmem %s0, 2992
  %v733 = vld [vmem:[%s732] sm:$0xff]
  %s734 = scalar_lea.vmem %s1, 984
  %s735 = scalar_lea.vmem %s0, 1456
  %v736 = vld [vmem:[%s735] sm:$0xff]
  %s737 = scalar_lea.vmem %s1, 1752
  %s738 = scalar_lea.vmem %s0, 4016
  %v739 = vld [vmem:[%s738] sm:$0xff]
  %s740 = scalar_lea.vmem %s1, 472
  %s741 = scalar_lea.vmem %s0, 2480
  %v742 = vld [vmem:[%s741] sm:$0xff]
  %s743 = scalar_lea.vmem %s1, 1240
  %s744 = scalar_lea.vmem %s0, 944
  %v745 = vld [vmem:[%s744] sm:$0xff]
  %s746 = scalar_lea.vmem %s1, 2008
  %s747 = scalar_lea.vmem %s0, 3504
  %v748 = vld [vmem:[%s747] sm:$0xff]
  %s749 = scalar_lea.vmem %s1, 728
  %s750 = scalar_lea.vmem %s0, 1968
  %v751 = vld [vmem:[%s750] sm:$0xff]
  %s752 = scalar_lea.vmem %s1, 1496
  %s753 = scalar_lea.vmem %s0, 432
  %v754 = vld [vmem:[%s753] sm:$0xff]
  %s755 = scalar_lea.vmem %s1, 2264
  %s756 = scalar_lea.vmem %s0, 4544
  %v757 = vld [vmem:[%s756] sm:$0xff]
  %s758 = scalar_lea.vmem %s1, 224
  %s759 = scalar_lea.vmem %s0, 3008
  %v760 = vld [vmem:[%s759] sm:$0xff]
  %s761 = scalar_lea.vmem %s1, 992
  %s762 = scalar_lea.vmem %s0, 1472
  %v763 = vld [vmem:[%s762] sm:$0xff]
  %s764 = scalar_lea.vmem %s1, 1760
  %s765 = scalar_lea.vmem %s0, 4032
  %v766 = vld [vmem:[%s765] sm:$0xff]
  %s767 = scalar_lea.vmem %s1, 480
  %s768 = scalar_lea.vmem %s0, 2496
  %v769 = vld [vmem:[%s768] sm:$0xff]
  %s770 = scalar_lea.vmem %s1, 1248
  %s771 = scalar_lea.vmem %s0, 960
  %v772 = vld [vmem:[%s771] sm:$0xff]
  %s773 = scalar_lea.vmem %s1, 2016
  %s774 = scalar_lea.vmem %s0, 3520
  %v775 = vld [vmem:[%s774] sm:$0xff]
  %s776 = scalar_lea.vmem %s1, 736
  %s777 = scalar_lea.vmem %s0, 1984
  %v778 = vld [vmem:[%s777] sm:$0xff]
  %s779 = scalar_lea.vmem %s1, 1504
  %s780 = scalar_lea.vmem %s0, 448
  %v781 = vld [vmem:[%s780] sm:$0xff]
  %s782 = scalar_lea.vmem %s1, 2272
  %s783 = scalar_lea.vmem %s0, 4560
  %v784 = vld [vmem:[%s783] sm:$0xff]
  %s785 = scalar_lea.vmem %s1, 232
  %s786 = scalar_lea.vmem %s0, 3024
  %v787 = vld [vmem:[%s786] sm:$0xff]
  %s788 = scalar_lea.vmem %s1, 1000
  %s789 = scalar_lea.vmem %s0, 1488
  %v790 = vld [vmem:[%s789] sm:$0xff]
  %s791 = scalar_lea.vmem %s1, 1768
  %s792 = scalar_lea.vmem %s0, 4048
  %v793 = vld [vmem:[%s792] sm:$0xff]
  %s794 = scalar_lea.vmem %s1, 488
  %s795 = scalar_lea.vmem %s0, 2512
  %v796 = vld [vmem:[%s795] sm:$0xff]
  %s797 = scalar_lea.vmem %s1, 1256
  %s798 = scalar_lea.vmem %s0, 976
  %v799 = vld [vmem:[%s798] sm:$0xff]
  %s800 = scalar_lea.vmem %s1, 2024
  %s801 = scalar_lea.vmem %s0, 3536
  %v802 = vld [vmem:[%s801] sm:$0xff]
  %s803 = scalar_lea.vmem %s1, 744
  %s804 = scalar_lea.vmem %s0, 2000
  %v805 = vld [vmem:[%s804] sm:$0xff]
  %s806 = scalar_lea.vmem %s1, 1512
  %s807 = scalar_lea.vmem %s0, 464
  %v808 = vld [vmem:[%s807] sm:$0xff]
  %s809 = scalar_lea.vmem %s1, 2280
  %s810 = scalar_lea.vmem %s0, 4576
  %v811 = vld [vmem:[%s810] sm:$0xff]
  %s812 = scalar_lea.vmem %s1, 240
  %s813 = scalar_lea.vmem %s0, 3040
  %v814 = vld [vmem:[%s813] sm:$0xff]
  %s815 = scalar_lea.vmem %s1, 1008
  %s816 = scalar_lea.vmem %s0, 1504
  %v817 = vld [vmem:[%s816] sm:$0xff]
  %s818 = scalar_lea.vmem %s1, 1776
  %s819 = scalar_lea.vmem %s0, 4064
  %v820 = vld [vmem:[%s819] sm:$0xff]
  %s821 = scalar_lea.vmem %s1, 496
  %s822 = scalar_lea.vmem %s0, 2528
  %v823 = vld [vmem:[%s822] sm:$0xff]
  %s824 = scalar_lea.vmem %s1, 1264
  %s825 = scalar_lea.vmem %s0, 992
  %v826 = vld [vmem:[%s825] sm:$0xff]
  %s827 = scalar_lea.vmem %s1, 2032
  %s828 = scalar_lea.vmem %s0, 3552
  %v829 = vld [vmem:[%s828] sm:$0xff]
  %s830 = scalar_lea.vmem %s1, 752
  %s831 = scalar_lea.vmem %s0, 2016
  %v832 = vld [vmem:[%s831] sm:$0xff]
  %s833 = scalar_lea.vmem %s1, 1520
  %s834 = scalar_lea.vmem %s0, 480
  %v835 = vld [vmem:[%s834] sm:$0xff]
  %s836 = scalar_lea.vmem %s1, 2288
  %s837 = scalar_lea.vmem %s0, 4592
  %v838 = vld [vmem:[%s837] sm:$0xff]
  %s839 = scalar_lea.vmem %s1, 248
  %s840 = scalar_lea.vmem %s0, 3056
  %v841 = vld [vmem:[%s840] sm:$0xff]
  %s842 = scalar_lea.vmem %s1, 1016
  %s843 = scalar_lea.vmem %s0, 1520
  %v844 = vld [vmem:[%s843] sm:$0xff]
  %s845 = scalar_lea.vmem %s1, 1784
  %s846 = scalar_lea.vmem %s0, 4080
  %v847 = vld [vmem:[%s846] sm:$0xff]
  %s848 = scalar_lea.vmem %s1, 504
  %s849 = scalar_lea.vmem %s0, 2544
  %v850 = vld [vmem:[%s849] sm:$0xff]
  %s851 = scalar_lea.vmem %s1, 1272
  %s852 = scalar_lea.vmem %s0, 1008
  %v853 = vld [vmem:[%s852] sm:$0xff]
  %s854 = scalar_lea.vmem %s1, 2040
  %s855 = scalar_lea.vmem %s0, 3568
  %v856 = vld [vmem:[%s855] sm:$0xff]
  %s857 = scalar_lea.vmem %s1, 760
  %s858 = scalar_lea.vmem %s0, 2032
  %v859 = vld [vmem:[%s858] sm:$0xff]
  %s860 = scalar_lea.vmem %s1, 1528
  %s861 = scalar_lea.vmem %s0, 496
  %v862 = vld [vmem:[%s861] sm:$0xff]
  %s863 = scalar_lea.vmem %s1, 2296
  %s864 = scalar_lea.vmem %s0, 4104
  %v865 = vld [vmem:[%s864] sm:$0xff]
  %s866 = scalar_lea.vmem %s1, 4
  %s867 = scalar_lea.vmem %s866, 4294967292
  %v868 = vpack.c.bf16 %v865, %v3
  %869 = vst [vmem:[%s867] sm:$0xff] %v868
  %s870 = scalar_lea.vmem %s0, 2568
  %v871 = vld [vmem:[%s870] sm:$0xff]
  %s872 = scalar_lea.vmem %s1, 772
  %s873 = scalar_lea.vmem %s872, 4294967292
  %v874 = vpack.c.bf16 %v871, %v5
  %875 = vst [vmem:[%s873] sm:$0xff] %v874
  %s876 = scalar_lea.vmem %s0, 1032
  %v877 = vld [vmem:[%s876] sm:$0xff]
  %s878 = scalar_lea.vmem %s1, 1540
  %s879 = scalar_lea.vmem %s878, 4294967292
  %v880 = vpack.c.bf16 %v877, %v8
  %881 = vst [vmem:[%s879] sm:$0xff] %v880
  %s882 = scalar_lea.vmem %s0, 3592
  %v883 = vld [vmem:[%s882] sm:$0xff]
  %s884 = scalar_lea.vmem %s1, 260
  %s885 = scalar_lea.vmem %s884, 4294967292
  %v886 = vpack.c.bf16 %v883, %v11
  %887 = vst [vmem:[%s885] sm:$0xff] %v886
  %s888 = scalar_lea.vmem %s0, 2056
  %v889 = vld [vmem:[%s888] sm:$0xff]
  %s890 = scalar_lea.vmem %s1, 1028
  %s891 = scalar_lea.vmem %s890, 4294967292
  %v892 = vpack.c.bf16 %v889, %v14
  %893 = vst [vmem:[%s891] sm:$0xff] %v892
  %s894 = scalar_lea.vmem %s0, 520
  %v895 = vld [vmem:[%s894] sm:$0xff]
  %s896 = scalar_lea.vmem %s1, 1796
  %s897 = scalar_lea.vmem %s896, 4294967292
  %v898 = vpack.c.bf16 %v895, %v17
  %899 = vst [vmem:[%s897] sm:$0xff] %v898
  %s900 = scalar_lea.vmem %s0, 3080
  %v901 = vld [vmem:[%s900] sm:$0xff]
  %s902 = scalar_lea.vmem %s1, 516
  %s903 = scalar_lea.vmem %s902, 4294967292
  %v904 = vpack.c.bf16 %v901, %v20
  %905 = vst [vmem:[%s903] sm:$0xff] %v904
  %s906 = scalar_lea.vmem %s0, 1544
  %v907 = vld [vmem:[%s906] sm:$0xff]
  %s908 = scalar_lea.vmem %s1, 1284
  %s909 = scalar_lea.vmem %s908, 4294967292
  %v910 = vpack.c.bf16 %v907, %v23
  %911 = vst [vmem:[%s909] sm:$0xff] %v910
  %s912 = scalar_lea.vmem %s0, 8
  %v913 = vld [vmem:[%s912] sm:$0xff]
  %s914 = scalar_lea.vmem %s1, 2052
  %s915 = scalar_lea.vmem %s914, 4294967292
  %v916 = vpack.c.bf16 %v913, %v25
  %917 = vst [vmem:[%s915] sm:$0xff] %v916
  %s918 = scalar_lea.vmem %s0, 4120
  %v919 = vld [vmem:[%s918] sm:$0xff]
  %s920 = scalar_lea.vmem %s1, 12
  %s921 = scalar_lea.vmem %s920, 4294967292
  %v922 = vpack.c.bf16 %v919, %v28
  %923 = vst [vmem:[%s921] sm:$0xff] %v922
  %s924 = scalar_lea.vmem %s0, 2584
  %v925 = vld [vmem:[%s924] sm:$0xff]
  %s926 = scalar_lea.vmem %s1, 780
  %s927 = scalar_lea.vmem %s926, 4294967292
  %v928 = vpack.c.bf16 %v925, %v31
  %929 = vst [vmem:[%s927] sm:$0xff] %v928
  %s930 = scalar_lea.vmem %s0, 1048
  %v931 = vld [vmem:[%s930] sm:$0xff]
  %s932 = scalar_lea.vmem %s1, 1548
  %s933 = scalar_lea.vmem %s932, 4294967292
  %v934 = vpack.c.bf16 %v931, %v34
  %935 = vst [vmem:[%s933] sm:$0xff] %v934
  %s936 = scalar_lea.vmem %s0, 3608
  %v937 = vld [vmem:[%s936] sm:$0xff]
  %s938 = scalar_lea.vmem %s1, 268
  %s939 = scalar_lea.vmem %s938, 4294967292
  %v940 = vpack.c.bf16 %v937, %v37
  %941 = vst [vmem:[%s939] sm:$0xff] %v940
  %s942 = scalar_lea.vmem %s0, 2072
  %v943 = vld [vmem:[%s942] sm:$0xff]
  %s944 = scalar_lea.vmem %s1, 1036
  %s945 = scalar_lea.vmem %s944, 4294967292
  %v946 = vpack.c.bf16 %v943, %v40
  %947 = vst [vmem:[%s945] sm:$0xff] %v946
  %s948 = scalar_lea.vmem %s0, 536
  %v949 = vld [vmem:[%s948] sm:$0xff]
  %s950 = scalar_lea.vmem %s1, 1804
  %s951 = scalar_lea.vmem %s950, 4294967292
  %v952 = vpack.c.bf16 %v949, %v43
  %953 = vst [vmem:[%s951] sm:$0xff] %v952
  %s954 = scalar_lea.vmem %s0, 3096
  %v955 = vld [vmem:[%s954] sm:$0xff]
  %s956 = scalar_lea.vmem %s1, 524
  %s957 = scalar_lea.vmem %s956, 4294967292
  %v958 = vpack.c.bf16 %v955, %v46
  %959 = vst [vmem:[%s957] sm:$0xff] %v958
  %s960 = scalar_lea.vmem %s0, 1560
  %v961 = vld [vmem:[%s960] sm:$0xff]
  %s962 = scalar_lea.vmem %s1, 1292
  %s963 = scalar_lea.vmem %s962, 4294967292
  %v964 = vpack.c.bf16 %v961, %v49
  %965 = vst [vmem:[%s963] sm:$0xff] %v964
  %s966 = scalar_lea.vmem %s0, 24
  %v967 = vld [vmem:[%s966] sm:$0xff]
  %s968 = scalar_lea.vmem %s1, 2060
  %s969 = scalar_lea.vmem %s968, 4294967292
  %v970 = vpack.c.bf16 %v967, %v52
  %971 = vst [vmem:[%s969] sm:$0xff] %v970
  %s972 = scalar_lea.vmem %s0, 4136
  %v973 = vld [vmem:[%s972] sm:$0xff]
  %s974 = scalar_lea.vmem %s1, 20
  %s975 = scalar_lea.vmem %s974, 4294967292
  %v976 = vpack.c.bf16 %v973, %v55
  %977 = vst [vmem:[%s975] sm:$0xff] %v976
  %s978 = scalar_lea.vmem %s0, 2600
  %v979 = vld [vmem:[%s978] sm:$0xff]
  %s980 = scalar_lea.vmem %s1, 788
  %s981 = scalar_lea.vmem %s980, 4294967292
  %v982 = vpack.c.bf16 %v979, %v58
  %983 = vst [vmem:[%s981] sm:$0xff] %v982
  %s984 = scalar_lea.vmem %s0, 1064
  %v985 = vld [vmem:[%s984] sm:$0xff]
  %s986 = scalar_lea.vmem %s1, 1556
  %s987 = scalar_lea.vmem %s986, 4294967292
  %v988 = vpack.c.bf16 %v985, %v61
  %989 = vst [vmem:[%s987] sm:$0xff] %v988
  %s990 = scalar_lea.vmem %s0, 3624
  %v991 = vld [vmem:[%s990] sm:$0xff]
  %s992 = scalar_lea.vmem %s1, 276
  %s993 = scalar_lea.vmem %s992, 4294967292
  %v994 = vpack.c.bf16 %v991, %v64
  %995 = vst [vmem:[%s993] sm:$0xff] %v994
  %s996 = scalar_lea.vmem %s0, 2088
  %v997 = vld [vmem:[%s996] sm:$0xff]
  %s998 = scalar_lea.vmem %s1, 1044
  %s999 = scalar_lea.vmem %s998, 4294967292
  %v1000 = vpack.c.bf16 %v997, %v67
  %1001 = vst [vmem:[%s999] sm:$0xff] %v1000
  %s1002 = scalar_lea.vmem %s0, 552
  %v1003 = vld [vmem:[%s1002] sm:$0xff]
  %s1004 = scalar_lea.vmem %s1, 1812
  %s1005 = scalar_lea.vmem %s1004, 4294967292
  %v1006 = vpack.c.bf16 %v1003, %v70
  %1007 = vst [vmem:[%s1005] sm:$0xff] %v1006
  %s1008 = scalar_lea.vmem %s0, 3112
  %v1009 = vld [vmem:[%s1008] sm:$0xff]
  %s1010 = scalar_lea.vmem %s1, 532
  %s1011 = scalar_lea.vmem %s1010, 4294967292
  %v1012 = vpack.c.bf16 %v1009, %v73
  %1013 = vst [vmem:[%s1011] sm:$0xff] %v1012
  %s1014 = scalar_lea.vmem %s0, 1576
  %v1015 = vld [vmem:[%s1014] sm:$0xff]
  %s1016 = scalar_lea.vmem %s1, 1300
  %s1017 = scalar_lea.vmem %s1016, 4294967292
  %v1018 = vpack.c.bf16 %v1015, %v76
  %1019 = vst [vmem:[%s1017] sm:$0xff] %v1018
  %s1020 = scalar_lea.vmem %s0, 40
  %v1021 = vld [vmem:[%s1020] sm:$0xff]
  %s1022 = scalar_lea.vmem %s1, 2068
  %s1023 = scalar_lea.vmem %s1022, 4294967292
  %v1024 = vpack.c.bf16 %v1021, %v79
  %1025 = vst [vmem:[%s1023] sm:$0xff] %v1024
  %s1026 = scalar_lea.vmem %s0, 4152
  %v1027 = vld [vmem:[%s1026] sm:$0xff]
  %s1028 = scalar_lea.vmem %s1, 28
  %s1029 = scalar_lea.vmem %s1028, 4294967292
  %v1030 = vpack.c.bf16 %v1027, %v82
  %1031 = vst [vmem:[%s1029] sm:$0xff] %v1030
  %s1032 = scalar_lea.vmem %s0, 2616
  %v1033 = vld [vmem:[%s1032] sm:$0xff]
  %s1034 = scalar_lea.vmem %s1, 796
  %s1035 = scalar_lea.vmem %s1034, 4294967292
  %v1036 = vpack.c.bf16 %v1033, %v85
  %1037 = vst [vmem:[%s1035] sm:$0xff] %v1036
  %s1038 = scalar_lea.vmem %s0, 1080
  %v1039 = vld [vmem:[%s1038] sm:$0xff]
  %s1040 = scalar_lea.vmem %s1, 1564
  %s1041 = scalar_lea.vmem %s1040, 4294967292
  %v1042 = vpack.c.bf16 %v1039, %v88
  %1043 = vst [vmem:[%s1041] sm:$0xff] %v1042
  %s1044 = scalar_lea.vmem %s0, 3640
  %v1045 = vld [vmem:[%s1044] sm:$0xff]
  %s1046 = scalar_lea.vmem %s1, 284
  %s1047 = scalar_lea.vmem %s1046, 4294967292
  %v1048 = vpack.c.bf16 %v1045, %v91
  %1049 = vst [vmem:[%s1047] sm:$0xff] %v1048
  %s1050 = scalar_lea.vmem %s0, 2104
  %v1051 = vld [vmem:[%s1050] sm:$0xff]
  %s1052 = scalar_lea.vmem %s1, 1052
  %s1053 = scalar_lea.vmem %s1052, 4294967292
  %v1054 = vpack.c.bf16 %v1051, %v94
  %1055 = vst [vmem:[%s1053] sm:$0xff] %v1054
  %s1056 = scalar_lea.vmem %s0, 568
  %v1057 = vld [vmem:[%s1056] sm:$0xff]
  %s1058 = scalar_lea.vmem %s1, 1820
  %s1059 = scalar_lea.vmem %s1058, 4294967292
  %v1060 = vpack.c.bf16 %v1057, %v97
  %1061 = vst [vmem:[%s1059] sm:$0xff] %v1060
  %s1062 = scalar_lea.vmem %s0, 3128
  %v1063 = vld [vmem:[%s1062] sm:$0xff]
  %s1064 = scalar_lea.vmem %s1, 540
  %s1065 = scalar_lea.vmem %s1064, 4294967292
  %v1066 = vpack.c.bf16 %v1063, %v100
  %1067 = vst [vmem:[%s1065] sm:$0xff] %v1066
  %s1068 = scalar_lea.vmem %s0, 1592
  %v1069 = vld [vmem:[%s1068] sm:$0xff]
  %s1070 = scalar_lea.vmem %s1, 1308
  %s1071 = scalar_lea.vmem %s1070, 4294967292
  %v1072 = vpack.c.bf16 %v1069, %v103
  %1073 = vst [vmem:[%s1071] sm:$0xff] %v1072
  %s1074 = scalar_lea.vmem %s0, 56
  %v1075 = vld [vmem:[%s1074] sm:$0xff]
  %s1076 = scalar_lea.vmem %s1, 2076
  %s1077 = scalar_lea.vmem %s1076, 4294967292
  %v1078 = vpack.c.bf16 %v1075, %v106
  %1079 = vst [vmem:[%s1077] sm:$0xff] %v1078
  %s1080 = scalar_lea.vmem %s0, 4168
  %v1081 = vld [vmem:[%s1080] sm:$0xff]
  %s1082 = scalar_lea.vmem %s1, 36
  %s1083 = scalar_lea.vmem %s1082, 4294967292
  %v1084 = vpack.c.bf16 %v1081, %v109
  %1085 = vst [vmem:[%s1083] sm:$0xff] %v1084
  %s1086 = scalar_lea.vmem %s0, 2632
  %v1087 = vld [vmem:[%s1086] sm:$0xff]
  %s1088 = scalar_lea.vmem %s1, 804
  %s1089 = scalar_lea.vmem %s1088, 4294967292
  %v1090 = vpack.c.bf16 %v1087, %v112
  %1091 = vst [vmem:[%s1089] sm:$0xff] %v1090
  %s1092 = scalar_lea.vmem %s0, 1096
  %v1093 = vld [vmem:[%s1092] sm:$0xff]
  %s1094 = scalar_lea.vmem %s1, 1572
  %s1095 = scalar_lea.vmem %s1094, 4294967292
  %v1096 = vpack.c.bf16 %v1093, %v115
  %1097 = vst [vmem:[%s1095] sm:$0xff] %v1096
  %s1098 = scalar_lea.vmem %s0, 3656
  %v1099 = vld [vmem:[%s1098] sm:$0xff]
  %s1100 = scalar_lea.vmem %s1, 292
  %s1101 = scalar_lea.vmem %s1100, 4294967292
  %v1102 = vpack.c.bf16 %v1099, %v118
  %1103 = vst [vmem:[%s1101] sm:$0xff] %v1102
  %s1104 = scalar_lea.vmem %s0, 2120
  %v1105 = vld [vmem:[%s1104] sm:$0xff]
  %s1106 = scalar_lea.vmem %s1, 1060
  %s1107 = scalar_lea.vmem %s1106, 4294967292
  %v1108 = vpack.c.bf16 %v1105, %v121
  %1109 = vst [vmem:[%s1107] sm:$0xff] %v1108
  %s1110 = scalar_lea.vmem %s0, 584
  %v1111 = vld [vmem:[%s1110] sm:$0xff]
  %s1112 = scalar_lea.vmem %s1, 1828
  %s1113 = scalar_lea.vmem %s1112, 4294967292
  %v1114 = vpack.c.bf16 %v1111, %v124
  %1115 = vst [vmem:[%s1113] sm:$0xff] %v1114
  %s1116 = scalar_lea.vmem %s0, 3144
  %v1117 = vld [vmem:[%s1116] sm:$0xff]
  %s1118 = scalar_lea.vmem %s1, 548
  %s1119 = scalar_lea.vmem %s1118, 4294967292
  %v1120 = vpack.c.bf16 %v1117, %v127
  %1121 = vst [vmem:[%s1119] sm:$0xff] %v1120
  %s1122 = scalar_lea.vmem %s0, 1608
  %v1123 = vld [vmem:[%s1122] sm:$0xff]
  %s1124 = scalar_lea.vmem %s1, 1316
  %s1125 = scalar_lea.vmem %s1124, 4294967292
  %v1126 = vpack.c.bf16 %v1123, %v130
  %1127 = vst [vmem:[%s1125] sm:$0xff] %v1126
  %s1128 = scalar_lea.vmem %s0, 72
  %v1129 = vld [vmem:[%s1128] sm:$0xff]
  %s1130 = scalar_lea.vmem %s1, 2084
  %s1131 = scalar_lea.vmem %s1130, 4294967292
  %v1132 = vpack.c.bf16 %v1129, %v133
  %1133 = vst [vmem:[%s1131] sm:$0xff] %v1132
  %s1134 = scalar_lea.vmem %s0, 4184
  %v1135 = vld [vmem:[%s1134] sm:$0xff]
  %s1136 = scalar_lea.vmem %s1, 44
  %s1137 = scalar_lea.vmem %s1136, 4294967292
  %v1138 = vpack.c.bf16 %v1135, %v136
  %1139 = vst [vmem:[%s1137] sm:$0xff] %v1138
  %s1140 = scalar_lea.vmem %s0, 2648
  %v1141 = vld [vmem:[%s1140] sm:$0xff]
  %s1142 = scalar_lea.vmem %s1, 812
  %s1143 = scalar_lea.vmem %s1142, 4294967292
  %v1144 = vpack.c.bf16 %v1141, %v139
  %1145 = vst [vmem:[%s1143] sm:$0xff] %v1144
  %s1146 = scalar_lea.vmem %s0, 1112
  %v1147 = vld [vmem:[%s1146] sm:$0xff]
  %s1148 = scalar_lea.vmem %s1, 1580
  %s1149 = scalar_lea.vmem %s1148, 4294967292
  %v1150 = vpack.c.bf16 %v1147, %v142
  %1151 = vst [vmem:[%s1149] sm:$0xff] %v1150
  %s1152 = scalar_lea.vmem %s0, 3672
  %v1153 = vld [vmem:[%s1152] sm:$0xff]
  %s1154 = scalar_lea.vmem %s1, 300
  %s1155 = scalar_lea.vmem %s1154, 4294967292
  %v1156 = vpack.c.bf16 %v1153, %v145
  %1157 = vst [vmem:[%s1155] sm:$0xff] %v1156
  %s1158 = scalar_lea.vmem %s0, 2136
  %v1159 = vld [vmem:[%s1158] sm:$0xff]
  %s1160 = scalar_lea.vmem %s1, 1068
  %s1161 = scalar_lea.vmem %s1160, 4294967292
  %v1162 = vpack.c.bf16 %v1159, %v148
  %1163 = vst [vmem:[%s1161] sm:$0xff] %v1162
  %s1164 = scalar_lea.vmem %s0, 600
  %v1165 = vld [vmem:[%s1164] sm:$0xff]
  %s1166 = scalar_lea.vmem %s1, 1836
  %s1167 = scalar_lea.vmem %s1166, 4294967292
  %v1168 = vpack.c.bf16 %v1165, %v151
  %1169 = vst [vmem:[%s1167] sm:$0xff] %v1168
  %s1170 = scalar_lea.vmem %s0, 3160
  %v1171 = vld [vmem:[%s1170] sm:$0xff]
  %s1172 = scalar_lea.vmem %s1, 556
  %s1173 = scalar_lea.vmem %s1172, 4294967292
  %v1174 = vpack.c.bf16 %v1171, %v154
  %1175 = vst [vmem:[%s1173] sm:$0xff] %v1174
  %s1176 = scalar_lea.vmem %s0, 1624
  %v1177 = vld [vmem:[%s1176] sm:$0xff]
  %s1178 = scalar_lea.vmem %s1, 1324
  %s1179 = scalar_lea.vmem %s1178, 4294967292
  %v1180 = vpack.c.bf16 %v1177, %v157
  %1181 = vst [vmem:[%s1179] sm:$0xff] %v1180
  %s1182 = scalar_lea.vmem %s0, 88
  %v1183 = vld [vmem:[%s1182] sm:$0xff]
  %s1184 = scalar_lea.vmem %s1, 2092
  %s1185 = scalar_lea.vmem %s1184, 4294967292
  %v1186 = vpack.c.bf16 %v1183, %v160
  %1187 = vst [vmem:[%s1185] sm:$0xff] %v1186
  %s1188 = scalar_lea.vmem %s0, 4200
  %v1189 = vld [vmem:[%s1188] sm:$0xff]
  %s1190 = scalar_lea.vmem %s1, 52
  %s1191 = scalar_lea.vmem %s1190, 4294967292
  %v1192 = vpack.c.bf16 %v1189, %v163
  %1193 = vst [vmem:[%s1191] sm:$0xff] %v1192
  %s1194 = scalar_lea.vmem %s0, 2664
  %v1195 = vld [vmem:[%s1194] sm:$0xff]
  %s1196 = scalar_lea.vmem %s1, 820
  %s1197 = scalar_lea.vmem %s1196, 4294967292
  %v1198 = vpack.c.bf16 %v1195, %v166
  %1199 = vst [vmem:[%s1197] sm:$0xff] %v1198
  %s1200 = scalar_lea.vmem %s0, 1128
  %v1201 = vld [vmem:[%s1200] sm:$0xff]
  %s1202 = scalar_lea.vmem %s1, 1588
  %s1203 = scalar_lea.vmem %s1202, 4294967292
  %v1204 = vpack.c.bf16 %v1201, %v169
  %1205 = vst [vmem:[%s1203] sm:$0xff] %v1204
  %s1206 = scalar_lea.vmem %s0, 3688
  %v1207 = vld [vmem:[%s1206] sm:$0xff]
  %s1208 = scalar_lea.vmem %s1, 308
  %s1209 = scalar_lea.vmem %s1208, 4294967292
  %v1210 = vpack.c.bf16 %v1207, %v172
  %1211 = vst [vmem:[%s1209] sm:$0xff] %v1210
  %s1212 = scalar_lea.vmem %s0, 2152
  %v1213 = vld [vmem:[%s1212] sm:$0xff]
  %s1214 = scalar_lea.vmem %s1, 1076
  %s1215 = scalar_lea.vmem %s1214, 4294967292
  %v1216 = vpack.c.bf16 %v1213, %v175
  %1217 = vst [vmem:[%s1215] sm:$0xff] %v1216
  %s1218 = scalar_lea.vmem %s0, 616
  %v1219 = vld [vmem:[%s1218] sm:$0xff]
  %s1220 = scalar_lea.vmem %s1, 1844
  %s1221 = scalar_lea.vmem %s1220, 4294967292
  %v1222 = vpack.c.bf16 %v1219, %v178
  %1223 = vst [vmem:[%s1221] sm:$0xff] %v1222
  %s1224 = scalar_lea.vmem %s0, 3176
  %v1225 = vld [vmem:[%s1224] sm:$0xff]
  %s1226 = scalar_lea.vmem %s1, 564
  %s1227 = scalar_lea.vmem %s1226, 4294967292
  %v1228 = vpack.c.bf16 %v1225, %v181
  %1229 = vst [vmem:[%s1227] sm:$0xff] %v1228
  %s1230 = scalar_lea.vmem %s0, 1640
  %v1231 = vld [vmem:[%s1230] sm:$0xff]
  %s1232 = scalar_lea.vmem %s1, 1332
  %s1233 = scalar_lea.vmem %s1232, 4294967292
  %v1234 = vpack.c.bf16 %v1231, %v184
  %1235 = vst [vmem:[%s1233] sm:$0xff] %v1234
  %s1236 = scalar_lea.vmem %s0, 104
  %v1237 = vld [vmem:[%s1236] sm:$0xff]
  %s1238 = scalar_lea.vmem %s1, 2100
  %s1239 = scalar_lea.vmem %s1238, 4294967292
  %v1240 = vpack.c.bf16 %v1237, %v187
  %1241 = vst [vmem:[%s1239] sm:$0xff] %v1240
  %s1242 = scalar_lea.vmem %s0, 4216
  %v1243 = vld [vmem:[%s1242] sm:$0xff]
  %s1244 = scalar_lea.vmem %s1, 60
  %s1245 = scalar_lea.vmem %s1244, 4294967292
  %v1246 = vpack.c.bf16 %v1243, %v190
  %1247 = vst [vmem:[%s1245] sm:$0xff] %v1246
  %s1248 = scalar_lea.vmem %s0, 2680
  %v1249 = vld [vmem:[%s1248] sm:$0xff]
  %s1250 = scalar_lea.vmem %s1, 828
  %s1251 = scalar_lea.vmem %s1250, 4294967292
  %v1252 = vpack.c.bf16 %v1249, %v193
  %1253 = vst [vmem:[%s1251] sm:$0xff] %v1252
  %s1254 = scalar_lea.vmem %s0, 1144
  %v1255 = vld [vmem:[%s1254] sm:$0xff]
  %s1256 = scalar_lea.vmem %s1, 1596
  %s1257 = scalar_lea.vmem %s1256, 4294967292
  %v1258 = vpack.c.bf16 %v1255, %v196
  %1259 = vst [vmem:[%s1257] sm:$0xff] %v1258
  %s1260 = scalar_lea.vmem %s0, 3704
  %v1261 = vld [vmem:[%s1260] sm:$0xff]
  %s1262 = scalar_lea.vmem %s1, 316
  %s1263 = scalar_lea.vmem %s1262, 4294967292
  %v1264 = vpack.c.bf16 %v1261, %v199
  %1265 = vst [vmem:[%s1263] sm:$0xff] %v1264
  %s1266 = scalar_lea.vmem %s0, 2168
  %v1267 = vld [vmem:[%s1266] sm:$0xff]
  %s1268 = scalar_lea.vmem %s1, 1084
  %s1269 = scalar_lea.vmem %s1268, 4294967292
  %v1270 = vpack.c.bf16 %v1267, %v202
  %1271 = vst [vmem:[%s1269] sm:$0xff] %v1270
  %s1272 = scalar_lea.vmem %s0, 632
  %v1273 = vld [vmem:[%s1272] sm:$0xff]
  %s1274 = scalar_lea.vmem %s1, 1852
  %s1275 = scalar_lea.vmem %s1274, 4294967292
  %v1276 = vpack.c.bf16 %v1273, %v205
  %1277 = vst [vmem:[%s1275] sm:$0xff] %v1276
  %s1278 = scalar_lea.vmem %s0, 3192
  %v1279 = vld [vmem:[%s1278] sm:$0xff]
  %s1280 = scalar_lea.vmem %s1, 572
  %s1281 = scalar_lea.vmem %s1280, 4294967292
  %v1282 = vpack.c.bf16 %v1279, %v208
  %1283 = vst [vmem:[%s1281] sm:$0xff] %v1282
  %s1284 = scalar_lea.vmem %s0, 1656
  %v1285 = vld [vmem:[%s1284] sm:$0xff]
  %s1286 = scalar_lea.vmem %s1, 1340
  %s1287 = scalar_lea.vmem %s1286, 4294967292
  %v1288 = vpack.c.bf16 %v1285, %v211
  %1289 = vst [vmem:[%s1287] sm:$0xff] %v1288
  %s1290 = scalar_lea.vmem %s0, 120
  %v1291 = vld [vmem:[%s1290] sm:$0xff]
  %s1292 = scalar_lea.vmem %s1, 2108
  %s1293 = scalar_lea.vmem %s1292, 4294967292
  %v1294 = vpack.c.bf16 %v1291, %v214
  %1295 = vst [vmem:[%s1293] sm:$0xff] %v1294
  %s1296 = scalar_lea.vmem %s0, 4232
  %v1297 = vld [vmem:[%s1296] sm:$0xff]
  %s1298 = scalar_lea.vmem %s1, 68
  %s1299 = scalar_lea.vmem %s1298, 4294967292
  %v1300 = vpack.c.bf16 %v1297, %v217
  %1301 = vst [vmem:[%s1299] sm:$0xff] %v1300
  %s1302 = scalar_lea.vmem %s0, 2696
  %v1303 = vld [vmem:[%s1302] sm:$0xff]
  %s1304 = scalar_lea.vmem %s1, 836
  %s1305 = scalar_lea.vmem %s1304, 4294967292
  %v1306 = vpack.c.bf16 %v1303, %v220
  %1307 = vst [vmem:[%s1305] sm:$0xff] %v1306
  %s1308 = scalar_lea.vmem %s0, 1160
  %v1309 = vld [vmem:[%s1308] sm:$0xff]
  %s1310 = scalar_lea.vmem %s1, 1604
  %s1311 = scalar_lea.vmem %s1310, 4294967292
  %v1312 = vpack.c.bf16 %v1309, %v223
  %1313 = vst [vmem:[%s1311] sm:$0xff] %v1312
  %s1314 = scalar_lea.vmem %s0, 3720
  %v1315 = vld [vmem:[%s1314] sm:$0xff]
  %s1316 = scalar_lea.vmem %s1, 324
  %s1317 = scalar_lea.vmem %s1316, 4294967292
  %v1318 = vpack.c.bf16 %v1315, %v226
  %1319 = vst [vmem:[%s1317] sm:$0xff] %v1318
  %s1320 = scalar_lea.vmem %s0, 2184
  %v1321 = vld [vmem:[%s1320] sm:$0xff]
  %s1322 = scalar_lea.vmem %s1, 1092
  %s1323 = scalar_lea.vmem %s1322, 4294967292
  %v1324 = vpack.c.bf16 %v1321, %v229
  %1325 = vst [vmem:[%s1323] sm:$0xff] %v1324
  %s1326 = scalar_lea.vmem %s0, 648
  %v1327 = vld [vmem:[%s1326] sm:$0xff]
  %s1328 = scalar_lea.vmem %s1, 1860
  %s1329 = scalar_lea.vmem %s1328, 4294967292
  %v1330 = vpack.c.bf16 %v1327, %v232
  %1331 = vst [vmem:[%s1329] sm:$0xff] %v1330
  %s1332 = scalar_lea.vmem %s0, 3208
  %v1333 = vld [vmem:[%s1332] sm:$0xff]
  %s1334 = scalar_lea.vmem %s1, 580
  %s1335 = scalar_lea.vmem %s1334, 4294967292
  %v1336 = vpack.c.bf16 %v1333, %v235
  %1337 = vst [vmem:[%s1335] sm:$0xff] %v1336
  %s1338 = scalar_lea.vmem %s0, 1672
  %v1339 = vld [vmem:[%s1338] sm:$0xff]
  %s1340 = scalar_lea.vmem %s1, 1348
  %s1341 = scalar_lea.vmem %s1340, 4294967292
  %v1342 = vpack.c.bf16 %v1339, %v238
  %1343 = vst [vmem:[%s1341] sm:$0xff] %v1342
  %s1344 = scalar_lea.vmem %s0, 136
  %v1345 = vld [vmem:[%s1344] sm:$0xff]
  %s1346 = scalar_lea.vmem %s1, 2116
  %s1347 = scalar_lea.vmem %s1346, 4294967292
  %v1348 = vpack.c.bf16 %v1345, %v241
  %1349 = vst [vmem:[%s1347] sm:$0xff] %v1348
  %s1350 = scalar_lea.vmem %s0, 4248
  %v1351 = vld [vmem:[%s1350] sm:$0xff]
  %s1352 = scalar_lea.vmem %s1, 76
  %s1353 = scalar_lea.vmem %s1352, 4294967292
  %v1354 = vpack.c.bf16 %v1351, %v244
  %1355 = vst [vmem:[%s1353] sm:$0xff] %v1354
  %s1356 = scalar_lea.vmem %s0, 2712
  %v1357 = vld [vmem:[%s1356] sm:$0xff]
  %s1358 = scalar_lea.vmem %s1, 844
  %s1359 = scalar_lea.vmem %s1358, 4294967292
  %v1360 = vpack.c.bf16 %v1357, %v247
  %1361 = vst [vmem:[%s1359] sm:$0xff] %v1360
  %s1362 = scalar_lea.vmem %s0, 1176
  %v1363 = vld [vmem:[%s1362] sm:$0xff]
  %s1364 = scalar_lea.vmem %s1, 1612
  %s1365 = scalar_lea.vmem %s1364, 4294967292
  %v1366 = vpack.c.bf16 %v1363, %v250
  %1367 = vst [vmem:[%s1365] sm:$0xff] %v1366
  %s1368 = scalar_lea.vmem %s0, 3736
  %v1369 = vld [vmem:[%s1368] sm:$0xff]
  %s1370 = scalar_lea.vmem %s1, 332
  %s1371 = scalar_lea.vmem %s1370, 4294967292
  %v1372 = vpack.c.bf16 %v1369, %v253
  %1373 = vst [vmem:[%s1371] sm:$0xff] %v1372
  %s1374 = scalar_lea.vmem %s0, 2200
  %v1375 = vld [vmem:[%s1374] sm:$0xff]
  %s1376 = scalar_lea.vmem %s1, 1100
  %s1377 = scalar_lea.vmem %s1376, 4294967292
  %v1378 = vpack.c.bf16 %v1375, %v256
  %1379 = vst [vmem:[%s1377] sm:$0xff] %v1378
  %s1380 = scalar_lea.vmem %s0, 664
  %v1381 = vld [vmem:[%s1380] sm:$0xff]
  %s1382 = scalar_lea.vmem %s1, 1868
  %s1383 = scalar_lea.vmem %s1382, 4294967292
  %v1384 = vpack.c.bf16 %v1381, %v259
  %1385 = vst [vmem:[%s1383] sm:$0xff] %v1384
  %s1386 = scalar_lea.vmem %s0, 3224
  %v1387 = vld [vmem:[%s1386] sm:$0xff]
  %s1388 = scalar_lea.vmem %s1, 588
  %s1389 = scalar_lea.vmem %s1388, 4294967292
  %v1390 = vpack.c.bf16 %v1387, %v262
  %1391 = vst [vmem:[%s1389] sm:$0xff] %v1390
  %s1392 = scalar_lea.vmem %s0, 1688
  %v1393 = vld [vmem:[%s1392] sm:$0xff]
  %s1394 = scalar_lea.vmem %s1, 1356
  %s1395 = scalar_lea.vmem %s1394, 4294967292
  %v1396 = vpack.c.bf16 %v1393, %v265
  %1397 = vst [vmem:[%s1395] sm:$0xff] %v1396
  %s1398 = scalar_lea.vmem %s0, 152
  %v1399 = vld [vmem:[%s1398] sm:$0xff]
  %s1400 = scalar_lea.vmem %s1, 2124
  %s1401 = scalar_lea.vmem %s1400, 4294967292
  %v1402 = vpack.c.bf16 %v1399, %v268
  %1403 = vst [vmem:[%s1401] sm:$0xff] %v1402
  %s1404 = scalar_lea.vmem %s0, 4264
  %v1405 = vld [vmem:[%s1404] sm:$0xff]
  %s1406 = scalar_lea.vmem %s1, 84
  %s1407 = scalar_lea.vmem %s1406, 4294967292
  %v1408 = vpack.c.bf16 %v1405, %v271
  %1409 = vst [vmem:[%s1407] sm:$0xff] %v1408
  %s1410 = scalar_lea.vmem %s0, 2728
  %v1411 = vld [vmem:[%s1410] sm:$0xff]
  %s1412 = scalar_lea.vmem %s1, 852
  %s1413 = scalar_lea.vmem %s1412, 4294967292
  %v1414 = vpack.c.bf16 %v1411, %v274
  %1415 = vst [vmem:[%s1413] sm:$0xff] %v1414
  %s1416 = scalar_lea.vmem %s0, 1192
  %v1417 = vld [vmem:[%s1416] sm:$0xff]
  %s1418 = scalar_lea.vmem %s1, 1620
  %s1419 = scalar_lea.vmem %s1418, 4294967292
  %v1420 = vpack.c.bf16 %v1417, %v277
  %1421 = vst [vmem:[%s1419] sm:$0xff] %v1420
  %s1422 = scalar_lea.vmem %s0, 3752
  %v1423 = vld [vmem:[%s1422] sm:$0xff]
  %s1424 = scalar_lea.vmem %s1, 340
  %s1425 = scalar_lea.vmem %s1424, 4294967292
  %v1426 = vpack.c.bf16 %v1423, %v280
  %1427 = vst [vmem:[%s1425] sm:$0xff] %v1426
  %s1428 = scalar_lea.vmem %s0, 2216
  %v1429 = vld [vmem:[%s1428] sm:$0xff]
  %s1430 = scalar_lea.vmem %s1, 1108
  %s1431 = scalar_lea.vmem %s1430, 4294967292
  %v1432 = vpack.c.bf16 %v1429, %v283
  %1433 = vst [vmem:[%s1431] sm:$0xff] %v1432
  %s1434 = scalar_lea.vmem %s0, 680
  %v1435 = vld [vmem:[%s1434] sm:$0xff]
  %s1436 = scalar_lea.vmem %s1, 1876
  %s1437 = scalar_lea.vmem %s1436, 4294967292
  %v1438 = vpack.c.bf16 %v1435, %v286
  %1439 = vst [vmem:[%s1437] sm:$0xff] %v1438
  %s1440 = scalar_lea.vmem %s0, 3240
  %v1441 = vld [vmem:[%s1440] sm:$0xff]
  %s1442 = scalar_lea.vmem %s1, 596
  %s1443 = scalar_lea.vmem %s1442, 4294967292
  %v1444 = vpack.c.bf16 %v1441, %v289
  %1445 = vst [vmem:[%s1443] sm:$0xff] %v1444
  %s1446 = scalar_lea.vmem %s0, 1704
  %v1447 = vld [vmem:[%s1446] sm:$0xff]
  %s1448 = scalar_lea.vmem %s1, 1364
  %s1449 = scalar_lea.vmem %s1448, 4294967292
  %v1450 = vpack.c.bf16 %v1447, %v292
  %1451 = vst [vmem:[%s1449] sm:$0xff] %v1450
  %s1452 = scalar_lea.vmem %s0, 168
  %v1453 = vld [vmem:[%s1452] sm:$0xff]
  %s1454 = scalar_lea.vmem %s1, 2132
  %s1455 = scalar_lea.vmem %s1454, 4294967292
  %v1456 = vpack.c.bf16 %v1453, %v295
  %1457 = vst [vmem:[%s1455] sm:$0xff] %v1456
  %s1458 = scalar_lea.vmem %s0, 4280
  %v1459 = vld [vmem:[%s1458] sm:$0xff]
  %s1460 = scalar_lea.vmem %s1, 92
  %s1461 = scalar_lea.vmem %s1460, 4294967292
  %v1462 = vpack.c.bf16 %v1459, %v298
  %1463 = vst [vmem:[%s1461] sm:$0xff] %v1462
  %s1464 = scalar_lea.vmem %s0, 2744
  %v1465 = vld [vmem:[%s1464] sm:$0xff]
  %s1466 = scalar_lea.vmem %s1, 860
  %s1467 = scalar_lea.vmem %s1466, 4294967292
  %v1468 = vpack.c.bf16 %v1465, %v301
  %1469 = vst [vmem:[%s1467] sm:$0xff] %v1468
  %s1470 = scalar_lea.vmem %s0, 1208
  %v1471 = vld [vmem:[%s1470] sm:$0xff]
  %s1472 = scalar_lea.vmem %s1, 1628
  %s1473 = scalar_lea.vmem %s1472, 4294967292
  %v1474 = vpack.c.bf16 %v1471, %v304
  %1475 = vst [vmem:[%s1473] sm:$0xff] %v1474
  %s1476 = scalar_lea.vmem %s0, 3768
  %v1477 = vld [vmem:[%s1476] sm:$0xff]
  %s1478 = scalar_lea.vmem %s1, 348
  %s1479 = scalar_lea.vmem %s1478, 4294967292
  %v1480 = vpack.c.bf16 %v1477, %v307
  %1481 = vst [vmem:[%s1479] sm:$0xff] %v1480
  %s1482 = scalar_lea.vmem %s0, 2232
  %v1483 = vld [vmem:[%s1482] sm:$0xff]
  %s1484 = scalar_lea.vmem %s1, 1116
  %s1485 = scalar_lea.vmem %s1484, 4294967292
  %v1486 = vpack.c.bf16 %v1483, %v310
  %1487 = vst [vmem:[%s1485] sm:$0xff] %v1486
  %s1488 = scalar_lea.vmem %s0, 696
  %v1489 = vld [vmem:[%s1488] sm:$0xff]
  %s1490 = scalar_lea.vmem %s1, 1884
  %s1491 = scalar_lea.vmem %s1490, 4294967292
  %v1492 = vpack.c.bf16 %v1489, %v313
  %1493 = vst [vmem:[%s1491] sm:$0xff] %v1492
  %s1494 = scalar_lea.vmem %s0, 3256
  %v1495 = vld [vmem:[%s1494] sm:$0xff]
  %s1496 = scalar_lea.vmem %s1, 604
  %s1497 = scalar_lea.vmem %s1496, 4294967292
  %v1498 = vpack.c.bf16 %v1495, %v316
  %1499 = vst [vmem:[%s1497] sm:$0xff] %v1498
  %s1500 = scalar_lea.vmem %s0, 1720
  %v1501 = vld [vmem:[%s1500] sm:$0xff]
  %s1502 = scalar_lea.vmem %s1, 1372
  %s1503 = scalar_lea.vmem %s1502, 4294967292
  %v1504 = vpack.c.bf16 %v1501, %v319
  %1505 = vst [vmem:[%s1503] sm:$0xff] %v1504
  %s1506 = scalar_lea.vmem %s0, 184
  %v1507 = vld [vmem:[%s1506] sm:$0xff]
  %s1508 = scalar_lea.vmem %s1, 2140
  %s1509 = scalar_lea.vmem %s1508, 4294967292
  %v1510 = vpack.c.bf16 %v1507, %v322
  %1511 = vst [vmem:[%s1509] sm:$0xff] %v1510
  %s1512 = scalar_lea.vmem %s0, 4296
  %v1513 = vld [vmem:[%s1512] sm:$0xff]
  %s1514 = scalar_lea.vmem %s1, 100
  %s1515 = scalar_lea.vmem %s1514, 4294967292
  %v1516 = vpack.c.bf16 %v1513, %v325
  %1517 = vst [vmem:[%s1515] sm:$0xff] %v1516
  %s1518 = scalar_lea.vmem %s0, 2760
  %v1519 = vld [vmem:[%s1518] sm:$0xff]
  %s1520 = scalar_lea.vmem %s1, 868
  %s1521 = scalar_lea.vmem %s1520, 4294967292
  %v1522 = vpack.c.bf16 %v1519, %v328
  %1523 = vst [vmem:[%s1521] sm:$0xff] %v1522
  %s1524 = scalar_lea.vmem %s0, 1224
  %v1525 = vld [vmem:[%s1524] sm:$0xff]
  %s1526 = scalar_lea.vmem %s1, 1636
  %s1527 = scalar_lea.vmem %s1526, 4294967292
  %v1528 = vpack.c.bf16 %v1525, %v331
  %1529 = vst [vmem:[%s1527] sm:$0xff] %v1528
  %s1530 = scalar_lea.vmem %s0, 3784
  %v1531 = vld [vmem:[%s1530] sm:$0xff]
  %s1532 = scalar_lea.vmem %s1, 356
  %s1533 = scalar_lea.vmem %s1532, 4294967292
  %v1534 = vpack.c.bf16 %v1531, %v334
  %1535 = vst [vmem:[%s1533] sm:$0xff] %v1534
  %s1536 = scalar_lea.vmem %s0, 2248
  %v1537 = vld [vmem:[%s1536] sm:$0xff]
  %s1538 = scalar_lea.vmem %s1, 1124
  %s1539 = scalar_lea.vmem %s1538, 4294967292
  %v1540 = vpack.c.bf16 %v1537, %v337
  %1541 = vst [vmem:[%s1539] sm:$0xff] %v1540
  %s1542 = scalar_lea.vmem %s0, 712
  %v1543 = vld [vmem:[%s1542] sm:$0xff]
  %s1544 = scalar_lea.vmem %s1, 1892
  %s1545 = scalar_lea.vmem %s1544, 4294967292
  %v1546 = vpack.c.bf16 %v1543, %v340
  %1547 = vst [vmem:[%s1545] sm:$0xff] %v1546
  %s1548 = scalar_lea.vmem %s0, 3272
  %v1549 = vld [vmem:[%s1548] sm:$0xff]
  %s1550 = scalar_lea.vmem %s1, 612
  %s1551 = scalar_lea.vmem %s1550, 4294967292
  %v1552 = vpack.c.bf16 %v1549, %v343
  %1553 = vst [vmem:[%s1551] sm:$0xff] %v1552
  %s1554 = scalar_lea.vmem %s0, 1736
  %v1555 = vld [vmem:[%s1554] sm:$0xff]
  %s1556 = scalar_lea.vmem %s1, 1380
  %s1557 = scalar_lea.vmem %s1556, 4294967292
  %v1558 = vpack.c.bf16 %v1555, %v346
  %1559 = vst [vmem:[%s1557] sm:$0xff] %v1558
  %s1560 = scalar_lea.vmem %s0, 200
  %v1561 = vld [vmem:[%s1560] sm:$0xff]
  %s1562 = scalar_lea.vmem %s1, 2148
  %s1563 = scalar_lea.vmem %s1562, 4294967292
  %v1564 = vpack.c.bf16 %v1561, %v349
  %1565 = vst [vmem:[%s1563] sm:$0xff] %v1564
  %s1566 = scalar_lea.vmem %s0, 4312
  %v1567 = vld [vmem:[%s1566] sm:$0xff]
  %s1568 = scalar_lea.vmem %s1, 108
  %s1569 = scalar_lea.vmem %s1568, 4294967292
  %v1570 = vpack.c.bf16 %v1567, %v352
  %1571 = vst [vmem:[%s1569] sm:$0xff] %v1570
  %s1572 = scalar_lea.vmem %s0, 2776
  %v1573 = vld [vmem:[%s1572] sm:$0xff]
  %s1574 = scalar_lea.vmem %s1, 876
  %s1575 = scalar_lea.vmem %s1574, 4294967292
  %v1576 = vpack.c.bf16 %v1573, %v355
  %1577 = vst [vmem:[%s1575] sm:$0xff] %v1576
  %s1578 = scalar_lea.vmem %s0, 1240
  %v1579 = vld [vmem:[%s1578] sm:$0xff]
  %s1580 = scalar_lea.vmem %s1, 1644
  %s1581 = scalar_lea.vmem %s1580, 4294967292
  %v1582 = vpack.c.bf16 %v1579, %v358
  %1583 = vst [vmem:[%s1581] sm:$0xff] %v1582
  %s1584 = scalar_lea.vmem %s0, 3800
  %v1585 = vld [vmem:[%s1584] sm:$0xff]
  %s1586 = scalar_lea.vmem %s1, 364
  %s1587 = scalar_lea.vmem %s1586, 4294967292
  %v1588 = vpack.c.bf16 %v1585, %v361
  %1589 = vst [vmem:[%s1587] sm:$0xff] %v1588
  %s1590 = scalar_lea.vmem %s0, 2264
  %v1591 = vld [vmem:[%s1590] sm:$0xff]
  %s1592 = scalar_lea.vmem %s1, 1132
  %s1593 = scalar_lea.vmem %s1592, 4294967292
  %v1594 = vpack.c.bf16 %v1591, %v364
  %1595 = vst [vmem:[%s1593] sm:$0xff] %v1594
  %s1596 = scalar_lea.vmem %s0, 728
  %v1597 = vld [vmem:[%s1596] sm:$0xff]
  %s1598 = scalar_lea.vmem %s1, 1900
  %s1599 = scalar_lea.vmem %s1598, 4294967292
  %v1600 = vpack.c.bf16 %v1597, %v367
  %1601 = vst [vmem:[%s1599] sm:$0xff] %v1600
  %s1602 = scalar_lea.vmem %s0, 3288
  %v1603 = vld [vmem:[%s1602] sm:$0xff]
  %s1604 = scalar_lea.vmem %s1, 620
  %s1605 = scalar_lea.vmem %s1604, 4294967292
  %v1606 = vpack.c.bf16 %v1603, %v370
  %1607 = vst [vmem:[%s1605] sm:$0xff] %v1606
  %s1608 = scalar_lea.vmem %s0, 1752
  %v1609 = vld [vmem:[%s1608] sm:$0xff]
  %s1610 = scalar_lea.vmem %s1, 1388
  %s1611 = scalar_lea.vmem %s1610, 4294967292
  %v1612 = vpack.c.bf16 %v1609, %v373
  %1613 = vst [vmem:[%s1611] sm:$0xff] %v1612
  %s1614 = scalar_lea.vmem %s0, 216
  %v1615 = vld [vmem:[%s1614] sm:$0xff]
  %s1616 = scalar_lea.vmem %s1, 2156
  %s1617 = scalar_lea.vmem %s1616, 4294967292
  %v1618 = vpack.c.bf16 %v1615, %v376
  %1619 = vst [vmem:[%s1617] sm:$0xff] %v1618
  %s1620 = scalar_lea.vmem %s0, 4328
  %v1621 = vld [vmem:[%s1620] sm:$0xff]
  %s1622 = scalar_lea.vmem %s1, 116
  %s1623 = scalar_lea.vmem %s1622, 4294967292
  %v1624 = vpack.c.bf16 %v1621, %v379
  %1625 = vst [vmem:[%s1623] sm:$0xff] %v1624
  %s1626 = scalar_lea.vmem %s0, 2792
  %v1627 = vld [vmem:[%s1626] sm:$0xff]
  %s1628 = scalar_lea.vmem %s1, 884
  %s1629 = scalar_lea.vmem %s1628, 4294967292
  %v1630 = vpack.c.bf16 %v1627, %v382
  %1631 = vst [vmem:[%s1629] sm:$0xff] %v1630
  %s1632 = scalar_lea.vmem %s0, 1256
  %v1633 = vld [vmem:[%s1632] sm:$0xff]
  %s1634 = scalar_lea.vmem %s1, 1652
  %s1635 = scalar_lea.vmem %s1634, 4294967292
  %v1636 = vpack.c.bf16 %v1633, %v385
  %1637 = vst [vmem:[%s1635] sm:$0xff] %v1636
  %s1638 = scalar_lea.vmem %s0, 3816
  %v1639 = vld [vmem:[%s1638] sm:$0xff]
  %s1640 = scalar_lea.vmem %s1, 372
  %s1641 = scalar_lea.vmem %s1640, 4294967292
  %v1642 = vpack.c.bf16 %v1639, %v388
  %1643 = vst [vmem:[%s1641] sm:$0xff] %v1642
  %s1644 = scalar_lea.vmem %s0, 2280
  %v1645 = vld [vmem:[%s1644] sm:$0xff]
  %s1646 = scalar_lea.vmem %s1, 1140
  %s1647 = scalar_lea.vmem %s1646, 4294967292
  %v1648 = vpack.c.bf16 %v1645, %v391
  %1649 = vst [vmem:[%s1647] sm:$0xff] %v1648
  %s1650 = scalar_lea.vmem %s0, 744
  %v1651 = vld [vmem:[%s1650] sm:$0xff]
  %s1652 = scalar_lea.vmem %s1, 1908
  %s1653 = scalar_lea.vmem %s1652, 4294967292
  %v1654 = vpack.c.bf16 %v1651, %v394
  %1655 = vst [vmem:[%s1653] sm:$0xff] %v1654
  %s1656 = scalar_lea.vmem %s0, 3304
  %v1657 = vld [vmem:[%s1656] sm:$0xff]
  %s1658 = scalar_lea.vmem %s1, 628
  %s1659 = scalar_lea.vmem %s1658, 4294967292
  %v1660 = vpack.c.bf16 %v1657, %v397
  %1661 = vst [vmem:[%s1659] sm:$0xff] %v1660
  %s1662 = scalar_lea.vmem %s0, 1768
  %v1663 = vld [vmem:[%s1662] sm:$0xff]
  %s1664 = scalar_lea.vmem %s1, 1396
  %s1665 = scalar_lea.vmem %s1664, 4294967292
  %v1666 = vpack.c.bf16 %v1663, %v400
  %1667 = vst [vmem:[%s1665] sm:$0xff] %v1666
  %s1668 = scalar_lea.vmem %s0, 232
  %v1669 = vld [vmem:[%s1668] sm:$0xff]
  %s1670 = scalar_lea.vmem %s1, 2164
  %s1671 = scalar_lea.vmem %s1670, 4294967292
  %v1672 = vpack.c.bf16 %v1669, %v403
  %1673 = vst [vmem:[%s1671] sm:$0xff] %v1672
  %s1674 = scalar_lea.vmem %s0, 4344
  %v1675 = vld [vmem:[%s1674] sm:$0xff]
  %s1676 = scalar_lea.vmem %s1, 124
  %s1677 = scalar_lea.vmem %s1676, 4294967292
  %v1678 = vpack.c.bf16 %v1675, %v406
  %1679 = vst [vmem:[%s1677] sm:$0xff] %v1678
  %s1680 = scalar_lea.vmem %s0, 2808
  %v1681 = vld [vmem:[%s1680] sm:$0xff]
  %s1682 = scalar_lea.vmem %s1, 892
  %s1683 = scalar_lea.vmem %s1682, 4294967292
  %v1684 = vpack.c.bf16 %v1681, %v409
  %1685 = vst [vmem:[%s1683] sm:$0xff] %v1684
  %s1686 = scalar_lea.vmem %s0, 1272
  %v1687 = vld [vmem:[%s1686] sm:$0xff]
  %s1688 = scalar_lea.vmem %s1, 1660
  %s1689 = scalar_lea.vmem %s1688, 4294967292
  %v1690 = vpack.c.bf16 %v1687, %v412
  %1691 = vst [vmem:[%s1689] sm:$0xff] %v1690
  %s1692 = scalar_lea.vmem %s0, 3832
  %v1693 = vld [vmem:[%s1692] sm:$0xff]
  %s1694 = scalar_lea.vmem %s1, 380
  %s1695 = scalar_lea.vmem %s1694, 4294967292
  %v1696 = vpack.c.bf16 %v1693, %v415
  %1697 = vst [vmem:[%s1695] sm:$0xff] %v1696
  %s1698 = scalar_lea.vmem %s0, 2296
  %v1699 = vld [vmem:[%s1698] sm:$0xff]
  %s1700 = scalar_lea.vmem %s1, 1148
  %s1701 = scalar_lea.vmem %s1700, 4294967292
  %v1702 = vpack.c.bf16 %v1699, %v418
  %1703 = vst [vmem:[%s1701] sm:$0xff] %v1702
  %s1704 = scalar_lea.vmem %s0, 760
  %v1705 = vld [vmem:[%s1704] sm:$0xff]
  %s1706 = scalar_lea.vmem %s1, 1916
  %s1707 = scalar_lea.vmem %s1706, 4294967292
  %v1708 = vpack.c.bf16 %v1705, %v421
  %1709 = vst [vmem:[%s1707] sm:$0xff] %v1708
  %s1710 = scalar_lea.vmem %s0, 3320
  %v1711 = vld [vmem:[%s1710] sm:$0xff]
  %s1712 = scalar_lea.vmem %s1, 636
  %s1713 = scalar_lea.vmem %s1712, 4294967292
  %v1714 = vpack.c.bf16 %v1711, %v424
  %1715 = vst [vmem:[%s1713] sm:$0xff] %v1714
  %s1716 = scalar_lea.vmem %s0, 1784
  %v1717 = vld [vmem:[%s1716] sm:$0xff]
  %s1718 = scalar_lea.vmem %s1, 1404
  %s1719 = scalar_lea.vmem %s1718, 4294967292
  %v1720 = vpack.c.bf16 %v1717, %v427
  %1721 = vst [vmem:[%s1719] sm:$0xff] %v1720
  %s1722 = scalar_lea.vmem %s0, 248
  %v1723 = vld [vmem:[%s1722] sm:$0xff]
  %s1724 = scalar_lea.vmem %s1, 2172
  %s1725 = scalar_lea.vmem %s1724, 4294967292
  %v1726 = vpack.c.bf16 %v1723, %v430
  %1727 = vst [vmem:[%s1725] sm:$0xff] %v1726
  %s1728 = scalar_lea.vmem %s0, 4360
  %v1729 = vld [vmem:[%s1728] sm:$0xff]
  %s1730 = scalar_lea.vmem %s1, 132
  %s1731 = scalar_lea.vmem %s1730, 4294967292
  %v1732 = vpack.c.bf16 %v1729, %v433
  %1733 = vst [vmem:[%s1731] sm:$0xff] %v1732
  %s1734 = scalar_lea.vmem %s0, 2824
  %v1735 = vld [vmem:[%s1734] sm:$0xff]
  %s1736 = scalar_lea.vmem %s1, 900
  %s1737 = scalar_lea.vmem %s1736, 4294967292
  %v1738 = vpack.c.bf16 %v1735, %v436
  %1739 = vst [vmem:[%s1737] sm:$0xff] %v1738
  %s1740 = scalar_lea.vmem %s0, 1288
  %v1741 = vld [vmem:[%s1740] sm:$0xff]
  %s1742 = scalar_lea.vmem %s1, 1668
  %s1743 = scalar_lea.vmem %s1742, 4294967292
  %v1744 = vpack.c.bf16 %v1741, %v439
  %1745 = vst [vmem:[%s1743] sm:$0xff] %v1744
  %s1746 = scalar_lea.vmem %s0, 3848
  %v1747 = vld [vmem:[%s1746] sm:$0xff]
  %s1748 = scalar_lea.vmem %s1, 388
  %s1749 = scalar_lea.vmem %s1748, 4294967292
  %v1750 = vpack.c.bf16 %v1747, %v442
  %1751 = vst [vmem:[%s1749] sm:$0xff] %v1750
  %s1752 = scalar_lea.vmem %s0, 2312
  %v1753 = vld [vmem:[%s1752] sm:$0xff]
  %s1754 = scalar_lea.vmem %s1, 1156
  %s1755 = scalar_lea.vmem %s1754, 4294967292
  %v1756 = vpack.c.bf16 %v1753, %v445
  %1757 = vst [vmem:[%s1755] sm:$0xff] %v1756
  %s1758 = scalar_lea.vmem %s0, 776
  %v1759 = vld [vmem:[%s1758] sm:$0xff]
  %s1760 = scalar_lea.vmem %s1, 1924
  %s1761 = scalar_lea.vmem %s1760, 4294967292
  %v1762 = vpack.c.bf16 %v1759, %v448
  %1763 = vst [vmem:[%s1761] sm:$0xff] %v1762
  %s1764 = scalar_lea.vmem %s0, 3336
  %v1765 = vld [vmem:[%s1764] sm:$0xff]
  %s1766 = scalar_lea.vmem %s1, 644
  %s1767 = scalar_lea.vmem %s1766, 4294967292
  %v1768 = vpack.c.bf16 %v1765, %v451
  %1769 = vst [vmem:[%s1767] sm:$0xff] %v1768
  %s1770 = scalar_lea.vmem %s0, 1800
  %v1771 = vld [vmem:[%s1770] sm:$0xff]
  %s1772 = scalar_lea.vmem %s1, 1412
  %s1773 = scalar_lea.vmem %s1772, 4294967292
  %v1774 = vpack.c.bf16 %v1771, %v454
  %1775 = vst [vmem:[%s1773] sm:$0xff] %v1774
  %s1776 = scalar_lea.vmem %s0, 264
  %v1777 = vld [vmem:[%s1776] sm:$0xff]
  %s1778 = scalar_lea.vmem %s1, 2180
  %s1779 = scalar_lea.vmem %s1778, 4294967292
  %v1780 = vpack.c.bf16 %v1777, %v457
  %1781 = vst [vmem:[%s1779] sm:$0xff] %v1780
  %s1782 = scalar_lea.vmem %s0, 4376
  %v1783 = vld [vmem:[%s1782] sm:$0xff]
  %s1784 = scalar_lea.vmem %s1, 140
  %s1785 = scalar_lea.vmem %s1784, 4294967292
  %v1786 = vpack.c.bf16 %v1783, %v460
  %1787 = vst [vmem:[%s1785] sm:$0xff] %v1786
  %s1788 = scalar_lea.vmem %s0, 2840
  %v1789 = vld [vmem:[%s1788] sm:$0xff]
  %s1790 = scalar_lea.vmem %s1, 908
  %s1791 = scalar_lea.vmem %s1790, 4294967292
  %v1792 = vpack.c.bf16 %v1789, %v463
  %1793 = vst [vmem:[%s1791] sm:$0xff] %v1792
  %s1794 = scalar_lea.vmem %s0, 1304
  %v1795 = vld [vmem:[%s1794] sm:$0xff]
  %s1796 = scalar_lea.vmem %s1, 1676
  %s1797 = scalar_lea.vmem %s1796, 4294967292
  %v1798 = vpack.c.bf16 %v1795, %v466
  %1799 = vst [vmem:[%s1797] sm:$0xff] %v1798
  %s1800 = scalar_lea.vmem %s0, 3864
  %v1801 = vld [vmem:[%s1800] sm:$0xff]
  %s1802 = scalar_lea.vmem %s1, 396
  %s1803 = scalar_lea.vmem %s1802, 4294967292
  %v1804 = vpack.c.bf16 %v1801, %v469
  %1805 = vst [vmem:[%s1803] sm:$0xff] %v1804
  %s1806 = scalar_lea.vmem %s0, 2328
  %v1807 = vld [vmem:[%s1806] sm:$0xff]
  %s1808 = scalar_lea.vmem %s1, 1164
  %s1809 = scalar_lea.vmem %s1808, 4294967292
  %v1810 = vpack.c.bf16 %v1807, %v472
  %1811 = vst [vmem:[%s1809] sm:$0xff] %v1810
  %s1812 = scalar_lea.vmem %s0, 792
  %v1813 = vld [vmem:[%s1812] sm:$0xff]
  %s1814 = scalar_lea.vmem %s1, 1932
  %s1815 = scalar_lea.vmem %s1814, 4294967292
  %v1816 = vpack.c.bf16 %v1813, %v475
  %1817 = vst [vmem:[%s1815] sm:$0xff] %v1816
  %s1818 = scalar_lea.vmem %s0, 3352
  %v1819 = vld [vmem:[%s1818] sm:$0xff]
  %s1820 = scalar_lea.vmem %s1, 652
  %s1821 = scalar_lea.vmem %s1820, 4294967292
  %v1822 = vpack.c.bf16 %v1819, %v478
  %1823 = vst [vmem:[%s1821] sm:$0xff] %v1822
  %s1824 = scalar_lea.vmem %s0, 1816
  %v1825 = vld [vmem:[%s1824] sm:$0xff]
  %s1826 = scalar_lea.vmem %s1, 1420
  %s1827 = scalar_lea.vmem %s1826, 4294967292
  %v1828 = vpack.c.bf16 %v1825, %v481
  %1829 = vst [vmem:[%s1827] sm:$0xff] %v1828
  %s1830 = scalar_lea.vmem %s0, 280
  %v1831 = vld [vmem:[%s1830] sm:$0xff]
  %s1832 = scalar_lea.vmem %s1, 2188
  %s1833 = scalar_lea.vmem %s1832, 4294967292
  %v1834 = vpack.c.bf16 %v1831, %v484
  %1835 = vst [vmem:[%s1833] sm:$0xff] %v1834
  %s1836 = scalar_lea.vmem %s0, 4392
  %v1837 = vld [vmem:[%s1836] sm:$0xff]
  %s1838 = scalar_lea.vmem %s1, 148
  %s1839 = scalar_lea.vmem %s1838, 4294967292
  %v1840 = vpack.c.bf16 %v1837, %v487
  %1841 = vst [vmem:[%s1839] sm:$0xff] %v1840
  %s1842 = scalar_lea.vmem %s0, 2856
  %v1843 = vld [vmem:[%s1842] sm:$0xff]
  %s1844 = scalar_lea.vmem %s1, 916
  %s1845 = scalar_lea.vmem %s1844, 4294967292
  %v1846 = vpack.c.bf16 %v1843, %v490
  %1847 = vst [vmem:[%s1845] sm:$0xff] %v1846
  %s1848 = scalar_lea.vmem %s0, 1320
  %v1849 = vld [vmem:[%s1848] sm:$0xff]
  %s1850 = scalar_lea.vmem %s1, 1684
  %s1851 = scalar_lea.vmem %s1850, 4294967292
  %v1852 = vpack.c.bf16 %v1849, %v493
  %1853 = vst [vmem:[%s1851] sm:$0xff] %v1852
  %s1854 = scalar_lea.vmem %s0, 3880
  %v1855 = vld [vmem:[%s1854] sm:$0xff]
  %s1856 = scalar_lea.vmem %s1, 404
  %s1857 = scalar_lea.vmem %s1856, 4294967292
  %v1858 = vpack.c.bf16 %v1855, %v496
  %1859 = vst [vmem:[%s1857] sm:$0xff] %v1858
  %s1860 = scalar_lea.vmem %s0, 2344
  %v1861 = vld [vmem:[%s1860] sm:$0xff]
  %s1862 = scalar_lea.vmem %s1, 1172
  %s1863 = scalar_lea.vmem %s1862, 4294967292
  %v1864 = vpack.c.bf16 %v1861, %v499
  %1865 = vst [vmem:[%s1863] sm:$0xff] %v1864
  %s1866 = scalar_lea.vmem %s0, 808
  %v1867 = vld [vmem:[%s1866] sm:$0xff]
  %s1868 = scalar_lea.vmem %s1, 1940
  %s1869 = scalar_lea.vmem %s1868, 4294967292
  %v1870 = vpack.c.bf16 %v1867, %v502
  %1871 = vst [vmem:[%s1869] sm:$0xff] %v1870
  %s1872 = scalar_lea.vmem %s0, 3368
  %v1873 = vld [vmem:[%s1872] sm:$0xff]
  %s1874 = scalar_lea.vmem %s1, 660
  %s1875 = scalar_lea.vmem %s1874, 4294967292
  %v1876 = vpack.c.bf16 %v1873, %v505
  %1877 = vst [vmem:[%s1875] sm:$0xff] %v1876
  %s1878 = scalar_lea.vmem %s0, 1832
  %v1879 = vld [vmem:[%s1878] sm:$0xff]
  %s1880 = scalar_lea.vmem %s1, 1428
  %s1881 = scalar_lea.vmem %s1880, 4294967292
  %v1882 = vpack.c.bf16 %v1879, %v508
  %1883 = vst [vmem:[%s1881] sm:$0xff] %v1882
  %s1884 = scalar_lea.vmem %s0, 296
  %v1885 = vld [vmem:[%s1884] sm:$0xff]
  %s1886 = scalar_lea.vmem %s1, 2196
  %s1887 = scalar_lea.vmem %s1886, 4294967292
  %v1888 = vpack.c.bf16 %v1885, %v511
  %1889 = vst [vmem:[%s1887] sm:$0xff] %v1888
  %s1890 = scalar_lea.vmem %s0, 4408
  %v1891 = vld [vmem:[%s1890] sm:$0xff]
  %s1892 = scalar_lea.vmem %s1, 156
  %s1893 = scalar_lea.vmem %s1892, 4294967292
  %v1894 = vpack.c.bf16 %v1891, %v514
  %1895 = vst [vmem:[%s1893] sm:$0xff] %v1894
  %s1896 = scalar_lea.vmem %s0, 2872
  %v1897 = vld [vmem:[%s1896] sm:$0xff]
  %s1898 = scalar_lea.vmem %s1, 924
  %s1899 = scalar_lea.vmem %s1898, 4294967292
  %v1900 = vpack.c.bf16 %v1897, %v517
  %1901 = vst [vmem:[%s1899] sm:$0xff] %v1900
  %s1902 = scalar_lea.vmem %s0, 1336
  %v1903 = vld [vmem:[%s1902] sm:$0xff]
  %s1904 = scalar_lea.vmem %s1, 1692
  %s1905 = scalar_lea.vmem %s1904, 4294967292
  %v1906 = vpack.c.bf16 %v1903, %v520
  %1907 = vst [vmem:[%s1905] sm:$0xff] %v1906
  %s1908 = scalar_lea.vmem %s0, 3896
  %v1909 = vld [vmem:[%s1908] sm:$0xff]
  %s1910 = scalar_lea.vmem %s1, 412
  %s1911 = scalar_lea.vmem %s1910, 4294967292
  %v1912 = vpack.c.bf16 %v1909, %v523
  %1913 = vst [vmem:[%s1911] sm:$0xff] %v1912
  %s1914 = scalar_lea.vmem %s0, 2360
  %v1915 = vld [vmem:[%s1914] sm:$0xff]
  %s1916 = scalar_lea.vmem %s1, 1180
  %s1917 = scalar_lea.vmem %s1916, 4294967292
  %v1918 = vpack.c.bf16 %v1915, %v526
  %1919 = vst [vmem:[%s1917] sm:$0xff] %v1918
  %s1920 = scalar_lea.vmem %s0, 824
  %v1921 = vld [vmem:[%s1920] sm:$0xff]
  %s1922 = scalar_lea.vmem %s1, 1948
  %s1923 = scalar_lea.vmem %s1922, 4294967292
  %v1924 = vpack.c.bf16 %v1921, %v529
  %1925 = vst [vmem:[%s1923] sm:$0xff] %v1924
  %s1926 = scalar_lea.vmem %s0, 3384
  %v1927 = vld [vmem:[%s1926] sm:$0xff]
  %s1928 = scalar_lea.vmem %s1, 668
  %s1929 = scalar_lea.vmem %s1928, 4294967292
  %v1930 = vpack.c.bf16 %v1927, %v532
  %1931 = vst [vmem:[%s1929] sm:$0xff] %v1930
  %s1932 = scalar_lea.vmem %s0, 1848
  %v1933 = vld [vmem:[%s1932] sm:$0xff]
  %s1934 = scalar_lea.vmem %s1, 1436
  %s1935 = scalar_lea.vmem %s1934, 4294967292
  %v1936 = vpack.c.bf16 %v1933, %v535
  %1937 = vst [vmem:[%s1935] sm:$0xff] %v1936
  %s1938 = scalar_lea.vmem %s0, 312
  %v1939 = vld [vmem:[%s1938] sm:$0xff]
  %s1940 = scalar_lea.vmem %s1, 2204
  %s1941 = scalar_lea.vmem %s1940, 4294967292
  %v1942 = vpack.c.bf16 %v1939, %v538
  %1943 = vst [vmem:[%s1941] sm:$0xff] %v1942
  %s1944 = scalar_lea.vmem %s0, 4424
  %v1945 = vld [vmem:[%s1944] sm:$0xff]
  %s1946 = scalar_lea.vmem %s1, 164
  %s1947 = scalar_lea.vmem %s1946, 4294967292
  %v1948 = vpack.c.bf16 %v1945, %v541
  %1949 = vst [vmem:[%s1947] sm:$0xff] %v1948
  %s1950 = scalar_lea.vmem %s0, 2888
  %v1951 = vld [vmem:[%s1950] sm:$0xff]
  %s1952 = scalar_lea.vmem %s1, 932
  %s1953 = scalar_lea.vmem %s1952, 4294967292
  %v1954 = vpack.c.bf16 %v1951, %v544
  %1955 = vst [vmem:[%s1953] sm:$0xff] %v1954
  %s1956 = scalar_lea.vmem %s0, 1352
  %v1957 = vld [vmem:[%s1956] sm:$0xff]
  %s1958 = scalar_lea.vmem %s1, 1700
  %s1959 = scalar_lea.vmem %s1958, 4294967292
  %v1960 = vpack.c.bf16 %v1957, %v547
  %1961 = vst [vmem:[%s1959] sm:$0xff] %v1960
  %s1962 = scalar_lea.vmem %s0, 3912
  %v1963 = vld [vmem:[%s1962] sm:$0xff]
  %s1964 = scalar_lea.vmem %s1, 420
  %s1965 = scalar_lea.vmem %s1964, 4294967292
  %v1966 = vpack.c.bf16 %v1963, %v550
  %1967 = vst [vmem:[%s1965] sm:$0xff] %v1966
  %s1968 = scalar_lea.vmem %s0, 2376
  %v1969 = vld [vmem:[%s1968] sm:$0xff]
  %s1970 = scalar_lea.vmem %s1, 1188
  %s1971 = scalar_lea.vmem %s1970, 4294967292
  %v1972 = vpack.c.bf16 %v1969, %v553
  %1973 = vst [vmem:[%s1971] sm:$0xff] %v1972
  %s1974 = scalar_lea.vmem %s0, 840
  %v1975 = vld [vmem:[%s1974] sm:$0xff]
  %s1976 = scalar_lea.vmem %s1, 1956
  %s1977 = scalar_lea.vmem %s1976, 4294967292
  %v1978 = vpack.c.bf16 %v1975, %v556
  %1979 = vst [vmem:[%s1977] sm:$0xff] %v1978
  %s1980 = scalar_lea.vmem %s0, 3400
  %v1981 = vld [vmem:[%s1980] sm:$0xff]
  %s1982 = scalar_lea.vmem %s1, 676
  %s1983 = scalar_lea.vmem %s1982, 4294967292
  %v1984 = vpack.c.bf16 %v1981, %v559
  %1985 = vst [vmem:[%s1983] sm:$0xff] %v1984
  %s1986 = scalar_lea.vmem %s0, 1864
  %v1987 = vld [vmem:[%s1986] sm:$0xff]
  %s1988 = scalar_lea.vmem %s1, 1444
  %s1989 = scalar_lea.vmem %s1988, 4294967292
  %v1990 = vpack.c.bf16 %v1987, %v562
  %1991 = vst [vmem:[%s1989] sm:$0xff] %v1990
  %s1992 = scalar_lea.vmem %s0, 328
  %v1993 = vld [vmem:[%s1992] sm:$0xff]
  %s1994 = scalar_lea.vmem %s1, 2212
  %s1995 = scalar_lea.vmem %s1994, 4294967292
  %v1996 = vpack.c.bf16 %v1993, %v565
  %1997 = vst [vmem:[%s1995] sm:$0xff] %v1996
  %s1998 = scalar_lea.vmem %s0, 4440
  %v1999 = vld [vmem:[%s1998] sm:$0xff]
  %s2000 = scalar_lea.vmem %s1, 172
  %s2001 = scalar_lea.vmem %s2000, 4294967292
  %v2002 = vpack.c.bf16 %v1999, %v568
  %2003 = vst [vmem:[%s2001] sm:$0xff] %v2002
  %s2004 = scalar_lea.vmem %s0, 2904
  %v2005 = vld [vmem:[%s2004] sm:$0xff]
  %s2006 = scalar_lea.vmem %s1, 940
  %s2007 = scalar_lea.vmem %s2006, 4294967292
  %v2008 = vpack.c.bf16 %v2005, %v571
  %2009 = vst [vmem:[%s2007] sm:$0xff] %v2008
  %s2010 = scalar_lea.vmem %s0, 1368
  %v2011 = vld [vmem:[%s2010] sm:$0xff]
  %s2012 = scalar_lea.vmem %s1, 1708
  %s2013 = scalar_lea.vmem %s2012, 4294967292
  %v2014 = vpack.c.bf16 %v2011, %v574
  %2015 = vst [vmem:[%s2013] sm:$0xff] %v2014
  %s2016 = scalar_lea.vmem %s0, 3928
  %v2017 = vld [vmem:[%s2016] sm:$0xff]
  %s2018 = scalar_lea.vmem %s1, 428
  %s2019 = scalar_lea.vmem %s2018, 4294967292
  %v2020 = vpack.c.bf16 %v2017, %v577
  %2021 = vst [vmem:[%s2019] sm:$0xff] %v2020
  %s2022 = scalar_lea.vmem %s0, 2392
  %v2023 = vld [vmem:[%s2022] sm:$0xff]
  %s2024 = scalar_lea.vmem %s1, 1196
  %s2025 = scalar_lea.vmem %s2024, 4294967292
  %v2026 = vpack.c.bf16 %v2023, %v580
  %2027 = vst [vmem:[%s2025] sm:$0xff] %v2026
  %s2028 = scalar_lea.vmem %s0, 856
  %v2029 = vld [vmem:[%s2028] sm:$0xff]
  %s2030 = scalar_lea.vmem %s1, 1964
  %s2031 = scalar_lea.vmem %s2030, 4294967292
  %v2032 = vpack.c.bf16 %v2029, %v583
  %2033 = vst [vmem:[%s2031] sm:$0xff] %v2032
  %s2034 = scalar_lea.vmem %s0, 3416
  %v2035 = vld [vmem:[%s2034] sm:$0xff]
  %s2036 = scalar_lea.vmem %s1, 684
  %s2037 = scalar_lea.vmem %s2036, 4294967292
  %v2038 = vpack.c.bf16 %v2035, %v586
  %2039 = vst [vmem:[%s2037] sm:$0xff] %v2038
  %s2040 = scalar_lea.vmem %s0, 1880
  %v2041 = vld [vmem:[%s2040] sm:$0xff]
  %s2042 = scalar_lea.vmem %s1, 1452
  %s2043 = scalar_lea.vmem %s2042, 4294967292
  %v2044 = vpack.c.bf16 %v2041, %v589
  %2045 = vst [vmem:[%s2043] sm:$0xff] %v2044
  %s2046 = scalar_lea.vmem %s0, 344
  %v2047 = vld [vmem:[%s2046] sm:$0xff]
  %s2048 = scalar_lea.vmem %s1, 2220
  %s2049 = scalar_lea.vmem %s2048, 4294967292
  %v2050 = vpack.c.bf16 %v2047, %v592
  %2051 = vst [vmem:[%s2049] sm:$0xff] %v2050
  %s2052 = scalar_lea.vmem %s0, 4456
  %v2053 = vld [vmem:[%s2052] sm:$0xff]
  %s2054 = scalar_lea.vmem %s1, 180
  %s2055 = scalar_lea.vmem %s2054, 4294967292
  %v2056 = vpack.c.bf16 %v2053, %v595
  %2057 = vst [vmem:[%s2055] sm:$0xff] %v2056
  %s2058 = scalar_lea.vmem %s0, 2920
  %v2059 = vld [vmem:[%s2058] sm:$0xff]
  %s2060 = scalar_lea.vmem %s1, 948
  %s2061 = scalar_lea.vmem %s2060, 4294967292
  %v2062 = vpack.c.bf16 %v2059, %v598
  %2063 = vst [vmem:[%s2061] sm:$0xff] %v2062
  %s2064 = scalar_lea.vmem %s0, 1384
  %v2065 = vld [vmem:[%s2064] sm:$0xff]
  %s2066 = scalar_lea.vmem %s1, 1716
  %s2067 = scalar_lea.vmem %s2066, 4294967292
  %v2068 = vpack.c.bf16 %v2065, %v601
  %2069 = vst [vmem:[%s2067] sm:$0xff] %v2068
  %s2070 = scalar_lea.vmem %s0, 3944
  %v2071 = vld [vmem:[%s2070] sm:$0xff]
  %s2072 = scalar_lea.vmem %s1, 436
  %s2073 = scalar_lea.vmem %s2072, 4294967292
  %v2074 = vpack.c.bf16 %v2071, %v604
  %2075 = vst [vmem:[%s2073] sm:$0xff] %v2074
  %s2076 = scalar_lea.vmem %s0, 2408
  %v2077 = vld [vmem:[%s2076] sm:$0xff]
  %s2078 = scalar_lea.vmem %s1, 1204
  %s2079 = scalar_lea.vmem %s2078, 4294967292
  %v2080 = vpack.c.bf16 %v2077, %v607
  %2081 = vst [vmem:[%s2079] sm:$0xff] %v2080
  %s2082 = scalar_lea.vmem %s0, 872
  %v2083 = vld [vmem:[%s2082] sm:$0xff]
  %s2084 = scalar_lea.vmem %s1, 1972
  %s2085 = scalar_lea.vmem %s2084, 4294967292
  %v2086 = vpack.c.bf16 %v2083, %v610
  %2087 = vst [vmem:[%s2085] sm:$0xff] %v2086
  %s2088 = scalar_lea.vmem %s0, 3432
  %v2089 = vld [vmem:[%s2088] sm:$0xff]
  %s2090 = scalar_lea.vmem %s1, 692
  %s2091 = scalar_lea.vmem %s2090, 4294967292
  %v2092 = vpack.c.bf16 %v2089, %v613
  %2093 = vst [vmem:[%s2091] sm:$0xff] %v2092
  %s2094 = scalar_lea.vmem %s0, 1896
  %v2095 = vld [vmem:[%s2094] sm:$0xff]
  %s2096 = scalar_lea.vmem %s1, 1460
  %s2097 = scalar_lea.vmem %s2096, 4294967292
  %v2098 = vpack.c.bf16 %v2095, %v616
  %2099 = vst [vmem:[%s2097] sm:$0xff] %v2098
  %s2100 = scalar_lea.vmem %s0, 360
  %v2101 = vld [vmem:[%s2100] sm:$0xff]
  %s2102 = scalar_lea.vmem %s1, 2228
  %s2103 = scalar_lea.vmem %s2102, 4294967292
  %v2104 = vpack.c.bf16 %v2101, %v619
  %2105 = vst [vmem:[%s2103] sm:$0xff] %v2104
  %s2106 = scalar_lea.vmem %s0, 4472
  %v2107 = vld [vmem:[%s2106] sm:$0xff]
  %s2108 = scalar_lea.vmem %s1, 188
  %s2109 = scalar_lea.vmem %s2108, 4294967292
  %v2110 = vpack.c.bf16 %v2107, %v622
  %2111 = vst [vmem:[%s2109] sm:$0xff] %v2110
  %s2112 = scalar_lea.vmem %s0, 2936
  %v2113 = vld [vmem:[%s2112] sm:$0xff]
  %s2114 = scalar_lea.vmem %s1, 956
  %s2115 = scalar_lea.vmem %s2114, 4294967292
  %v2116 = vpack.c.bf16 %v2113, %v625
  %2117 = vst [vmem:[%s2115] sm:$0xff] %v2116
  %s2118 = scalar_lea.vmem %s0, 1400
  %v2119 = vld [vmem:[%s2118] sm:$0xff]
  %s2120 = scalar_lea.vmem %s1, 1724
  %s2121 = scalar_lea.vmem %s2120, 4294967292
  %v2122 = vpack.c.bf16 %v2119, %v628
  %2123 = vst [vmem:[%s2121] sm:$0xff] %v2122
  %s2124 = scalar_lea.vmem %s0, 3960
  %v2125 = vld [vmem:[%s2124] sm:$0xff]
  %s2126 = scalar_lea.vmem %s1, 444
  %s2127 = scalar_lea.vmem %s2126, 4294967292
  %v2128 = vpack.c.bf16 %v2125, %v631
  %2129 = vst [vmem:[%s2127] sm:$0xff] %v2128
  %s2130 = scalar_lea.vmem %s0, 2424
  %v2131 = vld [vmem:[%s2130] sm:$0xff]
  %s2132 = scalar_lea.vmem %s1, 1212
  %s2133 = scalar_lea.vmem %s2132, 4294967292
  %v2134 = vpack.c.bf16 %v2131, %v634
  %2135 = vst [vmem:[%s2133] sm:$0xff] %v2134
  %s2136 = scalar_lea.vmem %s0, 888
  %v2137 = vld [vmem:[%s2136] sm:$0xff]
  %s2138 = scalar_lea.vmem %s1, 1980
  %s2139 = scalar_lea.vmem %s2138, 4294967292
  %v2140 = vpack.c.bf16 %v2137, %v637
  %2141 = vst [vmem:[%s2139] sm:$0xff] %v2140
  %s2142 = scalar_lea.vmem %s0, 3448
  %v2143 = vld [vmem:[%s2142] sm:$0xff]
  %s2144 = scalar_lea.vmem %s1, 700
  %s2145 = scalar_lea.vmem %s2144, 4294967292
  %v2146 = vpack.c.bf16 %v2143, %v640
  %2147 = vst [vmem:[%s2145] sm:$0xff] %v2146
  %s2148 = scalar_lea.vmem %s0, 1912
  %v2149 = vld [vmem:[%s2148] sm:$0xff]
  %s2150 = scalar_lea.vmem %s1, 1468
  %s2151 = scalar_lea.vmem %s2150, 4294967292
  %v2152 = vpack.c.bf16 %v2149, %v643
  %2153 = vst [vmem:[%s2151] sm:$0xff] %v2152
  %s2154 = scalar_lea.vmem %s0, 376
  %v2155 = vld [vmem:[%s2154] sm:$0xff]
  %s2156 = scalar_lea.vmem %s1, 2236
  %s2157 = scalar_lea.vmem %s2156, 4294967292
  %v2158 = vpack.c.bf16 %v2155, %v646
  %2159 = vst [vmem:[%s2157] sm:$0xff] %v2158
  %s2160 = scalar_lea.vmem %s0, 4488
  %v2161 = vld [vmem:[%s2160] sm:$0xff]
  %s2162 = scalar_lea.vmem %s1, 196
  %s2163 = scalar_lea.vmem %s2162, 4294967292
  %v2164 = vpack.c.bf16 %v2161, %v649
  %2165 = vst [vmem:[%s2163] sm:$0xff] %v2164
  %s2166 = scalar_lea.vmem %s0, 2952
  %v2167 = vld [vmem:[%s2166] sm:$0xff]
  %s2168 = scalar_lea.vmem %s1, 964
  %s2169 = scalar_lea.vmem %s2168, 4294967292
  %v2170 = vpack.c.bf16 %v2167, %v652
  %2171 = vst [vmem:[%s2169] sm:$0xff] %v2170
  %s2172 = scalar_lea.vmem %s0, 1416
  %v2173 = vld [vmem:[%s2172] sm:$0xff]
  %s2174 = scalar_lea.vmem %s1, 1732
  %s2175 = scalar_lea.vmem %s2174, 4294967292
  %v2176 = vpack.c.bf16 %v2173, %v655
  %2177 = vst [vmem:[%s2175] sm:$0xff] %v2176
  %s2178 = scalar_lea.vmem %s0, 3976
  %v2179 = vld [vmem:[%s2178] sm:$0xff]
  %s2180 = scalar_lea.vmem %s1, 452
  %s2181 = scalar_lea.vmem %s2180, 4294967292
  %v2182 = vpack.c.bf16 %v2179, %v658
  %2183 = vst [vmem:[%s2181] sm:$0xff] %v2182
  %s2184 = scalar_lea.vmem %s0, 2440
  %v2185 = vld [vmem:[%s2184] sm:$0xff]
  %s2186 = scalar_lea.vmem %s1, 1220
  %s2187 = scalar_lea.vmem %s2186, 4294967292
  %v2188 = vpack.c.bf16 %v2185, %v661
  %2189 = vst [vmem:[%s2187] sm:$0xff] %v2188
  %s2190 = scalar_lea.vmem %s0, 904
  %v2191 = vld [vmem:[%s2190] sm:$0xff]
  %s2192 = scalar_lea.vmem %s1, 1988
  %s2193 = scalar_lea.vmem %s2192, 4294967292
  %v2194 = vpack.c.bf16 %v2191, %v664
  %2195 = vst [vmem:[%s2193] sm:$0xff] %v2194
  %s2196 = scalar_lea.vmem %s0, 3464
  %v2197 = vld [vmem:[%s2196] sm:$0xff]
  %s2198 = scalar_lea.vmem %s1, 708
  %s2199 = scalar_lea.vmem %s2198, 4294967292
  %v2200 = vpack.c.bf16 %v2197, %v667
  %2201 = vst [vmem:[%s2199] sm:$0xff] %v2200
  %s2202 = scalar_lea.vmem %s0, 1928
  %v2203 = vld [vmem:[%s2202] sm:$0xff]
  %s2204 = scalar_lea.vmem %s1, 1476
  %s2205 = scalar_lea.vmem %s2204, 4294967292
  %v2206 = vpack.c.bf16 %v2203, %v670
  %2207 = vst [vmem:[%s2205] sm:$0xff] %v2206
  %s2208 = scalar_lea.vmem %s0, 392
  %v2209 = vld [vmem:[%s2208] sm:$0xff]
  %s2210 = scalar_lea.vmem %s1, 2244
  %s2211 = scalar_lea.vmem %s2210, 4294967292
  %v2212 = vpack.c.bf16 %v2209, %v673
  %2213 = vst [vmem:[%s2211] sm:$0xff] %v2212
  %s2214 = scalar_lea.vmem %s0, 4504
  %v2215 = vld [vmem:[%s2214] sm:$0xff]
  %s2216 = scalar_lea.vmem %s1, 204
  %s2217 = scalar_lea.vmem %s2216, 4294967292
  %v2218 = vpack.c.bf16 %v2215, %v676
  %2219 = vst [vmem:[%s2217] sm:$0xff] %v2218
  %s2220 = scalar_lea.vmem %s0, 2968
  %v2221 = vld [vmem:[%s2220] sm:$0xff]
  %s2222 = scalar_lea.vmem %s1, 972
  %s2223 = scalar_lea.vmem %s2222, 4294967292
  %v2224 = vpack.c.bf16 %v2221, %v679
  %2225 = vst [vmem:[%s2223] sm:$0xff] %v2224
  %s2226 = scalar_lea.vmem %s0, 1432
  %v2227 = vld [vmem:[%s2226] sm:$0xff]
  %s2228 = scalar_lea.vmem %s1, 1740
  %s2229 = scalar_lea.vmem %s2228, 4294967292
  %v2230 = vpack.c.bf16 %v2227, %v682
  %2231 = vst [vmem:[%s2229] sm:$0xff] %v2230
  %s2232 = scalar_lea.vmem %s0, 3992
  %v2233 = vld [vmem:[%s2232] sm:$0xff]
  %s2234 = scalar_lea.vmem %s1, 460
  %s2235 = scalar_lea.vmem %s2234, 4294967292
  %v2236 = vpack.c.bf16 %v2233, %v685
  %2237 = vst [vmem:[%s2235] sm:$0xff] %v2236
  %s2238 = scalar_lea.vmem %s0, 2456
  %v2239 = vld [vmem:[%s2238] sm:$0xff]
  %s2240 = scalar_lea.vmem %s1, 1228
  %s2241 = scalar_lea.vmem %s2240, 4294967292
  %v2242 = vpack.c.bf16 %v2239, %v688
  %2243 = vst [vmem:[%s2241] sm:$0xff] %v2242
  %s2244 = scalar_lea.vmem %s0, 920
  %v2245 = vld [vmem:[%s2244] sm:$0xff]
  %s2246 = scalar_lea.vmem %s1, 1996
  %s2247 = scalar_lea.vmem %s2246, 4294967292
  %v2248 = vpack.c.bf16 %v2245, %v691
  %2249 = vst [vmem:[%s2247] sm:$0xff] %v2248
  %s2250 = scalar_lea.vmem %s0, 3480
  %v2251 = vld [vmem:[%s2250] sm:$0xff]
  %s2252 = scalar_lea.vmem %s1, 716
  %s2253 = scalar_lea.vmem %s2252, 4294967292
  %v2254 = vpack.c.bf16 %v2251, %v694
  %2255 = vst [vmem:[%s2253] sm:$0xff] %v2254
  %s2256 = scalar_lea.vmem %s0, 1944
  %v2257 = vld [vmem:[%s2256] sm:$0xff]
  %s2258 = scalar_lea.vmem %s1, 1484
  %s2259 = scalar_lea.vmem %s2258, 4294967292
  %v2260 = vpack.c.bf16 %v2257, %v697
  %2261 = vst [vmem:[%s2259] sm:$0xff] %v2260
  %s2262 = scalar_lea.vmem %s0, 408
  %v2263 = vld [vmem:[%s2262] sm:$0xff]
  %s2264 = scalar_lea.vmem %s1, 2252
  %s2265 = scalar_lea.vmem %s2264, 4294967292
  %v2266 = vpack.c.bf16 %v2263, %v700
  %2267 = vst [vmem:[%s2265] sm:$0xff] %v2266
  %s2268 = scalar_lea.vmem %s0, 4520
  %v2269 = vld [vmem:[%s2268] sm:$0xff]
  %s2270 = scalar_lea.vmem %s1, 212
  %s2271 = scalar_lea.vmem %s2270, 4294967292
  %v2272 = vpack.c.bf16 %v2269, %v703
  %2273 = vst [vmem:[%s2271] sm:$0xff] %v2272
  %s2274 = scalar_lea.vmem %s0, 2984
  %v2275 = vld [vmem:[%s2274] sm:$0xff]
  %s2276 = scalar_lea.vmem %s1, 980
  %s2277 = scalar_lea.vmem %s2276, 4294967292
  %v2278 = vpack.c.bf16 %v2275, %v706
  %2279 = vst [vmem:[%s2277] sm:$0xff] %v2278
  %s2280 = scalar_lea.vmem %s0, 1448
  %v2281 = vld [vmem:[%s2280] sm:$0xff]
  %s2282 = scalar_lea.vmem %s1, 1748
  %s2283 = scalar_lea.vmem %s2282, 4294967292
  %v2284 = vpack.c.bf16 %v2281, %v709
  %2285 = vst [vmem:[%s2283] sm:$0xff] %v2284
  %s2286 = scalar_lea.vmem %s0, 4008
  %v2287 = vld [vmem:[%s2286] sm:$0xff]
  %s2288 = scalar_lea.vmem %s1, 468
  %s2289 = scalar_lea.vmem %s2288, 4294967292
  %v2290 = vpack.c.bf16 %v2287, %v712
  %2291 = vst [vmem:[%s2289] sm:$0xff] %v2290
  %s2292 = scalar_lea.vmem %s0, 2472
  %v2293 = vld [vmem:[%s2292] sm:$0xff]
  %s2294 = scalar_lea.vmem %s1, 1236
  %s2295 = scalar_lea.vmem %s2294, 4294967292
  %v2296 = vpack.c.bf16 %v2293, %v715
  %2297 = vst [vmem:[%s2295] sm:$0xff] %v2296
  %s2298 = scalar_lea.vmem %s0, 936
  %v2299 = vld [vmem:[%s2298] sm:$0xff]
  %s2300 = scalar_lea.vmem %s1, 2004
  %s2301 = scalar_lea.vmem %s2300, 4294967292
  %v2302 = vpack.c.bf16 %v2299, %v718
  %2303 = vst [vmem:[%s2301] sm:$0xff] %v2302
  %s2304 = scalar_lea.vmem %s0, 3496
  %v2305 = vld [vmem:[%s2304] sm:$0xff]
  %s2306 = scalar_lea.vmem %s1, 724
  %s2307 = scalar_lea.vmem %s2306, 4294967292
  %v2308 = vpack.c.bf16 %v2305, %v721
  %2309 = vst [vmem:[%s2307] sm:$0xff] %v2308
  %s2310 = scalar_lea.vmem %s0, 1960
  %v2311 = vld [vmem:[%s2310] sm:$0xff]
  %s2312 = scalar_lea.vmem %s1, 1492
  %s2313 = scalar_lea.vmem %s2312, 4294967292
  %v2314 = vpack.c.bf16 %v2311, %v724
  %2315 = vst [vmem:[%s2313] sm:$0xff] %v2314
  %s2316 = scalar_lea.vmem %s0, 424
  %v2317 = vld [vmem:[%s2316] sm:$0xff]
  %s2318 = scalar_lea.vmem %s1, 2260
  %s2319 = scalar_lea.vmem %s2318, 4294967292
  %v2320 = vpack.c.bf16 %v2317, %v727
  %2321 = vst [vmem:[%s2319] sm:$0xff] %v2320
  %s2322 = scalar_lea.vmem %s0, 4536
  %v2323 = vld [vmem:[%s2322] sm:$0xff]
  %s2324 = scalar_lea.vmem %s1, 220
  %s2325 = scalar_lea.vmem %s2324, 4294967292
  %v2326 = vpack.c.bf16 %v2323, %v730
  %2327 = vst [vmem:[%s2325] sm:$0xff] %v2326
  %s2328 = scalar_lea.vmem %s0, 3000
  %v2329 = vld [vmem:[%s2328] sm:$0xff]
  %s2330 = scalar_lea.vmem %s1, 988
  %s2331 = scalar_lea.vmem %s2330, 4294967292
  %v2332 = vpack.c.bf16 %v2329, %v733
  %2333 = vst [vmem:[%s2331] sm:$0xff] %v2332
  %s2334 = scalar_lea.vmem %s0, 1464
  %v2335 = vld [vmem:[%s2334] sm:$0xff]
  %s2336 = scalar_lea.vmem %s1, 1756
  %s2337 = scalar_lea.vmem %s2336, 4294967292
  %v2338 = vpack.c.bf16 %v2335, %v736
  %2339 = vst [vmem:[%s2337] sm:$0xff] %v2338
  %s2340 = scalar_lea.vmem %s0, 4024
  %v2341 = vld [vmem:[%s2340] sm:$0xff]
  %s2342 = scalar_lea.vmem %s1, 476
  %s2343 = scalar_lea.vmem %s2342, 4294967292
  %v2344 = vpack.c.bf16 %v2341, %v739
  %2345 = vst [vmem:[%s2343] sm:$0xff] %v2344
  %s2346 = scalar_lea.vmem %s0, 2488
  %v2347 = vld [vmem:[%s2346] sm:$0xff]
  %s2348 = scalar_lea.vmem %s1, 1244
  %s2349 = scalar_lea.vmem %s2348, 4294967292
  %v2350 = vpack.c.bf16 %v2347, %v742
  %2351 = vst [vmem:[%s2349] sm:$0xff] %v2350
  %s2352 = scalar_lea.vmem %s0, 952
  %v2353 = vld [vmem:[%s2352] sm:$0xff]
  %s2354 = scalar_lea.vmem %s1, 2012
  %s2355 = scalar_lea.vmem %s2354, 4294967292
  %v2356 = vpack.c.bf16 %v2353, %v745
  %2357 = vst [vmem:[%s2355] sm:$0xff] %v2356
  %s2358 = scalar_lea.vmem %s0, 3512
  %v2359 = vld [vmem:[%s2358] sm:$0xff]
  %s2360 = scalar_lea.vmem %s1, 732
  %s2361 = scalar_lea.vmem %s2360, 4294967292
  %v2362 = vpack.c.bf16 %v2359, %v748
  %2363 = vst [vmem:[%s2361] sm:$0xff] %v2362
  %s2364 = scalar_lea.vmem %s0, 1976
  %v2365 = vld [vmem:[%s2364] sm:$0xff]
  %s2366 = scalar_lea.vmem %s1, 1500
  %s2367 = scalar_lea.vmem %s2366, 4294967292
  %v2368 = vpack.c.bf16 %v2365, %v751
  %2369 = vst [vmem:[%s2367] sm:$0xff] %v2368
  %s2370 = scalar_lea.vmem %s0, 440
  %v2371 = vld [vmem:[%s2370] sm:$0xff]
  %s2372 = scalar_lea.vmem %s1, 2268
  %s2373 = scalar_lea.vmem %s2372, 4294967292
  %v2374 = vpack.c.bf16 %v2371, %v754
  %2375 = vst [vmem:[%s2373] sm:$0xff] %v2374
  %s2376 = scalar_lea.vmem %s0, 4552
  %v2377 = vld [vmem:[%s2376] sm:$0xff]
  %s2378 = scalar_lea.vmem %s1, 228
  %s2379 = scalar_lea.vmem %s2378, 4294967292
  %v2380 = vpack.c.bf16 %v2377, %v757
  %2381 = vst [vmem:[%s2379] sm:$0xff] %v2380
  %s2382 = scalar_lea.vmem %s0, 3016
  %v2383 = vld [vmem:[%s2382] sm:$0xff]
  %s2384 = scalar_lea.vmem %s1, 996
  %s2385 = scalar_lea.vmem %s2384, 4294967292
  %v2386 = vpack.c.bf16 %v2383, %v760
  %2387 = vst [vmem:[%s2385] sm:$0xff] %v2386
  %s2388 = scalar_lea.vmem %s0, 1480
  %v2389 = vld [vmem:[%s2388] sm:$0xff]
  %s2390 = scalar_lea.vmem %s1, 1764
  %s2391 = scalar_lea.vmem %s2390, 4294967292
  %v2392 = vpack.c.bf16 %v2389, %v763
  %2393 = vst [vmem:[%s2391] sm:$0xff] %v2392
  %s2394 = scalar_lea.vmem %s0, 4040
  %v2395 = vld [vmem:[%s2394] sm:$0xff]
  %s2396 = scalar_lea.vmem %s1, 484
  %s2397 = scalar_lea.vmem %s2396, 4294967292
  %v2398 = vpack.c.bf16 %v2395, %v766
  %2399 = vst [vmem:[%s2397] sm:$0xff] %v2398
  %s2400 = scalar_lea.vmem %s0, 2504
  %v2401 = vld [vmem:[%s2400] sm:$0xff]
  %s2402 = scalar_lea.vmem %s1, 1252
  %s2403 = scalar_lea.vmem %s2402, 4294967292
  %v2404 = vpack.c.bf16 %v2401, %v769
  %2405 = vst [vmem:[%s2403] sm:$0xff] %v2404
  %s2406 = scalar_lea.vmem %s0, 968
  %v2407 = vld [vmem:[%s2406] sm:$0xff]
  %s2408 = scalar_lea.vmem %s1, 2020
  %s2409 = scalar_lea.vmem %s2408, 4294967292
  %v2410 = vpack.c.bf16 %v2407, %v772
  %2411 = vst [vmem:[%s2409] sm:$0xff] %v2410
  %s2412 = scalar_lea.vmem %s0, 3528
  %v2413 = vld [vmem:[%s2412] sm:$0xff]
  %s2414 = scalar_lea.vmem %s1, 740
  %s2415 = scalar_lea.vmem %s2414, 4294967292
  %v2416 = vpack.c.bf16 %v2413, %v775
  %2417 = vst [vmem:[%s2415] sm:$0xff] %v2416
  %s2418 = scalar_lea.vmem %s0, 1992
  %v2419 = vld [vmem:[%s2418] sm:$0xff]
  %s2420 = scalar_lea.vmem %s1, 1508
  %s2421 = scalar_lea.vmem %s2420, 4294967292
  %v2422 = vpack.c.bf16 %v2419, %v778
  %2423 = vst [vmem:[%s2421] sm:$0xff] %v2422
  %s2424 = scalar_lea.vmem %s0, 456
  %v2425 = vld [vmem:[%s2424] sm:$0xff]
  %s2426 = scalar_lea.vmem %s1, 2276
  %s2427 = scalar_lea.vmem %s2426, 4294967292
  %v2428 = vpack.c.bf16 %v2425, %v781
  %2429 = vst [vmem:[%s2427] sm:$0xff] %v2428
  %s2430 = scalar_lea.vmem %s0, 4568
  %v2431 = vld [vmem:[%s2430] sm:$0xff]
  %s2432 = scalar_lea.vmem %s1, 236
  %s2433 = scalar_lea.vmem %s2432, 4294967292
  %v2434 = vpack.c.bf16 %v2431, %v784
  %2435 = vst [vmem:[%s2433] sm:$0xff] %v2434
  %s2436 = scalar_lea.vmem %s0, 3032
  %v2437 = vld [vmem:[%s2436] sm:$0xff]
  %s2438 = scalar_lea.vmem %s1, 1004
  %s2439 = scalar_lea.vmem %s2438, 4294967292
  %v2440 = vpack.c.bf16 %v2437, %v787
  %2441 = vst [vmem:[%s2439] sm:$0xff] %v2440
  %s2442 = scalar_lea.vmem %s0, 1496
  %v2443 = vld [vmem:[%s2442] sm:$0xff]
  %s2444 = scalar_lea.vmem %s1, 1772
  %s2445 = scalar_lea.vmem %s2444, 4294967292
  %v2446 = vpack.c.bf16 %v2443, %v790
  %2447 = vst [vmem:[%s2445] sm:$0xff] %v2446
  %s2448 = scalar_lea.vmem %s0, 4056
  %v2449 = vld [vmem:[%s2448] sm:$0xff]
  %s2450 = scalar_lea.vmem %s1, 492
  %s2451 = scalar_lea.vmem %s2450, 4294967292
  %v2452 = vpack.c.bf16 %v2449, %v793
  %2453 = vst [vmem:[%s2451] sm:$0xff] %v2452
  %s2454 = scalar_lea.vmem %s0, 2520
  %v2455 = vld [vmem:[%s2454] sm:$0xff]
  %s2456 = scalar_lea.vmem %s1, 1260
  %s2457 = scalar_lea.vmem %s2456, 4294967292
  %v2458 = vpack.c.bf16 %v2455, %v796
  %2459 = vst [vmem:[%s2457] sm:$0xff] %v2458
  %s2460 = scalar_lea.vmem %s0, 984
  %v2461 = vld [vmem:[%s2460] sm:$0xff]
  %s2462 = scalar_lea.vmem %s1, 2028
  %s2463 = scalar_lea.vmem %s2462, 4294967292
  %v2464 = vpack.c.bf16 %v2461, %v799
  %2465 = vst [vmem:[%s2463] sm:$0xff] %v2464
  %s2466 = scalar_lea.vmem %s0, 3544
  %v2467 = vld [vmem:[%s2466] sm:$0xff]
  %s2468 = scalar_lea.vmem %s1, 748
  %s2469 = scalar_lea.vmem %s2468, 4294967292
  %v2470 = vpack.c.bf16 %v2467, %v802
  %2471 = vst [vmem:[%s2469] sm:$0xff] %v2470
  %s2472 = scalar_lea.vmem %s0, 2008
  %v2473 = vld [vmem:[%s2472] sm:$0xff]
  %s2474 = scalar_lea.vmem %s1, 1516
  %s2475 = scalar_lea.vmem %s2474, 4294967292
  %v2476 = vpack.c.bf16 %v2473, %v805
  %2477 = vst [vmem:[%s2475] sm:$0xff] %v2476
  %s2478 = scalar_lea.vmem %s0, 472
  %v2479 = vld [vmem:[%s2478] sm:$0xff]
  %s2480 = scalar_lea.vmem %s1, 2284
  %s2481 = scalar_lea.vmem %s2480, 4294967292
  %v2482 = vpack.c.bf16 %v2479, %v808
  %2483 = vst [vmem:[%s2481] sm:$0xff] %v2482
  %s2484 = scalar_lea.vmem %s0, 4584
  %v2485 = vld [vmem:[%s2484] sm:$0xff]
  %s2486 = scalar_lea.vmem %s1, 244
  %s2487 = scalar_lea.vmem %s2486, 4294967292
  %v2488 = vpack.c.bf16 %v2485, %v811
  %2489 = vst [vmem:[%s2487] sm:$0xff] %v2488
  %s2490 = scalar_lea.vmem %s0, 3048
  %v2491 = vld [vmem:[%s2490] sm:$0xff]
  %s2492 = scalar_lea.vmem %s1, 1012
  %s2493 = scalar_lea.vmem %s2492, 4294967292
  %v2494 = vpack.c.bf16 %v2491, %v814
  %2495 = vst [vmem:[%s2493] sm:$0xff] %v2494
  %s2496 = scalar_lea.vmem %s0, 1512
  %v2497 = vld [vmem:[%s2496] sm:$0xff]
  %s2498 = scalar_lea.vmem %s1, 1780
  %s2499 = scalar_lea.vmem %s2498, 4294967292
  %v2500 = vpack.c.bf16 %v2497, %v817
  %2501 = vst [vmem:[%s2499] sm:$0xff] %v2500
  %s2502 = scalar_lea.vmem %s0, 4072
  %v2503 = vld [vmem:[%s2502] sm:$0xff]
  %s2504 = scalar_lea.vmem %s1, 500
  %s2505 = scalar_lea.vmem %s2504, 4294967292
  %v2506 = vpack.c.bf16 %v2503, %v820
  %2507 = vst [vmem:[%s2505] sm:$0xff] %v2506
  %s2508 = scalar_lea.vmem %s0, 2536
  %v2509 = vld [vmem:[%s2508] sm:$0xff]
  %s2510 = scalar_lea.vmem %s1, 1268
  %s2511 = scalar_lea.vmem %s2510, 4294967292
  %v2512 = vpack.c.bf16 %v2509, %v823
  %2513 = vst [vmem:[%s2511] sm:$0xff] %v2512
  %s2514 = scalar_lea.vmem %s0, 1000
  %v2515 = vld [vmem:[%s2514] sm:$0xff]
  %s2516 = scalar_lea.vmem %s1, 2036
  %s2517 = scalar_lea.vmem %s2516, 4294967292
  %v2518 = vpack.c.bf16 %v2515, %v826
  %2519 = vst [vmem:[%s2517] sm:$0xff] %v2518
  %s2520 = scalar_lea.vmem %s0, 3560
  %v2521 = vld [vmem:[%s2520] sm:$0xff]
  %s2522 = scalar_lea.vmem %s1, 756
  %s2523 = scalar_lea.vmem %s2522, 4294967292
  %v2524 = vpack.c.bf16 %v2521, %v829
  %2525 = vst [vmem:[%s2523] sm:$0xff] %v2524
  %s2526 = scalar_lea.vmem %s0, 2024
  %v2527 = vld [vmem:[%s2526] sm:$0xff]
  %s2528 = scalar_lea.vmem %s1, 1524
  %s2529 = scalar_lea.vmem %s2528, 4294967292
  %v2530 = vpack.c.bf16 %v2527, %v832
  %2531 = vst [vmem:[%s2529] sm:$0xff] %v2530
  %s2532 = scalar_lea.vmem %s0, 488
  %v2533 = vld [vmem:[%s2532] sm:$0xff]
  %s2534 = scalar_lea.vmem %s1, 2292
  %s2535 = scalar_lea.vmem %s2534, 4294967292
  %v2536 = vpack.c.bf16 %v2533, %v835
  %2537 = vst [vmem:[%s2535] sm:$0xff] %v2536
  %s2538 = scalar_lea.vmem %s0, 4600
  %v2539 = vld [vmem:[%s2538] sm:$0xff]
  %s2540 = scalar_lea.vmem %s1, 252
  %s2541 = scalar_lea.vmem %s2540, 4294967292
  %v2542 = vpack.c.bf16 %v2539, %v838
  %2543 = vst [vmem:[%s2541] sm:$0xff] %v2542
  %s2544 = scalar_lea.vmem %s0, 3064
  %v2545 = vld [vmem:[%s2544] sm:$0xff]
  %s2546 = scalar_lea.vmem %s1, 1020
  %s2547 = scalar_lea.vmem %s2546, 4294967292
  %v2548 = vpack.c.bf16 %v2545, %v841
  %2549 = vst [vmem:[%s2547] sm:$0xff] %v2548
  %s2550 = scalar_lea.vmem %s0, 1528
  %v2551 = vld [vmem:[%s2550] sm:$0xff]
  %s2552 = scalar_lea.vmem %s1, 1788
  %s2553 = scalar_lea.vmem %s2552, 4294967292
  %v2554 = vpack.c.bf16 %v2551, %v844
  %2555 = vst [vmem:[%s2553] sm:$0xff] %v2554
  %s2556 = scalar_lea.vmem %s0, 4088
  %v2557 = vld [vmem:[%s2556] sm:$0xff]
  %s2558 = scalar_lea.vmem %s1, 508
  %s2559 = scalar_lea.vmem %s2558, 4294967292
  %v2560 = vpack.c.bf16 %v2557, %v847
  %2561 = vst [vmem:[%s2559] sm:$0xff] %v2560
  %s2562 = scalar_lea.vmem %s0, 2552
  %v2563 = vld [vmem:[%s2562] sm:$0xff]
  %s2564 = scalar_lea.vmem %s1, 1276
  %s2565 = scalar_lea.vmem %s2564, 4294967292
  %v2566 = vpack.c.bf16 %v2563, %v850
  %2567 = vst [vmem:[%s2565] sm:$0xff] %v2566
  %s2568 = scalar_lea.vmem %s0, 1016
  %v2569 = vld [vmem:[%s2568] sm:$0xff]
  %s2570 = scalar_lea.vmem %s1, 2044
  %s2571 = scalar_lea.vmem %s2570, 4294967292
  %v2572 = vpack.c.bf16 %v2569, %v853
  %2573 = vst [vmem:[%s2571] sm:$0xff] %v2572
  %s2574 = scalar_lea.vmem %s0, 3576
  %v2575 = vld [vmem:[%s2574] sm:$0xff]
  %s2576 = scalar_lea.vmem %s1, 764
  %s2577 = scalar_lea.vmem %s2576, 4294967292
  %v2578 = vpack.c.bf16 %v2575, %v856
  %2579 = vst [vmem:[%s2577] sm:$0xff] %v2578
  %s2580 = scalar_lea.vmem %s0, 2040
  %v2581 = vld [vmem:[%s2580] sm:$0xff]
  %s2582 = scalar_lea.vmem %s1, 1532
  %s2583 = scalar_lea.vmem %s2582, 4294967292
  %v2584 = vpack.c.bf16 %v2581, %v859
  %2585 = vst [vmem:[%s2583] sm:$0xff] %v2584
  %s2586 = scalar_lea.vmem %s0, 504
  %v2587 = vld [vmem:[%s2586] sm:$0xff]
  %s2588 = scalar_lea.vmem %s1, 2300
  %s2589 = scalar_lea.vmem %s2588, 4294967292
  %v2590 = vpack.c.bf16 %v2587, %v862
  %2591 = vst [vmem:[%s2589] sm:$0xff] %v2590

// kernel: reverse.3
$region0: #{reverse.3}
  #allocation0 [shape = 's32[1]{0}', space=sflag, size = 0x4, scoped, tag = 'scoped memory for reverse.3']
  %s0 = inlined_call_operand.vmem [shape: f32[512,256,3,3], index: 0, kind: input, shape index: {}]
  %s1 = inlined_call_operand.vmem [shape: bf16[512,256,3,3], index: 1, kind: output, shape index: {}]
  loop: start=0, step=1, limit=11
  $region2: #{reverse.3} parent=0 // loop_pre_header
    _
  $region3: #{reverse.3} parent=0 // loop_header
    %s3 = sphi 0, %s7
    %p4 = scmp.ge.s32.totalorder %s3, 11
    %s10 = sphi 0, %s36
    %s11 = sphi 0, %s32
    %s12 = sphi 0, %s28
    %s13 = sphi 0, %s24
    %s14 = sphi 0, %s10
    %s15 = sphi 0, %s11
    %s16 = sphi 0, %s12
    %s17 = sphi 0, %s13
    %s18 = sphi 0, %s14
    %s19 = sphi 0, %s15
    %s20 = sphi 0, %s16
    %s21 = sphi 0, %s17
  $region4: #{reverse.3} parent=0 // loop_header_branch
    %6 = sbr.rel (%p4) target = $region8
  $region5: #{reverse.3} parent=0 // loop_body
    %s8 = ssub.s32 %s3, 1
    %s9 = ssub.s32 %s3, 2
    %s22 = sadd.s32 1, %s13
    %p23 = scmp.ge.s32.totalorder %s22, 1
    %s24 = scalar_select %p23, 0, %s22
    %s25 = sadd.s32 1, %s12
    %s26 = scalar_select %p23, %s25, %s12
    %p27 = scmp.ge.s32.totalorder %s26, 1
    %s28 = scalar_select %p27, 0, %s26
    %s29 = sadd.s32 1, %s11
    %s30 = scalar_select %p27, %s29, %s11
    %p31 = scmp.ge.s32.totalorder %s30, 3
    %s32 = scalar_select %p31, 0, %s30
    %s33 = sadd.s32 1, %s10
    %s34 = scalar_select %p31, %s33, %s10
    %p35 = scmp.ge.s32.totalorder %s34, 3
    %s36 = scalar_select %p35, 0, %s34
    %p37 = scmp.le.s32.totalorder 1, %s3
    %p38 = scmp.lt.s32.totalorder %s3, 10
    %p39 = pnand %p37, %p38
    %p40 = pneg %p39
    // Predicated region
    $region9: #{reverse.3} parent=5 // pred_check
      _
    $region10: #{reverse.3} parent=5 // pred_check_branch
      %42 = sbr.rel (%p39) target = $region12
    $region11: #{reverse.3} parent=5 // pred_region
      %s43 = ssub.s32 %s3, 1
    $region12: #{reverse.3} parent=5 // pred_fallthru
      _
    %p44 = scmp.lt.s32.totalorder %s3, 9
    // Predicated region
    $region13: #{reverse.3} parent=5 // pred_check
      %p45 = pneg %p44
    $region14: #{reverse.3} parent=5 // pred_check_branch
      %47 = sbr.rel (%p45) target = $region16
    $region15: #{reverse.3} parent=5 // pred_region
      %s48 = ssub.s32 2, %s10
      %s49 = ssub.s32 2, %s11
      %s50 = smul.u32 64, %s12
      %s51 = smul.u32 2, %s13
      %p52 = scmp.lt.s32.totalorder %s48, 2
      %s53 = scalar_select %p52, %s48, 2
      %p54 = scmp.lt.s32.totalorder %s49, 2
      %s55 = scalar_select %p54, %s49, 2
      %p56 = scmp.lt.s32.totalorder %s50, 63
      %s57 = scalar_select %p56, %s50, 63
      %p58 = scmp.lt.s32.totalorder %s51, 1
      %s59 = scalar_select %p58, %s51, 1
      %s60 = smul.addr %s57, 2
      %s61 = sadd.s32 %s59, %s60
      %s62 = smul.addr %s55, 128
      %s63 = sadd.s32 %s61, %s62
      %s64 = smul.addr %s53, 384
      %s65 = sadd.s32 %s63, %s64
      %s66 = smul.addr %s65, 8
      %s67 = scalar_lea.vmem %s0, %s66
      %s68 = ssub.s32 2, %s10
      %s69 = ssub.s32 2, %s11
      %s70 = smul.u32 64, %s12
      %s71 = smul.u32 2, %s13
    $region16: #{reverse.3} parent=5 // pred_fallthru
      _
    %p72 = scmp.le.s32.totalorder 1, %s3
    %p73 = scmp.lt.s32.totalorder %s3, 10
    %p74 = pnand %p72, %p73
    %p75 = pneg %p74
    // Predicated region
    $region17: #{reverse.3} parent=5 // pred_check
      _
    $region18: #{reverse.3} parent=5 // pred_check_branch
      %77 = sbr.rel (%p74) target = $region20
    $region19: #{reverse.3} parent=5 // pred_region
      %s78 = ssub.s32 %s3, 1
      %s79 = ssub.s32 2, %s14
      %s80 = ssub.s32 2, %s15
      %s81 = smul.u32 64, %s16
      %s82 = smul.u32 2, %s17
      %p83 = scmp.lt.s32.totalorder %s79, 2
      %s84 = scalar_select %p83, %s79, 2
      %p85 = scmp.lt.s32.totalorder %s80, 2
      %s86 = scalar_select %p85, %s80, 2
      %p87 = scmp.lt.s32.totalorder %s81, 63
      %s88 = scalar_select %p87, %s81, 63
      %p89 = scmp.lt.s32.totalorder %s82, 1
      %s90 = scalar_select %p89, %s82, 1
      %s91 = smul.addr %s88, 2
      %s92 = sadd.s32 %s90, %s91
      %s93 = smul.addr %s86, 128
      %s94 = sadd.s32 %s92, %s93
      %s95 = smul.addr %s84, 384
      %s96 = sadd.s32 %s94, %s95
      %s97 = smul.addr %s96, 8
      %s98 = scalar_lea.vmem %s0, %s97
      %s99 = smul.u32 64, %s16
      %s100 = smul.u32 2, %s17
      %p101 = scmp.lt.s32.totalorder %s14, 2
      %s102 = scalar_select %p101, %s14, 2
      %p103 = scmp.lt.s32.totalorder %s15, 2
      %s104 = scalar_select %p103, %s15, 2
      %p105 = scmp.lt.s32.totalorder %s99, 63
      %s106 = scalar_select %p105, %s99, 63
      %p107 = scmp.lt.s32.totalorder %s100, 1
      %s108 = scalar_select %p107, %s100, 1
      %s109 = smul.addr %s106, 2
      %s110 = sadd.s32 %s108, %s109
      %s111 = smul.addr %s104, 128
      %s112 = sadd.s32 %s110, %s111
      %s113 = smul.addr %s102, 384
      %s114 = sadd.s32 %s112, %s113
      %s115 = smul.addr %s114, 4
      %s116 = scalar_lea.vmem %s1, %s115
      %s117 = smul.u32 64, %s16
      %s118 = smul.u32 2, %s17
      %s119 = ssub.s32 2, %s14
      %s120 = ssub.s32 2, %s15
      %s121 = smul.u32 64, %s16
      %s122 = smul.u32 2, %s17
      %p123 = scmp.lt.s32.totalorder %s119, 2
      %s124 = scalar_select %p123, %s119, 2
      %p125 = scmp.lt.s32.totalorder %s120, 2
      %s126 = scalar_select %p125, %s120, 2
      %p127 = scmp.lt.s32.totalorder %s121, 63
      %s128 = scalar_select %p127, %s121, 63
      %p129 = scmp.lt.s32.totalorder %s122, 1
      %s130 = scalar_select %p129, %s122, 1
      %s131 = smul.addr %s128, 2
      %s132 = sadd.s32 %s130, %s131
      %s133 = smul.addr %s126, 128
      %s134 = sadd.s32 %s132, %s133
      %s135 = smul.addr %s124, 384
      %s136 = sadd.s32 %s134, %s135
      %s137 = smul.addr %s136, 8
      %s138 = scalar_lea.vmem %s0, %s137
      %s139 = ssub.s32 2, %s14
      %s140 = ssub.s32 2, %s15
      %s141 = smul.u32 64, %s16
      %s142 = smul.u32 2, %s17
      %s143 = smul.u32 64, %s16
      %s144 = smul.u32 2, %s17
      %p145 = scmp.lt.s32.totalorder %s14, 2
      %s146 = scalar_select %p145, %s14, 2
      %p147 = scmp.lt.s32.totalorder %s15, 2
      %s148 = scalar_select %p147, %s15, 2
      %p149 = scmp.lt.s32.totalorder %s143, 63
      %s150 = scalar_select %p149, %s143, 63
      %p151 = scmp.lt.s32.totalorder %s144, 1
      %s152 = scalar_select %p151, %s144, 1
      %s153 = smul.addr %s150, 2
      %s154 = sadd.s32 %s152, %s153
      %s155 = smul.addr %s148, 128
      %s156 = sadd.s32 %s154, %s155
      %s157 = smul.addr %s146, 384
      %s158 = sadd.s32 %s156, %s157
      %s159 = smul.addr %s158, 4
      %s160 = scalar_lea.vmem %s1, %s159
      %s161 = smul.u32 64, %s16
      %s162 = smul.u32 2, %s17
      %v163 = vld [vmem:[%s138] sm:$0xff]
      %s164 = scalar_lea.vmem %s138, 16
      %v165 = vld [vmem:[%s164] sm:$0xff]
      %s166 = scalar_lea.vmem %s160, 8
      %s167 = scalar_lea.vmem %s138, 32
      %v168 = vld [vmem:[%s167] sm:$0xff]
      %s169 = scalar_lea.vmem %s160, 16
      %s170 = scalar_lea.vmem %s138, 48
      %v171 = vld [vmem:[%s170] sm:$0xff]
      %s172 = scalar_lea.vmem %s160, 24
      %s173 = scalar_lea.vmem %s138, 64
      %v174 = vld [vmem:[%s173] sm:$0xff]
      %s175 = scalar_lea.vmem %s160, 32
      %s176 = scalar_lea.vmem %s138, 80
      %v177 = vld [vmem:[%s176] sm:$0xff]
      %s178 = scalar_lea.vmem %s160, 40
      %s179 = scalar_lea.vmem %s138, 96
      %v180 = vld [vmem:[%s179] sm:$0xff]
      %s181 = scalar_lea.vmem %s160, 48
      %s182 = scalar_lea.vmem %s138, 112
      %v183 = vld [vmem:[%s182] sm:$0xff]
      %s184 = scalar_lea.vmem %s160, 56
      %s185 = scalar_lea.vmem %s138, 128
      %v186 = vld [vmem:[%s185] sm:$0xff]
      %s187 = scalar_lea.vmem %s160, 64
      %s188 = scalar_lea.vmem %s138, 144
      %v189 = vld [vmem:[%s188] sm:$0xff]
      %s190 = scalar_lea.vmem %s160, 72
      %s191 = scalar_lea.vmem %s138, 160
      %v192 = vld [vmem:[%s191] sm:$0xff]
      %s193 = scalar_lea.vmem %s160, 80
      %s194 = scalar_lea.vmem %s138, 176
      %v195 = vld [vmem:[%s194] sm:$0xff]
      %s196 = scalar_lea.vmem %s160, 88
      %s197 = scalar_lea.vmem %s138, 192
      %v198 = vld [vmem:[%s197] sm:$0xff]
      %s199 = scalar_lea.vmem %s160, 96
      %s200 = scalar_lea.vmem %s138, 208
      %v201 = vld [vmem:[%s200] sm:$0xff]
      %s202 = scalar_lea.vmem %s160, 104
      %s203 = scalar_lea.vmem %s138, 224
      %v204 = vld [vmem:[%s203] sm:$0xff]
      %s205 = scalar_lea.vmem %s160, 112
      %s206 = scalar_lea.vmem %s138, 240
      %v207 = vld [vmem:[%s206] sm:$0xff]
      %s208 = scalar_lea.vmem %s160, 120
      %s209 = scalar_lea.vmem %s138, 256
      %v210 = vld [vmem:[%s209] sm:$0xff]
      %s211 = scalar_lea.vmem %s160, 128
      %s212 = scalar_lea.vmem %s138, 272
      %v213 = vld [vmem:[%s212] sm:$0xff]
      %s214 = scalar_lea.vmem %s160, 136
      %s215 = scalar_lea.vmem %s138, 288
      %v216 = vld [vmem:[%s215] sm:$0xff]
      %s217 = scalar_lea.vmem %s160, 144
      %s218 = scalar_lea.vmem %s138, 304
      %v219 = vld [vmem:[%s218] sm:$0xff]
      %s220 = scalar_lea.vmem %s160, 152
      %s221 = scalar_lea.vmem %s138, 320
      %v222 = vld [vmem:[%s221] sm:$0xff]
      %s223 = scalar_lea.vmem %s160, 160
      %s224 = scalar_lea.vmem %s138, 336
      %v225 = vld [vmem:[%s224] sm:$0xff]
      %s226 = scalar_lea.vmem %s160, 168
      %s227 = scalar_lea.vmem %s138, 352
      %v228 = vld [vmem:[%s227] sm:$0xff]
      %s229 = scalar_lea.vmem %s160, 176
      %s230 = scalar_lea.vmem %s138, 368
      %v231 = vld [vmem:[%s230] sm:$0xff]
      %s232 = scalar_lea.vmem %s160, 184
      %s233 = scalar_lea.vmem %s138, 384
      %v234 = vld [vmem:[%s233] sm:$0xff]
      %s235 = scalar_lea.vmem %s160, 192
      %s236 = scalar_lea.vmem %s138, 400
      %v237 = vld [vmem:[%s236] sm:$0xff]
      %s238 = scalar_lea.vmem %s160, 200
      %s239 = scalar_lea.vmem %s138, 416
      %v240 = vld [vmem:[%s239] sm:$0xff]
      %s241 = scalar_lea.vmem %s160, 208
      %s242 = scalar_lea.vmem %s138, 432
      %v243 = vld [vmem:[%s242] sm:$0xff]
      %s244 = scalar_lea.vmem %s160, 216
      %s245 = scalar_lea.vmem %s138, 448
      %v246 = vld [vmem:[%s245] sm:$0xff]
      %s247 = scalar_lea.vmem %s160, 224
      %s248 = scalar_lea.vmem %s138, 464
      %v249 = vld [vmem:[%s248] sm:$0xff]
      %s250 = scalar_lea.vmem %s160, 232
      %s251 = scalar_lea.vmem %s138, 480
      %v252 = vld [vmem:[%s251] sm:$0xff]
      %s253 = scalar_lea.vmem %s160, 240
      %s254 = scalar_lea.vmem %s138, 496
      %v255 = vld [vmem:[%s254] sm:$0xff]
      %s256 = scalar_lea.vmem %s160, 248
      %s257 = scalar_lea.vmem %s138, 512
      %v258 = vld [vmem:[%s257] sm:$0xff]
      %s259 = scalar_lea.vmem %s160, 256
      %s260 = scalar_lea.vmem %s138, 528
      %v261 = vld [vmem:[%s260] sm:$0xff]
      %s262 = scalar_lea.vmem %s160, 264
      %s263 = scalar_lea.vmem %s138, 544
      %v264 = vld [vmem:[%s263] sm:$0xff]
      %s265 = scalar_lea.vmem %s160, 272
      %s266 = scalar_lea.vmem %s138, 560
      %v267 = vld [vmem:[%s266] sm:$0xff]
      %s268 = scalar_lea.vmem %s160, 280
      %s269 = scalar_lea.vmem %s138, 576
      %v270 = vld [vmem:[%s269] sm:$0xff]
      %s271 = scalar_lea.vmem %s160, 288
      %s272 = scalar_lea.vmem %s138, 592
      %v273 = vld [vmem:[%s272] sm:$0xff]
      %s274 = scalar_lea.vmem %s160, 296
      %s275 = scalar_lea.vmem %s138, 608
      %v276 = vld [vmem:[%s275] sm:$0xff]
      %s277 = scalar_lea.vmem %s160, 304
      %s278 = scalar_lea.vmem %s138, 624
      %v279 = vld [vmem:[%s278] sm:$0xff]
      %s280 = scalar_lea.vmem %s160, 312
      %s281 = scalar_lea.vmem %s138, 640
      %v282 = vld [vmem:[%s281] sm:$0xff]
      %s283 = scalar_lea.vmem %s160, 320
      %s284 = scalar_lea.vmem %s138, 656
      %v285 = vld [vmem:[%s284] sm:$0xff]
      %s286 = scalar_lea.vmem %s160, 328
      %s287 = scalar_lea.vmem %s138, 672
      %v288 = vld [vmem:[%s287] sm:$0xff]
      %s289 = scalar_lea.vmem %s160, 336
      %s290 = scalar_lea.vmem %s138, 688
      %v291 = vld [vmem:[%s290] sm:$0xff]
      %s292 = scalar_lea.vmem %s160, 344
      %s293 = scalar_lea.vmem %s138, 704
      %v294 = vld [vmem:[%s293] sm:$0xff]
      %s295 = scalar_lea.vmem %s160, 352
      %s296 = scalar_lea.vmem %s138, 720
      %v297 = vld [vmem:[%s296] sm:$0xff]
      %s298 = scalar_lea.vmem %s160, 360
      %s299 = scalar_lea.vmem %s138, 736
      %v300 = vld [vmem:[%s299] sm:$0xff]
      %s301 = scalar_lea.vmem %s160, 368
      %s302 = scalar_lea.vmem %s138, 752
      %v303 = vld [vmem:[%s302] sm:$0xff]
      %s304 = scalar_lea.vmem %s160, 376
      %s305 = scalar_lea.vmem %s138, 768
      %v306 = vld [vmem:[%s305] sm:$0xff]
      %s307 = scalar_lea.vmem %s160, 384
      %s308 = scalar_lea.vmem %s138, 784
      %v309 = vld [vmem:[%s308] sm:$0xff]
      %s310 = scalar_lea.vmem %s160, 392
      %s311 = scalar_lea.vmem %s138, 800
      %v312 = vld [vmem:[%s311] sm:$0xff]
      %s313 = scalar_lea.vmem %s160, 400
      %s314 = scalar_lea.vmem %s138, 816
      %v315 = vld [vmem:[%s314] sm:$0xff]
      %s316 = scalar_lea.vmem %s160, 408
      %s317 = scalar_lea.vmem %s138, 832
      %v318 = vld [vmem:[%s317] sm:$0xff]
      %s319 = scalar_lea.vmem %s160, 416
      %s320 = scalar_lea.vmem %s138, 848
      %v321 = vld [vmem:[%s320] sm:$0xff]
      %s322 = scalar_lea.vmem %s160, 424
      %s323 = scalar_lea.vmem %s138, 864
      %v324 = vld [vmem:[%s323] sm:$0xff]
      %s325 = scalar_lea.vmem %s160, 432
      %s326 = scalar_lea.vmem %s138, 880
      %v327 = vld [vmem:[%s326] sm:$0xff]
      %s328 = scalar_lea.vmem %s160, 440
      %s329 = scalar_lea.vmem %s138, 896
      %v330 = vld [vmem:[%s329] sm:$0xff]
      %s331 = scalar_lea.vmem %s160, 448
      %s332 = scalar_lea.vmem %s138, 912
      %v333 = vld [vmem:[%s332] sm:$0xff]
      %s334 = scalar_lea.vmem %s160, 456
      %s335 = scalar_lea.vmem %s138, 928
      %v336 = vld [vmem:[%s335] sm:$0xff]
      %s337 = scalar_lea.vmem %s160, 464
      %s338 = scalar_lea.vmem %s138, 944
      %v339 = vld [vmem:[%s338] sm:$0xff]
      %s340 = scalar_lea.vmem %s160, 472
      %s341 = scalar_lea.vmem %s138, 960
      %v342 = vld [vmem:[%s341] sm:$0xff]
      %s343 = scalar_lea.vmem %s160, 480
      %s344 = scalar_lea.vmem %s138, 976
      %v345 = vld [vmem:[%s344] sm:$0xff]
      %s346 = scalar_lea.vmem %s160, 488
      %s347 = scalar_lea.vmem %s138, 992
      %v348 = vld [vmem:[%s347] sm:$0xff]
      %s349 = scalar_lea.vmem %s160, 496
      %s350 = scalar_lea.vmem %s138, 1008
      %v351 = vld [vmem:[%s350] sm:$0xff]
      %s352 = scalar_lea.vmem %s160, 504
      %s353 = scalar_lea.vmem %s138, 8
      %v354 = vld [vmem:[%s353] sm:$0xff]
      %s355 = scalar_lea.vmem %s160, 4
      %s356 = scalar_lea.vmem %s355, 4294967292
      %v357 = vpack.c.bf16 %v354, %v163
      %358 = vst [vmem:[%s356] sm:$0xff] %v357
      %s359 = scalar_lea.vmem %s138, 24
      %v360 = vld [vmem:[%s359] sm:$0xff]
      %s361 = scalar_lea.vmem %s160, 12
      %s362 = scalar_lea.vmem %s361, 4294967292
      %v363 = vpack.c.bf16 %v360, %v165
      %364 = vst [vmem:[%s362] sm:$0xff] %v363
      %s365 = scalar_lea.vmem %s138, 40
      %v366 = vld [vmem:[%s365] sm:$0xff]
      %s367 = scalar_lea.vmem %s160, 20
      %s368 = scalar_lea.vmem %s367, 4294967292
      %v369 = vpack.c.bf16 %v366, %v168
      %370 = vst [vmem:[%s368] sm:$0xff] %v369
      %s371 = scalar_lea.vmem %s138, 56
      %v372 = vld [vmem:[%s371] sm:$0xff]
      %s373 = scalar_lea.vmem %s160, 28
      %s374 = scalar_lea.vmem %s373, 4294967292
      %v375 = vpack.c.bf16 %v372, %v171
      %376 = vst [vmem:[%s374] sm:$0xff] %v375
      %s377 = scalar_lea.vmem %s138, 72
      %v378 = vld [vmem:[%s377] sm:$0xff]
      %s379 = scalar_lea.vmem %s160, 36
      %s380 = scalar_lea.vmem %s379, 4294967292
      %v381 = vpack.c.bf16 %v378, %v174
      %382 = vst [vmem:[%s380] sm:$0xff] %v381
      %s383 = scalar_lea.vmem %s138, 88
      %v384 = vld [vmem:[%s383] sm:$0xff]
      %s385 = scalar_lea.vmem %s160, 44
      %s386 = scalar_lea.vmem %s385, 4294967292
      %v387 = vpack.c.bf16 %v384, %v177
      %388 = vst [vmem:[%s386] sm:$0xff] %v387
      %s389 = scalar_lea.vmem %s138, 104
      %v390 = vld [vmem:[%s389] sm:$0xff]
      %s391 = scalar_lea.vmem %s160, 52
      %s392 = scalar_lea.vmem %s391, 4294967292
      %v393 = vpack.c.bf16 %v390, %v180
      %394 = vst [vmem:[%s392] sm:$0xff] %v393
      %s395 = scalar_lea.vmem %s138, 120
      %v396 = vld [vmem:[%s395] sm:$0xff]
      %s397 = scalar_lea.vmem %s160, 60
      %s398 = scalar_lea.vmem %s397, 4294967292
      %v399 = vpack.c.bf16 %v396, %v183
      %400 = vst [vmem:[%s398] sm:$0xff] %v399
      %s401 = scalar_lea.vmem %s138, 136
      %v402 = vld [vmem:[%s401] sm:$0xff]
      %s403 = scalar_lea.vmem %s160, 68
      %s404 = scalar_lea.vmem %s403, 4294967292
      %v405 = vpack.c.bf16 %v402, %v186
      %406 = vst [vmem:[%s404] sm:$0xff] %v405
      %s407 = scalar_lea.vmem %s138, 152
      %v408 = vld [vmem:[%s407] sm:$0xff]
      %s409 = scalar_lea.vmem %s160, 76
      %s410 = scalar_lea.vmem %s409, 4294967292
      %v411 = vpack.c.bf16 %v408, %v189
      %412 = vst [vmem:[%s410] sm:$0xff] %v411
      %s413 = scalar_lea.vmem %s138, 168
      %v414 = vld [vmem:[%s413] sm:$0xff]
      %s415 = scalar_lea.vmem %s160, 84
      %s416 = scalar_lea.vmem %s415, 4294967292
      %v417 = vpack.c.bf16 %v414, %v192
      %418 = vst [vmem:[%s416] sm:$0xff] %v417
      %s419 = scalar_lea.vmem %s138, 184
      %v420 = vld [vmem:[%s419] sm:$0xff]
      %s421 = scalar_lea.vmem %s160, 92
      %s422 = scalar_lea.vmem %s421, 4294967292
      %v423 = vpack.c.bf16 %v420, %v195
      %424 = vst [vmem:[%s422] sm:$0xff] %v423
      %s425 = scalar_lea.vmem %s138, 200
      %v426 = vld [vmem:[%s425] sm:$0xff]
      %s427 = scalar_lea.vmem %s160, 100
      %s428 = scalar_lea.vmem %s427, 4294967292
      %v429 = vpack.c.bf16 %v426, %v198
      %430 = vst [vmem:[%s428] sm:$0xff] %v429
      %s431 = scalar_lea.vmem %s138, 216
      %v432 = vld [vmem:[%s431] sm:$0xff]
      %s433 = scalar_lea.vmem %s160, 108
      %s434 = scalar_lea.vmem %s433, 4294967292
      %v435 = vpack.c.bf16 %v432, %v201
      %436 = vst [vmem:[%s434] sm:$0xff] %v435
      %s437 = scalar_lea.vmem %s138, 232
      %v438 = vld [vmem:[%s437] sm:$0xff]
      %s439 = scalar_lea.vmem %s160, 116
      %s440 = scalar_lea.vmem %s439, 4294967292
      %v441 = vpack.c.bf16 %v438, %v204
      %442 = vst [vmem:[%s440] sm:$0xff] %v441
      %s443 = scalar_lea.vmem %s138, 248
      %v444 = vld [vmem:[%s443] sm:$0xff]
      %s445 = scalar_lea.vmem %s160, 124
      %s446 = scalar_lea.vmem %s445, 4294967292
      %v447 = vpack.c.bf16 %v444, %v207
      %448 = vst [vmem:[%s446] sm:$0xff] %v447
      %s449 = scalar_lea.vmem %s138, 264
      %v450 = vld [vmem:[%s449] sm:$0xff]
      %s451 = scalar_lea.vmem %s160, 132
      %s452 = scalar_lea.vmem %s451, 4294967292
      %v453 = vpack.c.bf16 %v450, %v210
      %454 = vst [vmem:[%s452] sm:$0xff] %v453
      %s455 = scalar_lea.vmem %s138, 280
      %v456 = vld [vmem:[%s455] sm:$0xff]
      %s457 = scalar_lea.vmem %s160, 140
      %s458 = scalar_lea.vmem %s457, 4294967292
      %v459 = vpack.c.bf16 %v456, %v213
      %460 = vst [vmem:[%s458] sm:$0xff] %v459
      %s461 = scalar_lea.vmem %s138, 296
      %v462 = vld [vmem:[%s461] sm:$0xff]
      %s463 = scalar_lea.vmem %s160, 148
      %s464 = scalar_lea.vmem %s463, 4294967292
      %v465 = vpack.c.bf16 %v462, %v216
      %466 = vst [vmem:[%s464] sm:$0xff] %v465
      %s467 = scalar_lea.vmem %s138, 312
      %v468 = vld [vmem:[%s467] sm:$0xff]
      %s469 = scalar_lea.vmem %s160, 156
      %s470 = scalar_lea.vmem %s469, 4294967292
      %v471 = vpack.c.bf16 %v468, %v219
      %472 = vst [vmem:[%s470] sm:$0xff] %v471
      %s473 = scalar_lea.vmem %s138, 328
      %v474 = vld [vmem:[%s473] sm:$0xff]
      %s475 = scalar_lea.vmem %s160, 164
      %s476 = scalar_lea.vmem %s475, 4294967292
      %v477 = vpack.c.bf16 %v474, %v222
      %478 = vst [vmem:[%s476] sm:$0xff] %v477
      %s479 = scalar_lea.vmem %s138, 344
      %v480 = vld [vmem:[%s479] sm:$0xff]
      %s481 = scalar_lea.vmem %s160, 172
      %s482 = scalar_lea.vmem %s481, 4294967292
      %v483 = vpack.c.bf16 %v480, %v225
      %484 = vst [vmem:[%s482] sm:$0xff] %v483
      %s485 = scalar_lea.vmem %s138, 360
      %v486 = vld [vmem:[%s485] sm:$0xff]
      %s487 = scalar_lea.vmem %s160, 180
      %s488 = scalar_lea.vmem %s487, 4294967292
      %v489 = vpack.c.bf16 %v486, %v228
      %490 = vst [vmem:[%s488] sm:$0xff] %v489
      %s491 = scalar_lea.vmem %s138, 376
      %v492 = vld [vmem:[%s491] sm:$0xff]
      %s493 = scalar_lea.vmem %s160, 188
      %s494 = scalar_lea.vmem %s493, 4294967292
      %v495 = vpack.c.bf16 %v492, %v231
      %496 = vst [vmem:[%s494] sm:$0xff] %v495
      %s497 = scalar_lea.vmem %s138, 392
      %v498 = vld [vmem:[%s497] sm:$0xff]
      %s499 = scalar_lea.vmem %s160, 196
      %s500 = scalar_lea.vmem %s499, 4294967292
      %v501 = vpack.c.bf16 %v498, %v234
      %502 = vst [vmem:[%s500] sm:$0xff] %v501
      %s503 = scalar_lea.vmem %s138, 408
      %v504 = vld [vmem:[%s503] sm:$0xff]
      %s505 = scalar_lea.vmem %s160, 204
      %s506 = scalar_lea.vmem %s505, 4294967292
      %v507 = vpack.c.bf16 %v504, %v237
      %508 = vst [vmem:[%s506] sm:$0xff] %v507
      %s509 = scalar_lea.vmem %s138, 424
      %v510 = vld [vmem:[%s509] sm:$0xff]
      %s511 = scalar_lea.vmem %s160, 212
      %s512 = scalar_lea.vmem %s511, 4294967292
      %v513 = vpack.c.bf16 %v510, %v240
      %514 = vst [vmem:[%s512] sm:$0xff] %v513
      %s515 = scalar_lea.vmem %s138, 440
      %v516 = vld [vmem:[%s515] sm:$0xff]
      %s517 = scalar_lea.vmem %s160, 220
      %s518 = scalar_lea.vmem %s517, 4294967292
      %v519 = vpack.c.bf16 %v516, %v243
      %520 = vst [vmem:[%s518] sm:$0xff] %v519
      %s521 = scalar_lea.vmem %s138, 456
      %v522 = vld [vmem:[%s521] sm:$0xff]
      %s523 = scalar_lea.vmem %s160, 228
      %s524 = scalar_lea.vmem %s523, 4294967292
      %v525 = vpack.c.bf16 %v522, %v246
      %526 = vst [vmem:[%s524] sm:$0xff] %v525
      %s527 = scalar_lea.vmem %s138, 472
      %v528 = vld [vmem:[%s527] sm:$0xff]
      %s529 = scalar_lea.vmem %s160, 236
      %s530 = scalar_lea.vmem %s529, 4294967292
      %v531 = vpack.c.bf16 %v528, %v249
      %532 = vst [vmem:[%s530] sm:$0xff] %v531
      %s533 = scalar_lea.vmem %s138, 488
      %v534 = vld [vmem:[%s533] sm:$0xff]
      %s535 = scalar_lea.vmem %s160, 244
      %s536 = scalar_lea.vmem %s535, 4294967292
      %v537 = vpack.c.bf16 %v534, %v252
      %538 = vst [vmem:[%s536] sm:$0xff] %v537
      %s539 = scalar_lea.vmem %s138, 504
      %v540 = vld [vmem:[%s539] sm:$0xff]
      %s541 = scalar_lea.vmem %s160, 252
      %s542 = scalar_lea.vmem %s541, 4294967292
      %v543 = vpack.c.bf16 %v540, %v255
      %544 = vst [vmem:[%s542] sm:$0xff] %v543
      %s545 = scalar_lea.vmem %s138, 520
      %v546 = vld [vmem:[%s545] sm:$0xff]
      %s547 = scalar_lea.vmem %s160, 260
      %s548 = scalar_lea.vmem %s547, 4294967292
      %v549 = vpack.c.bf16 %v546, %v258
      %550 = vst [vmem:[%s548] sm:$0xff] %v549
      %s551 = scalar_lea.vmem %s138, 536
      %v552 = vld [vmem:[%s551] sm:$0xff]
      %s553 = scalar_lea.vmem %s160, 268
      %s554 = scalar_lea.vmem %s553, 4294967292
      %v555 = vpack.c.bf16 %v552, %v261
      %556 = vst [vmem:[%s554] sm:$0xff] %v555
      %s557 = scalar_lea.vmem %s138, 552
      %v558 = vld [vmem:[%s557] sm:$0xff]
      %s559 = scalar_lea.vmem %s160, 276
      %s560 = scalar_lea.vmem %s559, 4294967292
      %v561 = vpack.c.bf16 %v558, %v264
      %562 = vst [vmem:[%s560] sm:$0xff] %v561
      %s563 = scalar_lea.vmem %s138, 568
      %v564 = vld [vmem:[%s563] sm:$0xff]
      %s565 = scalar_lea.vmem %s160, 284
      %s566 = scalar_lea.vmem %s565, 4294967292
      %v567 = vpack.c.bf16 %v564, %v267
      %568 = vst [vmem:[%s566] sm:$0xff] %v567
      %s569 = scalar_lea.vmem %s138, 584
      %v570 = vld [vmem:[%s569] sm:$0xff]
      %s571 = scalar_lea.vmem %s160, 292
      %s572 = scalar_lea.vmem %s571, 4294967292
      %v573 = vpack.c.bf16 %v570, %v270
      %574 = vst [vmem:[%s572] sm:$0xff] %v573
      %s575 = scalar_lea.vmem %s138, 600
      %v576 = vld [vmem:[%s575] sm:$0xff]
      %s577 = scalar_lea.vmem %s160, 300
      %s578 = scalar_lea.vmem %s577, 4294967292
      %v579 = vpack.c.bf16 %v576, %v273
      %580 = vst [vmem:[%s578] sm:$0xff] %v579
      %s581 = scalar_lea.vmem %s138, 616
      %v582 = vld [vmem:[%s581] sm:$0xff]
      %s583 = scalar_lea.vmem %s160, 308
      %s584 = scalar_lea.vmem %s583, 4294967292
      %v585 = vpack.c.bf16 %v582, %v276
      %586 = vst [vmem:[%s584] sm:$0xff] %v585
      %s587 = scalar_lea.vmem %s138, 632
      %v588 = vld [vmem:[%s587] sm:$0xff]
      %s589 = scalar_lea.vmem %s160, 316
      %s590 = scalar_lea.vmem %s589, 4294967292
      %v591 = vpack.c.bf16 %v588, %v279
      %592 = vst [vmem:[%s590] sm:$0xff] %v591
      %s593 = scalar_lea.vmem %s138, 648
      %v594 = vld [vmem:[%s593] sm:$0xff]
      %s595 = scalar_lea.vmem %s160, 324
      %s596 = scalar_lea.vmem %s595, 4294967292
      %v597 = vpack.c.bf16 %v594, %v282
      %598 = vst [vmem:[%s596] sm:$0xff] %v597
      %s599 = scalar_lea.vmem %s138, 664
      %v600 = vld [vmem:[%s599] sm:$0xff]
      %s601 = scalar_lea.vmem %s160, 332
      %s602 = scalar_lea.vmem %s601, 4294967292
      %v603 = vpack.c.bf16 %v600, %v285
      %604 = vst [vmem:[%s602] sm:$0xff] %v603
      %s605 = scalar_lea.vmem %s138, 680
      %v606 = vld [vmem:[%s605] sm:$0xff]
      %s607 = scalar_lea.vmem %s160, 340
      %s608 = scalar_lea.vmem %s607, 4294967292
      %v609 = vpack.c.bf16 %v606, %v288
      %610 = vst [vmem:[%s608] sm:$0xff] %v609
      %s611 = scalar_lea.vmem %s138, 696
      %v612 = vld [vmem:[%s611] sm:$0xff]
      %s613 = scalar_lea.vmem %s160, 348
      %s614 = scalar_lea.vmem %s613, 4294967292
      %v615 = vpack.c.bf16 %v612, %v291
      %616 = vst [vmem:[%s614] sm:$0xff] %v615
      %s617 = scalar_lea.vmem %s138, 712
      %v618 = vld [vmem:[%s617] sm:$0xff]
      %s619 = scalar_lea.vmem %s160, 356
      %s620 = scalar_lea.vmem %s619, 4294967292
      %v621 = vpack.c.bf16 %v618, %v294
      %622 = vst [vmem:[%s620] sm:$0xff] %v621
      %s623 = scalar_lea.vmem %s138, 728
      %v624 = vld [vmem:[%s623] sm:$0xff]
      %s625 = scalar_lea.vmem %s160, 364
      %s626 = scalar_lea.vmem %s625, 4294967292
      %v627 = vpack.c.bf16 %v624, %v297
      %628 = vst [vmem:[%s626] sm:$0xff] %v627
      %s629 = scalar_lea.vmem %s138, 744
      %v630 = vld [vmem:[%s629] sm:$0xff]
      %s631 = scalar_lea.vmem %s160, 372
      %s632 = scalar_lea.vmem %s631, 4294967292
      %v633 = vpack.c.bf16 %v630, %v300
      %634 = vst [vmem:[%s632] sm:$0xff] %v633
      %s635 = scalar_lea.vmem %s138, 760
      %v636 = vld [vmem:[%s635] sm:$0xff]
      %s637 = scalar_lea.vmem %s160, 380
      %s638 = scalar_lea.vmem %s637, 4294967292
      %v639 = vpack.c.bf16 %v636, %v303
      %640 = vst [vmem:[%s638] sm:$0xff] %v639
      %s641 = scalar_lea.vmem %s138, 776
      %v642 = vld [vmem:[%s641] sm:$0xff]
      %s643 = scalar_lea.vmem %s160, 388
      %s644 = scalar_lea.vmem %s643, 4294967292
      %v645 = vpack.c.bf16 %v642, %v306
      %646 = vst [vmem:[%s644] sm:$0xff] %v645
      %s647 = scalar_lea.vmem %s138, 792
      %v648 = vld [vmem:[%s647] sm:$0xff]
      %s649 = scalar_lea.vmem %s160, 396
      %s650 = scalar_lea.vmem %s649, 4294967292
      %v651 = vpack.c.bf16 %v648, %v309
      %652 = vst [vmem:[%s650] sm:$0xff] %v651
      %s653 = scalar_lea.vmem %s138, 808
      %v654 = vld [vmem:[%s653] sm:$0xff]
      %s655 = scalar_lea.vmem %s160, 404
      %s656 = scalar_lea.vmem %s655, 4294967292
      %v657 = vpack.c.bf16 %v654, %v312
      %658 = vst [vmem:[%s656] sm:$0xff] %v657
      %s659 = scalar_lea.vmem %s138, 824
      %v660 = vld [vmem:[%s659] sm:$0xff]
      %s661 = scalar_lea.vmem %s160, 412
      %s662 = scalar_lea.vmem %s661, 4294967292
      %v663 = vpack.c.bf16 %v660, %v315
      %664 = vst [vmem:[%s662] sm:$0xff] %v663
      %s665 = scalar_lea.vmem %s138, 840
      %v666 = vld [vmem:[%s665] sm:$0xff]
      %s667 = scalar_lea.vmem %s160, 420
      %s668 = scalar_lea.vmem %s667, 4294967292
      %v669 = vpack.c.bf16 %v666, %v318
      %670 = vst [vmem:[%s668] sm:$0xff] %v669
      %s671 = scalar_lea.vmem %s138, 856
      %v672 = vld [vmem:[%s671] sm:$0xff]
      %s673 = scalar_lea.vmem %s160, 428
      %s674 = scalar_lea.vmem %s673, 4294967292
      %v675 = vpack.c.bf16 %v672, %v321
      %676 = vst [vmem:[%s674] sm:$0xff] %v675
      %s677 = scalar_lea.vmem %s138, 872
      %v678 = vld [vmem:[%s677] sm:$0xff]
      %s679 = scalar_lea.vmem %s160, 436
      %s680 = scalar_lea.vmem %s679, 4294967292
      %v681 = vpack.c.bf16 %v678, %v324
      %682 = vst [vmem:[%s680] sm:$0xff] %v681
      %s683 = scalar_lea.vmem %s138, 888
      %v684 = vld [vmem:[%s683] sm:$0xff]
      %s685 = scalar_lea.vmem %s160, 444
      %s686 = scalar_lea.vmem %s685, 4294967292
      %v687 = vpack.c.bf16 %v684, %v327
      %688 = vst [vmem:[%s686] sm:$0xff] %v687
      %s689 = scalar_lea.vmem %s138, 904
      %v690 = vld [vmem:[%s689] sm:$0xff]
      %s691 = scalar_lea.vmem %s160, 452
      %s692 = scalar_lea.vmem %s691, 4294967292
      %v693 = vpack.c.bf16 %v690, %v330
      %694 = vst [vmem:[%s692] sm:$0xff] %v693
      %s695 = scalar_lea.vmem %s138, 920
      %v696 = vld [vmem:[%s695] sm:$0xff]
      %s697 = scalar_lea.vmem %s160, 460
      %s698 = scalar_lea.vmem %s697, 4294967292
      %v699 = vpack.c.bf16 %v696, %v333
      %700 = vst [vmem:[%s698] sm:$0xff] %v699
      %s701 = scalar_lea.vmem %s138, 936
      %v702 = vld [vmem:[%s701] sm:$0xff]
      %s703 = scalar_lea.vmem %s160, 468
      %s704 = scalar_lea.vmem %s703, 4294967292
      %v705 = vpack.c.bf16 %v702, %v336
      %706 = vst [vmem:[%s704] sm:$0xff] %v705
      %s707 = scalar_lea.vmem %s138, 952
      %v708 = vld [vmem:[%s707] sm:$0xff]
      %s709 = scalar_lea.vmem %s160, 476
      %s710 = scalar_lea.vmem %s709, 4294967292
      %v711 = vpack.c.bf16 %v708, %v339
      %712 = vst [vmem:[%s710] sm:$0xff] %v711
      %s713 = scalar_lea.vmem %s138, 968
      %v714 = vld [vmem:[%s713] sm:$0xff]
      %s715 = scalar_lea.vmem %s160, 484
      %s716 = scalar_lea.vmem %s715, 4294967292
      %v717 = vpack.c.bf16 %v714, %v342
      %718 = vst [vmem:[%s716] sm:$0xff] %v717
      %s719 = scalar_lea.vmem %s138, 984
      %v720 = vld [vmem:[%s719] sm:$0xff]
      %s721 = scalar_lea.vmem %s160, 492
      %s722 = scalar_lea.vmem %s721, 4294967292
      %v723 = vpack.c.bf16 %v720, %v345
      %724 = vst [vmem:[%s722] sm:$0xff] %v723
      %s725 = scalar_lea.vmem %s138, 1000
      %v726 = vld [vmem:[%s725] sm:$0xff]
      %s727 = scalar_lea.vmem %s160, 500
      %s728 = scalar_lea.vmem %s727, 4294967292
      %v729 = vpack.c.bf16 %v726, %v348
      %730 = vst [vmem:[%s728] sm:$0xff] %v729
      %s731 = scalar_lea.vmem %s138, 1016
      %v732 = vld [vmem:[%s731] sm:$0xff]
      %s733 = scalar_lea.vmem %s160, 508
      %s734 = scalar_lea.vmem %s733, 4294967292
      %v735 = vpack.c.bf16 %v732, %v351
      %736 = vst [vmem:[%s734] sm:$0xff] %v735
      %s737 = smul.u32 64, %s16
      %s738 = smul.u32 2, %s17
      %p739 = scmp.lt.s32.totalorder %s14, 2
      %s740 = scalar_select %p739, %s14, 2
      %p741 = scmp.lt.s32.totalorder %s15, 2
      %s742 = scalar_select %p741, %s15, 2
      %p743 = scmp.lt.s32.totalorder %s737, 63
      %s744 = scalar_select %p743, %s737, 63
      %p745 = scmp.lt.s32.totalorder %s738, 1
      %s746 = scalar_select %p745, %s738, 1
      %s747 = smul.addr %s744, 2
      %s748 = sadd.s32 %s746, %s747
      %s749 = smul.addr %s742, 128
      %s750 = sadd.s32 %s748, %s749
      %s751 = smul.addr %s740, 384
      %s752 = sadd.s32 %s750, %s751
      %s753 = smul.addr %s752, 4
      %s754 = scalar_lea.vmem %s1, %s753
      %s755 = smul.u32 64, %s16
      %s756 = smul.u32 2, %s17
    $region20: #{reverse.3} parent=5 // pred_fallthru
      _
    %p757 = scmp.le.s32.totalorder 2, %s3
    // Predicated region
    $region21: #{reverse.3} parent=5 // pred_check
      %p758 = pneg %p757
    $region22: #{reverse.3} parent=5 // pred_check_branch
      %760 = sbr.rel (%p758) target = $region24
    $region23: #{reverse.3} parent=5 // pred_region
      %s761 = ssub.s32 %s3, 2
      %s762 = smul.u32 64, %s20
      %s763 = smul.u32 2, %s21
      %p764 = scmp.lt.s32.totalorder %s18, 2
      %s765 = scalar_select %p764, %s18, 2
      %p766 = scmp.lt.s32.totalorder %s19, 2
      %s767 = scalar_select %p766, %s19, 2
      %p768 = scmp.lt.s32.totalorder %s762, 63
      %s769 = scalar_select %p768, %s762, 63
      %p770 = scmp.lt.s32.totalorder %s763, 1
      %s771 = scalar_select %p770, %s763, 1
      %s772 = smul.addr %s769, 2
      %s773 = sadd.s32 %s771, %s772
      %s774 = smul.addr %s767, 128
      %s775 = sadd.s32 %s773, %s774
      %s776 = smul.addr %s765, 384
      %s777 = sadd.s32 %s775, %s776
      %s778 = smul.addr %s777, 4
      %s779 = scalar_lea.vmem %s1, %s778
    $region24: #{reverse.3} parent=5 // pred_fallthru
      _
  $region6: #{reverse.3} parent=0 // loop_footer
    %s7 = sadd.s32 1, %s3
  $region7: #{reverse.3} parent=0 // loop_footer_branch
    %2 = sbr.rel target = $region3
  $region8: #{reverse.3} parent=0 // loop_exit
    _

// kernel: reverse.4
$region0: #{reverse.4}
  #allocation0 [shape = 's32[1]{0}', space=sflag, size = 0x4, scoped, tag = 'scoped memory for reverse.4']
  %s0 = inlined_call_operand.vmem [shape: f32[512,512,3,3], index: 0, kind: input, shape index: {}]
  %s1 = inlined_call_operand.vmem [shape: bf16[512,512,3,3], index: 1, kind: output, shape index: {}]
  loop: start=0, step=1, limit=28
  $region2: #{reverse.4} parent=0 // loop_pre_header
    _
  $region3: #{reverse.4} parent=0 // loop_header
    %s3 = sphi 0, %s7
    %p4 = scmp.ge.s32.totalorder %s3, 28
    %s18 = sphi 0, %s76
    %s19 = sphi 0, %s72
    %s20 = sphi 0, %s68
    %s21 = sphi 0, %s64
    %s22 = sphi 0, %s18
    %s23 = sphi 0, %s19
    %s24 = sphi 0, %s20
    %s25 = sphi 0, %s21
    %s26 = sphi 0, %s22
    %s27 = sphi 0, %s23
    %s28 = sphi 0, %s24
    %s29 = sphi 0, %s25
    %s30 = sphi 0, %s26
    %s31 = sphi 0, %s27
    %s32 = sphi 0, %s28
    %s33 = sphi 0, %s29
    %s34 = sphi 0, %s30
    %s35 = sphi 0, %s31
    %s36 = sphi 0, %s32
    %s37 = sphi 0, %s33
    %s38 = sphi 0, %s34
    %s39 = sphi 0, %s35
    %s40 = sphi 0, %s36
    %s41 = sphi 0, %s37
    %s42 = sphi 0, %s38
    %s43 = sphi 0, %s39
    %s44 = sphi 0, %s40
    %s45 = sphi 0, %s41
    %s46 = sphi 0, %s42
    %s47 = sphi 0, %s43
    %s48 = sphi 0, %s44
    %s49 = sphi 0, %s45
    %s50 = sphi 0, %s46
    %s51 = sphi 0, %s47
    %s52 = sphi 0, %s48
    %s53 = sphi 0, %s49
    %s54 = sphi 0, %s50
    %s55 = sphi 0, %s51
    %s56 = sphi 0, %s52
    %s57 = sphi 0, %s53
    %s58 = sphi 0, %s54
    %s59 = sphi 0, %s55
    %s60 = sphi 0, %s56
    %s61 = sphi 0, %s57
  $region4: #{reverse.4} parent=0 // loop_header_branch
    %6 = sbr.rel (%p4) target = $region8
  $region5: #{reverse.4} parent=0 // loop_body
    %s8 = ssub.s32 %s3, 1
    %s9 = ssub.s32 %s3, 2
    %s10 = ssub.s32 %s3, 3
    %s11 = ssub.s32 %s3, 4
    %s12 = ssub.s32 %s3, 5
    %s13 = ssub.s32 %s3, 6
    %s14 = ssub.s32 %s3, 7
    %s15 = ssub.s32 %s3, 8
    %s16 = ssub.s32 %s3, 9
    %s17 = ssub.s32 %s3, 10
    %s62 = sadd.s32 1, %s21
    %p63 = scmp.ge.s32.totalorder %s62, 1
    %s64 = scalar_select %p63, 0, %s62
    %s65 = sadd.s32 1, %s20
    %s66 = scalar_select %p63, %s65, %s20
    %p67 = scmp.ge.s32.totalorder %s66, 2
    %s68 = scalar_select %p67, 0, %s66
    %s69 = sadd.s32 1, %s19
    %s70 = scalar_select %p67, %s69, %s19
    %p71 = scmp.ge.s32.totalorder %s70, 3
    %s72 = scalar_select %p71, 0, %s70
    %s73 = sadd.s32 1, %s18
    %s74 = scalar_select %p71, %s73, %s18
    %p75 = scmp.ge.s32.totalorder %s74, 3
    %s76 = scalar_select %p75, 0, %s74
    %p77 = scmp.le.s32.totalorder 5, %s3
    %p78 = scmp.lt.s32.totalorder %s3, 23
    %p79 = pnand %p77, %p78
    %p80 = pneg %p79
    // Predicated region
    $region9: #{reverse.4} parent=5 // pred_check
      _
    $region10: #{reverse.4} parent=5 // pred_check_branch
      %82 = sbr.rel (%p79) target = $region12
    $region11: #{reverse.4} parent=5 // pred_region
      %s83 = ssub.s32 %s3, 5
    $region12: #{reverse.4} parent=5 // pred_fallthru
      _
    %p84 = scmp.lt.s32.totalorder %s3, 18
    // Predicated region
    $region13: #{reverse.4} parent=5 // pred_check
      %p85 = pneg %p84
    $region14: #{reverse.4} parent=5 // pred_check_branch
      %87 = sbr.rel (%p85) target = $region16
    $region15: #{reverse.4} parent=5 // pred_region
      %s88 = ssub.s32 2, %s18
      %s89 = ssub.s32 2, %s19
      %s90 = smul.u32 32, %s20
      %s91 = smul.u32 4, %s21
      %p92 = scmp.lt.s32.totalorder %s88, 2
      %s93 = scalar_select %p92, %s88, 2
      %p94 = scmp.lt.s32.totalorder %s89, 2
      %s95 = scalar_select %p94, %s89, 2
      %p96 = scmp.lt.s32.totalorder %s90, 63
      %s97 = scalar_select %p96, %s90, 63
      %p98 = scmp.lt.s32.totalorder %s91, 3
      %s99 = scalar_select %p98, %s91, 3
      %s100 = smul.addr %s97, 4
      %s101 = sadd.s32 %s99, %s100
      %s102 = smul.addr %s95, 256
      %s103 = sadd.s32 %s101, %s102
      %s104 = smul.addr %s93, 768
      %s105 = sadd.s32 %s103, %s104
      %s106 = smul.addr %s105, 8
      %s107 = scalar_lea.vmem %s0, %s106
      %s108 = ssub.s32 2, %s18
      %s109 = ssub.s32 2, %s19
      %s110 = smul.u32 32, %s20
      %s111 = smul.u32 4, %s21
    $region16: #{reverse.4} parent=5 // pred_fallthru
      _
    %p112 = scmp.le.s32.totalorder 5, %s3
    %p113 = scmp.lt.s32.totalorder %s3, 23
    %p114 = pnand %p112, %p113
    %p115 = pneg %p114
    // Predicated region
    $region17: #{reverse.4} parent=5 // pred_check
      _
    $region18: #{reverse.4} parent=5 // pred_check_branch
      %117 = sbr.rel (%p114) target = $region20
    $region19: #{reverse.4} parent=5 // pred_region
      %s118 = ssub.s32 %s3, 5
      %s119 = ssub.s32 2, %s38
      %s120 = ssub.s32 2, %s39
      %s121 = smul.u32 32, %s40
      %s122 = smul.u32 4, %s41
      %p123 = scmp.lt.s32.totalorder %s119, 2
      %s124 = scalar_select %p123, %s119, 2
      %p125 = scmp.lt.s32.totalorder %s120, 2
      %s126 = scalar_select %p125, %s120, 2
      %p127 = scmp.lt.s32.totalorder %s121, 63
      %s128 = scalar_select %p127, %s121, 63
      %p129 = scmp.lt.s32.totalorder %s122, 3
      %s130 = scalar_select %p129, %s122, 3
      %s131 = smul.addr %s128, 4
      %s132 = sadd.s32 %s130, %s131
      %s133 = smul.addr %s126, 256
      %s134 = sadd.s32 %s132, %s133
      %s135 = smul.addr %s124, 768
      %s136 = sadd.s32 %s134, %s135
      %s137 = smul.addr %s136, 8
      %s138 = scalar_lea.vmem %s0, %s137
      %s139 = smul.u32 32, %s40
      %s140 = smul.u32 4, %s41
      %p141 = scmp.lt.s32.totalorder %s38, 2
      %s142 = scalar_select %p141, %s38, 2
      %p143 = scmp.lt.s32.totalorder %s39, 2
      %s144 = scalar_select %p143, %s39, 2
      %p145 = scmp.lt.s32.totalorder %s139, 63
      %s146 = scalar_select %p145, %s139, 63
      %p147 = scmp.lt.s32.totalorder %s140, 3
      %s148 = scalar_select %p147, %s140, 3
      %s149 = smul.addr %s146, 4
      %s150 = sadd.s32 %s148, %s149
      %s151 = smul.addr %s144, 256
      %s152 = sadd.s32 %s150, %s151
      %s153 = smul.addr %s142, 768
      %s154 = sadd.s32 %s152, %s153
      %s155 = smul.addr %s154, 4
      %s156 = scalar_lea.vmem %s1, %s155
      %s157 = smul.u32 32, %s40
      %s158 = smul.u32 4, %s41
      %s159 = ssub.s32 2, %s38
      %s160 = ssub.s32 2, %s39
      %s161 = smul.u32 32, %s40
      %s162 = smul.u32 4, %s41
      %p163 = scmp.lt.s32.totalorder %s159, 2
      %s164 = scalar_select %p163, %s159, 2
      %p165 = scmp.lt.s32.totalorder %s160, 2
      %s166 = scalar_select %p165, %s160, 2
      %p167 = scmp.lt.s32.totalorder %s161, 63
      %s168 = scalar_select %p167, %s161, 63
      %p169 = scmp.lt.s32.totalorder %s162, 3
      %s170 = scalar_select %p169, %s162, 3
      %s171 = smul.addr %s168, 4
      %s172 = sadd.s32 %s170, %s171
      %s173 = smul.addr %s166, 256
      %s174 = sadd.s32 %s172, %s173
      %s175 = smul.addr %s164, 768
      %s176 = sadd.s32 %s174, %s175
      %s177 = smul.addr %s176, 8
      %s178 = scalar_lea.vmem %s0, %s177
      %s179 = ssub.s32 2, %s38
      %s180 = ssub.s32 2, %s39
      %s181 = smul.u32 32, %s40
      %s182 = smul.u32 4, %s41
      %s183 = smul.u32 32, %s40
      %s184 = smul.u32 4, %s41
      %p185 = scmp.lt.s32.totalorder %s38, 2
      %s186 = scalar_select %p185, %s38, 2
      %p187 = scmp.lt.s32.totalorder %s39, 2
      %s188 = scalar_select %p187, %s39, 2
      %p189 = scmp.lt.s32.totalorder %s183, 63
      %s190 = scalar_select %p189, %s183, 63
      %p191 = scmp.lt.s32.totalorder %s184, 3
      %s192 = scalar_select %p191, %s184, 3
      %s193 = smul.addr %s190, 4
      %s194 = sadd.s32 %s192, %s193
      %s195 = smul.addr %s188, 256
      %s196 = sadd.s32 %s194, %s195
      %s197 = smul.addr %s186, 768
      %s198 = sadd.s32 %s196, %s197
      %s199 = smul.addr %s198, 4
      %s200 = scalar_lea.vmem %s1, %s199
      %s201 = smul.u32 32, %s40
      %s202 = smul.u32 4, %s41
      %v203 = vld [vmem:[%s178] sm:$0xff]
      %s204 = scalar_lea.vmem %s178, 32
      %v205 = vld [vmem:[%s204] sm:$0xff]
      %s206 = scalar_lea.vmem %s200, 16
      %s207 = scalar_lea.vmem %s178, 64
      %v208 = vld [vmem:[%s207] sm:$0xff]
      %s209 = scalar_lea.vmem %s200, 32
      %s210 = scalar_lea.vmem %s178, 96
      %v211 = vld [vmem:[%s210] sm:$0xff]
      %s212 = scalar_lea.vmem %s200, 48
      %s213 = scalar_lea.vmem %s178, 128
      %v214 = vld [vmem:[%s213] sm:$0xff]
      %s215 = scalar_lea.vmem %s200, 64
      %s216 = scalar_lea.vmem %s178, 160
      %v217 = vld [vmem:[%s216] sm:$0xff]
      %s218 = scalar_lea.vmem %s200, 80
      %s219 = scalar_lea.vmem %s178, 192
      %v220 = vld [vmem:[%s219] sm:$0xff]
      %s221 = scalar_lea.vmem %s200, 96
      %s222 = scalar_lea.vmem %s178, 224
      %v223 = vld [vmem:[%s222] sm:$0xff]
      %s224 = scalar_lea.vmem %s200, 112
      %s225 = scalar_lea.vmem %s178, 256
      %v226 = vld [vmem:[%s225] sm:$0xff]
      %s227 = scalar_lea.vmem %s200, 128
      %s228 = scalar_lea.vmem %s178, 288
      %v229 = vld [vmem:[%s228] sm:$0xff]
      %s230 = scalar_lea.vmem %s200, 144
      %s231 = scalar_lea.vmem %s178, 320
      %v232 = vld [vmem:[%s231] sm:$0xff]
      %s233 = scalar_lea.vmem %s200, 160
      %s234 = scalar_lea.vmem %s178, 352
      %v235 = vld [vmem:[%s234] sm:$0xff]
      %s236 = scalar_lea.vmem %s200, 176
      %s237 = scalar_lea.vmem %s178, 384
      %v238 = vld [vmem:[%s237] sm:$0xff]
      %s239 = scalar_lea.vmem %s200, 192
      %s240 = scalar_lea.vmem %s178, 416
      %v241 = vld [vmem:[%s240] sm:$0xff]
      %s242 = scalar_lea.vmem %s200, 208
      %s243 = scalar_lea.vmem %s178, 448
      %v244 = vld [vmem:[%s243] sm:$0xff]
      %s245 = scalar_lea.vmem %s200, 224
      %s246 = scalar_lea.vmem %s178, 480
      %v247 = vld [vmem:[%s246] sm:$0xff]
      %s248 = scalar_lea.vmem %s200, 240
      %s249 = scalar_lea.vmem %s178, 512
      %v250 = vld [vmem:[%s249] sm:$0xff]
      %s251 = scalar_lea.vmem %s200, 256
      %s252 = scalar_lea.vmem %s178, 544
      %v253 = vld [vmem:[%s252] sm:$0xff]
      %s254 = scalar_lea.vmem %s200, 272
      %s255 = scalar_lea.vmem %s178, 576
      %v256 = vld [vmem:[%s255] sm:$0xff]
      %s257 = scalar_lea.vmem %s200, 288
      %s258 = scalar_lea.vmem %s178, 608
      %v259 = vld [vmem:[%s258] sm:$0xff]
      %s260 = scalar_lea.vmem %s200, 304
      %s261 = scalar_lea.vmem %s178, 640
      %v262 = vld [vmem:[%s261] sm:$0xff]
      %s263 = scalar_lea.vmem %s200, 320
      %s264 = scalar_lea.vmem %s178, 672
      %v265 = vld [vmem:[%s264] sm:$0xff]
      %s266 = scalar_lea.vmem %s200, 336
      %s267 = scalar_lea.vmem %s178, 704
      %v268 = vld [vmem:[%s267] sm:$0xff]
      %s269 = scalar_lea.vmem %s200, 352
      %s270 = scalar_lea.vmem %s178, 736
      %v271 = vld [vmem:[%s270] sm:$0xff]
      %s272 = scalar_lea.vmem %s200, 368
      %s273 = scalar_lea.vmem %s178, 768
      %v274 = vld [vmem:[%s273] sm:$0xff]
      %s275 = scalar_lea.vmem %s200, 384
      %s276 = scalar_lea.vmem %s178, 800
      %v277 = vld [vmem:[%s276] sm:$0xff]
      %s278 = scalar_lea.vmem %s200, 400
      %s279 = scalar_lea.vmem %s178, 832
      %v280 = vld [vmem:[%s279] sm:$0xff]
      %s281 = scalar_lea.vmem %s200, 416
      %s282 = scalar_lea.vmem %s178, 864
      %v283 = vld [vmem:[%s282] sm:$0xff]
      %s284 = scalar_lea.vmem %s200, 432
      %s285 = scalar_lea.vmem %s178, 896
      %v286 = vld [vmem:[%s285] sm:$0xff]
      %s287 = scalar_lea.vmem %s200, 448
      %s288 = scalar_lea.vmem %s178, 928
      %v289 = vld [vmem:[%s288] sm:$0xff]
      %s290 = scalar_lea.vmem %s200, 464
      %s291 = scalar_lea.vmem %s178, 960
      %v292 = vld [vmem:[%s291] sm:$0xff]
      %s293 = scalar_lea.vmem %s200, 480
      %s294 = scalar_lea.vmem %s178, 992
      %v295 = vld [vmem:[%s294] sm:$0xff]
      %s296 = scalar_lea.vmem %s200, 496
      %s297 = scalar_lea.vmem %s178, 8
      %v298 = vld [vmem:[%s297] sm:$0xff]
      %s299 = scalar_lea.vmem %s200, 4
      %s300 = scalar_lea.vmem %s299, 4294967292
      %v301 = vpack.c.bf16 %v298, %v203
      %302 = vst [vmem:[%s300] sm:$0xff] %v301
      %s303 = scalar_lea.vmem %s178, 40
      %v304 = vld [vmem:[%s303] sm:$0xff]
      %s305 = scalar_lea.vmem %s200, 20
      %s306 = scalar_lea.vmem %s305, 4294967292
      %v307 = vpack.c.bf16 %v304, %v205
      %308 = vst [vmem:[%s306] sm:$0xff] %v307
      %s309 = scalar_lea.vmem %s178, 72
      %v310 = vld [vmem:[%s309] sm:$0xff]
      %s311 = scalar_lea.vmem %s200, 36
      %s312 = scalar_lea.vmem %s311, 4294967292
      %v313 = vpack.c.bf16 %v310, %v208
      %314 = vst [vmem:[%s312] sm:$0xff] %v313
      %s315 = scalar_lea.vmem %s178, 104
      %v316 = vld [vmem:[%s315] sm:$0xff]
      %s317 = scalar_lea.vmem %s200, 52
      %s318 = scalar_lea.vmem %s317, 4294967292
      %v319 = vpack.c.bf16 %v316, %v211
      %320 = vst [vmem:[%s318] sm:$0xff] %v319
      %s321 = scalar_lea.vmem %s178, 136
      %v322 = vld [vmem:[%s321] sm:$0xff]
      %s323 = scalar_lea.vmem %s200, 68
      %s324 = scalar_lea.vmem %s323, 4294967292
      %v325 = vpack.c.bf16 %v322, %v214
      %326 = vst [vmem:[%s324] sm:$0xff] %v325
      %s327 = scalar_lea.vmem %s178, 168
      %v328 = vld [vmem:[%s327] sm:$0xff]
      %s329 = scalar_lea.vmem %s200, 84
      %s330 = scalar_lea.vmem %s329, 4294967292
      %v331 = vpack.c.bf16 %v328, %v217
      %332 = vst [vmem:[%s330] sm:$0xff] %v331
      %s333 = scalar_lea.vmem %s178, 200
      %v334 = vld [vmem:[%s333] sm:$0xff]
      %s335 = scalar_lea.vmem %s200, 100
      %s336 = scalar_lea.vmem %s335, 4294967292
      %v337 = vpack.c.bf16 %v334, %v220
      %338 = vst [vmem:[%s336] sm:$0xff] %v337
      %s339 = scalar_lea.vmem %s178, 232
      %v340 = vld [vmem:[%s339] sm:$0xff]
      %s341 = scalar_lea.vmem %s200, 116
      %s342 = scalar_lea.vmem %s341, 4294967292
      %v343 = vpack.c.bf16 %v340, %v223
      %344 = vst [vmem:[%s342] sm:$0xff] %v343
      %s345 = scalar_lea.vmem %s178, 264
      %v346 = vld [vmem:[%s345] sm:$0xff]
      %s347 = scalar_lea.vmem %s200, 132
      %s348 = scalar_lea.vmem %s347, 4294967292
      %v349 = vpack.c.bf16 %v346, %v226
      %350 = vst [vmem:[%s348] sm:$0xff] %v349
      %s351 = scalar_lea.vmem %s178, 296
      %v352 = vld [vmem:[%s351] sm:$0xff]
      %s353 = scalar_lea.vmem %s200, 148
      %s354 = scalar_lea.vmem %s353, 4294967292
      %v355 = vpack.c.bf16 %v352, %v229
      %356 = vst [vmem:[%s354] sm:$0xff] %v355
      %s357 = scalar_lea.vmem %s178, 328
      %v358 = vld [vmem:[%s357] sm:$0xff]
      %s359 = scalar_lea.vmem %s200, 164
      %s360 = scalar_lea.vmem %s359, 4294967292
      %v361 = vpack.c.bf16 %v358, %v232
      %362 = vst [vmem:[%s360] sm:$0xff] %v361
      %s363 = scalar_lea.vmem %s178, 360
      %v364 = vld [vmem:[%s363] sm:$0xff]
      %s365 = scalar_lea.vmem %s200, 180
      %s366 = scalar_lea.vmem %s365, 4294967292
      %v367 = vpack.c.bf16 %v364, %v235
      %368 = vst [vmem:[%s366] sm:$0xff] %v367
      %s369 = scalar_lea.vmem %s178, 392
      %v370 = vld [vmem:[%s369] sm:$0xff]
      %s371 = scalar_lea.vmem %s200, 196
      %s372 = scalar_lea.vmem %s371, 4294967292
      %v373 = vpack.c.bf16 %v370, %v238
      %374 = vst [vmem:[%s372] sm:$0xff] %v373
      %s375 = scalar_lea.vmem %s178, 424
      %v376 = vld [vmem:[%s375] sm:$0xff]
      %s377 = scalar_lea.vmem %s200, 212
      %s378 = scalar_lea.vmem %s377, 4294967292
      %v379 = vpack.c.bf16 %v376, %v241
      %380 = vst [vmem:[%s378] sm:$0xff] %v379
      %s381 = scalar_lea.vmem %s178, 456
      %v382 = vld [vmem:[%s381] sm:$0xff]
      %s383 = scalar_lea.vmem %s200, 228
      %s384 = scalar_lea.vmem %s383, 4294967292
      %v385 = vpack.c.bf16 %v382, %v244
      %386 = vst [vmem:[%s384] sm:$0xff] %v385
      %s387 = scalar_lea.vmem %s178, 488
      %v388 = vld [vmem:[%s387] sm:$0xff]
      %s389 = scalar_lea.vmem %s200, 244
      %s390 = scalar_lea.vmem %s389, 4294967292
      %v391 = vpack.c.bf16 %v388, %v247
      %392 = vst [vmem:[%s390] sm:$0xff] %v391
      %s393 = scalar_lea.vmem %s178, 520
      %v394 = vld [vmem:[%s393] sm:$0xff]
      %s395 = scalar_lea.vmem %s200, 260
      %s396 = scalar_lea.vmem %s395, 4294967292
      %v397 = vpack.c.bf16 %v394, %v250
      %398 = vst [vmem:[%s396] sm:$0xff] %v397
      %s399 = scalar_lea.vmem %s178, 552
      %v400 = vld [vmem:[%s399] sm:$0xff]
      %s401 = scalar_lea.vmem %s200, 276
      %s402 = scalar_lea.vmem %s401, 4294967292
      %v403 = vpack.c.bf16 %v400, %v253
      %404 = vst [vmem:[%s402] sm:$0xff] %v403
      %s405 = scalar_lea.vmem %s178, 584
      %v406 = vld [vmem:[%s405] sm:$0xff]
      %s407 = scalar_lea.vmem %s200, 292
      %s408 = scalar_lea.vmem %s407, 4294967292
      %v409 = vpack.c.bf16 %v406, %v256
      %410 = vst [vmem:[%s408] sm:$0xff] %v409
      %s411 = scalar_lea.vmem %s178, 616
      %v412 = vld [vmem:[%s411] sm:$0xff]
      %s413 = scalar_lea.vmem %s200, 308
      %s414 = scalar_lea.vmem %s413, 4294967292
      %v415 = vpack.c.bf16 %v412, %v259
      %416 = vst [vmem:[%s414] sm:$0xff] %v415
      %s417 = scalar_lea.vmem %s178, 648
      %v418 = vld [vmem:[%s417] sm:$0xff]
      %s419 = scalar_lea.vmem %s200, 324
      %s420 = scalar_lea.vmem %s419, 4294967292
      %v421 = vpack.c.bf16 %v418, %v262
      %422 = vst [vmem:[%s420] sm:$0xff] %v421
      %s423 = scalar_lea.vmem %s178, 680
      %v424 = vld [vmem:[%s423] sm:$0xff]
      %s425 = scalar_lea.vmem %s200, 340
      %s426 = scalar_lea.vmem %s425, 4294967292
      %v427 = vpack.c.bf16 %v424, %v265
      %428 = vst [vmem:[%s426] sm:$0xff] %v427
      %s429 = scalar_lea.vmem %s178, 712
      %v430 = vld [vmem:[%s429] sm:$0xff]
      %s431 = scalar_lea.vmem %s200, 356
      %s432 = scalar_lea.vmem %s431, 4294967292
      %v433 = vpack.c.bf16 %v430, %v268
      %434 = vst [vmem:[%s432] sm:$0xff] %v433
      %s435 = scalar_lea.vmem %s178, 744
      %v436 = vld [vmem:[%s435] sm:$0xff]
      %s437 = scalar_lea.vmem %s200, 372
      %s438 = scalar_lea.vmem %s437, 4294967292
      %v439 = vpack.c.bf16 %v436, %v271
      %440 = vst [vmem:[%s438] sm:$0xff] %v439
      %s441 = scalar_lea.vmem %s178, 776
      %v442 = vld [vmem:[%s441] sm:$0xff]
      %s443 = scalar_lea.vmem %s200, 388
      %s444 = scalar_lea.vmem %s443, 4294967292
      %v445 = vpack.c.bf16 %v442, %v274
      %446 = vst [vmem:[%s444] sm:$0xff] %v445
      %s447 = scalar_lea.vmem %s178, 808
      %v448 = vld [vmem:[%s447] sm:$0xff]
      %s449 = scalar_lea.vmem %s200, 404
      %s450 = scalar_lea.vmem %s449, 4294967292
      %v451 = vpack.c.bf16 %v448, %v277
      %452 = vst [vmem:[%s450] sm:$0xff] %v451
      %s453 = scalar_lea.vmem %s178, 840
      %v454 = vld [vmem:[%s453] sm:$0xff]
      %s455 = scalar_lea.vmem %s200, 420
      %s456 = scalar_lea.vmem %s455, 4294967292
      %v457 = vpack.c.bf16 %v454, %v280
      %458 = vst [vmem:[%s456] sm:$0xff] %v457
      %s459 = scalar_lea.vmem %s178, 872
      %v460 = vld [vmem:[%s459] sm:$0xff]
      %s461 = scalar_lea.vmem %s200, 436
      %s462 = scalar_lea.vmem %s461, 4294967292
      %v463 = vpack.c.bf16 %v460, %v283
      %464 = vst [vmem:[%s462] sm:$0xff] %v463
      %s465 = scalar_lea.vmem %s178, 904
      %v466 = vld [vmem:[%s465] sm:$0xff]
      %s467 = scalar_lea.vmem %s200, 452
      %s468 = scalar_lea.vmem %s467, 4294967292
      %v469 = vpack.c.bf16 %v466, %v286
      %470 = vst [vmem:[%s468] sm:$0xff] %v469
      %s471 = scalar_lea.vmem %s178, 936
      %v472 = vld [vmem:[%s471] sm:$0xff]
      %s473 = scalar_lea.vmem %s200, 468
      %s474 = scalar_lea.vmem %s473, 4294967292
      %v475 = vpack.c.bf16 %v472, %v289
      %476 = vst [vmem:[%s474] sm:$0xff] %v475
      %s477 = scalar_lea.vmem %s178, 968
      %v478 = vld [vmem:[%s477] sm:$0xff]
      %s479 = scalar_lea.vmem %s200, 484
      %s480 = scalar_lea.vmem %s479, 4294967292
      %v481 = vpack.c.bf16 %v478, %v292
      %482 = vst [vmem:[%s480] sm:$0xff] %v481
      %s483 = scalar_lea.vmem %s178, 1000
      %v484 = vld [vmem:[%s483] sm:$0xff]
      %s485 = scalar_lea.vmem %s200, 500
      %s486 = scalar_lea.vmem %s485, 4294967292
      %v487 = vpack.c.bf16 %v484, %v295
      %488 = vst [vmem:[%s486] sm:$0xff] %v487
      %s489 = scalar_lea.vmem %s178, 16
      %v490 = vld [vmem:[%s489] sm:$0xff]
      %s491 = scalar_lea.vmem %s200, 8
      %s492 = scalar_lea.vmem %s178, 48
      %v493 = vld [vmem:[%s492] sm:$0xff]
      %s494 = scalar_lea.vmem %s200, 24
      %s495 = scalar_lea.vmem %s178, 80
      %v496 = vld [vmem:[%s495] sm:$0xff]
      %s497 = scalar_lea.vmem %s200, 40
      %s498 = scalar_lea.vmem %s178, 112
      %v499 = vld [vmem:[%s498] sm:$0xff]
      %s500 = scalar_lea.vmem %s200, 56
      %s501 = scalar_lea.vmem %s178, 144
      %v502 = vld [vmem:[%s501] sm:$0xff]
      %s503 = scalar_lea.vmem %s200, 72
      %s504 = scalar_lea.vmem %s178, 176
      %v505 = vld [vmem:[%s504] sm:$0xff]
      %s506 = scalar_lea.vmem %s200, 88
      %s507 = scalar_lea.vmem %s178, 208
      %v508 = vld [vmem:[%s507] sm:$0xff]
      %s509 = scalar_lea.vmem %s200, 104
      %s510 = scalar_lea.vmem %s178, 240
      %v511 = vld [vmem:[%s510] sm:$0xff]
      %s512 = scalar_lea.vmem %s200, 120
      %s513 = scalar_lea.vmem %s178, 272
      %v514 = vld [vmem:[%s513] sm:$0xff]
      %s515 = scalar_lea.vmem %s200, 136
      %s516 = scalar_lea.vmem %s178, 304
      %v517 = vld [vmem:[%s516] sm:$0xff]
      %s518 = scalar_lea.vmem %s200, 152
      %s519 = scalar_lea.vmem %s178, 336
      %v520 = vld [vmem:[%s519] sm:$0xff]
      %s521 = scalar_lea.vmem %s200, 168
      %s522 = scalar_lea.vmem %s178, 368
      %v523 = vld [vmem:[%s522] sm:$0xff]
      %s524 = scalar_lea.vmem %s200, 184
      %s525 = scalar_lea.vmem %s178, 400
      %v526 = vld [vmem:[%s525] sm:$0xff]
      %s527 = scalar_lea.vmem %s200, 200
      %s528 = scalar_lea.vmem %s178, 432
      %v529 = vld [vmem:[%s528] sm:$0xff]
      %s530 = scalar_lea.vmem %s200, 216
      %s531 = scalar_lea.vmem %s178, 464
      %v532 = vld [vmem:[%s531] sm:$0xff]
      %s533 = scalar_lea.vmem %s200, 232
      %s534 = scalar_lea.vmem %s178, 496
      %v535 = vld [vmem:[%s534] sm:$0xff]
      %s536 = scalar_lea.vmem %s200, 248
      %s537 = scalar_lea.vmem %s178, 528
      %v538 = vld [vmem:[%s537] sm:$0xff]
      %s539 = scalar_lea.vmem %s200, 264
      %s540 = scalar_lea.vmem %s178, 560
      %v541 = vld [vmem:[%s540] sm:$0xff]
      %s542 = scalar_lea.vmem %s200, 280
      %s543 = scalar_lea.vmem %s178, 592
      %v544 = vld [vmem:[%s543] sm:$0xff]
      %s545 = scalar_lea.vmem %s200, 296
      %s546 = scalar_lea.vmem %s178, 624
      %v547 = vld [vmem:[%s546] sm:$0xff]
      %s548 = scalar_lea.vmem %s200, 312
      %s549 = scalar_lea.vmem %s178, 656
      %v550 = vld [vmem:[%s549] sm:$0xff]
      %s551 = scalar_lea.vmem %s200, 328
      %s552 = scalar_lea.vmem %s178, 688
      %v553 = vld [vmem:[%s552] sm:$0xff]
      %s554 = scalar_lea.vmem %s200, 344
      %s555 = scalar_lea.vmem %s178, 720
      %v556 = vld [vmem:[%s555] sm:$0xff]
      %s557 = scalar_lea.vmem %s200, 360
      %s558 = scalar_lea.vmem %s178, 752
      %v559 = vld [vmem:[%s558] sm:$0xff]
      %s560 = scalar_lea.vmem %s200, 376
      %s561 = scalar_lea.vmem %s178, 784
      %v562 = vld [vmem:[%s561] sm:$0xff]
      %s563 = scalar_lea.vmem %s200, 392
      %s564 = scalar_lea.vmem %s178, 816
      %v565 = vld [vmem:[%s564] sm:$0xff]
      %s566 = scalar_lea.vmem %s200, 408
      %s567 = scalar_lea.vmem %s178, 848
      %v568 = vld [vmem:[%s567] sm:$0xff]
      %s569 = scalar_lea.vmem %s200, 424
      %s570 = scalar_lea.vmem %s178, 880
      %v571 = vld [vmem:[%s570] sm:$0xff]
      %s572 = scalar_lea.vmem %s200, 440
      %s573 = scalar_lea.vmem %s178, 912
      %v574 = vld [vmem:[%s573] sm:$0xff]
      %s575 = scalar_lea.vmem %s200, 456
      %s576 = scalar_lea.vmem %s178, 944
      %v577 = vld [vmem:[%s576] sm:$0xff]
      %s578 = scalar_lea.vmem %s200, 472
      %s579 = scalar_lea.vmem %s178, 976
      %v580 = vld [vmem:[%s579] sm:$0xff]
      %s581 = scalar_lea.vmem %s200, 488
      %s582 = scalar_lea.vmem %s178, 1008
      %v583 = vld [vmem:[%s582] sm:$0xff]
      %s584 = scalar_lea.vmem %s200, 504
      %s585 = scalar_lea.vmem %s178, 24
      %v586 = vld [vmem:[%s585] sm:$0xff]
      %s587 = scalar_lea.vmem %s200, 12
      %s588 = scalar_lea.vmem %s587, 4294967292
      %v589 = vpack.c.bf16 %v586, %v490
      %590 = vst [vmem:[%s588] sm:$0xff] %v589
      %s591 = scalar_lea.vmem %s178, 56
      %v592 = vld [vmem:[%s591] sm:$0xff]
      %s593 = scalar_lea.vmem %s200, 28
      %s594 = scalar_lea.vmem %s593, 4294967292
      %v595 = vpack.c.bf16 %v592, %v493
      %596 = vst [vmem:[%s594] sm:$0xff] %v595
      %s597 = scalar_lea.vmem %s178, 88
      %v598 = vld [vmem:[%s597] sm:$0xff]
      %s599 = scalar_lea.vmem %s200, 44
      %s600 = scalar_lea.vmem %s599, 4294967292
      %v601 = vpack.c.bf16 %v598, %v496
      %602 = vst [vmem:[%s600] sm:$0xff] %v601
      %s603 = scalar_lea.vmem %s178, 120
      %v604 = vld [vmem:[%s603] sm:$0xff]
      %s605 = scalar_lea.vmem %s200, 60
      %s606 = scalar_lea.vmem %s605, 4294967292
      %v607 = vpack.c.bf16 %v604, %v499
      %608 = vst [vmem:[%s606] sm:$0xff] %v607
      %s609 = scalar_lea.vmem %s178, 152
      %v610 = vld [vmem:[%s609] sm:$0xff]
      %s611 = scalar_lea.vmem %s200, 76
      %s612 = scalar_lea.vmem %s611, 4294967292
      %v613 = vpack.c.bf16 %v610, %v502
      %614 = vst [vmem:[%s612] sm:$0xff] %v613
      %s615 = scalar_lea.vmem %s178, 184
      %v616 = vld [vmem:[%s615] sm:$0xff]
      %s617 = scalar_lea.vmem %s200, 92
      %s618 = scalar_lea.vmem %s617, 4294967292
      %v619 = vpack.c.bf16 %v616, %v505
      %620 = vst [vmem:[%s618] sm:$0xff] %v619
      %s621 = scalar_lea.vmem %s178, 216
      %v622 = vld [vmem:[%s621] sm:$0xff]
      %s623 = scalar_lea.vmem %s200, 108
      %s624 = scalar_lea.vmem %s623, 4294967292
      %v625 = vpack.c.bf16 %v622, %v508
      %626 = vst [vmem:[%s624] sm:$0xff] %v625
      %s627 = scalar_lea.vmem %s178, 248
      %v628 = vld [vmem:[%s627] sm:$0xff]
      %s629 = scalar_lea.vmem %s200, 124
      %s630 = scalar_lea.vmem %s629, 4294967292
      %v631 = vpack.c.bf16 %v628, %v511
      %632 = vst [vmem:[%s630] sm:$0xff] %v631
      %s633 = scalar_lea.vmem %s178, 280
      %v634 = vld [vmem:[%s633] sm:$0xff]
      %s635 = scalar_lea.vmem %s200, 140
      %s636 = scalar_lea.vmem %s635, 4294967292
      %v637 = vpack.c.bf16 %v634, %v514
      %638 = vst [vmem:[%s636] sm:$0xff] %v637
      %s639 = scalar_lea.vmem %s178, 312
      %v640 = vld [vmem:[%s639] sm:$0xff]
      %s641 = scalar_lea.vmem %s200, 156
      %s642 = scalar_lea.vmem %s641, 4294967292
      %v643 = vpack.c.bf16 %v640, %v517
      %644 = vst [vmem:[%s642] sm:$0xff] %v643
      %s645 = scalar_lea.vmem %s178, 344
      %v646 = vld [vmem:[%s645] sm:$0xff]
      %s647 = scalar_lea.vmem %s200, 172
      %s648 = scalar_lea.vmem %s647, 4294967292
      %v649 = vpack.c.bf16 %v646, %v520
      %650 = vst [vmem:[%s648] sm:$0xff] %v649
      %s651 = scalar_lea.vmem %s178, 376
      %v652 = vld [vmem:[%s651] sm:$0xff]
      %s653 = scalar_lea.vmem %s200, 188
      %s654 = scalar_lea.vmem %s653, 4294967292
      %v655 = vpack.c.bf16 %v652, %v523
      %656 = vst [vmem:[%s654] sm:$0xff] %v655
      %s657 = scalar_lea.vmem %s178, 408
      %v658 = vld [vmem:[%s657] sm:$0xff]
      %s659 = scalar_lea.vmem %s200, 204
      %s660 = scalar_lea.vmem %s659, 4294967292
      %v661 = vpack.c.bf16 %v658, %v526
      %662 = vst [vmem:[%s660] sm:$0xff] %v661
      %s663 = scalar_lea.vmem %s178, 440
      %v664 = vld [vmem:[%s663] sm:$0xff]
      %s665 = scalar_lea.vmem %s200, 220
      %s666 = scalar_lea.vmem %s665, 4294967292
      %v667 = vpack.c.bf16 %v664, %v529
      %668 = vst [vmem:[%s666] sm:$0xff] %v667
      %s669 = scalar_lea.vmem %s178, 472
      %v670 = vld [vmem:[%s669] sm:$0xff]
      %s671 = scalar_lea.vmem %s200, 236
      %s672 = scalar_lea.vmem %s671, 4294967292
      %v673 = vpack.c.bf16 %v670, %v532
      %674 = vst [vmem:[%s672] sm:$0xff] %v673
      %s675 = scalar_lea.vmem %s178, 504
      %v676 = vld [vmem:[%s675] sm:$0xff]
      %s677 = scalar_lea.vmem %s200, 252
      %s678 = scalar_lea.vmem %s677, 4294967292
      %v679 = vpack.c.bf16 %v676, %v535
      %680 = vst [vmem:[%s678] sm:$0xff] %v679
      %s681 = scalar_lea.vmem %s178, 536
      %v682 = vld [vmem:[%s681] sm:$0xff]
      %s683 = scalar_lea.vmem %s200, 268
      %s684 = scalar_lea.vmem %s683, 4294967292
      %v685 = vpack.c.bf16 %v682, %v538
      %686 = vst [vmem:[%s684] sm:$0xff] %v685
      %s687 = scalar_lea.vmem %s178, 568
      %v688 = vld [vmem:[%s687] sm:$0xff]
      %s689 = scalar_lea.vmem %s200, 284
      %s690 = scalar_lea.vmem %s689, 4294967292
      %v691 = vpack.c.bf16 %v688, %v541
      %692 = vst [vmem:[%s690] sm:$0xff] %v691
      %s693 = scalar_lea.vmem %s178, 600
      %v694 = vld [vmem:[%s693] sm:$0xff]
      %s695 = scalar_lea.vmem %s200, 300
      %s696 = scalar_lea.vmem %s695, 4294967292
      %v697 = vpack.c.bf16 %v694, %v544
      %698 = vst [vmem:[%s696] sm:$0xff] %v697
      %s699 = scalar_lea.vmem %s178, 632
      %v700 = vld [vmem:[%s699] sm:$0xff]
      %s701 = scalar_lea.vmem %s200, 316
      %s702 = scalar_lea.vmem %s701, 4294967292
      %v703 = vpack.c.bf16 %v700, %v547
      %704 = vst [vmem:[%s702] sm:$0xff] %v703
      %s705 = scalar_lea.vmem %s178, 664
      %v706 = vld [vmem:[%s705] sm:$0xff]
      %s707 = scalar_lea.vmem %s200, 332
      %s708 = scalar_lea.vmem %s707, 4294967292
      %v709 = vpack.c.bf16 %v706, %v550
      %710 = vst [vmem:[%s708] sm:$0xff] %v709
      %s711 = scalar_lea.vmem %s178, 696
      %v712 = vld [vmem:[%s711] sm:$0xff]
      %s713 = scalar_lea.vmem %s200, 348
      %s714 = scalar_lea.vmem %s713, 4294967292
      %v715 = vpack.c.bf16 %v712, %v553
      %716 = vst [vmem:[%s714] sm:$0xff] %v715
      %s717 = scalar_lea.vmem %s178, 728
      %v718 = vld [vmem:[%s717] sm:$0xff]
      %s719 = scalar_lea.vmem %s200, 364
      %s720 = scalar_lea.vmem %s719, 4294967292
      %v721 = vpack.c.bf16 %v718, %v556
      %722 = vst [vmem:[%s720] sm:$0xff] %v721
      %s723 = scalar_lea.vmem %s178, 760
      %v724 = vld [vmem:[%s723] sm:$0xff]
      %s725 = scalar_lea.vmem %s200, 380
      %s726 = scalar_lea.vmem %s725, 4294967292
      %v727 = vpack.c.bf16 %v724, %v559
      %728 = vst [vmem:[%s726] sm:$0xff] %v727
      %s729 = scalar_lea.vmem %s178, 792
      %v730 = vld [vmem:[%s729] sm:$0xff]
      %s731 = scalar_lea.vmem %s200, 396
      %s732 = scalar_lea.vmem %s731, 4294967292
      %v733 = vpack.c.bf16 %v730, %v562
      %734 = vst [vmem:[%s732] sm:$0xff] %v733
      %s735 = scalar_lea.vmem %s178, 824
      %v736 = vld [vmem:[%s735] sm:$0xff]
      %s737 = scalar_lea.vmem %s200, 412
      %s738 = scalar_lea.vmem %s737, 4294967292
      %v739 = vpack.c.bf16 %v736, %v565
      %740 = vst [vmem:[%s738] sm:$0xff] %v739
      %s741 = scalar_lea.vmem %s178, 856
      %v742 = vld [vmem:[%s741] sm:$0xff]
      %s743 = scalar_lea.vmem %s200, 428
      %s744 = scalar_lea.vmem %s743, 4294967292
      %v745 = vpack.c.bf16 %v742, %v568
      %746 = vst [vmem:[%s744] sm:$0xff] %v745
      %s747 = scalar_lea.vmem %s178, 888
      %v748 = vld [vmem:[%s747] sm:$0xff]
      %s749 = scalar_lea.vmem %s200, 444
      %s750 = scalar_lea.vmem %s749, 4294967292
      %v751 = vpack.c.bf16 %v748, %v571
      %752 = vst [vmem:[%s750] sm:$0xff] %v751
      %s753 = scalar_lea.vmem %s178, 920
      %v754 = vld [vmem:[%s753] sm:$0xff]
      %s755 = scalar_lea.vmem %s200, 460
      %s756 = scalar_lea.vmem %s755, 4294967292
      %v757 = vpack.c.bf16 %v754, %v574
      %758 = vst [vmem:[%s756] sm:$0xff] %v757
      %s759 = scalar_lea.vmem %s178, 952
      %v760 = vld [vmem:[%s759] sm:$0xff]
      %s761 = scalar_lea.vmem %s200, 476
      %s762 = scalar_lea.vmem %s761, 4294967292
      %v763 = vpack.c.bf16 %v760, %v577
      %764 = vst [vmem:[%s762] sm:$0xff] %v763
      %s765 = scalar_lea.vmem %s178, 984
      %v766 = vld [vmem:[%s765] sm:$0xff]
      %s767 = scalar_lea.vmem %s200, 492
      %s768 = scalar_lea.vmem %s767, 4294967292
      %v769 = vpack.c.bf16 %v766, %v580
      %770 = vst [vmem:[%s768] sm:$0xff] %v769
      %s771 = scalar_lea.vmem %s178, 1016
      %v772 = vld [vmem:[%s771] sm:$0xff]
      %s773 = scalar_lea.vmem %s200, 508
      %s774 = scalar_lea.vmem %s773, 4294967292
      %v775 = vpack.c.bf16 %v772, %v583
      %776 = vst [vmem:[%s774] sm:$0xff] %v775
      %s777 = smul.u32 32, %s40
      %s778 = smul.u32 4, %s41
      %p779 = scmp.lt.s32.totalorder %s38, 2
      %s780 = scalar_select %p779, %s38, 2
      %p781 = scmp.lt.s32.totalorder %s39, 2
      %s782 = scalar_select %p781, %s39, 2
      %p783 = scmp.lt.s32.totalorder %s777, 63
      %s784 = scalar_select %p783, %s777, 63
      %p785 = scmp.lt.s32.totalorder %s778, 3
      %s786 = scalar_select %p785, %s778, 3
      %s787 = smul.addr %s784, 4
      %s788 = sadd.s32 %s786, %s787
      %s789 = smul.addr %s782, 256
      %s790 = sadd.s32 %s788, %s789
      %s791 = smul.addr %s780, 768
      %s792 = sadd.s32 %s790, %s791
      %s793 = smul.addr %s792, 4
      %s794 = scalar_lea.vmem %s1, %s793
      %s795 = smul.u32 32, %s40
      %s796 = smul.u32 4, %s41
    $region20: #{reverse.4} parent=5 // pred_fallthru
      _
    %p797 = scmp.le.s32.totalorder 10, %s3
    // Predicated region
    $region21: #{reverse.4} parent=5 // pred_check
      %p798 = pneg %p797
    $region22: #{reverse.4} parent=5 // pred_check_branch
      %800 = sbr.rel (%p798) target = $region24
    $region23: #{reverse.4} parent=5 // pred_region
      %s801 = ssub.s32 %s3, 10
      %s802 = smul.u32 32, %s60
      %s803 = smul.u32 4, %s61
      %p804 = scmp.lt.s32.totalorder %s58, 2
      %s805 = scalar_select %p804, %s58, 2
      %p806 = scmp.lt.s32.totalorder %s59, 2
      %s807 = scalar_select %p806, %s59, 2
      %p808 = scmp.lt.s32.totalorder %s802, 63
      %s809 = scalar_select %p808, %s802, 63
      %p810 = scmp.lt.s32.totalorder %s803, 3
      %s811 = scalar_select %p810, %s803, 3
      %s812 = smul.addr %s809, 4
      %s813 = sadd.s32 %s811, %s812
      %s814 = smul.addr %s807, 256
      %s815 = sadd.s32 %s813, %s814
      %s816 = smul.addr %s805, 768
      %s817 = sadd.s32 %s815, %s816
      %s818 = smul.addr %s817, 4
      %s819 = scalar_lea.vmem %s1, %s818
    $region24: #{reverse.4} parent=5 // pred_fallthru
      _
  $region6: #{reverse.4} parent=0 // loop_footer
    %s7 = sadd.s32 1, %s3
  $region7: #{reverse.4} parent=0 // loop_footer_branch
    %2 = sbr.rel target = $region3
  $region8: #{reverse.4} parent=0 // loop_exit
    _

// kernel: projection_net_forward.1
$region0: #{projection_net_forward.1}
  #allocation0 [shape = 'u32[]', space=smem, size = 0x4, offset = 0x4, fixed_abs, tag = 'smem constant byte address 0x4 - core index']
  #allocation1 [shape = 'u32[72,128]{1,0:T(1,128)}', space=vmem, size = 0x9000, scoped, tag = 'internal scratch']
  %s0 = inlined_call_operand.vmem [shape: bf16[16,512], index: 0, kind: input, shape index: {}]
  %s1 = inlined_call_operand.vmem [shape: bf16[8,512,512], index: 1, kind: input, shape index: {}]
  %s2 = inlined_call_operand.vmem [shape: f32[8,1,512], index: 2, kind: input, shape index: {}]
  %s3 = inlined_call_operand.vmem [shape: bf16[512,128], index: 3, kind: input, shape index: {}]
  %s4 = inlined_call_operand.vmem [shape: f32[1,128], index: 4, kind: input, shape index: {}]
  %s5 = inlined_call_operand.vmem [shape: bf16[128,128], index: 5, kind: input, shape index: {}]
  %s6 = inlined_call_operand.vmem [shape: f32[1,128], index: 6, kind: input, shape index: {}]
  %s7 = inlined_call_operand.vmem [shape: f32[16,128], index: 7, kind: output, shape index: {}]
  %s8 = sld [smem:[#allocation0]]
  $region38: #{projection_net_forward.1} parent=0
    _
  %s10 = ssub.s32 1, %s8
  %s11 = scalar_select 0, %s10, %s8
  // Predicated region
  $region2: #{projection_net_forward.1} parent=0 // pred_check
    _
  $region3: #{projection_net_forward.1} parent=0 // pred_check_branch
    %13 = sbr.rel (0) target = $region5
  $region4: #{projection_net_forward.1} parent=0 // pred_region
    _
  $region5: #{projection_net_forward.1} parent=0 // pred_fallthru
    _
  // Predicated region
  $region6: #{projection_net_forward.1} parent=0 // pred_check
    _
  $region7: #{projection_net_forward.1} parent=0 // pred_check_branch
    %15 = sbr.rel (0) target = $region9
  $region8: #{projection_net_forward.1} parent=0 // pred_region
    _
  $region9: #{projection_net_forward.1} parent=0 // pred_fallthru
    _
  // Predicated region
  $region10: #{projection_net_forward.1} parent=0 // pred_check
    _
  $region11: #{projection_net_forward.1} parent=0 // pred_check_branch
    %17 = sbr.rel (0) target = $region13
  $region12: #{projection_net_forward.1} parent=0 // pred_region
    _
  $region13: #{projection_net_forward.1} parent=0 // pred_fallthru
    _
  // Predicated region
  $region14: #{projection_net_forward.1} parent=0 // pred_check
    _
  $region15: #{projection_net_forward.1} parent=0 // pred_check_branch
    %19 = sbr.rel (0) target = $region17
  $region16: #{projection_net_forward.1} parent=0 // pred_region
    _
  $region17: #{projection_net_forward.1} parent=0 // pred_fallthru
    _
  // Predicated region
  $region18: #{projection_net_forward.1} parent=0 // pred_check
    _
  $region19: #{projection_net_forward.1} parent=0 // pred_check_branch
    %21 = sbr.rel (0) target = $region21
  $region20: #{projection_net_forward.1} parent=0 // pred_region
    _
  $region21: #{projection_net_forward.1} parent=0 // pred_fallthru
    _
  // Predicated region
  $region22: #{projection_net_forward.1} parent=0 // pred_check
    _
  $region23: #{projection_net_forward.1} parent=0 // pred_check_branch
    %23 = sbr.rel (0) target = $region25
  $region24: #{projection_net_forward.1} parent=0 // pred_region
    _
  $region25: #{projection_net_forward.1} parent=0 // pred_fallthru
    _
  // Predicated region
  $region26: #{projection_net_forward.1} parent=0 // pred_check
    _
  $region27: #{projection_net_forward.1} parent=0 // pred_check_branch
    %25 = sbr.rel (0) target = $region29
  $region28: #{projection_net_forward.1} parent=0 // pred_region
    _
  $region29: #{projection_net_forward.1} parent=0 // pred_fallthru
    _
  %v26 = vld [vmem:[%s0] sm:$0xff]
  %v27 = vld [vmem:[%s0 + $0x8] sm:$0xff]
  %v28 = vld [vmem:[%s0 + $0x10] sm:$0xff]
  %v29 = vld [vmem:[%s0 + $0x18] sm:$0xff]
  %v30 = vld [vmem:[%s1] sm:$0xff]
  %v31 = vld [vmem:[%s1 + $0x8] sm:$0xff]
  %v32 = vld [vmem:[%s1 + $0x10] sm:$0xff]
  %v33 = vld [vmem:[%s1 + $0x18] sm:$0xff]
  %v34 = vld [vmem:[%s1 + $0x20] sm:$0xff]
  %v35 = vld [vmem:[%s1 + $0x28] sm:$0xff]
  %v36 = vld [vmem:[%s1 + $0x30] sm:$0xff]
  %v37 = vld [vmem:[%s1 + $0x38] sm:$0xff]
  %v38 = vld [vmem:[%s1 + $0x40] sm:$0xff]
  %v39 = vld [vmem:[%s1 + $0x48] sm:$0xff]
  %v40 = vld [vmem:[%s1 + $0x50] sm:$0xff]
  %v41 = vld [vmem:[%s1 + $0x58] sm:$0xff]
  %v42 = vld [vmem:[%s1 + $0x60] sm:$0xff]
  %v43 = vld [vmem:[%s1 + $0x68] sm:$0xff]
  %v44 = vld [vmem:[%s1 + $0x70] sm:$0xff]
  %v45 = vld [vmem:[%s1 + $0x78] sm:$0xff]
  %v46 = vld [vmem:[%s1 + $0x80] sm:$0xff]
  %v47 = vld [vmem:[%s1 + $0x88] sm:$0xff]
  %v48 = vld [vmem:[%s1 + $0x90] sm:$0xff]
  %v49 = vld [vmem:[%s1 + $0x98] sm:$0xff]
  %v50 = vld [vmem:[%s1 + $0xa0] sm:$0xff]
  %v51 = vld [vmem:[%s1 + $0xa8] sm:$0xff]
  %v52 = vld [vmem:[%s1 + $0xb0] sm:$0xff]
  %v53 = vld [vmem:[%s1 + $0xb8] sm:$0xff]
  %v54 = vld [vmem:[%s1 + $0xc0] sm:$0xff]
  %v55 = vld [vmem:[%s1 + $0xc8] sm:$0xff]
  %v56 = vld [vmem:[%s1 + $0xd0] sm:$0xff]
  %v57 = vld [vmem:[%s1 + $0xd8] sm:$0xff]
  %v58 = vld [vmem:[%s1 + $0xe0] sm:$0xff]
  %v59 = vld [vmem:[%s1 + $0xe8] sm:$0xff]
  %v60 = vld [vmem:[%s1 + $0xf0] sm:$0xff]
  %v61 = vld [vmem:[%s1 + $0xf8] sm:$0xff]
  %v62 = vld [vmem:[%s1 + $0x100] sm:$0xff]
  %v63 = vld [vmem:[%s1 + $0x108] sm:$0xff]
  %v64 = vld [vmem:[%s1 + $0x110] sm:$0xff]
  %v65 = vld [vmem:[%s1 + $0x118] sm:$0xff]
  %v66 = vld [vmem:[%s1 + $0x120] sm:$0xff]
  %v67 = vld [vmem:[%s1 + $0x128] sm:$0xff]
  %v68 = vld [vmem:[%s1 + $0x130] sm:$0xff]
  %v69 = vld [vmem:[%s1 + $0x138] sm:$0xff]
  %v70 = vld [vmem:[%s1 + $0x140] sm:$0xff]
  %v71 = vld [vmem:[%s1 + $0x148] sm:$0xff]
  %v72 = vld [vmem:[%s1 + $0x150] sm:$0xff]
  %v73 = vld [vmem:[%s1 + $0x158] sm:$0xff]
  %v74 = vld [vmem:[%s1 + $0x160] sm:$0xff]
  %v75 = vld [vmem:[%s1 + $0x168] sm:$0xff]
  %v76 = vld [vmem:[%s1 + $0x170] sm:$0xff]
  %v77 = vld [vmem:[%s1 + $0x178] sm:$0xff]
  %v78 = vld [vmem:[%s1 + $0x180] sm:$0xff]
  %v79 = vld [vmem:[%s1 + $0x188] sm:$0xff]
  %v80 = vld [vmem:[%s1 + $0x190] sm:$0xff]
  %v81 = vld [vmem:[%s1 + $0x198] sm:$0xff]
  %v82 = vld [vmem:[%s1 + $0x1a0] sm:$0xff]
  %v83 = vld [vmem:[%s1 + $0x1a8] sm:$0xff]
  %v84 = vld [vmem:[%s1 + $0x1b0] sm:$0xff]
  %v85 = vld [vmem:[%s1 + $0x1b8] sm:$0xff]
  %v86 = vld [vmem:[%s1 + $0x1c0] sm:$0xff]
  %v87 = vld [vmem:[%s1 + $0x1c8] sm:$0xff]
  %v88 = vld [vmem:[%s1 + $0x1d0] sm:$0xff]
  %v89 = vld [vmem:[%s1 + $0x1d8] sm:$0xff]
  %v90 = vld [vmem:[%s1 + $0x1e0] sm:$0xff]
  %v91 = vld [vmem:[%s1 + $0x1e8] sm:$0xff]
  %v92 = vld [vmem:[%s1 + $0x1f0] sm:$0xff]
  %v93 = vld [vmem:[%s1 + $0x1f8] sm:$0xff]
  %v94 = vld [vmem:[%s1 + $0x200] sm:$0xff]
  %v95 = vld [vmem:[%s1 + $0x208] sm:$0xff]
  %v96 = vld [vmem:[%s1 + $0x210] sm:$0xff]
  %v97 = vld [vmem:[%s1 + $0x218] sm:$0xff]
  %v98 = vld [vmem:[%s1 + $0x220] sm:$0xff]
  %v99 = vld [vmem:[%s1 + $0x228] sm:$0xff]
  %v100 = vld [vmem:[%s1 + $0x230] sm:$0xff]
  %v101 = vld [vmem:[%s1 + $0x238] sm:$0xff]
  %v102 = vld [vmem:[%s1 + $0x240] sm:$0xff]
  %v103 = vld [vmem:[%s1 + $0x248] sm:$0xff]
  %v104 = vld [vmem:[%s1 + $0x250] sm:$0xff]
  %v105 = vld [vmem:[%s1 + $0x258] sm:$0xff]
  %v106 = vld [vmem:[%s1 + $0x260] sm:$0xff]
  %v107 = vld [vmem:[%s1 + $0x268] sm:$0xff]
  %v108 = vld [vmem:[%s1 + $0x270] sm:$0xff]
  %v109 = vld [vmem:[%s1 + $0x278] sm:$0xff]
  %v110 = vld [vmem:[%s1 + $0x280] sm:$0xff]
  %v111 = vld [vmem:[%s1 + $0x288] sm:$0xff]
  %v112 = vld [vmem:[%s1 + $0x290] sm:$0xff]
  %v113 = vld [vmem:[%s1 + $0x298] sm:$0xff]
  %v114 = vld [vmem:[%s1 + $0x2a0] sm:$0xff]
  %v115 = vld [vmem:[%s1 + $0x2a8] sm:$0xff]
  %v116 = vld [vmem:[%s1 + $0x2b0] sm:$0xff]
  %v117 = vld [vmem:[%s1 + $0x2b8] sm:$0xff]
  %v118 = vld [vmem:[%s1 + $0x2c0] sm:$0xff]
  %v119 = vld [vmem:[%s1 + $0x2c8] sm:$0xff]
  %v120 = vld [vmem:[%s1 + $0x2d0] sm:$0xff]
  %v121 = vld [vmem:[%s1 + $0x2d8] sm:$0xff]
  %v122 = vld [vmem:[%s1 + $0x2e0] sm:$0xff]
  %v123 = vld [vmem:[%s1 + $0x2e8] sm:$0xff]
  %v124 = vld [vmem:[%s1 + $0x2f0] sm:$0xff]
  %v125 = vld [vmem:[%s1 + $0x2f8] sm:$0xff]
  %v126 = vld [vmem:[%s1 + $0x300] sm:$0xff]
  %v127 = vld [vmem:[%s1 + $0x308] sm:$0xff]
  %v128 = vld [vmem:[%s1 + $0x310] sm:$0xff]
  %v129 = vld [vmem:[%s1 + $0x318] sm:$0xff]
  %v130 = vld [vmem:[%s1 + $0x320] sm:$0xff]
  %v131 = vld [vmem:[%s1 + $0x328] sm:$0xff]
  %v132 = vld [vmem:[%s1 + $0x330] sm:$0xff]
  %v133 = vld [vmem:[%s1 + $0x338] sm:$0xff]
  %v134 = vld [vmem:[%s1 + $0x340] sm:$0xff]
  %v135 = vld [vmem:[%s1 + $0x348] sm:$0xff]
  %v136 = vld [vmem:[%s1 + $0x350] sm:$0xff]
  %v137 = vld [vmem:[%s1 + $0x358] sm:$0xff]
  %v138 = vld [vmem:[%s1 + $0x360] sm:$0xff]
  %v139 = vld [vmem:[%s1 + $0x368] sm:$0xff]
  %v140 = vld [vmem:[%s1 + $0x370] sm:$0xff]
  %v141 = vld [vmem:[%s1 + $0x378] sm:$0xff]
  %v142 = vld [vmem:[%s1 + $0x380] sm:$0xff]
  %v143 = vld [vmem:[%s1 + $0x388] sm:$0xff]
  %v144 = vld [vmem:[%s1 + $0x390] sm:$0xff]
  %v145 = vld [vmem:[%s1 + $0x398] sm:$0xff]
  %v146 = vld [vmem:[%s1 + $0x3a0] sm:$0xff]
  %v147 = vld [vmem:[%s1 + $0x3a8] sm:$0xff]
  %v148 = vld [vmem:[%s1 + $0x3b0] sm:$0xff]
  %v149 = vld [vmem:[%s1 + $0x3b8] sm:$0xff]
  %v150 = vld [vmem:[%s1 + $0x3c0] sm:$0xff]
  %v151 = vld [vmem:[%s1 + $0x3c8] sm:$0xff]
  %v152 = vld [vmem:[%s1 + $0x3d0] sm:$0xff]
  %v153 = vld [vmem:[%s1 + $0x3d8] sm:$0xff]
  %v154 = vld [vmem:[%s1 + $0x3e0] sm:$0xff]
  %v155 = vld [vmem:[%s1 + $0x3e8] sm:$0xff]
  %v156 = vld [vmem:[%s1 + $0x3f0] sm:$0xff]
  %v157 = vld [vmem:[%s1 + $0x3f8] sm:$0xff]
  %v158 = vld [vmem:[%s2] sm:$0xf]
  %v160 = vperm.slane %v158, 0
  %v161 = vperm.slane %v158, 1
  %v162 = vperm.slane %v158, 2
  %v163 = vperm.slane %v158, 3
  %v172 = vunpack.c.l.b16 %v26
  %v173 = vunpack.c.h.b16 %v26
  %v174 = vunpack.c.l.b16 %v27
  %v175 = vunpack.c.h.b16 %v27
  %v176 = vunpack.c.l.b16 %v28
  %v177 = vunpack.c.h.b16 %v28
  %v178 = vunpack.c.l.b16 %v29
  %v179 = vunpack.c.h.b16 %v29
  %v180 = vpack.c.b16 %v176, %v172
  %v181 = vpack.c.b16 %v177, %v173
  %v182 = vpack.c.b16 %v178, %v174
  %v183 = vpack.c.b16 %v179, %v175
  %v316 = vunpack.c.l.b16 %v30
  %v317 = vunpack.c.h.b16 %v30
  %v318 = vunpack.c.l.b16 %v31
  %v319 = vunpack.c.h.b16 %v31
  %v320 = vunpack.c.l.b16 %v32
  %v321 = vunpack.c.h.b16 %v32
  %v322 = vunpack.c.l.b16 %v33
  %v323 = vunpack.c.h.b16 %v33
  %v324 = vunpack.c.l.b16 %v34
  %v325 = vunpack.c.h.b16 %v34
  %v326 = vunpack.c.l.b16 %v35
  %v327 = vunpack.c.h.b16 %v35
  %v328 = vunpack.c.l.b16 %v36
  %v329 = vunpack.c.h.b16 %v36
  %v330 = vunpack.c.l.b16 %v37
  %v331 = vunpack.c.h.b16 %v37
  %v332 = vunpack.c.l.b16 %v38
  %v333 = vunpack.c.h.b16 %v38
  %v334 = vunpack.c.l.b16 %v39
  %v335 = vunpack.c.h.b16 %v39
  %v336 = vunpack.c.l.b16 %v40
  %v337 = vunpack.c.h.b16 %v40
  %v338 = vunpack.c.l.b16 %v41
  %v339 = vunpack.c.h.b16 %v41
  %v340 = vunpack.c.l.b16 %v42
  %v341 = vunpack.c.h.b16 %v42
  %v342 = vunpack.c.l.b16 %v43
  %v343 = vunpack.c.h.b16 %v43
  %v344 = vunpack.c.l.b16 %v44
  %v345 = vunpack.c.h.b16 %v44
  %v346 = vunpack.c.l.b16 %v45
  %v347 = vunpack.c.h.b16 %v45
  %v348 = vunpack.c.l.b16 %v46
  %v349 = vunpack.c.h.b16 %v46
  %v350 = vunpack.c.l.b16 %v47
  %v351 = vunpack.c.h.b16 %v47
  %v352 = vunpack.c.l.b16 %v48
  %v353 = vunpack.c.h.b16 %v48
  %v354 = vunpack.c.l.b16 %v49
  %v355 = vunpack.c.h.b16 %v49
  %v356 = vunpack.c.l.b16 %v50
  %v357 = vunpack.c.h.b16 %v50
  %v358 = vunpack.c.l.b16 %v51
  %v359 = vunpack.c.h.b16 %v51
  %v360 = vunpack.c.l.b16 %v52
  %v361 = vunpack.c.h.b16 %v52
  %v362 = vunpack.c.l.b16 %v53
  %v363 = vunpack.c.h.b16 %v53
  %v364 = vunpack.c.l.b16 %v54
  %v365 = vunpack.c.h.b16 %v54
  %v366 = vunpack.c.l.b16 %v55
  %v367 = vunpack.c.h.b16 %v55
  %v368 = vunpack.c.l.b16 %v56
  %v369 = vunpack.c.h.b16 %v56
  %v370 = vunpack.c.l.b16 %v57
  %v371 = vunpack.c.h.b16 %v57
  %v372 = vunpack.c.l.b16 %v58
  %v373 = vunpack.c.h.b16 %v58
  %v374 = vunpack.c.l.b16 %v59
  %v375 = vunpack.c.h.b16 %v59
  %v376 = vunpack.c.l.b16 %v60
  %v377 = vunpack.c.h.b16 %v60
  %v378 = vunpack.c.l.b16 %v61
  %v379 = vunpack.c.h.b16 %v61
  %v380 = vunpack.c.l.b16 %v62
  %v381 = vunpack.c.h.b16 %v62
  %v382 = vunpack.c.l.b16 %v63
  %v383 = vunpack.c.h.b16 %v63
  %v384 = vunpack.c.l.b16 %v64
  %v385 = vunpack.c.h.b16 %v64
  %v386 = vunpack.c.l.b16 %v65
  %v387 = vunpack.c.h.b16 %v65
  %v388 = vunpack.c.l.b16 %v66
  %v389 = vunpack.c.h.b16 %v66
  %v390 = vunpack.c.l.b16 %v67
  %v391 = vunpack.c.h.b16 %v67
  %v392 = vunpack.c.l.b16 %v68
  %v393 = vunpack.c.h.b16 %v68
  %v394 = vunpack.c.l.b16 %v69
  %v395 = vunpack.c.h.b16 %v69
  %v396 = vunpack.c.l.b16 %v70
  %v397 = vunpack.c.h.b16 %v70
  %v398 = vunpack.c.l.b16 %v71
  %v399 = vunpack.c.h.b16 %v71
  %v400 = vunpack.c.l.b16 %v72
  %v401 = vunpack.c.h.b16 %v72
  %v402 = vunpack.c.l.b16 %v73
  %v403 = vunpack.c.h.b16 %v73
  %v404 = vunpack.c.l.b16 %v74
  %v405 = vunpack.c.h.b16 %v74
  %v406 = vunpack.c.l.b16 %v75
  %v407 = vunpack.c.h.b16 %v75
  %v408 = vunpack.c.l.b16 %v76
  %v409 = vunpack.c.h.b16 %v76
  %v410 = vunpack.c.l.b16 %v77
  %v411 = vunpack.c.h.b16 %v77
  %v412 = vunpack.c.l.b16 %v78
  %v413 = vunpack.c.h.b16 %v78
  %v414 = vunpack.c.l.b16 %v79
  %v415 = vunpack.c.h.b16 %v79
  %v416 = vunpack.c.l.b16 %v80
  %v417 = vunpack.c.h.b16 %v80
  %v418 = vunpack.c.l.b16 %v81
  %v419 = vunpack.c.h.b16 %v81
  %v420 = vunpack.c.l.b16 %v82
  %v421 = vunpack.c.h.b16 %v82
  %v422 = vunpack.c.l.b16 %v83
  %v423 = vunpack.c.h.b16 %v83
  %v424 = vunpack.c.l.b16 %v84
  %v425 = vunpack.c.h.b16 %v84
  %v426 = vunpack.c.l.b16 %v85
  %v427 = vunpack.c.h.b16 %v85
  %v428 = vunpack.c.l.b16 %v86
  %v429 = vunpack.c.h.b16 %v86
  %v430 = vunpack.c.l.b16 %v87
  %v431 = vunpack.c.h.b16 %v87
  %v432 = vunpack.c.l.b16 %v88
  %v433 = vunpack.c.h.b16 %v88
  %v434 = vunpack.c.l.b16 %v89
  %v435 = vunpack.c.h.b16 %v89
  %v436 = vunpack.c.l.b16 %v90
  %v437 = vunpack.c.h.b16 %v90
  %v438 = vunpack.c.l.b16 %v91
  %v439 = vunpack.c.h.b16 %v91
  %v440 = vunpack.c.l.b16 %v92
  %v441 = vunpack.c.h.b16 %v92
  %v442 = vunpack.c.l.b16 %v93
  %v443 = vunpack.c.h.b16 %v93
  %v444 = vunpack.c.l.b16 %v94
  %v445 = vunpack.c.h.b16 %v94
  %v446 = vunpack.c.l.b16 %v95
  %v447 = vunpack.c.h.b16 %v95
  %v448 = vunpack.c.l.b16 %v96
  %v449 = vunpack.c.h.b16 %v96
  %v450 = vunpack.c.l.b16 %v97
  %v451 = vunpack.c.h.b16 %v97
  %v452 = vunpack.c.l.b16 %v98
  %v453 = vunpack.c.h.b16 %v98
  %v454 = vunpack.c.l.b16 %v99
  %v455 = vunpack.c.h.b16 %v99
  %v456 = vunpack.c.l.b16 %v100
  %v457 = vunpack.c.h.b16 %v100
  %v458 = vunpack.c.l.b16 %v101
  %v459 = vunpack.c.h.b16 %v101
  %v460 = vunpack.c.l.b16 %v102
  %v461 = vunpack.c.h.b16 %v102
  %v462 = vunpack.c.l.b16 %v103
  %v463 = vunpack.c.h.b16 %v103
  %v464 = vunpack.c.l.b16 %v104
  %v465 = vunpack.c.h.b16 %v104
  %v466 = vunpack.c.l.b16 %v105
  %v467 = vunpack.c.h.b16 %v105
  %v468 = vunpack.c.l.b16 %v106
  %v469 = vunpack.c.h.b16 %v106
  %v470 = vunpack.c.l.b16 %v107
  %v471 = vunpack.c.h.b16 %v107
  %v472 = vunpack.c.l.b16 %v108
  %v473 = vunpack.c.h.b16 %v108
  %v474 = vunpack.c.l.b16 %v109
  %v475 = vunpack.c.h.b16 %v109
  %v476 = vunpack.c.l.b16 %v110
  %v477 = vunpack.c.h.b16 %v110
  %v478 = vunpack.c.l.b16 %v111
  %v479 = vunpack.c.h.b16 %v111
  %v480 = vunpack.c.l.b16 %v112
  %v481 = vunpack.c.h.b16 %v112
  %v482 = vunpack.c.l.b16 %v113
  %v483 = vunpack.c.h.b16 %v113
  %v484 = vunpack.c.l.b16 %v114
  %v485 = vunpack.c.h.b16 %v114
  %v486 = vunpack.c.l.b16 %v115
  %v487 = vunpack.c.h.b16 %v115
  %v488 = vunpack.c.l.b16 %v116
  %v489 = vunpack.c.h.b16 %v116
  %v490 = vunpack.c.l.b16 %v117
  %v491 = vunpack.c.h.b16 %v117
  %v492 = vunpack.c.l.b16 %v118
  %v493 = vunpack.c.h.b16 %v118
  %v494 = vunpack.c.l.b16 %v119
  %v495 = vunpack.c.h.b16 %v119
  %v496 = vunpack.c.l.b16 %v120
  %v497 = vunpack.c.h.b16 %v120
  %v498 = vunpack.c.l.b16 %v121
  %v499 = vunpack.c.h.b16 %v121
  %v500 = vunpack.c.l.b16 %v122
  %v501 = vunpack.c.h.b16 %v122
  %v502 = vunpack.c.l.b16 %v123
  %v503 = vunpack.c.h.b16 %v123
  %v504 = vunpack.c.l.b16 %v124
  %v505 = vunpack.c.h.b16 %v124
  %v506 = vunpack.c.l.b16 %v125
  %v507 = vunpack.c.h.b16 %v125
  %v508 = vunpack.c.l.b16 %v126
  %v509 = vunpack.c.h.b16 %v126
  %v510 = vunpack.c.l.b16 %v127
  %v511 = vunpack.c.h.b16 %v127
  %v512 = vunpack.c.l.b16 %v128
  %v513 = vunpack.c.h.b16 %v128
  %v514 = vunpack.c.l.b16 %v129
  %v515 = vunpack.c.h.b16 %v129
  %v516 = vunpack.c.l.b16 %v130
  %v517 = vunpack.c.h.b16 %v130
  %v518 = vunpack.c.l.b16 %v131
  %v519 = vunpack.c.h.b16 %v131
  %v520 = vunpack.c.l.b16 %v132
  %v521 = vunpack.c.h.b16 %v132
  %v522 = vunpack.c.l.b16 %v133
  %v523 = vunpack.c.h.b16 %v133
  %v524 = vunpack.c.l.b16 %v134
  %v525 = vunpack.c.h.b16 %v134
  %v526 = vunpack.c.l.b16 %v135
  %v527 = vunpack.c.h.b16 %v135
  %v528 = vunpack.c.l.b16 %v136
  %v529 = vunpack.c.h.b16 %v136
  %v530 = vunpack.c.l.b16 %v137
  %v531 = vunpack.c.h.b16 %v137
  %v532 = vunpack.c.l.b16 %v138
  %v533 = vunpack.c.h.b16 %v138
  %v534 = vunpack.c.l.b16 %v139
  %v535 = vunpack.c.h.b16 %v139
  %v536 = vunpack.c.l.b16 %v140
  %v537 = vunpack.c.h.b16 %v140
  %v538 = vunpack.c.l.b16 %v141
  %v539 = vunpack.c.h.b16 %v141
  %v540 = vunpack.c.l.b16 %v142
  %v541 = vunpack.c.h.b16 %v142
  %v542 = vunpack.c.l.b16 %v143
  %v543 = vunpack.c.h.b16 %v143
  %v544 = vunpack.c.l.b16 %v144
  %v545 = vunpack.c.h.b16 %v144
  %v546 = vunpack.c.l.b16 %v145
  %v547 = vunpack.c.h.b16 %v145
  %v548 = vunpack.c.l.b16 %v146
  %v549 = vunpack.c.h.b16 %v146
  %v550 = vunpack.c.l.b16 %v147
  %v551 = vunpack.c.h.b16 %v147
  %v552 = vunpack.c.l.b16 %v148
  %v553 = vunpack.c.h.b16 %v148
  %v554 = vunpack.c.l.b16 %v149
  %v555 = vunpack.c.h.b16 %v149
  %v556 = vunpack.c.l.b16 %v150
  %v557 = vunpack.c.h.b16 %v150
  %v558 = vunpack.c.l.b16 %v151
  %v559 = vunpack.c.h.b16 %v151
  %v560 = vunpack.c.l.b16 %v152
  %v561 = vunpack.c.h.b16 %v152
  %v562 = vunpack.c.l.b16 %v153
  %v563 = vunpack.c.h.b16 %v153
  %v564 = vunpack.c.l.b16 %v154
  %v565 = vunpack.c.h.b16 %v154
  %v566 = vunpack.c.l.b16 %v155
  %v567 = vunpack.c.h.b16 %v155
  %v568 = vunpack.c.l.b16 %v156
  %v569 = vunpack.c.h.b16 %v156
  %v570 = vunpack.c.l.b16 %v157
  %v571 = vunpack.c.h.b16 %v157
  %v572 = vpack.c.b16 %v320, %v316
  %v573 = vpack.c.b16 %v321, %v317
  %v574 = vpack.c.b16 %v322, %v318
  %v575 = vpack.c.b16 %v323, %v319
  %v576 = vpack.c.b16 %v328, %v324
  %v577 = vpack.c.b16 %v329, %v325
  %v578 = vpack.c.b16 %v330, %v326
  %v579 = vpack.c.b16 %v331, %v327
  %v580 = vpack.c.b16 %v336, %v332
  %v581 = vpack.c.b16 %v337, %v333
  %v582 = vpack.c.b16 %v338, %v334
  %v583 = vpack.c.b16 %v339, %v335
  %v584 = vpack.c.b16 %v344, %v340
  %v585 = vpack.c.b16 %v345, %v341
  %v586 = vpack.c.b16 %v346, %v342
  %v587 = vpack.c.b16 %v347, %v343
  %v588 = vpack.c.b16 %v352, %v348
  %v589 = vpack.c.b16 %v353, %v349
  %v590 = vpack.c.b16 %v354, %v350
  %v591 = vpack.c.b16 %v355, %v351
  %v592 = vpack.c.b16 %v360, %v356
  %v593 = vpack.c.b16 %v361, %v357
  %v594 = vpack.c.b16 %v362, %v358
  %v595 = vpack.c.b16 %v363, %v359
  %v596 = vpack.c.b16 %v368, %v364
  %v597 = vpack.c.b16 %v369, %v365
  %v598 = vpack.c.b16 %v370, %v366
  %v599 = vpack.c.b16 %v371, %v367
  %v600 = vpack.c.b16 %v376, %v372
  %v601 = vpack.c.b16 %v377, %v373
  %v602 = vpack.c.b16 %v378, %v374
  %v603 = vpack.c.b16 %v379, %v375
  %v604 = vpack.c.b16 %v384, %v380
  %v605 = vpack.c.b16 %v385, %v381
  %v606 = vpack.c.b16 %v386, %v382
  %v607 = vpack.c.b16 %v387, %v383
  %v608 = vpack.c.b16 %v392, %v388
  %v609 = vpack.c.b16 %v393, %v389
  %v610 = vpack.c.b16 %v394, %v390
  %v611 = vpack.c.b16 %v395, %v391
  %v612 = vpack.c.b16 %v400, %v396
  %v613 = vpack.c.b16 %v401, %v397
  %v614 = vpack.c.b16 %v402, %v398
  %v615 = vpack.c.b16 %v403, %v399
  %v616 = vpack.c.b16 %v408, %v404
  %v617 = vpack.c.b16 %v409, %v405
  %v618 = vpack.c.b16 %v410, %v406
  %v619 = vpack.c.b16 %v411, %v407
  %v620 = vpack.c.b16 %v416, %v412
  %v621 = vpack.c.b16 %v417, %v413
  %v622 = vpack.c.b16 %v418, %v414
  %v623 = vpack.c.b16 %v419, %v415
  %v624 = vpack.c.b16 %v424, %v420
  %v625 = vpack.c.b16 %v425, %v421
  %v626 = vpack.c.b16 %v426, %v422
  %v627 = vpack.c.b16 %v427, %v423
  %v628 = vpack.c.b16 %v432, %v428
  %v629 = vpack.c.b16 %v433, %v429
  %v630 = vpack.c.b16 %v434, %v430
  %v631 = vpack.c.b16 %v435, %v431
  %v632 = vpack.c.b16 %v440, %v436
  %v633 = vpack.c.b16 %v441, %v437
  %v634 = vpack.c.b16 %v442, %v438
  %v635 = vpack.c.b16 %v443, %v439
  %v636 = vpack.c.b16 %v448, %v444
  %v637 = vpack.c.b16 %v449, %v445
  %v638 = vpack.c.b16 %v450, %v446
  %v639 = vpack.c.b16 %v451, %v447
  %v640 = vpack.c.b16 %v456, %v452
  %v641 = vpack.c.b16 %v457, %v453
  %v642 = vpack.c.b16 %v458, %v454
  %v643 = vpack.c.b16 %v459, %v455
  %v644 = vpack.c.b16 %v464, %v460
  %v645 = vpack.c.b16 %v465, %v461
  %v646 = vpack.c.b16 %v466, %v462
  %v647 = vpack.c.b16 %v467, %v463
  %v648 = vpack.c.b16 %v472, %v468
  %v649 = vpack.c.b16 %v473, %v469
  %v650 = vpack.c.b16 %v474, %v470
  %v651 = vpack.c.b16 %v475, %v471
  %v652 = vpack.c.b16 %v480, %v476
  %v653 = vpack.c.b16 %v481, %v477
  %v654 = vpack.c.b16 %v482, %v478
  %v655 = vpack.c.b16 %v483, %v479
  %v656 = vpack.c.b16 %v488, %v484
  %v657 = vpack.c.b16 %v489, %v485
  %v658 = vpack.c.b16 %v490, %v486
  %v659 = vpack.c.b16 %v491, %v487
  %v660 = vpack.c.b16 %v496, %v492
  %v661 = vpack.c.b16 %v497, %v493
  %v662 = vpack.c.b16 %v498, %v494
  %v663 = vpack.c.b16 %v499, %v495
  %v664 = vpack.c.b16 %v504, %v500
  %v665 = vpack.c.b16 %v505, %v501
  %v666 = vpack.c.b16 %v506, %v502
  %v667 = vpack.c.b16 %v507, %v503
  %v668 = vpack.c.b16 %v512, %v508
  %v669 = vpack.c.b16 %v513, %v509
  %v670 = vpack.c.b16 %v514, %v510
  %v671 = vpack.c.b16 %v515, %v511
  %v672 = vpack.c.b16 %v520, %v516
  %v673 = vpack.c.b16 %v521, %v517
  %v674 = vpack.c.b16 %v522, %v518
  %v675 = vpack.c.b16 %v523, %v519
  %v676 = vpack.c.b16 %v528, %v524
  %v677 = vpack.c.b16 %v529, %v525
  %v678 = vpack.c.b16 %v530, %v526
  %v679 = vpack.c.b16 %v531, %v527
  %v680 = vpack.c.b16 %v536, %v532
  %v681 = vpack.c.b16 %v537, %v533
  %v682 = vpack.c.b16 %v538, %v534
  %v683 = vpack.c.b16 %v539, %v535
  %v684 = vpack.c.b16 %v544, %v540
  %v685 = vpack.c.b16 %v545, %v541
  %v686 = vpack.c.b16 %v546, %v542
  %v687 = vpack.c.b16 %v547, %v543
  %v688 = vpack.c.b16 %v552, %v548
  %v689 = vpack.c.b16 %v553, %v549
  %v690 = vpack.c.b16 %v554, %v550
  %v691 = vpack.c.b16 %v555, %v551
  %v692 = vpack.c.b16 %v560, %v556
  %v693 = vpack.c.b16 %v561, %v557
  %v694 = vpack.c.b16 %v562, %v558
  %v695 = vpack.c.b16 %v563, %v559
  %v696 = vpack.c.b16 %v568, %v564
  %v697 = vpack.c.b16 %v569, %v565
  %v698 = vpack.c.b16 %v570, %v566
  %v699 = vpack.c.b16 %v571, %v567
  %828 = vmatpush.bf16.msra.mxu0 %v600
  %829 = vmatpush.bf16.msra.mxu0 %v596
  %830 = vmatpush.bf16.msra.mxu0 %v592
  %831 = vmatpush.bf16.msra.mxu0 %v588
  %832 = vmatpush.bf16.msra.mxu0 %v584
  %833 = vmatpush.bf16.msra.mxu0 %v580
  %834 = vmatpush.bf16.msra.mxu0 %v576
  %835 = vmatpush.bf16.msra.mxu0 %v572
  %836 = vmatmul.bf16.gmra.mxu0 %v180
  %v837 = vpop.f32.mrf.mxu0
  %v838 = vadd.f32 %v160, %v837
  %v839 = vpop.f32.mrf.mxu0
  %v840 = vadd.f32 %v160, %v839
  %841 = vdwg.mxu0
  %842 = vmatpush.bf16.msra.mxu0 %v632
  %843 = vmatpush.bf16.msra.mxu0 %v628
  %844 = vmatpush.bf16.msra.mxu0 %v624
  %845 = vmatpush.bf16.msra.mxu0 %v620
  %846 = vmatpush.bf16.msra.mxu0 %v616
  %847 = vmatpush.bf16.msra.mxu0 %v612
  %848 = vmatpush.bf16.msra.mxu0 %v608
  %849 = vmatpush.bf16.msra.mxu0 %v604
  %850 = vmatmul.bf16.gmra.mxu0 %v181
  %v851 = vpop.f32.mrf.mxu0
  %v852 = vadd.f32 %v838, %v851
  %v853 = vpop.f32.mrf.mxu0
  %v854 = vadd.f32 %v840, %v853
  %855 = vdwg.mxu0
  %856 = vmatpush.bf16.msra.mxu0 %v664
  %857 = vmatpush.bf16.msra.mxu0 %v660
  %858 = vmatpush.bf16.msra.mxu0 %v656
  %859 = vmatpush.bf16.msra.mxu0 %v652
  %860 = vmatpush.bf16.msra.mxu0 %v648
  %861 = vmatpush.bf16.msra.mxu0 %v644
  %862 = vmatpush.bf16.msra.mxu0 %v640
  %863 = vmatpush.bf16.msra.mxu0 %v636
  %864 = vmatmul.bf16.gmra.mxu0 %v182
  %v865 = vpop.f32.mrf.mxu0
  %v866 = vadd.f32 %v852, %v865
  %v867 = vpop.f32.mrf.mxu0
  %v868 = vadd.f32 %v854, %v867
  %869 = vdwg.mxu0
  %870 = vmatpush.bf16.msra.mxu0 %v696
  %871 = vmatpush.bf16.msra.mxu0 %v692
  %872 = vmatpush.bf16.msra.mxu0 %v688
  %873 = vmatpush.bf16.msra.mxu0 %v684
  %874 = vmatpush.bf16.msra.mxu0 %v680
  %875 = vmatpush.bf16.msra.mxu0 %v676
  %876 = vmatpush.bf16.msra.mxu0 %v672
  %877 = vmatpush.bf16.msra.mxu0 %v668
  %878 = vmatmul.bf16.gmra.mxu0 %v183
  %v879 = vpop.f32.mrf.mxu0
  %v880 = vadd.f32 %v866, %v879
  %v881 = vpop.f32.mrf.mxu0
  %v882 = vadd.f32 %v868, %v881
  %883 = vdwg.mxu0
  %884 = vmatpush.bf16.msra.mxu0 %v601
  %885 = vmatpush.bf16.msra.mxu0 %v597
  %886 = vmatpush.bf16.msra.mxu0 %v593
  %887 = vmatpush.bf16.msra.mxu0 %v589
  %888 = vmatpush.bf16.msra.mxu0 %v585
  %889 = vmatpush.bf16.msra.mxu0 %v581
  %890 = vmatpush.bf16.msra.mxu0 %v577
  %891 = vmatpush.bf16.msra.mxu0 %v573
  %892 = vmatmul.bf16.gmra.mxu0 %v180
  %v893 = vpop.f32.mrf.mxu0
  %v894 = vadd.f32 %v161, %v893
  %v895 = vpop.f32.mrf.mxu0
  %v896 = vadd.f32 %v161, %v895
  %897 = vdwg.mxu0
  %898 = vmatpush.bf16.msra.mxu0 %v633
  %899 = vmatpush.bf16.msra.mxu0 %v629
  %900 = vmatpush.bf16.msra.mxu0 %v625
  %901 = vmatpush.bf16.msra.mxu0 %v621
  %902 = vmatpush.bf16.msra.mxu0 %v617
  %903 = vmatpush.bf16.msra.mxu0 %v613
  %904 = vmatpush.bf16.msra.mxu0 %v609
  %905 = vmatpush.bf16.msra.mxu0 %v605
  %906 = vmatmul.bf16.gmra.mxu0 %v181
  %v907 = vpop.f32.mrf.mxu0
  %v908 = vadd.f32 %v894, %v907
  %v909 = vpop.f32.mrf.mxu0
  %v910 = vadd.f32 %v896, %v909
  %911 = vdwg.mxu0
  %912 = vmatpush.bf16.msra.mxu0 %v665
  %913 = vmatpush.bf16.msra.mxu0 %v661
  %914 = vmatpush.bf16.msra.mxu0 %v657
  %915 = vmatpush.bf16.msra.mxu0 %v653
  %916 = vmatpush.bf16.msra.mxu0 %v649
  %917 = vmatpush.bf16.msra.mxu0 %v645
  %918 = vmatpush.bf16.msra.mxu0 %v641
  %919 = vmatpush.bf16.msra.mxu0 %v637
  %920 = vmatmul.bf16.gmra.mxu0 %v182
  %v921 = vpop.f32.mrf.mxu0
  %v922 = vadd.f32 %v908, %v921
  %v923 = vpop.f32.mrf.mxu0
  %v924 = vadd.f32 %v910, %v923
  %925 = vdwg.mxu0
  %926 = vmatpush.bf16.msra.mxu0 %v697
  %927 = vmatpush.bf16.msra.mxu0 %v693
  %928 = vmatpush.bf16.msra.mxu0 %v689
  %929 = vmatpush.bf16.msra.mxu0 %v685
  %930 = vmatpush.bf16.msra.mxu0 %v681
  %931 = vmatpush.bf16.msra.mxu0 %v677
  %932 = vmatpush.bf16.msra.mxu0 %v673
  %933 = vmatpush.bf16.msra.mxu0 %v669
  %934 = vmatmul.bf16.gmra.mxu0 %v183
  %v935 = vpop.f32.mrf.mxu0
  %v936 = vadd.f32 %v922, %v935
  %v937 = vpop.f32.mrf.mxu0
  %v938 = vadd.f32 %v924, %v937
  %939 = vdwg.mxu0
  %940 = vmatpush.bf16.msra.mxu0 %v602
  %941 = vmatpush.bf16.msra.mxu0 %v598
  %942 = vmatpush.bf16.msra.mxu0 %v594
  %943 = vmatpush.bf16.msra.mxu0 %v590
  %944 = vmatpush.bf16.msra.mxu0 %v586
  %945 = vmatpush.bf16.msra.mxu0 %v582
  %946 = vmatpush.bf16.msra.mxu0 %v578
  %947 = vmatpush.bf16.msra.mxu0 %v574
  %948 = vmatmul.bf16.gmra.mxu0 %v180
  %v949 = vpop.f32.mrf.mxu0
  %v950 = vadd.f32 %v162, %v949
  %v951 = vpop.f32.mrf.mxu0
  %v952 = vadd.f32 %v162, %v951
  %953 = vdwg.mxu0
  %954 = vmatpush.bf16.msra.mxu0 %v634
  %955 = vmatpush.bf16.msra.mxu0 %v630
  %956 = vmatpush.bf16.msra.mxu0 %v626
  %957 = vmatpush.bf16.msra.mxu0 %v622
  %958 = vmatpush.bf16.msra.mxu0 %v618
  %959 = vmatpush.bf16.msra.mxu0 %v614
  %960 = vmatpush.bf16.msra.mxu0 %v610
  %961 = vmatpush.bf16.msra.mxu0 %v606
  %962 = vmatmul.bf16.gmra.mxu0 %v181
  %v963 = vpop.f32.mrf.mxu0
  %v964 = vadd.f32 %v950, %v963
  %v965 = vpop.f32.mrf.mxu0
  %v966 = vadd.f32 %v952, %v965
  %967 = vdwg.mxu0
  %968 = vmatpush.bf16.msra.mxu0 %v666
  %969 = vmatpush.bf16.msra.mxu0 %v662
  %970 = vmatpush.bf16.msra.mxu0 %v658
  %971 = vmatpush.bf16.msra.mxu0 %v654
  %972 = vmatpush.bf16.msra.mxu0 %v650
  %973 = vmatpush.bf16.msra.mxu0 %v646
  %974 = vmatpush.bf16.msra.mxu0 %v642
  %975 = vmatpush.bf16.msra.mxu0 %v638
  %976 = vmatmul.bf16.gmra.mxu0 %v182
  %v977 = vpop.f32.mrf.mxu0
  %v978 = vadd.f32 %v964, %v977
  %v979 = vpop.f32.mrf.mxu0
  %v980 = vadd.f32 %v966, %v979
  %981 = vdwg.mxu0
  %982 = vmatpush.bf16.msra.mxu0 %v698
  %983 = vmatpush.bf16.msra.mxu0 %v694
  %984 = vmatpush.bf16.msra.mxu0 %v690
  %985 = vmatpush.bf16.msra.mxu0 %v686
  %986 = vmatpush.bf16.msra.mxu0 %v682
  %987 = vmatpush.bf16.msra.mxu0 %v678
  %988 = vmatpush.bf16.msra.mxu0 %v674
  %989 = vmatpush.bf16.msra.mxu0 %v670
  %990 = vmatmul.bf16.gmra.mxu0 %v183
  %v991 = vpop.f32.mrf.mxu0
  %v992 = vadd.f32 %v978, %v991
  %v993 = vpop.f32.mrf.mxu0
  %v994 = vadd.f32 %v980, %v993
  %995 = vdwg.mxu0
  %996 = vmatpush.bf16.msra.mxu0 %v603
  %997 = vmatpush.bf16.msra.mxu0 %v599
  %998 = vmatpush.bf16.msra.mxu0 %v595
  %999 = vmatpush.bf16.msra.mxu0 %v591
  %1000 = vmatpush.bf16.msra.mxu0 %v587
  %1001 = vmatpush.bf16.msra.mxu0 %v583
  %1002 = vmatpush.bf16.msra.mxu0 %v579
  %1003 = vmatpush.bf16.msra.mxu0 %v575
  %1004 = vmatmul.bf16.gmra.mxu0 %v180
  %v1005 = vpop.f32.mrf.mxu0
  %v1006 = vadd.f32 %v163, %v1005
  %v1007 = vpop.f32.mrf.mxu0
  %v1008 = vadd.f32 %v163, %v1007
  %1009 = vdwg.mxu0
  %1010 = vmatpush.bf16.msra.mxu0 %v635
  %1011 = vmatpush.bf16.msra.mxu0 %v631
  %1012 = vmatpush.bf16.msra.mxu0 %v627
  %1013 = vmatpush.bf16.msra.mxu0 %v623
  %1014 = vmatpush.bf16.msra.mxu0 %v619
  %1015 = vmatpush.bf16.msra.mxu0 %v615
  %1016 = vmatpush.bf16.msra.mxu0 %v611
  %1017 = vmatpush.bf16.msra.mxu0 %v607
  %1018 = vmatmul.bf16.gmra.mxu0 %v181
  %v1019 = vpop.f32.mrf.mxu0
  %v1020 = vadd.f32 %v1006, %v1019
  %v1021 = vpop.f32.mrf.mxu0
  %v1022 = vadd.f32 %v1008, %v1021
  %1023 = vdwg.mxu0
  %1024 = vmatpush.bf16.msra.mxu0 %v667
  %1025 = vmatpush.bf16.msra.mxu0 %v663
  %1026 = vmatpush.bf16.msra.mxu0 %v659
  %1027 = vmatpush.bf16.msra.mxu0 %v655
  %1028 = vmatpush.bf16.msra.mxu0 %v651
  %1029 = vmatpush.bf16.msra.mxu0 %v647
  %1030 = vmatpush.bf16.msra.mxu0 %v643
  %1031 = vmatpush.bf16.msra.mxu0 %v639
  %1032 = vmatmul.bf16.gmra.mxu0 %v182
  %v1033 = vpop.f32.mrf.mxu0
  %v1034 = vadd.f32 %v1020, %v1033
  %v1035 = vpop.f32.mrf.mxu0
  %v1036 = vadd.f32 %v1022, %v1035
  %1037 = vdwg.mxu0
  %1038 = vmatpush.bf16.msra.mxu0 %v699
  %1039 = vmatpush.bf16.msra.mxu0 %v695
  %1040 = vmatpush.bf16.msra.mxu0 %v691
  %1041 = vmatpush.bf16.msra.mxu0 %v687
  %1042 = vmatpush.bf16.msra.mxu0 %v683
  %1043 = vmatpush.bf16.msra.mxu0 %v679
  %1044 = vmatpush.bf16.msra.mxu0 %v675
  %1045 = vmatpush.bf16.msra.mxu0 %v671
  %1046 = vmatmul.bf16.gmra.mxu0 %v183
  %v1047 = vpop.f32.mrf.mxu0
  %v1048 = vadd.f32 %v1034, %v1047
  %v1049 = vpop.f32.mrf.mxu0
  %v1050 = vadd.f32 %v1036, %v1049
  %1051 = vdwg.mxu0
  %v1052 = vmax.f32 %v880, 0.0
  %v1053 = vmax.f32 %v936, 0.0
  %v1054 = vmax.f32 %v992, 0.0
  %v1055 = vmax.f32 %v1048, 0.0
  %v1056 = vmax.f32 %v882, 0.0
  %v1057 = vmax.f32 %v938, 0.0
  %v1058 = vmax.f32 %v994, 0.0
  %v1059 = vmax.f32 %v1050, 0.0
  %v1060 = vpack.c.bf16 %v1056, %v1052
  %v1061 = vpack.c.bf16 %v1057, %v1053
  %v1062 = vpack.c.bf16 %v1058, %v1054
  %v1063 = vpack.c.bf16 %v1059, %v1055
  %s1064 = scalar_lea.vmem %s1, 1024
  %v1065 = vld [vmem:[%s1064] sm:$0xff]
  %v1066 = vld [vmem:[%s1064 + $0x8] sm:$0xff]
  %v1067 = vld [vmem:[%s1064 + $0x10] sm:$0xff]
  %v1068 = vld [vmem:[%s1064 + $0x18] sm:$0xff]
  %v1069 = vld [vmem:[%s1064 + $0x20] sm:$0xff]
  %v1070 = vld [vmem:[%s1064 + $0x28] sm:$0xff]
  %v1071 = vld [vmem:[%s1064 + $0x30] sm:$0xff]
  %v1072 = vld [vmem:[%s1064 + $0x38] sm:$0xff]
  %v1073 = vld [vmem:[%s1064 + $0x40] sm:$0xff]
  %v1074 = vld [vmem:[%s1064 + $0x48] sm:$0xff]
  %v1075 = vld [vmem:[%s1064 + $0x50] sm:$0xff]
  %v1076 = vld [vmem:[%s1064 + $0x58] sm:$0xff]
  %v1077 = vld [vmem:[%s1064 + $0x60] sm:$0xff]
  %v1078 = vld [vmem:[%s1064 + $0x68] sm:$0xff]
  %v1079 = vld [vmem:[%s1064 + $0x70] sm:$0xff]
  %v1080 = vld [vmem:[%s1064 + $0x78] sm:$0xff]
  %v1081 = vld [vmem:[%s1064 + $0x80] sm:$0xff]
  %v1082 = vld [vmem:[%s1064 + $0x88] sm:$0xff]
  %v1083 = vld [vmem:[%s1064 + $0x90] sm:$0xff]
  %v1084 = vld [vmem:[%s1064 + $0x98] sm:$0xff]
  %v1085 = vld [vmem:[%s1064 + $0xa0] sm:$0xff]
  %v1086 = vld [vmem:[%s1064 + $0xa8] sm:$0xff]
  %v1087 = vld [vmem:[%s1064 + $0xb0] sm:$0xff]
  %v1088 = vld [vmem:[%s1064 + $0xb8] sm:$0xff]
  %v1089 = vld [vmem:[%s1064 + $0xc0] sm:$0xff]
  %v1090 = vld [vmem:[%s1064 + $0xc8] sm:$0xff]
  %v1091 = vld [vmem:[%s1064 + $0xd0] sm:$0xff]
  %v1092 = vld [vmem:[%s1064 + $0xd8] sm:$0xff]
  %v1093 = vld [vmem:[%s1064 + $0xe0] sm:$0xff]
  %v1094 = vld [vmem:[%s1064 + $0xe8] sm:$0xff]
  %v1095 = vld [vmem:[%s1064 + $0xf0] sm:$0xff]
  %v1096 = vld [vmem:[%s1064 + $0xf8] sm:$0xff]
  %v1097 = vld [vmem:[%s1064 + $0x100] sm:$0xff]
  %v1098 = vld [vmem:[%s1064 + $0x108] sm:$0xff]
  %v1099 = vld [vmem:[%s1064 + $0x110] sm:$0xff]
  %v1100 = vld [vmem:[%s1064 + $0x118] sm:$0xff]
  %v1101 = vld [vmem:[%s1064 + $0x120] sm:$0xff]
  %v1102 = vld [vmem:[%s1064 + $0x128] sm:$0xff]
  %v1103 = vld [vmem:[%s1064 + $0x130] sm:$0xff]
  %v1104 = vld [vmem:[%s1064 + $0x138] sm:$0xff]
  %v1105 = vld [vmem:[%s1064 + $0x140] sm:$0xff]
  %v1106 = vld [vmem:[%s1064 + $0x148] sm:$0xff]
  %v1107 = vld [vmem:[%s1064 + $0x150] sm:$0xff]
  %v1108 = vld [vmem:[%s1064 + $0x158] sm:$0xff]
  %v1109 = vld [vmem:[%s1064 + $0x160] sm:$0xff]
  %v1110 = vld [vmem:[%s1064 + $0x168] sm:$0xff]
  %v1111 = vld [vmem:[%s1064 + $0x170] sm:$0xff]
  %v1112 = vld [vmem:[%s1064 + $0x178] sm:$0xff]
  %v1113 = vld [vmem:[%s1064 + $0x180] sm:$0xff]
  %v1114 = vld [vmem:[%s1064 + $0x188] sm:$0xff]
  %v1115 = vld [vmem:[%s1064 + $0x190] sm:$0xff]
  %v1116 = vld [vmem:[%s1064 + $0x198] sm:$0xff]
  %v1117 = vld [vmem:[%s1064 + $0x1a0] sm:$0xff]
  %v1118 = vld [vmem:[%s1064 + $0x1a8] sm:$0xff]
  %v1119 = vld [vmem:[%s1064 + $0x1b0] sm:$0xff]
  %v1120 = vld [vmem:[%s1064 + $0x1b8] sm:$0xff]
  %v1121 = vld [vmem:[%s1064 + $0x1c0] sm:$0xff]
  %v1122 = vld [vmem:[%s1064 + $0x1c8] sm:$0xff]
  %v1123 = vld [vmem:[%s1064 + $0x1d0] sm:$0xff]
  %v1124 = vld [vmem:[%s1064 + $0x1d8] sm:$0xff]
  %v1125 = vld [vmem:[%s1064 + $0x1e0] sm:$0xff]
  %v1126 = vld [vmem:[%s1064 + $0x1e8] sm:$0xff]
  %v1127 = vld [vmem:[%s1064 + $0x1f0] sm:$0xff]
  %v1128 = vld [vmem:[%s1064 + $0x1f8] sm:$0xff]
  %v1129 = vld [vmem:[%s1064 + $0x200] sm:$0xff]
  %v1130 = vld [vmem:[%s1064 + $0x208] sm:$0xff]
  %v1131 = vld [vmem:[%s1064 + $0x210] sm:$0xff]
  %v1132 = vld [vmem:[%s1064 + $0x218] sm:$0xff]
  %v1133 = vld [vmem:[%s1064 + $0x220] sm:$0xff]
  %v1134 = vld [vmem:[%s1064 + $0x228] sm:$0xff]
  %v1135 = vld [vmem:[%s1064 + $0x230] sm:$0xff]
  %v1136 = vld [vmem:[%s1064 + $0x238] sm:$0xff]
  %v1137 = vld [vmem:[%s1064 + $0x240] sm:$0xff]
  %v1138 = vld [vmem:[%s1064 + $0x248] sm:$0xff]
  %v1139 = vld [vmem:[%s1064 + $0x250] sm:$0xff]
  %v1140 = vld [vmem:[%s1064 + $0x258] sm:$0xff]
  %v1141 = vld [vmem:[%s1064 + $0x260] sm:$0xff]
  %v1142 = vld [vmem:[%s1064 + $0x268] sm:$0xff]
  %v1143 = vld [vmem:[%s1064 + $0x270] sm:$0xff]
  %v1144 = vld [vmem:[%s1064 + $0x278] sm:$0xff]
  %v1145 = vld [vmem:[%s1064 + $0x280] sm:$0xff]
  %v1146 = vld [vmem:[%s1064 + $0x288] sm:$0xff]
  %v1147 = vld [vmem:[%s1064 + $0x290] sm:$0xff]
  %v1148 = vld [vmem:[%s1064 + $0x298] sm:$0xff]
  %v1149 = vld [vmem:[%s1064 + $0x2a0] sm:$0xff]
  %v1150 = vld [vmem:[%s1064 + $0x2a8] sm:$0xff]
  %v1151 = vld [vmem:[%s1064 + $0x2b0] sm:$0xff]
  %v1152 = vld [vmem:[%s1064 + $0x2b8] sm:$0xff]
  %v1153 = vld [vmem:[%s1064 + $0x2c0] sm:$0xff]
  %v1154 = vld [vmem:[%s1064 + $0x2c8] sm:$0xff]
  %v1155 = vld [vmem:[%s1064 + $0x2d0] sm:$0xff]
  %v1156 = vld [vmem:[%s1064 + $0x2d8] sm:$0xff]
  %v1157 = vld [vmem:[%s1064 + $0x2e0] sm:$0xff]
  %v1158 = vld [vmem:[%s1064 + $0x2e8] sm:$0xff]
  %v1159 = vld [vmem:[%s1064 + $0x2f0] sm:$0xff]
  %v1160 = vld [vmem:[%s1064 + $0x2f8] sm:$0xff]
  %v1161 = vld [vmem:[%s1064 + $0x300] sm:$0xff]
  %v1162 = vld [vmem:[%s1064 + $0x308] sm:$0xff]
  %v1163 = vld [vmem:[%s1064 + $0x310] sm:$0xff]
  %v1164 = vld [vmem:[%s1064 + $0x318] sm:$0xff]
  %v1165 = vld [vmem:[%s1064 + $0x320] sm:$0xff]
  %v1166 = vld [vmem:[%s1064 + $0x328] sm:$0xff]
  %v1167 = vld [vmem:[%s1064 + $0x330] sm:$0xff]
  %v1168 = vld [vmem:[%s1064 + $0x338] sm:$0xff]
  %v1169 = vld [vmem:[%s1064 + $0x340] sm:$0xff]
  %v1170 = vld [vmem:[%s1064 + $0x348] sm:$0xff]
  %v1171 = vld [vmem:[%s1064 + $0x350] sm:$0xff]
  %v1172 = vld [vmem:[%s1064 + $0x358] sm:$0xff]
  %v1173 = vld [vmem:[%s1064 + $0x360] sm:$0xff]
  %v1174 = vld [vmem:[%s1064 + $0x368] sm:$0xff]
  %v1175 = vld [vmem:[%s1064 + $0x370] sm:$0xff]
  %v1176 = vld [vmem:[%s1064 + $0x378] sm:$0xff]
  %v1177 = vld [vmem:[%s1064 + $0x380] sm:$0xff]
  %v1178 = vld [vmem:[%s1064 + $0x388] sm:$0xff]
  %v1179 = vld [vmem:[%s1064 + $0x390] sm:$0xff]
  %v1180 = vld [vmem:[%s1064 + $0x398] sm:$0xff]
  %v1181 = vld [vmem:[%s1064 + $0x3a0] sm:$0xff]
  %v1182 = vld [vmem:[%s1064 + $0x3a8] sm:$0xff]
  %v1183 = vld [vmem:[%s1064 + $0x3b0] sm:$0xff]
  %v1184 = vld [vmem:[%s1064 + $0x3b8] sm:$0xff]
  %v1185 = vld [vmem:[%s1064 + $0x3c0] sm:$0xff]
  %v1186 = vld [vmem:[%s1064 + $0x3c8] sm:$0xff]
  %v1187 = vld [vmem:[%s1064 + $0x3d0] sm:$0xff]
  %v1188 = vld [vmem:[%s1064 + $0x3d8] sm:$0xff]
  %v1189 = vld [vmem:[%s1064 + $0x3e0] sm:$0xff]
  %v1190 = vld [vmem:[%s1064 + $0x3e8] sm:$0xff]
  %v1191 = vld [vmem:[%s1064 + $0x3f0] sm:$0xff]
  %v1192 = vld [vmem:[%s1064 + $0x3f8] sm:$0xff]
  %s1193 = scalar_lea.vmem %s2, 4
  %v1194 = vld [vmem:[%s1193] sm:$0xf]
  %v1196 = vperm.slane %v1194, 0
  %v1197 = vperm.slane %v1194, 1
  %v1198 = vperm.slane %v1194, 2
  %v1199 = vperm.slane %v1194, 3
  %v1332 = vunpack.c.l.b16 %v1065
  %v1333 = vunpack.c.h.b16 %v1065
  %v1334 = vunpack.c.l.b16 %v1066
  %v1335 = vunpack.c.h.b16 %v1066
  %v1336 = vunpack.c.l.b16 %v1067
  %v1337 = vunpack.c.h.b16 %v1067
  %v1338 = vunpack.c.l.b16 %v1068
  %v1339 = vunpack.c.h.b16 %v1068
  %v1340 = vunpack.c.l.b16 %v1069
  %v1341 = vunpack.c.h.b16 %v1069
  %v1342 = vunpack.c.l.b16 %v1070
  %v1343 = vunpack.c.h.b16 %v1070
  %v1344 = vunpack.c.l.b16 %v1071
  %v1345 = vunpack.c.h.b16 %v1071
  %v1346 = vunpack.c.l.b16 %v1072
  %v1347 = vunpack.c.h.b16 %v1072
  %v1348 = vunpack.c.l.b16 %v1073
  %v1349 = vunpack.c.h.b16 %v1073
  %v1350 = vunpack.c.l.b16 %v1074
  %v1351 = vunpack.c.h.b16 %v1074
  %v1352 = vunpack.c.l.b16 %v1075
  %v1353 = vunpack.c.h.b16 %v1075
  %v1354 = vunpack.c.l.b16 %v1076
  %v1355 = vunpack.c.h.b16 %v1076
  %v1356 = vunpack.c.l.b16 %v1077
  %v1357 = vunpack.c.h.b16 %v1077
  %v1358 = vunpack.c.l.b16 %v1078
  %v1359 = vunpack.c.h.b16 %v1078
  %v1360 = vunpack.c.l.b16 %v1079
  %v1361 = vunpack.c.h.b16 %v1079
  %v1362 = vunpack.c.l.b16 %v1080
  %v1363 = vunpack.c.h.b16 %v1080
  %v1364 = vunpack.c.l.b16 %v1081
  %v1365 = vunpack.c.h.b16 %v1081
  %v1366 = vunpack.c.l.b16 %v1082
  %v1367 = vunpack.c.h.b16 %v1082
  %v1368 = vunpack.c.l.b16 %v1083
  %v1369 = vunpack.c.h.b16 %v1083
  %v1370 = vunpack.c.l.b16 %v1084
  %v1371 = vunpack.c.h.b16 %v1084
  %v1372 = vunpack.c.l.b16 %v1085
  %v1373 = vunpack.c.h.b16 %v1085
  %v1374 = vunpack.c.l.b16 %v1086
  %v1375 = vunpack.c.h.b16 %v1086
  %v1376 = vunpack.c.l.b16 %v1087
  %v1377 = vunpack.c.h.b16 %v1087
  %v1378 = vunpack.c.l.b16 %v1088
  %v1379 = vunpack.c.h.b16 %v1088
  %v1380 = vunpack.c.l.b16 %v1089
  %v1381 = vunpack.c.h.b16 %v1089
  %v1382 = vunpack.c.l.b16 %v1090
  %v1383 = vunpack.c.h.b16 %v1090
  %v1384 = vunpack.c.l.b16 %v1091
  %v1385 = vunpack.c.h.b16 %v1091
  %v1386 = vunpack.c.l.b16 %v1092
  %v1387 = vunpack.c.h.b16 %v1092
  %v1388 = vunpack.c.l.b16 %v1093
  %v1389 = vunpack.c.h.b16 %v1093
  %v1390 = vunpack.c.l.b16 %v1094
  %v1391 = vunpack.c.h.b16 %v1094
  %v1392 = vunpack.c.l.b16 %v1095
  %v1393 = vunpack.c.h.b16 %v1095
  %v1394 = vunpack.c.l.b16 %v1096
  %v1395 = vunpack.c.h.b16 %v1096
  %v1396 = vunpack.c.l.b16 %v1097
  %v1397 = vunpack.c.h.b16 %v1097
  %v1398 = vunpack.c.l.b16 %v1098
  %v1399 = vunpack.c.h.b16 %v1098
  %v1400 = vunpack.c.l.b16 %v1099
  %v1401 = vunpack.c.h.b16 %v1099
  %v1402 = vunpack.c.l.b16 %v1100
  %v1403 = vunpack.c.h.b16 %v1100
  %v1404 = vunpack.c.l.b16 %v1101
  %v1405 = vunpack.c.h.b16 %v1101
  %v1406 = vunpack.c.l.b16 %v1102
  %v1407 = vunpack.c.h.b16 %v1102
  %v1408 = vunpack.c.l.b16 %v1103
  %v1409 = vunpack.c.h.b16 %v1103
  %v1410 = vunpack.c.l.b16 %v1104
  %v1411 = vunpack.c.h.b16 %v1104
  %v1412 = vunpack.c.l.b16 %v1105
  %v1413 = vunpack.c.h.b16 %v1105
  %v1414 = vunpack.c.l.b16 %v1106
  %v1415 = vunpack.c.h.b16 %v1106
  %v1416 = vunpack.c.l.b16 %v1107
  %v1417 = vunpack.c.h.b16 %v1107
  %v1418 = vunpack.c.l.b16 %v1108
  %v1419 = vunpack.c.h.b16 %v1108
  %v1420 = vunpack.c.l.b16 %v1109
  %v1421 = vunpack.c.h.b16 %v1109
  %v1422 = vunpack.c.l.b16 %v1110
  %v1423 = vunpack.c.h.b16 %v1110
  %v1424 = vunpack.c.l.b16 %v1111
  %v1425 = vunpack.c.h.b16 %v1111
  %v1426 = vunpack.c.l.b16 %v1112
  %v1427 = vunpack.c.h.b16 %v1112
  %v1428 = vunpack.c.l.b16 %v1113
  %v1429 = vunpack.c.h.b16 %v1113
  %v1430 = vunpack.c.l.b16 %v1114
  %v1431 = vunpack.c.h.b16 %v1114
  %v1432 = vunpack.c.l.b16 %v1115
  %v1433 = vunpack.c.h.b16 %v1115
  %v1434 = vunpack.c.l.b16 %v1116
  %v1435 = vunpack.c.h.b16 %v1116
  %v1436 = vunpack.c.l.b16 %v1117
  %v1437 = vunpack.c.h.b16 %v1117
  %v1438 = vunpack.c.l.b16 %v1118
  %v1439 = vunpack.c.h.b16 %v1118
  %v1440 = vunpack.c.l.b16 %v1119
  %v1441 = vunpack.c.h.b16 %v1119
  %v1442 = vunpack.c.l.b16 %v1120
  %v1443 = vunpack.c.h.b16 %v1120
  %v1444 = vunpack.c.l.b16 %v1121
  %v1445 = vunpack.c.h.b16 %v1121
  %v1446 = vunpack.c.l.b16 %v1122
  %v1447 = vunpack.c.h.b16 %v1122
  %v1448 = vunpack.c.l.b16 %v1123
  %v1449 = vunpack.c.h.b16 %v1123
  %v1450 = vunpack.c.l.b16 %v1124
  %v1451 = vunpack.c.h.b16 %v1124
  %v1452 = vunpack.c.l.b16 %v1125
  %v1453 = vunpack.c.h.b16 %v1125
  %v1454 = vunpack.c.l.b16 %v1126
  %v1455 = vunpack.c.h.b16 %v1126
  %v1456 = vunpack.c.l.b16 %v1127
  %v1457 = vunpack.c.h.b16 %v1127
  %v1458 = vunpack.c.l.b16 %v1128
  %v1459 = vunpack.c.h.b16 %v1128
  %v1460 = vunpack.c.l.b16 %v1129
  %v1461 = vunpack.c.h.b16 %v1129
  %v1462 = vunpack.c.l.b16 %v1130
  %v1463 = vunpack.c.h.b16 %v1130
  %v1464 = vunpack.c.l.b16 %v1131
  %v1465 = vunpack.c.h.b16 %v1131
  %v1466 = vunpack.c.l.b16 %v1132
  %v1467 = vunpack.c.h.b16 %v1132
  %v1468 = vunpack.c.l.b16 %v1133
  %v1469 = vunpack.c.h.b16 %v1133
  %v1470 = vunpack.c.l.b16 %v1134
  %v1471 = vunpack.c.h.b16 %v1134
  %v1472 = vunpack.c.l.b16 %v1135
  %v1473 = vunpack.c.h.b16 %v1135
  %v1474 = vunpack.c.l.b16 %v1136
  %v1475 = vunpack.c.h.b16 %v1136
  %v1476 = vunpack.c.l.b16 %v1137
  %v1477 = vunpack.c.h.b16 %v1137
  %v1478 = vunpack.c.l.b16 %v1138
  %v1479 = vunpack.c.h.b16 %v1138
  %v1480 = vunpack.c.l.b16 %v1139
  %v1481 = vunpack.c.h.b16 %v1139
  %v1482 = vunpack.c.l.b16 %v1140
  %v1483 = vunpack.c.h.b16 %v1140
  %v1484 = vunpack.c.l.b16 %v1141
  %v1485 = vunpack.c.h.b16 %v1141
  %v1486 = vunpack.c.l.b16 %v1142
  %v1487 = vunpack.c.h.b16 %v1142
  %v1488 = vunpack.c.l.b16 %v1143
  %v1489 = vunpack.c.h.b16 %v1143
  %v1490 = vunpack.c.l.b16 %v1144
  %v1491 = vunpack.c.h.b16 %v1144
  %v1492 = vunpack.c.l.b16 %v1145
  %v1493 = vunpack.c.h.b16 %v1145
  %v1494 = vunpack.c.l.b16 %v1146
  %v1495 = vunpack.c.h.b16 %v1146
  %v1496 = vunpack.c.l.b16 %v1147
  %v1497 = vunpack.c.h.b16 %v1147
  %v1498 = vunpack.c.l.b16 %v1148
  %v1499 = vunpack.c.h.b16 %v1148
  %v1500 = vunpack.c.l.b16 %v1149
  %v1501 = vunpack.c.h.b16 %v1149
  %v1502 = vunpack.c.l.b16 %v1150
  %v1503 = vunpack.c.h.b16 %v1150
  %v1504 = vunpack.c.l.b16 %v1151
  %v1505 = vunpack.c.h.b16 %v1151
  %v1506 = vunpack.c.l.b16 %v1152
  %v1507 = vunpack.c.h.b16 %v1152
  %v1508 = vunpack.c.l.b16 %v1153
  %v1509 = vunpack.c.h.b16 %v1153
  %v1510 = vunpack.c.l.b16 %v1154
  %v1511 = vunpack.c.h.b16 %v1154
  %v1512 = vunpack.c.l.b16 %v1155
  %v1513 = vunpack.c.h.b16 %v1155
  %v1514 = vunpack.c.l.b16 %v1156
  %v1515 = vunpack.c.h.b16 %v1156
  %v1516 = vunpack.c.l.b16 %v1157
  %v1517 = vunpack.c.h.b16 %v1157
  %v1518 = vunpack.c.l.b16 %v1158
  %v1519 = vunpack.c.h.b16 %v1158
  %v1520 = vunpack.c.l.b16 %v1159
  %v1521 = vunpack.c.h.b16 %v1159
  %v1522 = vunpack.c.l.b16 %v1160
  %v1523 = vunpack.c.h.b16 %v1160
  %v1524 = vunpack.c.l.b16 %v1161
  %v1525 = vunpack.c.h.b16 %v1161
  %v1526 = vunpack.c.l.b16 %v1162
  %v1527 = vunpack.c.h.b16 %v1162
  %v1528 = vunpack.c.l.b16 %v1163
  %v1529 = vunpack.c.h.b16 %v1163
  %v1530 = vunpack.c.l.b16 %v1164
  %v1531 = vunpack.c.h.b16 %v1164
  %v1532 = vunpack.c.l.b16 %v1165
  %v1533 = vunpack.c.h.b16 %v1165
  %v1534 = vunpack.c.l.b16 %v1166
  %v1535 = vunpack.c.h.b16 %v1166
  %v1536 = vunpack.c.l.b16 %v1167
  %v1537 = vunpack.c.h.b16 %v1167
  %v1538 = vunpack.c.l.b16 %v1168
  %v1539 = vunpack.c.h.b16 %v1168
  %v1540 = vunpack.c.l.b16 %v1169
  %v1541 = vunpack.c.h.b16 %v1169
  %v1542 = vunpack.c.l.b16 %v1170
  %v1543 = vunpack.c.h.b16 %v1170
  %v1544 = vunpack.c.l.b16 %v1171
  %v1545 = vunpack.c.h.b16 %v1171
  %v1546 = vunpack.c.l.b16 %v1172
  %v1547 = vunpack.c.h.b16 %v1172
  %v1548 = vunpack.c.l.b16 %v1173
  %v1549 = vunpack.c.h.b16 %v1173
  %v1550 = vunpack.c.l.b16 %v1174
  %v1551 = vunpack.c.h.b16 %v1174
  %v1552 = vunpack.c.l.b16 %v1175
  %v1553 = vunpack.c.h.b16 %v1175
  %v1554 = vunpack.c.l.b16 %v1176
  %v1555 = vunpack.c.h.b16 %v1176
  %v1556 = vunpack.c.l.b16 %v1177
  %v1557 = vunpack.c.h.b16 %v1177
  %v1558 = vunpack.c.l.b16 %v1178
  %v1559 = vunpack.c.h.b16 %v1178
  %v1560 = vunpack.c.l.b16 %v1179
  %v1561 = vunpack.c.h.b16 %v1179
  %v1562 = vunpack.c.l.b16 %v1180
  %v1563 = vunpack.c.h.b16 %v1180
  %v1564 = vunpack.c.l.b16 %v1181
  %v1565 = vunpack.c.h.b16 %v1181
  %v1566 = vunpack.c.l.b16 %v1182
  %v1567 = vunpack.c.h.b16 %v1182
  %v1568 = vunpack.c.l.b16 %v1183
  %v1569 = vunpack.c.h.b16 %v1183
  %v1570 = vunpack.c.l.b16 %v1184
  %v1571 = vunpack.c.h.b16 %v1184
  %v1572 = vunpack.c.l.b16 %v1185
  %v1573 = vunpack.c.h.b16 %v1185
  %v1574 = vunpack.c.l.b16 %v1186
  %v1575 = vunpack.c.h.b16 %v1186
  %v1576 = vunpack.c.l.b16 %v1187
  %v1577 = vunpack.c.h.b16 %v1187
  %v1578 = vunpack.c.l.b16 %v1188
  %v1579 = vunpack.c.h.b16 %v1188
  %v1580 = vunpack.c.l.b16 %v1189
  %v1581 = vunpack.c.h.b16 %v1189
  %v1582 = vunpack.c.l.b16 %v1190
  %v1583 = vunpack.c.h.b16 %v1190
  %v1584 = vunpack.c.l.b16 %v1191
  %v1585 = vunpack.c.h.b16 %v1191
  %v1586 = vunpack.c.l.b16 %v1192
  %v1587 = vunpack.c.h.b16 %v1192
  %v1588 = vpack.c.b16 %v1336, %v1332
  %v1589 = vpack.c.b16 %v1337, %v1333
  %v1590 = vpack.c.b16 %v1338, %v1334
  %v1591 = vpack.c.b16 %v1339, %v1335
  %v1592 = vpack.c.b16 %v1344, %v1340
  %v1593 = vpack.c.b16 %v1345, %v1341
  %v1594 = vpack.c.b16 %v1346, %v1342
  %v1595 = vpack.c.b16 %v1347, %v1343
  %v1596 = vpack.c.b16 %v1352, %v1348
  %v1597 = vpack.c.b16 %v1353, %v1349
  %v1598 = vpack.c.b16 %v1354, %v1350
  %v1599 = vpack.c.b16 %v1355, %v1351
  %v1600 = vpack.c.b16 %v1360, %v1356
  %v1601 = vpack.c.b16 %v1361, %v1357
  %v1602 = vpack.c.b16 %v1362, %v1358
  %v1603 = vpack.c.b16 %v1363, %v1359
  %v1604 = vpack.c.b16 %v1368, %v1364
  %v1605 = vpack.c.b16 %v1369, %v1365
  %v1606 = vpack.c.b16 %v1370, %v1366
  %v1607 = vpack.c.b16 %v1371, %v1367
  %v1608 = vpack.c.b16 %v1376, %v1372
  %v1609 = vpack.c.b16 %v1377, %v1373
  %v1610 = vpack.c.b16 %v1378, %v1374
  %v1611 = vpack.c.b16 %v1379, %v1375
  %v1612 = vpack.c.b16 %v1384, %v1380
  %v1613 = vpack.c.b16 %v1385, %v1381
  %v1614 = vpack.c.b16 %v1386, %v1382
  %v1615 = vpack.c.b16 %v1387, %v1383
  %v1616 = vpack.c.b16 %v1392, %v1388
  %v1617 = vpack.c.b16 %v1393, %v1389
  %v1618 = vpack.c.b16 %v1394, %v1390
  %v1619 = vpack.c.b16 %v1395, %v1391
  %v1620 = vpack.c.b16 %v1400, %v1396
  %v1621 = vpack.c.b16 %v1401, %v1397
  %v1622 = vpack.c.b16 %v1402, %v1398
  %v1623 = vpack.c.b16 %v1403, %v1399
  %v1624 = vpack.c.b16 %v1408, %v1404
  %v1625 = vpack.c.b16 %v1409, %v1405
  %v1626 = vpack.c.b16 %v1410, %v1406
  %v1627 = vpack.c.b16 %v1411, %v1407
  %v1628 = vpack.c.b16 %v1416, %v1412
  %v1629 = vpack.c.b16 %v1417, %v1413
  %v1630 = vpack.c.b16 %v1418, %v1414
  %v1631 = vpack.c.b16 %v1419, %v1415
  %v1632 = vpack.c.b16 %v1424, %v1420
  %v1633 = vpack.c.b16 %v1425, %v1421
  %v1634 = vpack.c.b16 %v1426, %v1422
  %v1635 = vpack.c.b16 %v1427, %v1423
  %v1636 = vpack.c.b16 %v1432, %v1428
  %v1637 = vpack.c.b16 %v1433, %v1429
  %v1638 = vpack.c.b16 %v1434, %v1430
  %v1639 = vpack.c.b16 %v1435, %v1431
  %v1640 = vpack.c.b16 %v1440, %v1436
  %v1641 = vpack.c.b16 %v1441, %v1437
  %v1642 = vpack.c.b16 %v1442, %v1438
  %v1643 = vpack.c.b16 %v1443, %v1439
  %v1644 = vpack.c.b16 %v1448, %v1444
  %v1645 = vpack.c.b16 %v1449, %v1445
  %v1646 = vpack.c.b16 %v1450, %v1446
  %v1647 = vpack.c.b16 %v1451, %v1447
  %v1648 = vpack.c.b16 %v1456, %v1452
  %v1649 = vpack.c.b16 %v1457, %v1453
  %v1650 = vpack.c.b16 %v1458, %v1454
  %v1651 = vpack.c.b16 %v1459, %v1455
  %v1652 = vpack.c.b16 %v1464, %v1460
  %v1653 = vpack.c.b16 %v1465, %v1461
  %v1654 = vpack.c.b16 %v1466, %v1462
  %v1655 = vpack.c.b16 %v1467, %v1463
  %v1656 = vpack.c.b16 %v1472, %v1468
  %v1657 = vpack.c.b16 %v1473, %v1469
  %v1658 = vpack.c.b16 %v1474, %v1470
  %v1659 = vpack.c.b16 %v1475, %v1471
  %v1660 = vpack.c.b16 %v1480, %v1476
  %v1661 = vpack.c.b16 %v1481, %v1477
  %v1662 = vpack.c.b16 %v1482, %v1478
  %v1663 = vpack.c.b16 %v1483, %v1479
  %v1664 = vpack.c.b16 %v1488, %v1484
  %v1665 = vpack.c.b16 %v1489, %v1485
  %v1666 = vpack.c.b16 %v1490, %v1486
  %v1667 = vpack.c.b16 %v1491, %v1487
  %v1668 = vpack.c.b16 %v1496, %v1492
  %v1669 = vpack.c.b16 %v1497, %v1493
  %v1670 = vpack.c.b16 %v1498, %v1494
  %v1671 = vpack.c.b16 %v1499, %v1495
  %v1672 = vpack.c.b16 %v1504, %v1500
  %v1673 = vpack.c.b16 %v1505, %v1501
  %v1674 = vpack.c.b16 %v1506, %v1502
  %v1675 = vpack.c.b16 %v1507, %v1503
  %v1676 = vpack.c.b16 %v1512, %v1508
  %v1677 = vpack.c.b16 %v1513, %v1509
  %v1678 = vpack.c.b16 %v1514, %v1510
  %v1679 = vpack.c.b16 %v1515, %v1511
  %v1680 = vpack.c.b16 %v1520, %v1516
  %v1681 = vpack.c.b16 %v1521, %v1517
  %v1682 = vpack.c.b16 %v1522, %v1518
  %v1683 = vpack.c.b16 %v1523, %v1519
  %v1684 = vpack.c.b16 %v1528, %v1524
  %v1685 = vpack.c.b16 %v1529, %v1525
  %v1686 = vpack.c.b16 %v1530, %v1526
  %v1687 = vpack.c.b16 %v1531, %v1527
  %v1688 = vpack.c.b16 %v1536, %v1532
  %v1689 = vpack.c.b16 %v1537, %v1533
  %v1690 = vpack.c.b16 %v1538, %v1534
  %v1691 = vpack.c.b16 %v1539, %v1535
  %v1692 = vpack.c.b16 %v1544, %v1540
  %v1693 = vpack.c.b16 %v1545, %v1541
  %v1694 = vpack.c.b16 %v1546, %v1542
  %v1695 = vpack.c.b16 %v1547, %v1543
  %v1696 = vpack.c.b16 %v1552, %v1548
  %v1697 = vpack.c.b16 %v1553, %v1549
  %v1698 = vpack.c.b16 %v1554, %v1550
  %v1699 = vpack.c.b16 %v1555, %v1551
  %v1700 = vpack.c.b16 %v1560, %v1556
  %v1701 = vpack.c.b16 %v1561, %v1557
  %v1702 = vpack.c.b16 %v1562, %v1558
  %v1703 = vpack.c.b16 %v1563, %v1559
  %v1704 = vpack.c.b16 %v1568, %v1564
  %v1705 = vpack.c.b16 %v1569, %v1565
  %v1706 = vpack.c.b16 %v1570, %v1566
  %v1707 = vpack.c.b16 %v1571, %v1567
  %v1708 = vpack.c.b16 %v1576, %v1572
  %v1709 = vpack.c.b16 %v1577, %v1573
  %v1710 = vpack.c.b16 %v1578, %v1574
  %v1711 = vpack.c.b16 %v1579, %v1575
  %v1712 = vpack.c.b16 %v1584, %v1580
  %v1713 = vpack.c.b16 %v1585, %v1581
  %v1714 = vpack.c.b16 %v1586, %v1582
  %v1715 = vpack.c.b16 %v1587, %v1583
  %1844 = vmatpush.bf16.msra.mxu0 %v1616
  %1845 = vmatpush.bf16.msra.mxu0 %v1612
  %1846 = vmatpush.bf16.msra.mxu0 %v1608
  %1847 = vmatpush.bf16.msra.mxu0 %v1604
  %1848 = vmatpush.bf16.msra.mxu0 %v1600
  %1849 = vmatpush.bf16.msra.mxu0 %v1596
  %1850 = vmatpush.bf16.msra.mxu0 %v1592
  %1851 = vmatpush.bf16.msra.mxu0 %v1588
  %1852 = vmatmul.bf16.gmra.mxu0 %v1060
  %v1853 = vpop.f32.mrf.mxu0
  %v1854 = vadd.f32 %v1196, %v1853
  %v1855 = vpop.f32.mrf.mxu0
  %v1856 = vadd.f32 %v1196, %v1855
  %1857 = vdwg.mxu0
  %1858 = vmatpush.bf16.msra.mxu0 %v1648
  %1859 = vmatpush.bf16.msra.mxu0 %v1644
  %1860 = vmatpush.bf16.msra.mxu0 %v1640
  %1861 = vmatpush.bf16.msra.mxu0 %v1636
  %1862 = vmatpush.bf16.msra.mxu0 %v1632
  %1863 = vmatpush.bf16.msra.mxu0 %v1628
  %1864 = vmatpush.bf16.msra.mxu0 %v1624
  %1865 = vmatpush.bf16.msra.mxu0 %v1620
  %1866 = vmatmul.bf16.gmra.mxu0 %v1061
  %v1867 = vpop.f32.mrf.mxu0
  %v1868 = vadd.f32 %v1854, %v1867
  %v1869 = vpop.f32.mrf.mxu0
  %v1870 = vadd.f32 %v1856, %v1869
  %1871 = vdwg.mxu0
  %1872 = vmatpush.bf16.msra.mxu0 %v1680
  %1873 = vmatpush.bf16.msra.mxu0 %v1676
  %1874 = vmatpush.bf16.msra.mxu0 %v1672
  %1875 = vmatpush.bf16.msra.mxu0 %v1668
  %1876 = vmatpush.bf16.msra.mxu0 %v1664
  %1877 = vmatpush.bf16.msra.mxu0 %v1660
  %1878 = vmatpush.bf16.msra.mxu0 %v1656
  %1879 = vmatpush.bf16.msra.mxu0 %v1652
  %1880 = vmatmul.bf16.gmra.mxu0 %v1062
  %v1881 = vpop.f32.mrf.mxu0
  %v1882 = vadd.f32 %v1868, %v1881
  %v1883 = vpop.f32.mrf.mxu0
  %v1884 = vadd.f32 %v1870, %v1883
  %1885 = vdwg.mxu0
  %1886 = vmatpush.bf16.msra.mxu0 %v1712
  %1887 = vmatpush.bf16.msra.mxu0 %v1708
  %1888 = vmatpush.bf16.msra.mxu0 %v1704
  %1889 = vmatpush.bf16.msra.mxu0 %v1700
  %1890 = vmatpush.bf16.msra.mxu0 %v1696
  %1891 = vmatpush.bf16.msra.mxu0 %v1692
  %1892 = vmatpush.bf16.msra.mxu0 %v1688
  %1893 = vmatpush.bf16.msra.mxu0 %v1684
  %1894 = vmatmul.bf16.gmra.mxu0 %v1063
  %v1895 = vpop.f32.mrf.mxu0
  %v1896 = vadd.f32 %v1882, %v1895
  %v1897 = vpop.f32.mrf.mxu0
  %v1898 = vadd.f32 %v1884, %v1897
  %1899 = vdwg.mxu0
  %1900 = vmatpush.bf16.msra.mxu0 %v1617
  %1901 = vmatpush.bf16.msra.mxu0 %v1613
  %1902 = vmatpush.bf16.msra.mxu0 %v1609
  %1903 = vmatpush.bf16.msra.mxu0 %v1605
  %1904 = vmatpush.bf16.msra.mxu0 %v1601
  %1905 = vmatpush.bf16.msra.mxu0 %v1597
  %1906 = vmatpush.bf16.msra.mxu0 %v1593
  %1907 = vmatpush.bf16.msra.mxu0 %v1589
  %1908 = vmatmul.bf16.gmra.mxu0 %v1060
  %v1909 = vpop.f32.mrf.mxu0
  %v1910 = vadd.f32 %v1197, %v1909
  %v1911 = vpop.f32.mrf.mxu0
  %v1912 = vadd.f32 %v1197, %v1911
  %1913 = vdwg.mxu0
  %1914 = vmatpush.bf16.msra.mxu0 %v1649
  %1915 = vmatpush.bf16.msra.mxu0 %v1645
  %1916 = vmatpush.bf16.msra.mxu0 %v1641
  %1917 = vmatpush.bf16.msra.mxu0 %v1637
  %1918 = vmatpush.bf16.msra.mxu0 %v1633
  %1919 = vmatpush.bf16.msra.mxu0 %v1629
  %1920 = vmatpush.bf16.msra.mxu0 %v1625
  %1921 = vmatpush.bf16.msra.mxu0 %v1621
  %1922 = vmatmul.bf16.gmra.mxu0 %v1061
  %v1923 = vpop.f32.mrf.mxu0
  %v1924 = vadd.f32 %v1910, %v1923
  %v1925 = vpop.f32.mrf.mxu0
  %v1926 = vadd.f32 %v1912, %v1925
  %1927 = vdwg.mxu0
  %1928 = vmatpush.bf16.msra.mxu0 %v1681
  %1929 = vmatpush.bf16.msra.mxu0 %v1677
  %1930 = vmatpush.bf16.msra.mxu0 %v1673
  %1931 = vmatpush.bf16.msra.mxu0 %v1669
  %1932 = vmatpush.bf16.msra.mxu0 %v1665
  %1933 = vmatpush.bf16.msra.mxu0 %v1661
  %1934 = vmatpush.bf16.msra.mxu0 %v1657
  %1935 = vmatpush.bf16.msra.mxu0 %v1653
  %1936 = vmatmul.bf16.gmra.mxu0 %v1062
  %v1937 = vpop.f32.mrf.mxu0
  %v1938 = vadd.f32 %v1924, %v1937
  %v1939 = vpop.f32.mrf.mxu0
  %v1940 = vadd.f32 %v1926, %v1939
  %1941 = vdwg.mxu0
  %1942 = vmatpush.bf16.msra.mxu0 %v1713
  %1943 = vmatpush.bf16.msra.mxu0 %v1709
  %1944 = vmatpush.bf16.msra.mxu0 %v1705
  %1945 = vmatpush.bf16.msra.mxu0 %v1701
  %1946 = vmatpush.bf16.msra.mxu0 %v1697
  %1947 = vmatpush.bf16.msra.mxu0 %v1693
  %1948 = vmatpush.bf16.msra.mxu0 %v1689
  %1949 = vmatpush.bf16.msra.mxu0 %v1685
  %1950 = vmatmul.bf16.gmra.mxu0 %v1063
  %v1951 = vpop.f32.mrf.mxu0
  %v1952 = vadd.f32 %v1938, %v1951
  %v1953 = vpop.f32.mrf.mxu0
  %v1954 = vadd.f32 %v1940, %v1953
  %1955 = vdwg.mxu0
  %1956 = vmatpush.bf16.msra.mxu0 %v1618
  %1957 = vmatpush.bf16.msra.mxu0 %v1614
  %1958 = vmatpush.bf16.msra.mxu0 %v1610
  %1959 = vmatpush.bf16.msra.mxu0 %v1606
  %1960 = vmatpush.bf16.msra.mxu0 %v1602
  %1961 = vmatpush.bf16.msra.mxu0 %v1598
  %1962 = vmatpush.bf16.msra.mxu0 %v1594
  %1963 = vmatpush.bf16.msra.mxu0 %v1590
  %1964 = vmatmul.bf16.gmra.mxu0 %v1060
  %v1965 = vpop.f32.mrf.mxu0
  %v1966 = vadd.f32 %v1198, %v1965
  %v1967 = vpop.f32.mrf.mxu0
  %v1968 = vadd.f32 %v1198, %v1967
  %1969 = vdwg.mxu0
  %1970 = vmatpush.bf16.msra.mxu0 %v1650
  %1971 = vmatpush.bf16.msra.mxu0 %v1646
  %1972 = vmatpush.bf16.msra.mxu0 %v1642
  %1973 = vmatpush.bf16.msra.mxu0 %v1638
  %1974 = vmatpush.bf16.msra.mxu0 %v1634
  %1975 = vmatpush.bf16.msra.mxu0 %v1630
  %1976 = vmatpush.bf16.msra.mxu0 %v1626
  %1977 = vmatpush.bf16.msra.mxu0 %v1622
  %1978 = vmatmul.bf16.gmra.mxu0 %v1061
  %v1979 = vpop.f32.mrf.mxu0
  %v1980 = vadd.f32 %v1966, %v1979
  %v1981 = vpop.f32.mrf.mxu0
  %v1982 = vadd.f32 %v1968, %v1981
  %1983 = vdwg.mxu0
  %1984 = vmatpush.bf16.msra.mxu0 %v1682
  %1985 = vmatpush.bf16.msra.mxu0 %v1678
  %1986 = vmatpush.bf16.msra.mxu0 %v1674
  %1987 = vmatpush.bf16.msra.mxu0 %v1670
  %1988 = vmatpush.bf16.msra.mxu0 %v1666
  %1989 = vmatpush.bf16.msra.mxu0 %v1662
  %1990 = vmatpush.bf16.msra.mxu0 %v1658
  %1991 = vmatpush.bf16.msra.mxu0 %v1654
  %1992 = vmatmul.bf16.gmra.mxu0 %v1062
  %v1993 = vpop.f32.mrf.mxu0
  %v1994 = vadd.f32 %v1980, %v1993
  %v1995 = vpop.f32.mrf.mxu0
  %v1996 = vadd.f32 %v1982, %v1995
  %1997 = vdwg.mxu0
  %1998 = vmatpush.bf16.msra.mxu0 %v1714
  %1999 = vmatpush.bf16.msra.mxu0 %v1710
  %2000 = vmatpush.bf16.msra.mxu0 %v1706
  %2001 = vmatpush.bf16.msra.mxu0 %v1702
  %2002 = vmatpush.bf16.msra.mxu0 %v1698
  %2003 = vmatpush.bf16.msra.mxu0 %v1694
  %2004 = vmatpush.bf16.msra.mxu0 %v1690
  %2005 = vmatpush.bf16.msra.mxu0 %v1686
  %2006 = vmatmul.bf16.gmra.mxu0 %v1063
  %v2007 = vpop.f32.mrf.mxu0
  %v2008 = vadd.f32 %v1994, %v2007
  %v2009 = vpop.f32.mrf.mxu0
  %v2010 = vadd.f32 %v1996, %v2009
  %2011 = vdwg.mxu0
  %2012 = vmatpush.bf16.msra.mxu0 %v1619
  %2013 = vmatpush.bf16.msra.mxu0 %v1615
  %2014 = vmatpush.bf16.msra.mxu0 %v1611
  %2015 = vmatpush.bf16.msra.mxu0 %v1607
  %2016 = vmatpush.bf16.msra.mxu0 %v1603
  %2017 = vmatpush.bf16.msra.mxu0 %v1599
  %2018 = vmatpush.bf16.msra.mxu0 %v1595
  %2019 = vmatpush.bf16.msra.mxu0 %v1591
  %2020 = vmatmul.bf16.gmra.mxu0 %v1060
  %v2021 = vpop.f32.mrf.mxu0
  %v2022 = vadd.f32 %v1199, %v2021
  %v2023 = vpop.f32.mrf.mxu0
  %v2024 = vadd.f32 %v1199, %v2023
  %2025 = vdwg.mxu0
  %2026 = vmatpush.bf16.msra.mxu0 %v1651
  %2027 = vmatpush.bf16.msra.mxu0 %v1647
  %2028 = vmatpush.bf16.msra.mxu0 %v1643
  %2029 = vmatpush.bf16.msra.mxu0 %v1639
  %2030 = vmatpush.bf16.msra.mxu0 %v1635
  %2031 = vmatpush.bf16.msra.mxu0 %v1631
  %2032 = vmatpush.bf16.msra.mxu0 %v1627
  %2033 = vmatpush.bf16.msra.mxu0 %v1623
  %2034 = vmatmul.bf16.gmra.mxu0 %v1061
  %v2035 = vpop.f32.mrf.mxu0
  %v2036 = vadd.f32 %v2022, %v2035
  %v2037 = vpop.f32.mrf.mxu0
  %v2038 = vadd.f32 %v2024, %v2037
  %2039 = vdwg.mxu0
  %2040 = vmatpush.bf16.msra.mxu0 %v1683
  %2041 = vmatpush.bf16.msra.mxu0 %v1679
  %2042 = vmatpush.bf16.msra.mxu0 %v1675
  %2043 = vmatpush.bf16.msra.mxu0 %v1671
  %2044 = vmatpush.bf16.msra.mxu0 %v1667
  %2045 = vmatpush.bf16.msra.mxu0 %v1663
  %2046 = vmatpush.bf16.msra.mxu0 %v1659
  %2047 = vmatpush.bf16.msra.mxu0 %v1655
  %2048 = vmatmul.bf16.gmra.mxu0 %v1062
  %v2049 = vpop.f32.mrf.mxu0
  %v2050 = vadd.f32 %v2036, %v2049
  %v2051 = vpop.f32.mrf.mxu0
  %v2052 = vadd.f32 %v2038, %v2051
  %2053 = vdwg.mxu0
  %2054 = vmatpush.bf16.msra.mxu0 %v1715
  %2055 = vmatpush.bf16.msra.mxu0 %v1711
  %2056 = vmatpush.bf16.msra.mxu0 %v1707
  %2057 = vmatpush.bf16.msra.mxu0 %v1703
  %2058 = vmatpush.bf16.msra.mxu0 %v1699
  %2059 = vmatpush.bf16.msra.mxu0 %v1695
  %2060 = vmatpush.bf16.msra.mxu0 %v1691
  %2061 = vmatpush.bf16.msra.mxu0 %v1687
  %2062 = vmatmul.bf16.gmra.mxu0 %v1063
  %v2063 = vpop.f32.mrf.mxu0
  %v2064 = vadd.f32 %v2050, %v2063
  %v2065 = vpop.f32.mrf.mxu0
  %v2066 = vadd.f32 %v2052, %v2065
  %2067 = vdwg.mxu0
  %v2068 = vmax.f32 %v1896, 0.0
  %v2069 = vmax.f32 %v1952, 0.0
  %v2070 = vmax.f32 %v2008, 0.0
  %v2071 = vmax.f32 %v2064, 0.0
  %v2072 = vmax.f32 %v1898, 0.0
  %v2073 = vmax.f32 %v1954, 0.0
  %v2074 = vmax.f32 %v2010, 0.0
  %v2075 = vmax.f32 %v2066, 0.0
  %v2076 = vpack.c.bf16 %v2072, %v2068
  %v2077 = vpack.c.bf16 %v2073, %v2069
  %v2078 = vpack.c.bf16 %v2074, %v2070
  %v2079 = vpack.c.bf16 %v2075, %v2071
  %s2080 = scalar_lea.vmem %s1, 2048
  %v2081 = vld [vmem:[%s2080] sm:$0xff]
  %v2082 = vld [vmem:[%s2080 + $0x8] sm:$0xff]
  %v2083 = vld [vmem:[%s2080 + $0x10] sm:$0xff]
  %v2084 = vld [vmem:[%s2080 + $0x18] sm:$0xff]
  %v2085 = vld [vmem:[%s2080 + $0x20] sm:$0xff]
  %v2086 = vld [vmem:[%s2080 + $0x28] sm:$0xff]
  %v2087 = vld [vmem:[%s2080 + $0x30] sm:$0xff]
  %v2088 = vld [vmem:[%s2080 + $0x38] sm:$0xff]
  %v2089 = vld [vmem:[%s2080 + $0x40] sm:$0xff]
  %v2090 = vld [vmem:[%s2080 + $0x48] sm:$0xff]
  %v2091 = vld [vmem:[%s2080 + $0x50] sm:$0xff]
  %v2092 = vld [vmem:[%s2080 + $0x58] sm:$0xff]
  %v2093 = vld [vmem:[%s2080 + $0x60] sm:$0xff]
  %v2094 = vld [vmem:[%s2080 + $0x68] sm:$0xff]
  %v2095 = vld [vmem:[%s2080 + $0x70] sm:$0xff]
  %v2096 = vld [vmem:[%s2080 + $0x78] sm:$0xff]
  %v2097 = vld [vmem:[%s2080 + $0x80] sm:$0xff]
  %v2098 = vld [vmem:[%s2080 + $0x88] sm:$0xff]
  %v2099 = vld [vmem:[%s2080 + $0x90] sm:$0xff]
  %v2100 = vld [vmem:[%s2080 + $0x98] sm:$0xff]
  %v2101 = vld [vmem:[%s2080 + $0xa0] sm:$0xff]
  %v2102 = vld [vmem:[%s2080 + $0xa8] sm:$0xff]
  %v2103 = vld [vmem:[%s2080 + $0xb0] sm:$0xff]
  %v2104 = vld [vmem:[%s2080 + $0xb8] sm:$0xff]
  %v2105 = vld [vmem:[%s2080 + $0xc0] sm:$0xff]
  %v2106 = vld [vmem:[%s2080 + $0xc8] sm:$0xff]
  %v2107 = vld [vmem:[%s2080 + $0xd0] sm:$0xff]
  %v2108 = vld [vmem:[%s2080 + $0xd8] sm:$0xff]
  %v2109 = vld [vmem:[%s2080 + $0xe0] sm:$0xff]
  %v2110 = vld [vmem:[%s2080 + $0xe8] sm:$0xff]
  %v2111 = vld [vmem:[%s2080 + $0xf0] sm:$0xff]
  %v2112 = vld [vmem:[%s2080 + $0xf8] sm:$0xff]
  %v2113 = vld [vmem:[%s2080 + $0x100] sm:$0xff]
  %v2114 = vld [vmem:[%s2080 + $0x108] sm:$0xff]
  %v2115 = vld [vmem:[%s2080 + $0x110] sm:$0xff]
  %v2116 = vld [vmem:[%s2080 + $0x118] sm:$0xff]
  %v2117 = vld [vmem:[%s2080 + $0x120] sm:$0xff]
  %v2118 = vld [vmem:[%s2080 + $0x128] sm:$0xff]
  %v2119 = vld [vmem:[%s2080 + $0x130] sm:$0xff]
  %v2120 = vld [vmem:[%s2080 + $0x138] sm:$0xff]
  %v2121 = vld [vmem:[%s2080 + $0x140] sm:$0xff]
  %v2122 = vld [vmem:[%s2080 + $0x148] sm:$0xff]
  %v2123 = vld [vmem:[%s2080 + $0x150] sm:$0xff]
  %v2124 = vld [vmem:[%s2080 + $0x158] sm:$0xff]
  %v2125 = vld [vmem:[%s2080 + $0x160] sm:$0xff]
  %v2126 = vld [vmem:[%s2080 + $0x168] sm:$0xff]
  %v2127 = vld [vmem:[%s2080 + $0x170] sm:$0xff]
  %v2128 = vld [vmem:[%s2080 + $0x178] sm:$0xff]
  %v2129 = vld [vmem:[%s2080 + $0x180] sm:$0xff]
  %v2130 = vld [vmem:[%s2080 + $0x188] sm:$0xff]
  %v2131 = vld [vmem:[%s2080 + $0x190] sm:$0xff]
  %v2132 = vld [vmem:[%s2080 + $0x198] sm:$0xff]
  %v2133 = vld [vmem:[%s2080 + $0x1a0] sm:$0xff]
  %v2134 = vld [vmem:[%s2080 + $0x1a8] sm:$0xff]
  %v2135 = vld [vmem:[%s2080 + $0x1b0] sm:$0xff]
  %v2136 = vld [vmem:[%s2080 + $0x1b8] sm:$0xff]
  %v2137 = vld [vmem:[%s2080 + $0x1c0] sm:$0xff]
  %v2138 = vld [vmem:[%s2080 + $0x1c8] sm:$0xff]
  %v2139 = vld [vmem:[%s2080 + $0x1d0] sm:$0xff]
  %v2140 = vld [vmem:[%s2080 + $0x1d8] sm:$0xff]
  %v2141 = vld [vmem:[%s2080 + $0x1e0] sm:$0xff]
  %v2142 = vld [vmem:[%s2080 + $0x1e8] sm:$0xff]
  %v2143 = vld [vmem:[%s2080 + $0x1f0] sm:$0xff]
  %v2144 = vld [vmem:[%s2080 + $0x1f8] sm:$0xff]
  %v2145 = vld [vmem:[%s2080 + $0x200] sm:$0xff]
  %v2146 = vld [vmem:[%s2080 + $0x208] sm:$0xff]
  %v2147 = vld [vmem:[%s2080 + $0x210] sm:$0xff]
  %v2148 = vld [vmem:[%s2080 + $0x218] sm:$0xff]
  %v2149 = vld [vmem:[%s2080 + $0x220] sm:$0xff]
  %v2150 = vld [vmem:[%s2080 + $0x228] sm:$0xff]
  %v2151 = vld [vmem:[%s2080 + $0x230] sm:$0xff]
  %v2152 = vld [vmem:[%s2080 + $0x238] sm:$0xff]
  %v2153 = vld [vmem:[%s2080 + $0x240] sm:$0xff]
  %v2154 = vld [vmem:[%s2080 + $0x248] sm:$0xff]
  %v2155 = vld [vmem:[%s2080 + $0x250] sm:$0xff]
  %v2156 = vld [vmem:[%s2080 + $0x258] sm:$0xff]
  %v2157 = vld [vmem:[%s2080 + $0x260] sm:$0xff]
  %v2158 = vld [vmem:[%s2080 + $0x268] sm:$0xff]
  %v2159 = vld [vmem:[%s2080 + $0x270] sm:$0xff]
  %v2160 = vld [vmem:[%s2080 + $0x278] sm:$0xff]
  %v2161 = vld [vmem:[%s2080 + $0x280] sm:$0xff]
  %v2162 = vld [vmem:[%s2080 + $0x288] sm:$0xff]
  %v2163 = vld [vmem:[%s2080 + $0x290] sm:$0xff]
  %v2164 = vld [vmem:[%s2080 + $0x298] sm:$0xff]
  %v2165 = vld [vmem:[%s2080 + $0x2a0] sm:$0xff]
  %v2166 = vld [vmem:[%s2080 + $0x2a8] sm:$0xff]
  %v2167 = vld [vmem:[%s2080 + $0x2b0] sm:$0xff]
  %v2168 = vld [vmem:[%s2080 + $0x2b8] sm:$0xff]
  %v2169 = vld [vmem:[%s2080 + $0x2c0] sm:$0xff]
  %v2170 = vld [vmem:[%s2080 + $0x2c8] sm:$0xff]
  %v2171 = vld [vmem:[%s2080 + $0x2d0] sm:$0xff]
  %v2172 = vld [vmem:[%s2080 + $0x2d8] sm:$0xff]
  %v2173 = vld [vmem:[%s2080 + $0x2e0] sm:$0xff]
  %v2174 = vld [vmem:[%s2080 + $0x2e8] sm:$0xff]
  %v2175 = vld [vmem:[%s2080 + $0x2f0] sm:$0xff]
  %v2176 = vld [vmem:[%s2080 + $0x2f8] sm:$0xff]
  %v2177 = vld [vmem:[%s2080 + $0x300] sm:$0xff]
  %v2178 = vld [vmem:[%s2080 + $0x308] sm:$0xff]
  %v2179 = vld [vmem:[%s2080 + $0x310] sm:$0xff]
  %v2180 = vld [vmem:[%s2080 + $0x318] sm:$0xff]
  %v2181 = vld [vmem:[%s2080 + $0x320] sm:$0xff]
  %v2182 = vld [vmem:[%s2080 + $0x328] sm:$0xff]
  %v2183 = vld [vmem:[%s2080 + $0x330] sm:$0xff]
  %v2184 = vld [vmem:[%s2080 + $0x338] sm:$0xff]
  %v2185 = vld [vmem:[%s2080 + $0x340] sm:$0xff]
  %v2186 = vld [vmem:[%s2080 + $0x348] sm:$0xff]
  %v2187 = vld [vmem:[%s2080 + $0x350] sm:$0xff]
  %v2188 = vld [vmem:[%s2080 + $0x358] sm:$0xff]
  %v2189 = vld [vmem:[%s2080 + $0x360] sm:$0xff]
  %v2190 = vld [vmem:[%s2080 + $0x368] sm:$0xff]
  %v2191 = vld [vmem:[%s2080 + $0x370] sm:$0xff]
  %v2192 = vld [vmem:[%s2080 + $0x378] sm:$0xff]
  %v2193 = vld [vmem:[%s2080 + $0x380] sm:$0xff]
  %v2194 = vld [vmem:[%s2080 + $0x388] sm:$0xff]
  %v2195 = vld [vmem:[%s2080 + $0x390] sm:$0xff]
  %v2196 = vld [vmem:[%s2080 + $0x398] sm:$0xff]
  %v2197 = vld [vmem:[%s2080 + $0x3a0] sm:$0xff]
  %v2198 = vld [vmem:[%s2080 + $0x3a8] sm:$0xff]
  %v2199 = vld [vmem:[%s2080 + $0x3b0] sm:$0xff]
  %v2200 = vld [vmem:[%s2080 + $0x3b8] sm:$0xff]
  %v2201 = vld [vmem:[%s2080 + $0x3c0] sm:$0xff]
  %v2202 = vld [vmem:[%s2080 + $0x3c8] sm:$0xff]
  %v2203 = vld [vmem:[%s2080 + $0x3d0] sm:$0xff]
  %v2204 = vld [vmem:[%s2080 + $0x3d8] sm:$0xff]
  %v2205 = vld [vmem:[%s2080 + $0x3e0] sm:$0xff]
  %v2206 = vld [vmem:[%s2080 + $0x3e8] sm:$0xff]
  %v2207 = vld [vmem:[%s2080 + $0x3f0] sm:$0xff]
  %v2208 = vld [vmem:[%s2080 + $0x3f8] sm:$0xff]
  %s2209 = scalar_lea.vmem %s2, 8
  %v2210 = vld [vmem:[%s2209] sm:$0xf]
  %v2212 = vperm.slane %v2210, 0
  %v2213 = vperm.slane %v2210, 1
  %v2214 = vperm.slane %v2210, 2
  %v2215 = vperm.slane %v2210, 3
  %v2348 = vunpack.c.l.b16 %v2081
  %v2349 = vunpack.c.h.b16 %v2081
  %v2350 = vunpack.c.l.b16 %v2082
  %v2351 = vunpack.c.h.b16 %v2082
  %v2352 = vunpack.c.l.b16 %v2083
  %v2353 = vunpack.c.h.b16 %v2083
  %v2354 = vunpack.c.l.b16 %v2084
  %v2355 = vunpack.c.h.b16 %v2084
  %v2356 = vunpack.c.l.b16 %v2085
  %v2357 = vunpack.c.h.b16 %v2085
  %v2358 = vunpack.c.l.b16 %v2086
  %v2359 = vunpack.c.h.b16 %v2086
  %v2360 = vunpack.c.l.b16 %v2087
  %v2361 = vunpack.c.h.b16 %v2087
  %v2362 = vunpack.c.l.b16 %v2088
  %v2363 = vunpack.c.h.b16 %v2088
  %v2364 = vunpack.c.l.b16 %v2089
  %v2365 = vunpack.c.h.b16 %v2089
  %v2366 = vunpack.c.l.b16 %v2090
  %v2367 = vunpack.c.h.b16 %v2090
  %v2368 = vunpack.c.l.b16 %v2091
  %v2369 = vunpack.c.h.b16 %v2091
  %v2370 = vunpack.c.l.b16 %v2092
  %v2371 = vunpack.c.h.b16 %v2092
  %v2372 = vunpack.c.l.b16 %v2093
  %v2373 = vunpack.c.h.b16 %v2093
  %v2374 = vunpack.c.l.b16 %v2094
  %v2375 = vunpack.c.h.b16 %v2094
  %v2376 = vunpack.c.l.b16 %v2095
  %v2377 = vunpack.c.h.b16 %v2095
  %v2378 = vunpack.c.l.b16 %v2096
  %v2379 = vunpack.c.h.b16 %v2096
  %v2380 = vunpack.c.l.b16 %v2097
  %v2381 = vunpack.c.h.b16 %v2097
  %v2382 = vunpack.c.l.b16 %v2098
  %v2383 = vunpack.c.h.b16 %v2098
  %v2384 = vunpack.c.l.b16 %v2099
  %v2385 = vunpack.c.h.b16 %v2099
  %v2386 = vunpack.c.l.b16 %v2100
  %v2387 = vunpack.c.h.b16 %v2100
  %v2388 = vunpack.c.l.b16 %v2101
  %v2389 = vunpack.c.h.b16 %v2101
  %v2390 = vunpack.c.l.b16 %v2102
  %v2391 = vunpack.c.h.b16 %v2102
  %v2392 = vunpack.c.l.b16 %v2103
  %v2393 = vunpack.c.h.b16 %v2103
  %v2394 = vunpack.c.l.b16 %v2104
  %v2395 = vunpack.c.h.b16 %v2104
  %v2396 = vunpack.c.l.b16 %v2105
  %v2397 = vunpack.c.h.b16 %v2105
  %v2398 = vunpack.c.l.b16 %v2106
  %v2399 = vunpack.c.h.b16 %v2106
  %v2400 = vunpack.c.l.b16 %v2107
  %v2401 = vunpack.c.h.b16 %v2107
  %v2402 = vunpack.c.l.b16 %v2108
  %v2403 = vunpack.c.h.b16 %v2108
  %v2404 = vunpack.c.l.b16 %v2109
  %v2405 = vunpack.c.h.b16 %v2109
  %v2406 = vunpack.c.l.b16 %v2110
  %v2407 = vunpack.c.h.b16 %v2110
  %v2408 = vunpack.c.l.b16 %v2111
  %v2409 = vunpack.c.h.b16 %v2111
  %v2410 = vunpack.c.l.b16 %v2112
  %v2411 = vunpack.c.h.b16 %v2112
  %v2412 = vunpack.c.l.b16 %v2113
  %v2413 = vunpack.c.h.b16 %v2113
  %v2414 = vunpack.c.l.b16 %v2114
  %v2415 = vunpack.c.h.b16 %v2114
  %v2416 = vunpack.c.l.b16 %v2115
  %v2417 = vunpack.c.h.b16 %v2115
  %v2418 = vunpack.c.l.b16 %v2116
  %v2419 = vunpack.c.h.b16 %v2116
  %v2420 = vunpack.c.l.b16 %v2117
  %v2421 = vunpack.c.h.b16 %v2117
  %v2422 = vunpack.c.l.b16 %v2118
  %v2423 = vunpack.c.h.b16 %v2118
  %v2424 = vunpack.c.l.b16 %v2119
  %v2425 = vunpack.c.h.b16 %v2119
  %v2426 = vunpack.c.l.b16 %v2120
  %v2427 = vunpack.c.h.b16 %v2120
  %v2428 = vunpack.c.l.b16 %v2121
  %v2429 = vunpack.c.h.b16 %v2121
  %v2430 = vunpack.c.l.b16 %v2122
  %v2431 = vunpack.c.h.b16 %v2122
  %v2432 = vunpack.c.l.b16 %v2123
  %v2433 = vunpack.c.h.b16 %v2123
  %v2434 = vunpack.c.l.b16 %v2124
  %v2435 = vunpack.c.h.b16 %v2124
  %v2436 = vunpack.c.l.b16 %v2125
  %v2437 = vunpack.c.h.b16 %v2125
  %v2438 = vunpack.c.l.b16 %v2126
  %v2439 = vunpack.c.h.b16 %v2126
  %v2440 = vunpack.c.l.b16 %v2127
  %v2441 = vunpack.c.h.b16 %v2127
  %v2442 = vunpack.c.l.b16 %v2128
  %v2443 = vunpack.c.h.b16 %v2128
  %v2444 = vunpack.c.l.b16 %v2129
  %v2445 = vunpack.c.h.b16 %v2129
  %v2446 = vunpack.c.l.b16 %v2130
  %v2447 = vunpack.c.h.b16 %v2130
  %v2448 = vunpack.c.l.b16 %v2131
  %v2449 = vunpack.c.h.b16 %v2131
  %v2450 = vunpack.c.l.b16 %v2132
  %v2451 = vunpack.c.h.b16 %v2132
  %v2452 = vunpack.c.l.b16 %v2133
  %v2453 = vunpack.c.h.b16 %v2133
  %v2454 = vunpack.c.l.b16 %v2134
  %v2455 = vunpack.c.h.b16 %v2134
  %v2456 = vunpack.c.l.b16 %v2135
  %v2457 = vunpack.c.h.b16 %v2135
  %v2458 = vunpack.c.l.b16 %v2136
  %v2459 = vunpack.c.h.b16 %v2136
  %v2460 = vunpack.c.l.b16 %v2137
  %v2461 = vunpack.c.h.b16 %v2137
  %v2462 = vunpack.c.l.b16 %v2138
  %v2463 = vunpack.c.h.b16 %v2138
  %v2464 = vunpack.c.l.b16 %v2139
  %v2465 = vunpack.c.h.b16 %v2139
  %v2466 = vunpack.c.l.b16 %v2140
  %v2467 = vunpack.c.h.b16 %v2140
  %v2468 = vunpack.c.l.b16 %v2141
  %v2469 = vunpack.c.h.b16 %v2141
  %v2470 = vunpack.c.l.b16 %v2142
  %v2471 = vunpack.c.h.b16 %v2142
  %v2472 = vunpack.c.l.b16 %v2143
  %v2473 = vunpack.c.h.b16 %v2143
  %v2474 = vunpack.c.l.b16 %v2144
  %v2475 = vunpack.c.h.b16 %v2144
  %v2476 = vunpack.c.l.b16 %v2145
  %v2477 = vunpack.c.h.b16 %v2145
  %v2478 = vunpack.c.l.b16 %v2146
  %v2479 = vunpack.c.h.b16 %v2146
  %v2480 = vunpack.c.l.b16 %v2147
  %v2481 = vunpack.c.h.b16 %v2147
  %v2482 = vunpack.c.l.b16 %v2148
  %v2483 = vunpack.c.h.b16 %v2148
  %v2484 = vunpack.c.l.b16 %v2149
  %v2485 = vunpack.c.h.b16 %v2149
  %v2486 = vunpack.c.l.b16 %v2150
  %v2487 = vunpack.c.h.b16 %v2150
  %v2488 = vunpack.c.l.b16 %v2151
  %v2489 = vunpack.c.h.b16 %v2151
  %v2490 = vunpack.c.l.b16 %v2152
  %v2491 = vunpack.c.h.b16 %v2152
  %v2492 = vunpack.c.l.b16 %v2153
  %v2493 = vunpack.c.h.b16 %v2153
  %v2494 = vunpack.c.l.b16 %v2154
  %v2495 = vunpack.c.h.b16 %v2154
  %v2496 = vunpack.c.l.b16 %v2155
  %v2497 = vunpack.c.h.b16 %v2155
  %v2498 = vunpack.c.l.b16 %v2156
  %v2499 = vunpack.c.h.b16 %v2156
  %v2500 = vunpack.c.l.b16 %v2157
  %v2501 = vunpack.c.h.b16 %v2157
  %v2502 = vunpack.c.l.b16 %v2158
  %v2503 = vunpack.c.h.b16 %v2158
  %v2504 = vunpack.c.l.b16 %v2159
  %v2505 = vunpack.c.h.b16 %v2159
  %v2506 = vunpack.c.l.b16 %v2160
  %v2507 = vunpack.c.h.b16 %v2160
  %v2508 = vunpack.c.l.b16 %v2161
  %v2509 = vunpack.c.h.b16 %v2161
  %v2510 = vunpack.c.l.b16 %v2162
  %v2511 = vunpack.c.h.b16 %v2162
  %v2512 = vunpack.c.l.b16 %v2163
  %v2513 = vunpack.c.h.b16 %v2163
  %v2514 = vunpack.c.l.b16 %v2164
  %v2515 = vunpack.c.h.b16 %v2164
  %v2516 = vunpack.c.l.b16 %v2165
  %v2517 = vunpack.c.h.b16 %v2165
  %v2518 = vunpack.c.l.b16 %v2166
  %v2519 = vunpack.c.h.b16 %v2166
  %v2520 = vunpack.c.l.b16 %v2167
  %v2521 = vunpack.c.h.b16 %v2167
  %v2522 = vunpack.c.l.b16 %v2168
  %v2523 = vunpack.c.h.b16 %v2168
  %v2524 = vunpack.c.l.b16 %v2169
  %v2525 = vunpack.c.h.b16 %v2169
  %v2526 = vunpack.c.l.b16 %v2170
  %v2527 = vunpack.c.h.b16 %v2170
  %v2528 = vunpack.c.l.b16 %v2171
  %v2529 = vunpack.c.h.b16 %v2171
  %v2530 = vunpack.c.l.b16 %v2172
  %v2531 = vunpack.c.h.b16 %v2172
  %v2532 = vunpack.c.l.b16 %v2173
  %v2533 = vunpack.c.h.b16 %v2173
  %v2534 = vunpack.c.l.b16 %v2174
  %v2535 = vunpack.c.h.b16 %v2174
  %v2536 = vunpack.c.l.b16 %v2175
  %v2537 = vunpack.c.h.b16 %v2175
  %v2538 = vunpack.c.l.b16 %v2176
  %v2539 = vunpack.c.h.b16 %v2176
  %v2540 = vunpack.c.l.b16 %v2177
  %v2541 = vunpack.c.h.b16 %v2177
  %v2542 = vunpack.c.l.b16 %v2178
  %v2543 = vunpack.c.h.b16 %v2178
  %v2544 = vunpack.c.l.b16 %v2179
  %v2545 = vunpack.c.h.b16 %v2179
  %v2546 = vunpack.c.l.b16 %v2180
  %v2547 = vunpack.c.h.b16 %v2180
  %v2548 = vunpack.c.l.b16 %v2181
  %v2549 = vunpack.c.h.b16 %v2181
  %v2550 = vunpack.c.l.b16 %v2182
  %v2551 = vunpack.c.h.b16 %v2182
  %v2552 = vunpack.c.l.b16 %v2183
  %v2553 = vunpack.c.h.b16 %v2183
  %v2554 = vunpack.c.l.b16 %v2184
  %v2555 = vunpack.c.h.b16 %v2184
  %v2556 = vunpack.c.l.b16 %v2185
  %v2557 = vunpack.c.h.b16 %v2185
  %v2558 = vunpack.c.l.b16 %v2186
  %v2559 = vunpack.c.h.b16 %v2186
  %v2560 = vunpack.c.l.b16 %v2187
  %v2561 = vunpack.c.h.b16 %v2187
  %v2562 = vunpack.c.l.b16 %v2188
  %v2563 = vunpack.c.h.b16 %v2188
  %v2564 = vunpack.c.l.b16 %v2189
  %v2565 = vunpack.c.h.b16 %v2189
  %v2566 = vunpack.c.l.b16 %v2190
  %v2567 = vunpack.c.h.b16 %v2190
  %v2568 = vunpack.c.l.b16 %v2191
  %v2569 = vunpack.c.h.b16 %v2191
  %v2570 = vunpack.c.l.b16 %v2192
  %v2571 = vunpack.c.h.b16 %v2192
  %v2572 = vunpack.c.l.b16 %v2193
  %v2573 = vunpack.c.h.b16 %v2193
  %v2574 = vunpack.c.l.b16 %v2194
  %v2575 = vunpack.c.h.b16 %v2194
  %v2576 = vunpack.c.l.b16 %v2195
  %v2577 = vunpack.c.h.b16 %v2195
  %v2578 = vunpack.c.l.b16 %v2196
  %v2579 = vunpack.c.h.b16 %v2196
  %v2580 = vunpack.c.l.b16 %v2197
  %v2581 = vunpack.c.h.b16 %v2197
  %v2582 = vunpack.c.l.b16 %v2198
  %v2583 = vunpack.c.h.b16 %v2198
  %v2584 = vunpack.c.l.b16 %v2199
  %v2585 = vunpack.c.h.b16 %v2199
  %v2586 = vunpack.c.l.b16 %v2200
  %v2587 = vunpack.c.h.b16 %v2200
  %v2588 = vunpack.c.l.b16 %v2201
  %v2589 = vunpack.c.h.b16 %v2201
  %v2590 = vunpack.c.l.b16 %v2202
  %v2591 = vunpack.c.h.b16 %v2202
  %v2592 = vunpack.c.l.b16 %v2203
  %v2593 = vunpack.c.h.b16 %v2203
  %v2594 = vunpack.c.l.b16 %v2204
  %v2595 = vunpack.c.h.b16 %v2204
  %v2596 = vunpack.c.l.b16 %v2205
  %v2597 = vunpack.c.h.b16 %v2205
  %v2598 = vunpack.c.l.b16 %v2206
  %v2599 = vunpack.c.h.b16 %v2206
  %v2600 = vunpack.c.l.b16 %v2207
  %v2601 = vunpack.c.h.b16 %v2207
  %v2602 = vunpack.c.l.b16 %v2208
  %v2603 = vunpack.c.h.b16 %v2208
  %v2604 = vpack.c.b16 %v2352, %v2348
  %v2605 = vpack.c.b16 %v2353, %v2349
  %v2606 = vpack.c.b16 %v2354, %v2350
  %v2607 = vpack.c.b16 %v2355, %v2351
  %v2608 = vpack.c.b16 %v2360, %v2356
  %v2609 = vpack.c.b16 %v2361, %v2357
  %v2610 = vpack.c.b16 %v2362, %v2358
  %v2611 = vpack.c.b16 %v2363, %v2359
  %v2612 = vpack.c.b16 %v2368, %v2364
  %v2613 = vpack.c.b16 %v2369, %v2365
  %v2614 = vpack.c.b16 %v2370, %v2366
  %v2615 = vpack.c.b16 %v2371, %v2367
  %v2616 = vpack.c.b16 %v2376, %v2372
  %v2617 = vpack.c.b16 %v2377, %v2373
  %v2618 = vpack.c.b16 %v2378, %v2374
  %v2619 = vpack.c.b16 %v2379, %v2375
  %v2620 = vpack.c.b16 %v2384, %v2380
  %v2621 = vpack.c.b16 %v2385, %v2381
  %v2622 = vpack.c.b16 %v2386, %v2382
  %v2623 = vpack.c.b16 %v2387, %v2383
  %v2624 = vpack.c.b16 %v2392, %v2388
  %v2625 = vpack.c.b16 %v2393, %v2389
  %v2626 = vpack.c.b16 %v2394, %v2390
  %v2627 = vpack.c.b16 %v2395, %v2391
  %v2628 = vpack.c.b16 %v2400, %v2396
  %v2629 = vpack.c.b16 %v2401, %v2397
  %v2630 = vpack.c.b16 %v2402, %v2398
  %v2631 = vpack.c.b16 %v2403, %v2399
  %v2632 = vpack.c.b16 %v2408, %v2404
  %v2633 = vpack.c.b16 %v2409, %v2405
  %v2634 = vpack.c.b16 %v2410, %v2406
  %v2635 = vpack.c.b16 %v2411, %v2407
  %v2636 = vpack.c.b16 %v2416, %v2412
  %v2637 = vpack.c.b16 %v2417, %v2413
  %v2638 = vpack.c.b16 %v2418, %v2414
  %v2639 = vpack.c.b16 %v2419, %v2415
  %v2640 = vpack.c.b16 %v2424, %v2420
  %v2641 = vpack.c.b16 %v2425, %v2421
  %v2642 = vpack.c.b16 %v2426, %v2422
  %v2643 = vpack.c.b16 %v2427, %v2423
  %v2644 = vpack.c.b16 %v2432, %v2428
  %v2645 = vpack.c.b16 %v2433, %v2429
  %v2646 = vpack.c.b16 %v2434, %v2430
  %v2647 = vpack.c.b16 %v2435, %v2431
  %v2648 = vpack.c.b16 %v2440, %v2436
  %v2649 = vpack.c.b16 %v2441, %v2437
  %v2650 = vpack.c.b16 %v2442, %v2438
  %v2651 = vpack.c.b16 %v2443, %v2439
  %v2652 = vpack.c.b16 %v2448, %v2444
  %v2653 = vpack.c.b16 %v2449, %v2445
  %v2654 = vpack.c.b16 %v2450, %v2446
  %v2655 = vpack.c.b16 %v2451, %v2447
  %v2656 = vpack.c.b16 %v2456, %v2452
  %v2657 = vpack.c.b16 %v2457, %v2453
  %v2658 = vpack.c.b16 %v2458, %v2454
  %v2659 = vpack.c.b16 %v2459, %v2455
  %v2660 = vpack.c.b16 %v2464, %v2460
  %v2661 = vpack.c.b16 %v2465, %v2461
  %v2662 = vpack.c.b16 %v2466, %v2462
  %v2663 = vpack.c.b16 %v2467, %v2463
  %v2664 = vpack.c.b16 %v2472, %v2468
  %v2665 = vpack.c.b16 %v2473, %v2469
  %v2666 = vpack.c.b16 %v2474, %v2470
  %v2667 = vpack.c.b16 %v2475, %v2471
  %v2668 = vpack.c.b16 %v2480, %v2476
  %v2669 = vpack.c.b16 %v2481, %v2477
  %v2670 = vpack.c.b16 %v2482, %v2478
  %v2671 = vpack.c.b16 %v2483, %v2479
  %v2672 = vpack.c.b16 %v2488, %v2484
  %v2673 = vpack.c.b16 %v2489, %v2485
  %v2674 = vpack.c.b16 %v2490, %v2486
  %v2675 = vpack.c.b16 %v2491, %v2487
  %v2676 = vpack.c.b16 %v2496, %v2492
  %v2677 = vpack.c.b16 %v2497, %v2493
  %v2678 = vpack.c.b16 %v2498, %v2494
  %v2679 = vpack.c.b16 %v2499, %v2495
  %v2680 = vpack.c.b16 %v2504, %v2500
  %v2681 = vpack.c.b16 %v2505, %v2501
  %v2682 = vpack.c.b16 %v2506, %v2502
  %v2683 = vpack.c.b16 %v2507, %v2503
  %v2684 = vpack.c.b16 %v2512, %v2508
  %v2685 = vpack.c.b16 %v2513, %v2509
  %v2686 = vpack.c.b16 %v2514, %v2510
  %v2687 = vpack.c.b16 %v2515, %v2511
  %v2688 = vpack.c.b16 %v2520, %v2516
  %v2689 = vpack.c.b16 %v2521, %v2517
  %v2690 = vpack.c.b16 %v2522, %v2518
  %v2691 = vpack.c.b16 %v2523, %v2519
  %v2692 = vpack.c.b16 %v2528, %v2524
  %v2693 = vpack.c.b16 %v2529, %v2525
  %v2694 = vpack.c.b16 %v2530, %v2526
  %v2695 = vpack.c.b16 %v2531, %v2527
  %v2696 = vpack.c.b16 %v2536, %v2532
  %v2697 = vpack.c.b16 %v2537, %v2533
  %v2698 = vpack.c.b16 %v2538, %v2534
  %v2699 = vpack.c.b16 %v2539, %v2535
  %v2700 = vpack.c.b16 %v2544, %v2540
  %v2701 = vpack.c.b16 %v2545, %v2541
  %v2702 = vpack.c.b16 %v2546, %v2542
  %v2703 = vpack.c.b16 %v2547, %v2543
  %v2704 = vpack.c.b16 %v2552, %v2548
  %v2705 = vpack.c.b16 %v2553, %v2549
  %v2706 = vpack.c.b16 %v2554, %v2550
  %v2707 = vpack.c.b16 %v2555, %v2551
  %v2708 = vpack.c.b16 %v2560, %v2556
  %v2709 = vpack.c.b16 %v2561, %v2557
  %v2710 = vpack.c.b16 %v2562, %v2558
  %v2711 = vpack.c.b16 %v2563, %v2559
  %v2712 = vpack.c.b16 %v2568, %v2564
  %v2713 = vpack.c.b16 %v2569, %v2565
  %v2714 = vpack.c.b16 %v2570, %v2566
  %v2715 = vpack.c.b16 %v2571, %v2567
  %v2716 = vpack.c.b16 %v2576, %v2572
  %v2717 = vpack.c.b16 %v2577, %v2573
  %v2718 = vpack.c.b16 %v2578, %v2574
  %v2719 = vpack.c.b16 %v2579, %v2575
  %v2720 = vpack.c.b16 %v2584, %v2580
  %v2721 = vpack.c.b16 %v2585, %v2581
  %v2722 = vpack.c.b16 %v2586, %v2582
  %v2723 = vpack.c.b16 %v2587, %v2583
  %v2724 = vpack.c.b16 %v2592, %v2588
  %v2725 = vpack.c.b16 %v2593, %v2589
  %v2726 = vpack.c.b16 %v2594, %v2590
  %v2727 = vpack.c.b16 %v2595, %v2591
  %v2728 = vpack.c.b16 %v2600, %v2596
  %v2729 = vpack.c.b16 %v2601, %v2597
  %v2730 = vpack.c.b16 %v2602, %v2598
  %v2731 = vpack.c.b16 %v2603, %v2599
  %2860 = vmatpush.bf16.msra.mxu0 %v2632
  %2861 = vmatpush.bf16.msra.mxu0 %v2628
  %2862 = vmatpush.bf16.msra.mxu0 %v2624
  %2863 = vmatpush.bf16.msra.mxu0 %v2620
  %2864 = vmatpush.bf16.msra.mxu0 %v2616
  %2865 = vmatpush.bf16.msra.mxu0 %v2612
  %2866 = vmatpush.bf16.msra.mxu0 %v2608
  %2867 = vmatpush.bf16.msra.mxu0 %v2604
  %2868 = vmatmul.bf16.gmra.mxu0 %v2076
  %v2869 = vpop.f32.mrf.mxu0
  %v2870 = vadd.f32 %v2212, %v2869
  %v2871 = vpop.f32.mrf.mxu0
  %v2872 = vadd.f32 %v2212, %v2871
  %2873 = vdwg.mxu0
  %2874 = vmatpush.bf16.msra.mxu0 %v2664
  %2875 = vmatpush.bf16.msra.mxu0 %v2660
  %2876 = vmatpush.bf16.msra.mxu0 %v2656
  %2877 = vmatpush.bf16.msra.mxu0 %v2652
  %2878 = vmatpush.bf16.msra.mxu0 %v2648
  %2879 = vmatpush.bf16.msra.mxu0 %v2644
  %2880 = vmatpush.bf16.msra.mxu0 %v2640
  %2881 = vmatpush.bf16.msra.mxu0 %v2636
  %2882 = vmatmul.bf16.gmra.mxu0 %v2077
  %v2883 = vpop.f32.mrf.mxu0
  %v2884 = vadd.f32 %v2870, %v2883
  %v2885 = vpop.f32.mrf.mxu0
  %v2886 = vadd.f32 %v2872, %v2885
  %2887 = vdwg.mxu0
  %2888 = vmatpush.bf16.msra.mxu0 %v2696
  %2889 = vmatpush.bf16.msra.mxu0 %v2692
  %2890 = vmatpush.bf16.msra.mxu0 %v2688
  %2891 = vmatpush.bf16.msra.mxu0 %v2684
  %2892 = vmatpush.bf16.msra.mxu0 %v2680
  %2893 = vmatpush.bf16.msra.mxu0 %v2676
  %2894 = vmatpush.bf16.msra.mxu0 %v2672
  %2895 = vmatpush.bf16.msra.mxu0 %v2668
  %2896 = vmatmul.bf16.gmra.mxu0 %v2078
  %v2897 = vpop.f32.mrf.mxu0
  %v2898 = vadd.f32 %v2884, %v2897
  %v2899 = vpop.f32.mrf.mxu0
  %v2900 = vadd.f32 %v2886, %v2899
  %2901 = vdwg.mxu0
  %2902 = vmatpush.bf16.msra.mxu0 %v2728
  %2903 = vmatpush.bf16.msra.mxu0 %v2724
  %2904 = vmatpush.bf16.msra.mxu0 %v2720
  %2905 = vmatpush.bf16.msra.mxu0 %v2716
  %2906 = vmatpush.bf16.msra.mxu0 %v2712
  %2907 = vmatpush.bf16.msra.mxu0 %v2708
  %2908 = vmatpush.bf16.msra.mxu0 %v2704
  %2909 = vmatpush.bf16.msra.mxu0 %v2700
  %2910 = vmatmul.bf16.gmra.mxu0 %v2079
  %v2911 = vpop.f32.mrf.mxu0
  %v2912 = vadd.f32 %v2898, %v2911
  %v2913 = vpop.f32.mrf.mxu0
  %v2914 = vadd.f32 %v2900, %v2913
  %2915 = vdwg.mxu0
  %2916 = vmatpush.bf16.msra.mxu0 %v2633
  %2917 = vmatpush.bf16.msra.mxu0 %v2629
  %2918 = vmatpush.bf16.msra.mxu0 %v2625
  %2919 = vmatpush.bf16.msra.mxu0 %v2621
  %2920 = vmatpush.bf16.msra.mxu0 %v2617
  %2921 = vmatpush.bf16.msra.mxu0 %v2613
  %2922 = vmatpush.bf16.msra.mxu0 %v2609
  %2923 = vmatpush.bf16.msra.mxu0 %v2605
  %2924 = vmatmul.bf16.gmra.mxu0 %v2076
  %v2925 = vpop.f32.mrf.mxu0
  %v2926 = vadd.f32 %v2213, %v2925
  %v2927 = vpop.f32.mrf.mxu0
  %v2928 = vadd.f32 %v2213, %v2927
  %2929 = vdwg.mxu0
  %2930 = vmatpush.bf16.msra.mxu0 %v2665
  %2931 = vmatpush.bf16.msra.mxu0 %v2661
  %2932 = vmatpush.bf16.msra.mxu0 %v2657
  %2933 = vmatpush.bf16.msra.mxu0 %v2653
  %2934 = vmatpush.bf16.msra.mxu0 %v2649
  %2935 = vmatpush.bf16.msra.mxu0 %v2645
  %2936 = vmatpush.bf16.msra.mxu0 %v2641
  %2937 = vmatpush.bf16.msra.mxu0 %v2637
  %2938 = vmatmul.bf16.gmra.mxu0 %v2077
  %v2939 = vpop.f32.mrf.mxu0
  %v2940 = vadd.f32 %v2926, %v2939
  %v2941 = vpop.f32.mrf.mxu0
  %v2942 = vadd.f32 %v2928, %v2941
  %2943 = vdwg.mxu0
  %2944 = vmatpush.bf16.msra.mxu0 %v2697
  %2945 = vmatpush.bf16.msra.mxu0 %v2693
  %2946 = vmatpush.bf16.msra.mxu0 %v2689
  %2947 = vmatpush.bf16.msra.mxu0 %v2685
  %2948 = vmatpush.bf16.msra.mxu0 %v2681
  %2949 = vmatpush.bf16.msra.mxu0 %v2677
  %2950 = vmatpush.bf16.msra.mxu0 %v2673
  %2951 = vmatpush.bf16.msra.mxu0 %v2669
  %2952 = vmatmul.bf16.gmra.mxu0 %v2078
  %v2953 = vpop.f32.mrf.mxu0
  %v2954 = vadd.f32 %v2940, %v2953
  %v2955 = vpop.f32.mrf.mxu0
  %v2956 = vadd.f32 %v2942, %v2955
  %2957 = vdwg.mxu0
  %2958 = vmatpush.bf16.msra.mxu0 %v2729
  %2959 = vmatpush.bf16.msra.mxu0 %v2725
  %2960 = vmatpush.bf16.msra.mxu0 %v2721
  %2961 = vmatpush.bf16.msra.mxu0 %v2717
  %2962 = vmatpush.bf16.msra.mxu0 %v2713
  %2963 = vmatpush.bf16.msra.mxu0 %v2709
  %2964 = vmatpush.bf16.msra.mxu0 %v2705
  %2965 = vmatpush.bf16.msra.mxu0 %v2701
  %2966 = vmatmul.bf16.gmra.mxu0 %v2079
  %v2967 = vpop.f32.mrf.mxu0
  %v2968 = vadd.f32 %v2954, %v2967
  %v2969 = vpop.f32.mrf.mxu0
  %v2970 = vadd.f32 %v2956, %v2969
  %2971 = vdwg.mxu0
  %2972 = vmatpush.bf16.msra.mxu0 %v2634
  %2973 = vmatpush.bf16.msra.mxu0 %v2630
  %2974 = vmatpush.bf16.msra.mxu0 %v2626
  %2975 = vmatpush.bf16.msra.mxu0 %v2622
  %2976 = vmatpush.bf16.msra.mxu0 %v2618
  %2977 = vmatpush.bf16.msra.mxu0 %v2614
  %2978 = vmatpush.bf16.msra.mxu0 %v2610
  %2979 = vmatpush.bf16.msra.mxu0 %v2606
  %2980 = vmatmul.bf16.gmra.mxu0 %v2076
  %v2981 = vpop.f32.mrf.mxu0
  %v2982 = vadd.f32 %v2214, %v2981
  %v2983 = vpop.f32.mrf.mxu0
  %v2984 = vadd.f32 %v2214, %v2983
  %2985 = vdwg.mxu0
  %2986 = vmatpush.bf16.msra.mxu0 %v2666
  %2987 = vmatpush.bf16.msra.mxu0 %v2662
  %2988 = vmatpush.bf16.msra.mxu0 %v2658
  %2989 = vmatpush.bf16.msra.mxu0 %v2654
  %2990 = vmatpush.bf16.msra.mxu0 %v2650
  %2991 = vmatpush.bf16.msra.mxu0 %v2646
  %2992 = vmatpush.bf16.msra.mxu0 %v2642
  %2993 = vmatpush.bf16.msra.mxu0 %v2638
  %2994 = vmatmul.bf16.gmra.mxu0 %v2077
  %v2995 = vpop.f32.mrf.mxu0
  %v2996 = vadd.f32 %v2982, %v2995
  %v2997 = vpop.f32.mrf.mxu0
  %v2998 = vadd.f32 %v2984, %v2997
  %2999 = vdwg.mxu0
  %3000 = vmatpush.bf16.msra.mxu0 %v2698
  %3001 = vmatpush.bf16.msra.mxu0 %v2694
  %3002 = vmatpush.bf16.msra.mxu0 %v2690
  %3003 = vmatpush.bf16.msra.mxu0 %v2686
  %3004 = vmatpush.bf16.msra.mxu0 %v2682
  %3005 = vmatpush.bf16.msra.mxu0 %v2678
  %3006 = vmatpush.bf16.msra.mxu0 %v2674
  %3007 = vmatpush.bf16.msra.mxu0 %v2670
  %3008 = vmatmul.bf16.gmra.mxu0 %v2078
  %v3009 = vpop.f32.mrf.mxu0
  %v3010 = vadd.f32 %v2996, %v3009
  %v3011 = vpop.f32.mrf.mxu0
  %v3012 = vadd.f32 %v2998, %v3011
  %3013 = vdwg.mxu0
  %3014 = vmatpush.bf16.msra.mxu0 %v2730
  %3015 = vmatpush.bf16.msra.mxu0 %v2726
  %3016 = vmatpush.bf16.msra.mxu0 %v2722
  %3017 = vmatpush.bf16.msra.mxu0 %v2718
  %3018 = vmatpush.bf16.msra.mxu0 %v2714
  %3019 = vmatpush.bf16.msra.mxu0 %v2710
  %3020 = vmatpush.bf16.msra.mxu0 %v2706
  %3021 = vmatpush.bf16.msra.mxu0 %v2702
  %3022 = vmatmul.bf16.gmra.mxu0 %v2079
  %v3023 = vpop.f32.mrf.mxu0
  %v3024 = vadd.f32 %v3010, %v3023
  %v3025 = vpop.f32.mrf.mxu0
  %v3026 = vadd.f32 %v3012, %v3025
  %3027 = vdwg.mxu0
  %3028 = vmatpush.bf16.msra.mxu0 %v2635
  %3029 = vmatpush.bf16.msra.mxu0 %v2631
  %3030 = vmatpush.bf16.msra.mxu0 %v2627
  %3031 = vmatpush.bf16.msra.mxu0 %v2623
  %3032 = vmatpush.bf16.msra.mxu0 %v2619
  %3033 = vmatpush.bf16.msra.mxu0 %v2615
  %3034 = vmatpush.bf16.msra.mxu0 %v2611
  %3035 = vmatpush.bf16.msra.mxu0 %v2607
  %3036 = vmatmul.bf16.gmra.mxu0 %v2076
  %v3037 = vpop.f32.mrf.mxu0
  %v3038 = vadd.f32 %v2215, %v3037
  %v3039 = vpop.f32.mrf.mxu0
  %v3040 = vadd.f32 %v2215, %v3039
  %3041 = vdwg.mxu0
  %3042 = vmatpush.bf16.msra.mxu0 %v2667
  %3043 = vmatpush.bf16.msra.mxu0 %v2663
  %3044 = vmatpush.bf16.msra.mxu0 %v2659
  %3045 = vmatpush.bf16.msra.mxu0 %v2655
  %3046 = vmatpush.bf16.msra.mxu0 %v2651
  %3047 = vmatpush.bf16.msra.mxu0 %v2647
  %3048 = vmatpush.bf16.msra.mxu0 %v2643
  %3049 = vmatpush.bf16.msra.mxu0 %v2639
  %3050 = vmatmul.bf16.gmra.mxu0 %v2077
  %v3051 = vpop.f32.mrf.mxu0
  %v3052 = vadd.f32 %v3038, %v3051
  %v3053 = vpop.f32.mrf.mxu0
  %v3054 = vadd.f32 %v3040, %v3053
  %3055 = vdwg.mxu0
  %3056 = vmatpush.bf16.msra.mxu0 %v2699
  %3057 = vmatpush.bf16.msra.mxu0 %v2695
  %3058 = vmatpush.bf16.msra.mxu0 %v2691
  %3059 = vmatpush.bf16.msra.mxu0 %v2687
  %3060 = vmatpush.bf16.msra.mxu0 %v2683
  %3061 = vmatpush.bf16.msra.mxu0 %v2679
  %3062 = vmatpush.bf16.msra.mxu0 %v2675
  %3063 = vmatpush.bf16.msra.mxu0 %v2671
  %3064 = vmatmul.bf16.gmra.mxu0 %v2078
  %v3065 = vpop.f32.mrf.mxu0
  %v3066 = vadd.f32 %v3052, %v3065
  %v3067 = vpop.f32.mrf.mxu0
  %v3068 = vadd.f32 %v3054, %v3067
  %3069 = vdwg.mxu0
  %3070 = vmatpush.bf16.msra.mxu0 %v2731
  %3071 = vmatpush.bf16.msra.mxu0 %v2727
  %3072 = vmatpush.bf16.msra.mxu0 %v2723
  %3073 = vmatpush.bf16.msra.mxu0 %v2719
  %3074 = vmatpush.bf16.msra.mxu0 %v2715
  %3075 = vmatpush.bf16.msra.mxu0 %v2711
  %3076 = vmatpush.bf16.msra.mxu0 %v2707
  %3077 = vmatpush.bf16.msra.mxu0 %v2703
  %3078 = vmatmul.bf16.gmra.mxu0 %v2079
  %v3079 = vpop.f32.mrf.mxu0
  %v3080 = vadd.f32 %v3066, %v3079
  %v3081 = vpop.f32.mrf.mxu0
  %v3082 = vadd.f32 %v3068, %v3081
  %3083 = vdwg.mxu0
  %v3084 = vmax.f32 %v2912, 0.0
  %v3085 = vmax.f32 %v2968, 0.0
  %v3086 = vmax.f32 %v3024, 0.0
  %v3087 = vmax.f32 %v3080, 0.0
  %v3088 = vmax.f32 %v2914, 0.0
  %v3089 = vmax.f32 %v2970, 0.0
  %v3090 = vmax.f32 %v3026, 0.0
  %v3091 = vmax.f32 %v3082, 0.0
  %v3092 = vpack.c.bf16 %v3088, %v3084
  %v3093 = vpack.c.bf16 %v3089, %v3085
  %v3094 = vpack.c.bf16 %v3090, %v3086
  %v3095 = vpack.c.bf16 %v3091, %v3087
  %s3096 = scalar_lea.vmem %s1, 3072
  %v3097 = vld [vmem:[%s3096] sm:$0xff]
  %v3098 = vld [vmem:[%s3096 + $0x8] sm:$0xff]
  %v3099 = vld [vmem:[%s3096 + $0x10] sm:$0xff]
  %v3100 = vld [vmem:[%s3096 + $0x18] sm:$0xff]
  %v3101 = vld [vmem:[%s3096 + $0x20] sm:$0xff]
  %v3102 = vld [vmem:[%s3096 + $0x28] sm:$0xff]
  %v3103 = vld [vmem:[%s3096 + $0x30] sm:$0xff]
  %v3104 = vld [vmem:[%s3096 + $0x38] sm:$0xff]
  %v3105 = vld [vmem:[%s3096 + $0x40] sm:$0xff]
  %v3106 = vld [vmem:[%s3096 + $0x48] sm:$0xff]
  %v3107 = vld [vmem:[%s3096 + $0x50] sm:$0xff]
  %v3108 = vld [vmem:[%s3096 + $0x58] sm:$0xff]
  %v3109 = vld [vmem:[%s3096 + $0x60] sm:$0xff]
  %v3110 = vld [vmem:[%s3096 + $0x68] sm:$0xff]
  %v3111 = vld [vmem:[%s3096 + $0x70] sm:$0xff]
  %v3112 = vld [vmem:[%s3096 + $0x78] sm:$0xff]
  %v3113 = vld [vmem:[%s3096 + $0x80] sm:$0xff]
  %v3114 = vld [vmem:[%s3096 + $0x88] sm:$0xff]
  %v3115 = vld [vmem:[%s3096 + $0x90] sm:$0xff]
  %v3116 = vld [vmem:[%s3096 + $0x98] sm:$0xff]
  %v3117 = vld [vmem:[%s3096 + $0xa0] sm:$0xff]
  %v3118 = vld [vmem:[%s3096 + $0xa8] sm:$0xff]
  %v3119 = vld [vmem:[%s3096 + $0xb0] sm:$0xff]
  %v3120 = vld [vmem:[%s3096 + $0xb8] sm:$0xff]
  %v3121 = vld [vmem:[%s3096 + $0xc0] sm:$0xff]
  %v3122 = vld [vmem:[%s3096 + $0xc8] sm:$0xff]
  %v3123 = vld [vmem:[%s3096 + $0xd0] sm:$0xff]
  %v3124 = vld [vmem:[%s3096 + $0xd8] sm:$0xff]
  %v3125 = vld [vmem:[%s3096 + $0xe0] sm:$0xff]
  %v3126 = vld [vmem:[%s3096 + $0xe8] sm:$0xff]
  %v3127 = vld [vmem:[%s3096 + $0xf0] sm:$0xff]
  %v3128 = vld [vmem:[%s3096 + $0xf8] sm:$0xff]
  %v3129 = vld [vmem:[%s3096 + $0x100] sm:$0xff]
  %v3130 = vld [vmem:[%s3096 + $0x108] sm:$0xff]
  %v3131 = vld [vmem:[%s3096 + $0x110] sm:$0xff]
  %v3132 = vld [vmem:[%s3096 + $0x118] sm:$0xff]
  %v3133 = vld [vmem:[%s3096 + $0x120] sm:$0xff]
  %v3134 = vld [vmem:[%s3096 + $0x128] sm:$0xff]
  %v3135 = vld [vmem:[%s3096 + $0x130] sm:$0xff]
  %v3136 = vld [vmem:[%s3096 + $0x138] sm:$0xff]
  %v3137 = vld [vmem:[%s3096 + $0x140] sm:$0xff]
  %v3138 = vld [vmem:[%s3096 + $0x148] sm:$0xff]
  %v3139 = vld [vmem:[%s3096 + $0x150] sm:$0xff]
  %v3140 = vld [vmem:[%s3096 + $0x158] sm:$0xff]
  %v3141 = vld [vmem:[%s3096 + $0x160] sm:$0xff]
  %v3142 = vld [vmem:[%s3096 + $0x168] sm:$0xff]
  %v3143 = vld [vmem:[%s3096 + $0x170] sm:$0xff]
  %v3144 = vld [vmem:[%s3096 + $0x178] sm:$0xff]
  %v3145 = vld [vmem:[%s3096 + $0x180] sm:$0xff]
  %v3146 = vld [vmem:[%s3096 + $0x188] sm:$0xff]
  %v3147 = vld [vmem:[%s3096 + $0x190] sm:$0xff]
  %v3148 = vld [vmem:[%s3096 + $0x198] sm:$0xff]
  %v3149 = vld [vmem:[%s3096 + $0x1a0] sm:$0xff]
  %v3150 = vld [vmem:[%s3096 + $0x1a8] sm:$0xff]
  %v3151 = vld [vmem:[%s3096 + $0x1b0] sm:$0xff]
  %v3152 = vld [vmem:[%s3096 + $0x1b8] sm:$0xff]
  %v3153 = vld [vmem:[%s3096 + $0x1c0] sm:$0xff]
  %v3154 = vld [vmem:[%s3096 + $0x1c8] sm:$0xff]
  %v3155 = vld [vmem:[%s3096 + $0x1d0] sm:$0xff]
  %v3156 = vld [vmem:[%s3096 + $0x1d8] sm:$0xff]
  %v3157 = vld [vmem:[%s3096 + $0x1e0] sm:$0xff]
  %v3158 = vld [vmem:[%s3096 + $0x1e8] sm:$0xff]
  %v3159 = vld [vmem:[%s3096 + $0x1f0] sm:$0xff]
  %v3160 = vld [vmem:[%s3096 + $0x1f8] sm:$0xff]
  %v3161 = vld [vmem:[%s3096 + $0x200] sm:$0xff]
  %v3162 = vld [vmem:[%s3096 + $0x208] sm:$0xff]
  %v3163 = vld [vmem:[%s3096 + $0x210] sm:$0xff]
  %v3164 = vld [vmem:[%s3096 + $0x218] sm:$0xff]
  %v3165 = vld [vmem:[%s3096 + $0x220] sm:$0xff]
  %v3166 = vld [vmem:[%s3096 + $0x228] sm:$0xff]
  %v3167 = vld [vmem:[%s3096 + $0x230] sm:$0xff]
  %v3168 = vld [vmem:[%s3096 + $0x238] sm:$0xff]
  %v3169 = vld [vmem:[%s3096 + $0x240] sm:$0xff]
  %v3170 = vld [vmem:[%s3096 + $0x248] sm:$0xff]
  %v3171 = vld [vmem:[%s3096 + $0x250] sm:$0xff]
  %v3172 = vld [vmem:[%s3096 + $0x258] sm:$0xff]
  %v3173 = vld [vmem:[%s3096 + $0x260] sm:$0xff]
  %v3174 = vld [vmem:[%s3096 + $0x268] sm:$0xff]
  %v3175 = vld [vmem:[%s3096 + $0x270] sm:$0xff]
  %v3176 = vld [vmem:[%s3096 + $0x278] sm:$0xff]
  %v3177 = vld [vmem:[%s3096 + $0x280] sm:$0xff]
  %v3178 = vld [vmem:[%s3096 + $0x288] sm:$0xff]
  %v3179 = vld [vmem:[%s3096 + $0x290] sm:$0xff]
  %v3180 = vld [vmem:[%s3096 + $0x298] sm:$0xff]
  %v3181 = vld [vmem:[%s3096 + $0x2a0] sm:$0xff]
  %v3182 = vld [vmem:[%s3096 + $0x2a8] sm:$0xff]
  %v3183 = vld [vmem:[%s3096 + $0x2b0] sm:$0xff]
  %v3184 = vld [vmem:[%s3096 + $0x2b8] sm:$0xff]
  %v3185 = vld [vmem:[%s3096 + $0x2c0] sm:$0xff]
  %v3186 = vld [vmem:[%s3096 + $0x2c8] sm:$0xff]
  %v3187 = vld [vmem:[%s3096 + $0x2d0] sm:$0xff]
  %v3188 = vld [vmem:[%s3096 + $0x2d8] sm:$0xff]
  %v3189 = vld [vmem:[%s3096 + $0x2e0] sm:$0xff]
  %v3190 = vld [vmem:[%s3096 + $0x2e8] sm:$0xff]
  %v3191 = vld [vmem:[%s3096 + $0x2f0] sm:$0xff]
  %v3192 = vld [vmem:[%s3096 + $0x2f8] sm:$0xff]
  %v3193 = vld [vmem:[%s3096 + $0x300] sm:$0xff]
  %v3194 = vld [vmem:[%s3096 + $0x308] sm:$0xff]
  %v3195 = vld [vmem:[%s3096 + $0x310] sm:$0xff]
  %v3196 = vld [vmem:[%s3096 + $0x318] sm:$0xff]
  %v3197 = vld [vmem:[%s3096 + $0x320] sm:$0xff]
  %v3198 = vld [vmem:[%s3096 + $0x328] sm:$0xff]
  %v3199 = vld [vmem:[%s3096 + $0x330] sm:$0xff]
  %v3200 = vld [vmem:[%s3096 + $0x338] sm:$0xff]
  %v3201 = vld [vmem:[%s3096 + $0x340] sm:$0xff]
  %v3202 = vld [vmem:[%s3096 + $0x348] sm:$0xff]
  %v3203 = vld [vmem:[%s3096 + $0x350] sm:$0xff]
  %v3204 = vld [vmem:[%s3096 + $0x358] sm:$0xff]
  %v3205 = vld [vmem:[%s3096 + $0x360] sm:$0xff]
  %v3206 = vld [vmem:[%s3096 + $0x368] sm:$0xff]
  %v3207 = vld [vmem:[%s3096 + $0x370] sm:$0xff]
  %v3208 = vld [vmem:[%s3096 + $0x378] sm:$0xff]
  %v3209 = vld [vmem:[%s3096 + $0x380] sm:$0xff]
  %v3210 = vld [vmem:[%s3096 + $0x388] sm:$0xff]
  %v3211 = vld [vmem:[%s3096 + $0x390] sm:$0xff]
  %v3212 = vld [vmem:[%s3096 + $0x398] sm:$0xff]
  %v3213 = vld [vmem:[%s3096 + $0x3a0] sm:$0xff]
  %v3214 = vld [vmem:[%s3096 + $0x3a8] sm:$0xff]
  %v3215 = vld [vmem:[%s3096 + $0x3b0] sm:$0xff]
  %v3216 = vld [vmem:[%s3096 + $0x3b8] sm:$0xff]
  %v3217 = vld [vmem:[%s3096 + $0x3c0] sm:$0xff]
  %v3218 = vld [vmem:[%s3096 + $0x3c8] sm:$0xff]
  %v3219 = vld [vmem:[%s3096 + $0x3d0] sm:$0xff]
  %v3220 = vld [vmem:[%s3096 + $0x3d8] sm:$0xff]
  %v3221 = vld [vmem:[%s3096 + $0x3e0] sm:$0xff]
  %v3222 = vld [vmem:[%s3096 + $0x3e8] sm:$0xff]
  %v3223 = vld [vmem:[%s3096 + $0x3f0] sm:$0xff]
  %v3224 = vld [vmem:[%s3096 + $0x3f8] sm:$0xff]
  %s3225 = scalar_lea.vmem %s2, 12
  %v3226 = vld [vmem:[%s3225] sm:$0xf]
  %v3228 = vperm.slane %v3226, 0
  %v3229 = vperm.slane %v3226, 1
  %v3230 = vperm.slane %v3226, 2
  %v3231 = vperm.slane %v3226, 3
  %v3364 = vunpack.c.l.b16 %v3097
  %v3365 = vunpack.c.h.b16 %v3097
  %v3366 = vunpack.c.l.b16 %v3098
  %v3367 = vunpack.c.h.b16 %v3098
  %v3368 = vunpack.c.l.b16 %v3099
  %v3369 = vunpack.c.h.b16 %v3099
  %v3370 = vunpack.c.l.b16 %v3100
  %v3371 = vunpack.c.h.b16 %v3100
  %v3372 = vunpack.c.l.b16 %v3101
  %v3373 = vunpack.c.h.b16 %v3101
  %v3374 = vunpack.c.l.b16 %v3102
  %v3375 = vunpack.c.h.b16 %v3102
  %v3376 = vunpack.c.l.b16 %v3103
  %v3377 = vunpack.c.h.b16 %v3103
  %v3378 = vunpack.c.l.b16 %v3104
  %v3379 = vunpack.c.h.b16 %v3104
  %v3380 = vunpack.c.l.b16 %v3105
  %v3381 = vunpack.c.h.b16 %v3105
  %v3382 = vunpack.c.l.b16 %v3106
  %v3383 = vunpack.c.h.b16 %v3106
  %v3384 = vunpack.c.l.b16 %v3107
  %v3385 = vunpack.c.h.b16 %v3107
  %v3386 = vunpack.c.l.b16 %v3108
  %v3387 = vunpack.c.h.b16 %v3108
  %v3388 = vunpack.c.l.b16 %v3109
  %v3389 = vunpack.c.h.b16 %v3109
  %v3390 = vunpack.c.l.b16 %v3110
  %v3391 = vunpack.c.h.b16 %v3110
  %v3392 = vunpack.c.l.b16 %v3111
  %v3393 = vunpack.c.h.b16 %v3111
  %v3394 = vunpack.c.l.b16 %v3112
  %v3395 = vunpack.c.h.b16 %v3112
  %v3396 = vunpack.c.l.b16 %v3113
  %v3397 = vunpack.c.h.b16 %v3113
  %v3398 = vunpack.c.l.b16 %v3114
  %v3399 = vunpack.c.h.b16 %v3114
  %v3400 = vunpack.c.l.b16 %v3115
  %v3401 = vunpack.c.h.b16 %v3115
  %v3402 = vunpack.c.l.b16 %v3116
  %v3403 = vunpack.c.h.b16 %v3116
  %v3404 = vunpack.c.l.b16 %v3117
  %v3405 = vunpack.c.h.b16 %v3117
  %v3406 = vunpack.c.l.b16 %v3118
  %v3407 = vunpack.c.h.b16 %v3118
  %v3408 = vunpack.c.l.b16 %v3119
  %v3409 = vunpack.c.h.b16 %v3119
  %v3410 = vunpack.c.l.b16 %v3120
  %v3411 = vunpack.c.h.b16 %v3120
  %v3412 = vunpack.c.l.b16 %v3121
  %v3413 = vunpack.c.h.b16 %v3121
  %v3414 = vunpack.c.l.b16 %v3122
  %v3415 = vunpack.c.h.b16 %v3122
  %v3416 = vunpack.c.l.b16 %v3123
  %v3417 = vunpack.c.h.b16 %v3123
  %v3418 = vunpack.c.l.b16 %v3124
  %v3419 = vunpack.c.h.b16 %v3124
  %v3420 = vunpack.c.l.b16 %v3125
  %v3421 = vunpack.c.h.b16 %v3125
  %v3422 = vunpack.c.l.b16 %v3126
  %v3423 = vunpack.c.h.b16 %v3126
  %v3424 = vunpack.c.l.b16 %v3127
  %v3425 = vunpack.c.h.b16 %v3127
  %v3426 = vunpack.c.l.b16 %v3128
  %v3427 = vunpack.c.h.b16 %v3128
  %v3428 = vunpack.c.l.b16 %v3129
  %v3429 = vunpack.c.h.b16 %v3129
  %v3430 = vunpack.c.l.b16 %v3130
  %v3431 = vunpack.c.h.b16 %v3130
  %v3432 = vunpack.c.l.b16 %v3131
  %v3433 = vunpack.c.h.b16 %v3131
  %v3434 = vunpack.c.l.b16 %v3132
  %v3435 = vunpack.c.h.b16 %v3132
  %v3436 = vunpack.c.l.b16 %v3133
  %v3437 = vunpack.c.h.b16 %v3133
  %v3438 = vunpack.c.l.b16 %v3134
  %v3439 = vunpack.c.h.b16 %v3134
  %v3440 = vunpack.c.l.b16 %v3135
  %v3441 = vunpack.c.h.b16 %v3135
  %v3442 = vunpack.c.l.b16 %v3136
  %v3443 = vunpack.c.h.b16 %v3136
  %v3444 = vunpack.c.l.b16 %v3137
  %v3445 = vunpack.c.h.b16 %v3137
  %v3446 = vunpack.c.l.b16 %v3138
  %v3447 = vunpack.c.h.b16 %v3138
  %v3448 = vunpack.c.l.b16 %v3139
  %v3449 = vunpack.c.h.b16 %v3139
  %v3450 = vunpack.c.l.b16 %v3140
  %v3451 = vunpack.c.h.b16 %v3140
  %v3452 = vunpack.c.l.b16 %v3141
  %v3453 = vunpack.c.h.b16 %v3141
  %v3454 = vunpack.c.l.b16 %v3142
  %v3455 = vunpack.c.h.b16 %v3142
  %v3456 = vunpack.c.l.b16 %v3143
  %v3457 = vunpack.c.h.b16 %v3143
  %v3458 = vunpack.c.l.b16 %v3144
  %v3459 = vunpack.c.h.b16 %v3144
  %v3460 = vunpack.c.l.b16 %v3145
  %v3461 = vunpack.c.h.b16 %v3145
  %v3462 = vunpack.c.l.b16 %v3146
  %v3463 = vunpack.c.h.b16 %v3146
  %v3464 = vunpack.c.l.b16 %v3147
  %v3465 = vunpack.c.h.b16 %v3147
  %v3466 = vunpack.c.l.b16 %v3148
  %v3467 = vunpack.c.h.b16 %v3148
  %v3468 = vunpack.c.l.b16 %v3149
  %v3469 = vunpack.c.h.b16 %v3149
  %v3470 = vunpack.c.l.b16 %v3150
  %v3471 = vunpack.c.h.b16 %v3150
  %v3472 = vunpack.c.l.b16 %v3151
  %v3473 = vunpack.c.h.b16 %v3151
  %v3474 = vunpack.c.l.b16 %v3152
  %v3475 = vunpack.c.h.b16 %v3152
  %v3476 = vunpack.c.l.b16 %v3153
  %v3477 = vunpack.c.h.b16 %v3153
  %v3478 = vunpack.c.l.b16 %v3154
  %v3479 = vunpack.c.h.b16 %v3154
  %v3480 = vunpack.c.l.b16 %v3155
  %v3481 = vunpack.c.h.b16 %v3155
  %v3482 = vunpack.c.l.b16 %v3156
  %v3483 = vunpack.c.h.b16 %v3156
  %v3484 = vunpack.c.l.b16 %v3157
  %v3485 = vunpack.c.h.b16 %v3157
  %v3486 = vunpack.c.l.b16 %v3158
  %v3487 = vunpack.c.h.b16 %v3158
  %v3488 = vunpack.c.l.b16 %v3159
  %v3489 = vunpack.c.h.b16 %v3159
  %v3490 = vunpack.c.l.b16 %v3160
  %v3491 = vunpack.c.h.b16 %v3160
  %v3492 = vunpack.c.l.b16 %v3161
  %v3493 = vunpack.c.h.b16 %v3161
  %v3494 = vunpack.c.l.b16 %v3162
  %v3495 = vunpack.c.h.b16 %v3162
  %v3496 = vunpack.c.l.b16 %v3163
  %v3497 = vunpack.c.h.b16 %v3163
  %v3498 = vunpack.c.l.b16 %v3164
  %v3499 = vunpack.c.h.b16 %v3164
  %v3500 = vunpack.c.l.b16 %v3165
  %v3501 = vunpack.c.h.b16 %v3165
  %v3502 = vunpack.c.l.b16 %v3166
  %v3503 = vunpack.c.h.b16 %v3166
  %v3504 = vunpack.c.l.b16 %v3167
  %v3505 = vunpack.c.h.b16 %v3167
  %v3506 = vunpack.c.l.b16 %v3168
  %v3507 = vunpack.c.h.b16 %v3168
  %v3508 = vunpack.c.l.b16 %v3169
  %v3509 = vunpack.c.h.b16 %v3169
  %v3510 = vunpack.c.l.b16 %v3170
  %v3511 = vunpack.c.h.b16 %v3170
  %v3512 = vunpack.c.l.b16 %v3171
  %v3513 = vunpack.c.h.b16 %v3171
  %v3514 = vunpack.c.l.b16 %v3172
  %v3515 = vunpack.c.h.b16 %v3172
  %v3516 = vunpack.c.l.b16 %v3173
  %v3517 = vunpack.c.h.b16 %v3173
  %v3518 = vunpack.c.l.b16 %v3174
  %v3519 = vunpack.c.h.b16 %v3174
  %v3520 = vunpack.c.l.b16 %v3175
  %v3521 = vunpack.c.h.b16 %v3175
  %v3522 = vunpack.c.l.b16 %v3176
  %v3523 = vunpack.c.h.b16 %v3176
  %v3524 = vunpack.c.l.b16 %v3177
  %v3525 = vunpack.c.h.b16 %v3177
  %v3526 = vunpack.c.l.b16 %v3178
  %v3527 = vunpack.c.h.b16 %v3178
  %v3528 = vunpack.c.l.b16 %v3179
  %v3529 = vunpack.c.h.b16 %v3179
  %v3530 = vunpack.c.l.b16 %v3180
  %v3531 = vunpack.c.h.b16 %v3180
  %v3532 = vunpack.c.l.b16 %v3181
  %v3533 = vunpack.c.h.b16 %v3181
  %v3534 = vunpack.c.l.b16 %v3182
  %v3535 = vunpack.c.h.b16 %v3182
  %v3536 = vunpack.c.l.b16 %v3183
  %v3537 = vunpack.c.h.b16 %v3183
  %v3538 = vunpack.c.l.b16 %v3184
  %v3539 = vunpack.c.h.b16 %v3184
  %v3540 = vunpack.c.l.b16 %v3185
  %v3541 = vunpack.c.h.b16 %v3185
  %v3542 = vunpack.c.l.b16 %v3186
  %v3543 = vunpack.c.h.b16 %v3186
  %v3544 = vunpack.c.l.b16 %v3187
  %v3545 = vunpack.c.h.b16 %v3187
  %v3546 = vunpack.c.l.b16 %v3188
  %v3547 = vunpack.c.h.b16 %v3188
  %v3548 = vunpack.c.l.b16 %v3189
  %v3549 = vunpack.c.h.b16 %v3189
  %v3550 = vunpack.c.l.b16 %v3190
  %v3551 = vunpack.c.h.b16 %v3190
  %v3552 = vunpack.c.l.b16 %v3191
  %v3553 = vunpack.c.h.b16 %v3191
  %v3554 = vunpack.c.l.b16 %v3192
  %v3555 = vunpack.c.h.b16 %v3192
  %v3556 = vunpack.c.l.b16 %v3193
  %v3557 = vunpack.c.h.b16 %v3193
  %v3558 = vunpack.c.l.b16 %v3194
  %v3559 = vunpack.c.h.b16 %v3194
  %v3560 = vunpack.c.l.b16 %v3195
  %v3561 = vunpack.c.h.b16 %v3195
  %v3562 = vunpack.c.l.b16 %v3196
  %v3563 = vunpack.c.h.b16 %v3196
  %v3564 = vunpack.c.l.b16 %v3197
  %v3565 = vunpack.c.h.b16 %v3197
  %v3566 = vunpack.c.l.b16 %v3198
  %v3567 = vunpack.c.h.b16 %v3198
  %v3568 = vunpack.c.l.b16 %v3199
  %v3569 = vunpack.c.h.b16 %v3199
  %v3570 = vunpack.c.l.b16 %v3200
  %v3571 = vunpack.c.h.b16 %v3200
  %v3572 = vunpack.c.l.b16 %v3201
  %v3573 = vunpack.c.h.b16 %v3201
  %v3574 = vunpack.c.l.b16 %v3202
  %v3575 = vunpack.c.h.b16 %v3202
  %v3576 = vunpack.c.l.b16 %v3203
  %v3577 = vunpack.c.h.b16 %v3203
  %v3578 = vunpack.c.l.b16 %v3204
  %v3579 = vunpack.c.h.b16 %v3204
  %v3580 = vunpack.c.l.b16 %v3205
  %v3581 = vunpack.c.h.b16 %v3205
  %v3582 = vunpack.c.l.b16 %v3206
  %v3583 = vunpack.c.h.b16 %v3206
  %v3584 = vunpack.c.l.b16 %v3207
  %v3585 = vunpack.c.h.b16 %v3207
  %v3586 = vunpack.c.l.b16 %v3208
  %v3587 = vunpack.c.h.b16 %v3208
  %v3588 = vunpack.c.l.b16 %v3209
  %v3589 = vunpack.c.h.b16 %v3209
  %v3590 = vunpack.c.l.b16 %v3210
  %v3591 = vunpack.c.h.b16 %v3210
  %v3592 = vunpack.c.l.b16 %v3211
  %v3593 = vunpack.c.h.b16 %v3211
  %v3594 = vunpack.c.l.b16 %v3212
  %v3595 = vunpack.c.h.b16 %v3212
  %v3596 = vunpack.c.l.b16 %v3213
  %v3597 = vunpack.c.h.b16 %v3213
  %v3598 = vunpack.c.l.b16 %v3214
  %v3599 = vunpack.c.h.b16 %v3214
  %v3600 = vunpack.c.l.b16 %v3215
  %v3601 = vunpack.c.h.b16 %v3215
  %v3602 = vunpack.c.l.b16 %v3216
  %v3603 = vunpack.c.h.b16 %v3216
  %v3604 = vunpack.c.l.b16 %v3217
  %v3605 = vunpack.c.h.b16 %v3217
  %v3606 = vunpack.c.l.b16 %v3218
  %v3607 = vunpack.c.h.b16 %v3218
  %v3608 = vunpack.c.l.b16 %v3219
  %v3609 = vunpack.c.h.b16 %v3219
  %v3610 = vunpack.c.l.b16 %v3220
  %v3611 = vunpack.c.h.b16 %v3220
  %v3612 = vunpack.c.l.b16 %v3221
  %v3613 = vunpack.c.h.b16 %v3221
  %v3614 = vunpack.c.l.b16 %v3222
  %v3615 = vunpack.c.h.b16 %v3222
  %v3616 = vunpack.c.l.b16 %v3223
  %v3617 = vunpack.c.h.b16 %v3223
  %v3618 = vunpack.c.l.b16 %v3224
  %v3619 = vunpack.c.h.b16 %v3224
  %v3620 = vpack.c.b16 %v3368, %v3364
  %v3621 = vpack.c.b16 %v3369, %v3365
  %v3622 = vpack.c.b16 %v3370, %v3366
  %v3623 = vpack.c.b16 %v3371, %v3367
  %v3624 = vpack.c.b16 %v3376, %v3372
  %v3625 = vpack.c.b16 %v3377, %v3373
  %v3626 = vpack.c.b16 %v3378, %v3374
  %v3627 = vpack.c.b16 %v3379, %v3375
  %v3628 = vpack.c.b16 %v3384, %v3380
  %v3629 = vpack.c.b16 %v3385, %v3381
  %v3630 = vpack.c.b16 %v3386, %v3382
  %v3631 = vpack.c.b16 %v3387, %v3383
  %v3632 = vpack.c.b16 %v3392, %v3388
  %v3633 = vpack.c.b16 %v3393, %v3389
  %v3634 = vpack.c.b16 %v3394, %v3390
  %v3635 = vpack.c.b16 %v3395, %v3391
  %v3636 = vpack.c.b16 %v3400, %v3396
  %v3637 = vpack.c.b16 %v3401, %v3397
  %v3638 = vpack.c.b16 %v3402, %v3398
  %v3639 = vpack.c.b16 %v3403, %v3399
  %v3640 = vpack.c.b16 %v3408, %v3404
  %v3641 = vpack.c.b16 %v3409, %v3405
  %v3642 = vpack.c.b16 %v3410, %v3406
  %v3643 = vpack.c.b16 %v3411, %v3407
  %v3644 = vpack.c.b16 %v3416, %v3412
  %v3645 = vpack.c.b16 %v3417, %v3413
  %v3646 = vpack.c.b16 %v3418, %v3414
  %v3647 = vpack.c.b16 %v3419, %v3415
  %v3648 = vpack.c.b16 %v3424, %v3420
  %v3649 = vpack.c.b16 %v3425, %v3421
  %v3650 = vpack.c.b16 %v3426, %v3422
  %v3651 = vpack.c.b16 %v3427, %v3423
  %v3652 = vpack.c.b16 %v3432, %v3428
  %v3653 = vpack.c.b16 %v3433, %v3429
  %v3654 = vpack.c.b16 %v3434, %v3430
  %v3655 = vpack.c.b16 %v3435, %v3431
  %v3656 = vpack.c.b16 %v3440, %v3436
  %v3657 = vpack.c.b16 %v3441, %v3437
  %v3658 = vpack.c.b16 %v3442, %v3438
  %v3659 = vpack.c.b16 %v3443, %v3439
  %v3660 = vpack.c.b16 %v3448, %v3444
  %v3661 = vpack.c.b16 %v3449, %v3445
  %v3662 = vpack.c.b16 %v3450, %v3446
  %v3663 = vpack.c.b16 %v3451, %v3447
  %v3664 = vpack.c.b16 %v3456, %v3452
  %v3665 = vpack.c.b16 %v3457, %v3453
  %v3666 = vpack.c.b16 %v3458, %v3454
  %v3667 = vpack.c.b16 %v3459, %v3455
  %v3668 = vpack.c.b16 %v3464, %v3460
  %v3669 = vpack.c.b16 %v3465, %v3461
  %v3670 = vpack.c.b16 %v3466, %v3462
  %v3671 = vpack.c.b16 %v3467, %v3463
  %v3672 = vpack.c.b16 %v3472, %v3468
  %v3673 = vpack.c.b16 %v3473, %v3469
  %v3674 = vpack.c.b16 %v3474, %v3470
  %v3675 = vpack.c.b16 %v3475, %v3471
  %v3676 = vpack.c.b16 %v3480, %v3476
  %v3677 = vpack.c.b16 %v3481, %v3477
  %v3678 = vpack.c.b16 %v3482, %v3478
  %v3679 = vpack.c.b16 %v3483, %v3479
  %v3680 = vpack.c.b16 %v3488, %v3484
  %v3681 = vpack.c.b16 %v3489, %v3485
  %v3682 = vpack.c.b16 %v3490, %v3486
  %v3683 = vpack.c.b16 %v3491, %v3487
  %v3684 = vpack.c.b16 %v3496, %v3492
  %v3685 = vpack.c.b16 %v3497, %v3493
  %v3686 = vpack.c.b16 %v3498, %v3494
  %v3687 = vpack.c.b16 %v3499, %v3495
  %v3688 = vpack.c.b16 %v3504, %v3500
  %v3689 = vpack.c.b16 %v3505, %v3501
  %v3690 = vpack.c.b16 %v3506, %v3502
  %v3691 = vpack.c.b16 %v3507, %v3503
  %v3692 = vpack.c.b16 %v3512, %v3508
  %v3693 = vpack.c.b16 %v3513, %v3509
  %v3694 = vpack.c.b16 %v3514, %v3510
  %v3695 = vpack.c.b16 %v3515, %v3511
  %v3696 = vpack.c.b16 %v3520, %v3516
  %v3697 = vpack.c.b16 %v3521, %v3517
  %v3698 = vpack.c.b16 %v3522, %v3518
  %v3699 = vpack.c.b16 %v3523, %v3519
  %v3700 = vpack.c.b16 %v3528, %v3524
  %v3701 = vpack.c.b16 %v3529, %v3525
  %v3702 = vpack.c.b16 %v3530, %v3526
  %v3703 = vpack.c.b16 %v3531, %v3527
  %v3704 = vpack.c.b16 %v3536, %v3532
  %v3705 = vpack.c.b16 %v3537, %v3533
  %v3706 = vpack.c.b16 %v3538, %v3534
  %v3707 = vpack.c.b16 %v3539, %v3535
  %v3708 = vpack.c.b16 %v3544, %v3540
  %v3709 = vpack.c.b16 %v3545, %v3541
  %v3710 = vpack.c.b16 %v3546, %v3542
  %v3711 = vpack.c.b16 %v3547, %v3543
  %v3712 = vpack.c.b16 %v3552, %v3548
  %v3713 = vpack.c.b16 %v3553, %v3549
  %v3714 = vpack.c.b16 %v3554, %v3550
  %v3715 = vpack.c.b16 %v3555, %v3551
  %v3716 = vpack.c.b16 %v3560, %v3556
  %v3717 = vpack.c.b16 %v3561, %v3557
  %v3718 = vpack.c.b16 %v3562, %v3558
  %v3719 = vpack.c.b16 %v3563, %v3559
  %v3720 = vpack.c.b16 %v3568, %v3564
  %v3721 = vpack.c.b16 %v3569, %v3565
  %v3722 = vpack.c.b16 %v3570, %v3566
  %v3723 = vpack.c.b16 %v3571, %v3567
  %v3724 = vpack.c.b16 %v3576, %v3572
  %v3725 = vpack.c.b16 %v3577, %v3573
  %v3726 = vpack.c.b16 %v3578, %v3574
  %v3727 = vpack.c.b16 %v3579, %v3575
  %v3728 = vpack.c.b16 %v3584, %v3580
  %v3729 = vpack.c.b16 %v3585, %v3581
  %v3730 = vpack.c.b16 %v3586, %v3582
  %v3731 = vpack.c.b16 %v3587, %v3583
  %v3732 = vpack.c.b16 %v3592, %v3588
  %v3733 = vpack.c.b16 %v3593, %v3589
  %v3734 = vpack.c.b16 %v3594, %v3590
  %v3735 = vpack.c.b16 %v3595, %v3591
  %v3736 = vpack.c.b16 %v3600, %v3596
  %v3737 = vpack.c.b16 %v3601, %v3597
  %v3738 = vpack.c.b16 %v3602, %v3598
  %v3739 = vpack.c.b16 %v3603, %v3599
  %v3740 = vpack.c.b16 %v3608, %v3604
  %v3741 = vpack.c.b16 %v3609, %v3605
  %v3742 = vpack.c.b16 %v3610, %v3606
  %v3743 = vpack.c.b16 %v3611, %v3607
  %v3744 = vpack.c.b16 %v3616, %v3612
  %v3745 = vpack.c.b16 %v3617, %v3613
  %v3746 = vpack.c.b16 %v3618, %v3614
  %v3747 = vpack.c.b16 %v3619, %v3615
  %3876 = vmatpush.bf16.msra.mxu0 %v3648
  %3877 = vmatpush.bf16.msra.mxu0 %v3644
  %3878 = vmatpush.bf16.msra.mxu0 %v3640
  %3879 = vmatpush.bf16.msra.mxu0 %v3636
  %3880 = vmatpush.bf16.msra.mxu0 %v3632
  %3881 = vmatpush.bf16.msra.mxu0 %v3628
  %3882 = vmatpush.bf16.msra.mxu0 %v3624
  %3883 = vmatpush.bf16.msra.mxu0 %v3620
  %3884 = vmatmul.bf16.gmra.mxu0 %v3092
  %v3885 = vpop.f32.mrf.mxu0
  %v3886 = vadd.f32 %v3228, %v3885
  %v3887 = vpop.f32.mrf.mxu0
  %v3888 = vadd.f32 %v3228, %v3887
  %3889 = vdwg.mxu0
  %3890 = vmatpush.bf16.msra.mxu0 %v3680
  %3891 = vmatpush.bf16.msra.mxu0 %v3676
  %3892 = vmatpush.bf16.msra.mxu0 %v3672
  %3893 = vmatpush.bf16.msra.mxu0 %v3668
  %3894 = vmatpush.bf16.msra.mxu0 %v3664
  %3895 = vmatpush.bf16.msra.mxu0 %v3660
  %3896 = vmatpush.bf16.msra.mxu0 %v3656
  %3897 = vmatpush.bf16.msra.mxu0 %v3652
  %3898 = vmatmul.bf16.gmra.mxu0 %v3093
  %v3899 = vpop.f32.mrf.mxu0
  %v3900 = vadd.f32 %v3886, %v3899
  %v3901 = vpop.f32.mrf.mxu0
  %v3902 = vadd.f32 %v3888, %v3901
  %3903 = vdwg.mxu0
  %3904 = vmatpush.bf16.msra.mxu0 %v3712
  %3905 = vmatpush.bf16.msra.mxu0 %v3708
  %3906 = vmatpush.bf16.msra.mxu0 %v3704
  %3907 = vmatpush.bf16.msra.mxu0 %v3700
  %3908 = vmatpush.bf16.msra.mxu0 %v3696
  %3909 = vmatpush.bf16.msra.mxu0 %v3692
  %3910 = vmatpush.bf16.msra.mxu0 %v3688
  %3911 = vmatpush.bf16.msra.mxu0 %v3684
  %3912 = vmatmul.bf16.gmra.mxu0 %v3094
  %v3913 = vpop.f32.mrf.mxu0
  %v3914 = vadd.f32 %v3900, %v3913
  %v3915 = vpop.f32.mrf.mxu0
  %v3916 = vadd.f32 %v3902, %v3915
  %3917 = vdwg.mxu0
  %3918 = vmatpush.bf16.msra.mxu0 %v3744
  %3919 = vmatpush.bf16.msra.mxu0 %v3740
  %3920 = vmatpush.bf16.msra.mxu0 %v3736
  %3921 = vmatpush.bf16.msra.mxu0 %v3732
  %3922 = vmatpush.bf16.msra.mxu0 %v3728
  %3923 = vmatpush.bf16.msra.mxu0 %v3724
  %3924 = vmatpush.bf16.msra.mxu0 %v3720
  %3925 = vmatpush.bf16.msra.mxu0 %v3716
  %3926 = vmatmul.bf16.gmra.mxu0 %v3095
  %v3927 = vpop.f32.mrf.mxu0
  %v3928 = vadd.f32 %v3914, %v3927
  %v3929 = vpop.f32.mrf.mxu0
  %v3930 = vadd.f32 %v3916, %v3929
  %3931 = vdwg.mxu0
  %3932 = vmatpush.bf16.msra.mxu0 %v3649
  %3933 = vmatpush.bf16.msra.mxu0 %v3645
  %3934 = vmatpush.bf16.msra.mxu0 %v3641
  %3935 = vmatpush.bf16.msra.mxu0 %v3637
  %3936 = vmatpush.bf16.msra.mxu0 %v3633
  %3937 = vmatpush.bf16.msra.mxu0 %v3629
  %3938 = vmatpush.bf16.msra.mxu0 %v3625
  %3939 = vmatpush.bf16.msra.mxu0 %v3621
  %3940 = vmatmul.bf16.gmra.mxu0 %v3092
  %v3941 = vpop.f32.mrf.mxu0
  %v3942 = vadd.f32 %v3229, %v3941
  %v3943 = vpop.f32.mrf.mxu0
  %v3944 = vadd.f32 %v3229, %v3943
  %3945 = vdwg.mxu0
  %3946 = vmatpush.bf16.msra.mxu0 %v3681
  %3947 = vmatpush.bf16.msra.mxu0 %v3677
  %3948 = vmatpush.bf16.msra.mxu0 %v3673
  %3949 = vmatpush.bf16.msra.mxu0 %v3669
  %3950 = vmatpush.bf16.msra.mxu0 %v3665
  %3951 = vmatpush.bf16.msra.mxu0 %v3661
  %3952 = vmatpush.bf16.msra.mxu0 %v3657
  %3953 = vmatpush.bf16.msra.mxu0 %v3653
  %3954 = vmatmul.bf16.gmra.mxu0 %v3093
  %v3955 = vpop.f32.mrf.mxu0
  %v3956 = vadd.f32 %v3942, %v3955
  %v3957 = vpop.f32.mrf.mxu0
  %v3958 = vadd.f32 %v3944, %v3957
  %3959 = vdwg.mxu0
  %3960 = vmatpush.bf16.msra.mxu0 %v3713
  %3961 = vmatpush.bf16.msra.mxu0 %v3709
  %3962 = vmatpush.bf16.msra.mxu0 %v3705
  %3963 = vmatpush.bf16.msra.mxu0 %v3701
  %3964 = vmatpush.bf16.msra.mxu0 %v3697
  %3965 = vmatpush.bf16.msra.mxu0 %v3693
  %3966 = vmatpush.bf16.msra.mxu0 %v3689
  %3967 = vmatpush.bf16.msra.mxu0 %v3685
  %3968 = vmatmul.bf16.gmra.mxu0 %v3094
  %v3969 = vpop.f32.mrf.mxu0
  %v3970 = vadd.f32 %v3956, %v3969
  %v3971 = vpop.f32.mrf.mxu0
  %v3972 = vadd.f32 %v3958, %v3971
  %3973 = vdwg.mxu0
  %3974 = vmatpush.bf16.msra.mxu0 %v3745
  %3975 = vmatpush.bf16.msra.mxu0 %v3741
  %3976 = vmatpush.bf16.msra.mxu0 %v3737
  %3977 = vmatpush.bf16.msra.mxu0 %v3733
  %3978 = vmatpush.bf16.msra.mxu0 %v3729
  %3979 = vmatpush.bf16.msra.mxu0 %v3725
  %3980 = vmatpush.bf16.msra.mxu0 %v3721
  %3981 = vmatpush.bf16.msra.mxu0 %v3717
  %3982 = vmatmul.bf16.gmra.mxu0 %v3095
  %v3983 = vpop.f32.mrf.mxu0
  %v3984 = vadd.f32 %v3970, %v3983
  %v3985 = vpop.f32.mrf.mxu0
  %v3986 = vadd.f32 %v3972, %v3985
  %3987 = vdwg.mxu0
  %3988 = vmatpush.bf16.msra.mxu0 %v3650
  %3989 = vmatpush.bf16.msra.mxu0 %v3646
  %3990 = vmatpush.bf16.msra.mxu0 %v3642
  %3991 = vmatpush.bf16.msra.mxu0 %v3638
  %3992 = vmatpush.bf16.msra.mxu0 %v3634
  %3993 = vmatpush.bf16.msra.mxu0 %v3630
  %3994 = vmatpush.bf16.msra.mxu0 %v3626
  %3995 = vmatpush.bf16.msra.mxu0 %v3622
  %3996 = vmatmul.bf16.gmra.mxu0 %v3092
  %v3997 = vpop.f32.mrf.mxu0
  %v3998 = vadd.f32 %v3230, %v3997
  %v3999 = vpop.f32.mrf.mxu0
  %v4000 = vadd.f32 %v3230, %v3999
  %4001 = vdwg.mxu0
  %4002 = vmatpush.bf16.msra.mxu0 %v3682
  %4003 = vmatpush.bf16.msra.mxu0 %v3678
  %4004 = vmatpush.bf16.msra.mxu0 %v3674
  %4005 = vmatpush.bf16.msra.mxu0 %v3670
  %4006 = vmatpush.bf16.msra.mxu0 %v3666
  %4007 = vmatpush.bf16.msra.mxu0 %v3662
  %4008 = vmatpush.bf16.msra.mxu0 %v3658
  %4009 = vmatpush.bf16.msra.mxu0 %v3654
  %4010 = vmatmul.bf16.gmra.mxu0 %v3093
  %v4011 = vpop.f32.mrf.mxu0
  %v4012 = vadd.f32 %v3998, %v4011
  %v4013 = vpop.f32.mrf.mxu0
  %v4014 = vadd.f32 %v4000, %v4013
  %4015 = vdwg.mxu0
  %4016 = vmatpush.bf16.msra.mxu0 %v3714
  %4017 = vmatpush.bf16.msra.mxu0 %v3710
  %4018 = vmatpush.bf16.msra.mxu0 %v3706
  %4019 = vmatpush.bf16.msra.mxu0 %v3702
  %4020 = vmatpush.bf16.msra.mxu0 %v3698
  %4021 = vmatpush.bf16.msra.mxu0 %v3694
  %4022 = vmatpush.bf16.msra.mxu0 %v3690
  %4023 = vmatpush.bf16.msra.mxu0 %v3686
  %4024 = vmatmul.bf16.gmra.mxu0 %v3094
  %v4025 = vpop.f32.mrf.mxu0
  %v4026 = vadd.f32 %v4012, %v4025
  %v4027 = vpop.f32.mrf.mxu0
  %v4028 = vadd.f32 %v4014, %v4027
  %4029 = vdwg.mxu0
  %4030 = vmatpush.bf16.msra.mxu0 %v3746
  %4031 = vmatpush.bf16.msra.mxu0 %v3742
  %4032 = vmatpush.bf16.msra.mxu0 %v3738
  %4033 = vmatpush.bf16.msra.mxu0 %v3734
  %4034 = vmatpush.bf16.msra.mxu0 %v3730
  %4035 = vmatpush.bf16.msra.mxu0 %v3726
  %4036 = vmatpush.bf16.msra.mxu0 %v3722
  %4037 = vmatpush.bf16.msra.mxu0 %v3718
  %4038 = vmatmul.bf16.gmra.mxu0 %v3095
  %v4039 = vpop.f32.mrf.mxu0
  %v4040 = vadd.f32 %v4026, %v4039
  %v4041 = vpop.f32.mrf.mxu0
  %v4042 = vadd.f32 %v4028, %v4041
  %4043 = vdwg.mxu0
  %4044 = vmatpush.bf16.msra.mxu0 %v3651
  %4045 = vmatpush.bf16.msra.mxu0 %v3647
  %4046 = vmatpush.bf16.msra.mxu0 %v3643
  %4047 = vmatpush.bf16.msra.mxu0 %v3639
  %4048 = vmatpush.bf16.msra.mxu0 %v3635
  %4049 = vmatpush.bf16.msra.mxu0 %v3631
  %4050 = vmatpush.bf16.msra.mxu0 %v3627
  %4051 = vmatpush.bf16.msra.mxu0 %v3623
  %4052 = vmatmul.bf16.gmra.mxu0 %v3092
  %v4053 = vpop.f32.mrf.mxu0
  %v4054 = vadd.f32 %v3231, %v4053
  %v4055 = vpop.f32.mrf.mxu0
  %v4056 = vadd.f32 %v3231, %v4055
  %4057 = vdwg.mxu0
  %4058 = vmatpush.bf16.msra.mxu0 %v3683
  %4059 = vmatpush.bf16.msra.mxu0 %v3679
  %4060 = vmatpush.bf16.msra.mxu0 %v3675
  %4061 = vmatpush.bf16.msra.mxu0 %v3671
  %4062 = vmatpush.bf16.msra.mxu0 %v3667
  %4063 = vmatpush.bf16.msra.mxu0 %v3663
  %4064 = vmatpush.bf16.msra.mxu0 %v3659
  %4065 = vmatpush.bf16.msra.mxu0 %v3655
  %4066 = vmatmul.bf16.gmra.mxu0 %v3093
  %v4067 = vpop.f32.mrf.mxu0
  %v4068 = vadd.f32 %v4054, %v4067
  %v4069 = vpop.f32.mrf.mxu0
  %v4070 = vadd.f32 %v4056, %v4069
  %4071 = vdwg.mxu0
  %4072 = vmatpush.bf16.msra.mxu0 %v3715
  %4073 = vmatpush.bf16.msra.mxu0 %v3711
  %4074 = vmatpush.bf16.msra.mxu0 %v3707
  %4075 = vmatpush.bf16.msra.mxu0 %v3703
  %4076 = vmatpush.bf16.msra.mxu0 %v3699
  %4077 = vmatpush.bf16.msra.mxu0 %v3695
  %4078 = vmatpush.bf16.msra.mxu0 %v3691
  %4079 = vmatpush.bf16.msra.mxu0 %v3687
  %4080 = vmatmul.bf16.gmra.mxu0 %v3094
  %v4081 = vpop.f32.mrf.mxu0
  %v4082 = vadd.f32 %v4068, %v4081
  %v4083 = vpop.f32.mrf.mxu0
  %v4084 = vadd.f32 %v4070, %v4083
  %4085 = vdwg.mxu0
  %4086 = vmatpush.bf16.msra.mxu0 %v3747
  %4087 = vmatpush.bf16.msra.mxu0 %v3743
  %4088 = vmatpush.bf16.msra.mxu0 %v3739
  %4089 = vmatpush.bf16.msra.mxu0 %v3735
  %4090 = vmatpush.bf16.msra.mxu0 %v3731
  %4091 = vmatpush.bf16.msra.mxu0 %v3727
  %4092 = vmatpush.bf16.msra.mxu0 %v3723
  %4093 = vmatpush.bf16.msra.mxu0 %v3719
  %4094 = vmatmul.bf16.gmra.mxu0 %v3095
  %v4095 = vpop.f32.mrf.mxu0
  %v4096 = vadd.f32 %v4082, %v4095
  %v4097 = vpop.f32.mrf.mxu0
  %v4098 = vadd.f32 %v4084, %v4097
  %4099 = vdwg.mxu0
  %v4100 = vmax.f32 %v3928, 0.0
  %v4101 = vmax.f32 %v3984, 0.0
  %v4102 = vmax.f32 %v4040, 0.0
  %v4103 = vmax.f32 %v4096, 0.0
  %v4104 = vmax.f32 %v3930, 0.0
  %v4105 = vmax.f32 %v3986, 0.0
  %v4106 = vmax.f32 %v4042, 0.0
  %v4107 = vmax.f32 %v4098, 0.0
  %v4108 = vpack.c.bf16 %v4104, %v4100
  %v4109 = vpack.c.bf16 %v4105, %v4101
  %v4110 = vpack.c.bf16 %v4106, %v4102
  %v4111 = vpack.c.bf16 %v4107, %v4103
  %s4112 = scalar_lea.vmem %s1, 4096
  %v4113 = vld [vmem:[%s4112] sm:$0xff]
  %v4114 = vld [vmem:[%s4112 + $0x8] sm:$0xff]
  %v4115 = vld [vmem:[%s4112 + $0x10] sm:$0xff]
  %v4116 = vld [vmem:[%s4112 + $0x18] sm:$0xff]
  %v4117 = vld [vmem:[%s4112 + $0x20] sm:$0xff]
  %v4118 = vld [vmem:[%s4112 + $0x28] sm:$0xff]
  %v4119 = vld [vmem:[%s4112 + $0x30] sm:$0xff]
  %v4120 = vld [vmem:[%s4112 + $0x38] sm:$0xff]
  %v4121 = vld [vmem:[%s4112 + $0x40] sm:$0xff]
  %v4122 = vld [vmem:[%s4112 + $0x48] sm:$0xff]
  %v4123 = vld [vmem:[%s4112 + $0x50] sm:$0xff]
  %v4124 = vld [vmem:[%s4112 + $0x58] sm:$0xff]
  %v4125 = vld [vmem:[%s4112 + $0x60] sm:$0xff]
  %v4126 = vld [vmem:[%s4112 + $0x68] sm:$0xff]
  %v4127 = vld [vmem:[%s4112 + $0x70] sm:$0xff]
  %v4128 = vld [vmem:[%s4112 + $0x78] sm:$0xff]
  %v4129 = vld [vmem:[%s4112 + $0x80] sm:$0xff]
  %v4130 = vld [vmem:[%s4112 + $0x88] sm:$0xff]
  %v4131 = vld [vmem:[%s4112 + $0x90] sm:$0xff]
  %v4132 = vld [vmem:[%s4112 + $0x98] sm:$0xff]
  %v4133 = vld [vmem:[%s4112 + $0xa0] sm:$0xff]
  %v4134 = vld [vmem:[%s4112 + $0xa8] sm:$0xff]
  %v4135 = vld [vmem:[%s4112 + $0xb0] sm:$0xff]
  %v4136 = vld [vmem:[%s4112 + $0xb8] sm:$0xff]
  %v4137 = vld [vmem:[%s4112 + $0xc0] sm:$0xff]
  %v4138 = vld [vmem:[%s4112 + $0xc8] sm:$0xff]
  %v4139 = vld [vmem:[%s4112 + $0xd0] sm:$0xff]
  %v4140 = vld [vmem:[%s4112 + $0xd8] sm:$0xff]
  %v4141 = vld [vmem:[%s4112 + $0xe0] sm:$0xff]
  %v4142 = vld [vmem:[%s4112 + $0xe8] sm:$0xff]
  %v4143 = vld [vmem:[%s4112 + $0xf0] sm:$0xff]
  %v4144 = vld [vmem:[%s4112 + $0xf8] sm:$0xff]
  %v4145 = vld [vmem:[%s4112 + $0x100] sm:$0xff]
  %v4146 = vld [vmem:[%s4112 + $0x108] sm:$0xff]
  %v4147 = vld [vmem:[%s4112 + $0x110] sm:$0xff]
  %v4148 = vld [vmem:[%s4112 + $0x118] sm:$0xff]
  %v4149 = vld [vmem:[%s4112 + $0x120] sm:$0xff]
  %v4150 = vld [vmem:[%s4112 + $0x128] sm:$0xff]
  %v4151 = vld [vmem:[%s4112 + $0x130] sm:$0xff]
  %v4152 = vld [vmem:[%s4112 + $0x138] sm:$0xff]
  %v4153 = vld [vmem:[%s4112 + $0x140] sm:$0xff]
  %v4154 = vld [vmem:[%s4112 + $0x148] sm:$0xff]
  %v4155 = vld [vmem:[%s4112 + $0x150] sm:$0xff]
  %v4156 = vld [vmem:[%s4112 + $0x158] sm:$0xff]
  %v4157 = vld [vmem:[%s4112 + $0x160] sm:$0xff]
  %v4158 = vld [vmem:[%s4112 + $0x168] sm:$0xff]
  %v4159 = vld [vmem:[%s4112 + $0x170] sm:$0xff]
  %v4160 = vld [vmem:[%s4112 + $0x178] sm:$0xff]
  %v4161 = vld [vmem:[%s4112 + $0x180] sm:$0xff]
  %v4162 = vld [vmem:[%s4112 + $0x188] sm:$0xff]
  %v4163 = vld [vmem:[%s4112 + $0x190] sm:$0xff]
  %v4164 = vld [vmem:[%s4112 + $0x198] sm:$0xff]
  %v4165 = vld [vmem:[%s4112 + $0x1a0] sm:$0xff]
  %v4166 = vld [vmem:[%s4112 + $0x1a8] sm:$0xff]
  %v4167 = vld [vmem:[%s4112 + $0x1b0] sm:$0xff]
  %v4168 = vld [vmem:[%s4112 + $0x1b8] sm:$0xff]
  %v4169 = vld [vmem:[%s4112 + $0x1c0] sm:$0xff]
  %v4170 = vld [vmem:[%s4112 + $0x1c8] sm:$0xff]
  %v4171 = vld [vmem:[%s4112 + $0x1d0] sm:$0xff]
  %v4172 = vld [vmem:[%s4112 + $0x1d8] sm:$0xff]
  %v4173 = vld [vmem:[%s4112 + $0x1e0] sm:$0xff]
  %v4174 = vld [vmem:[%s4112 + $0x1e8] sm:$0xff]
  %v4175 = vld [vmem:[%s4112 + $0x1f0] sm:$0xff]
  %v4176 = vld [vmem:[%s4112 + $0x1f8] sm:$0xff]
  %v4177 = vld [vmem:[%s4112 + $0x200] sm:$0xff]
  %v4178 = vld [vmem:[%s4112 + $0x208] sm:$0xff]
  %v4179 = vld [vmem:[%s4112 + $0x210] sm:$0xff]
  %v4180 = vld [vmem:[%s4112 + $0x218] sm:$0xff]
  %v4181 = vld [vmem:[%s4112 + $0x220] sm:$0xff]
  %v4182 = vld [vmem:[%s4112 + $0x228] sm:$0xff]
  %v4183 = vld [vmem:[%s4112 + $0x230] sm:$0xff]
  %v4184 = vld [vmem:[%s4112 + $0x238] sm:$0xff]
  %v4185 = vld [vmem:[%s4112 + $0x240] sm:$0xff]
  %v4186 = vld [vmem:[%s4112 + $0x248] sm:$0xff]
  %v4187 = vld [vmem:[%s4112 + $0x250] sm:$0xff]
  %v4188 = vld [vmem:[%s4112 + $0x258] sm:$0xff]
  %v4189 = vld [vmem:[%s4112 + $0x260] sm:$0xff]
  %v4190 = vld [vmem:[%s4112 + $0x268] sm:$0xff]
  %v4191 = vld [vmem:[%s4112 + $0x270] sm:$0xff]
  %v4192 = vld [vmem:[%s4112 + $0x278] sm:$0xff]
  %v4193 = vld [vmem:[%s4112 + $0x280] sm:$0xff]
  %v4194 = vld [vmem:[%s4112 + $0x288] sm:$0xff]
  %v4195 = vld [vmem:[%s4112 + $0x290] sm:$0xff]
  %v4196 = vld [vmem:[%s4112 + $0x298] sm:$0xff]
  %v4197 = vld [vmem:[%s4112 + $0x2a0] sm:$0xff]
  %v4198 = vld [vmem:[%s4112 + $0x2a8] sm:$0xff]
  %v4199 = vld [vmem:[%s4112 + $0x2b0] sm:$0xff]
  %v4200 = vld [vmem:[%s4112 + $0x2b8] sm:$0xff]
  %v4201 = vld [vmem:[%s4112 + $0x2c0] sm:$0xff]
  %v4202 = vld [vmem:[%s4112 + $0x2c8] sm:$0xff]
  %v4203 = vld [vmem:[%s4112 + $0x2d0] sm:$0xff]
  %v4204 = vld [vmem:[%s4112 + $0x2d8] sm:$0xff]
  %v4205 = vld [vmem:[%s4112 + $0x2e0] sm:$0xff]
  %v4206 = vld [vmem:[%s4112 + $0x2e8] sm:$0xff]
  %v4207 = vld [vmem:[%s4112 + $0x2f0] sm:$0xff]
  %v4208 = vld [vmem:[%s4112 + $0x2f8] sm:$0xff]
  %v4209 = vld [vmem:[%s4112 + $0x300] sm:$0xff]
  %v4210 = vld [vmem:[%s4112 + $0x308] sm:$0xff]
  %v4211 = vld [vmem:[%s4112 + $0x310] sm:$0xff]
  %v4212 = vld [vmem:[%s4112 + $0x318] sm:$0xff]
  %v4213 = vld [vmem:[%s4112 + $0x320] sm:$0xff]
  %v4214 = vld [vmem:[%s4112 + $0x328] sm:$0xff]
  %v4215 = vld [vmem:[%s4112 + $0x330] sm:$0xff]
  %v4216 = vld [vmem:[%s4112 + $0x338] sm:$0xff]
  %v4217 = vld [vmem:[%s4112 + $0x340] sm:$0xff]
  %v4218 = vld [vmem:[%s4112 + $0x348] sm:$0xff]
  %v4219 = vld [vmem:[%s4112 + $0x350] sm:$0xff]
  %v4220 = vld [vmem:[%s4112 + $0x358] sm:$0xff]
  %v4221 = vld [vmem:[%s4112 + $0x360] sm:$0xff]
  %v4222 = vld [vmem:[%s4112 + $0x368] sm:$0xff]
  %v4223 = vld [vmem:[%s4112 + $0x370] sm:$0xff]
  %v4224 = vld [vmem:[%s4112 + $0x378] sm:$0xff]
  %v4225 = vld [vmem:[%s4112 + $0x380] sm:$0xff]
  %v4226 = vld [vmem:[%s4112 + $0x388] sm:$0xff]
  %v4227 = vld [vmem:[%s4112 + $0x390] sm:$0xff]
  %v4228 = vld [vmem:[%s4112 + $0x398] sm:$0xff]
  %v4229 = vld [vmem:[%s4112 + $0x3a0] sm:$0xff]
  %v4230 = vld [vmem:[%s4112 + $0x3a8] sm:$0xff]
  %v4231 = vld [vmem:[%s4112 + $0x3b0] sm:$0xff]
  %v4232 = vld [vmem:[%s4112 + $0x3b8] sm:$0xff]
  %v4233 = vld [vmem:[%s4112 + $0x3c0] sm:$0xff]
  %v4234 = vld [vmem:[%s4112 + $0x3c8] sm:$0xff]
  %v4235 = vld [vmem:[%s4112 + $0x3d0] sm:$0xff]
  %v4236 = vld [vmem:[%s4112 + $0x3d8] sm:$0xff]
  %v4237 = vld [vmem:[%s4112 + $0x3e0] sm:$0xff]
  %v4238 = vld [vmem:[%s4112 + $0x3e8] sm:$0xff]
  %v4239 = vld [vmem:[%s4112 + $0x3f0] sm:$0xff]
  %v4240 = vld [vmem:[%s4112 + $0x3f8] sm:$0xff]
  %s4241 = scalar_lea.vmem %s2, 16
  %v4242 = vld [vmem:[%s4241] sm:$0xf]
  %v4244 = vperm.slane %v4242, 0
  %v4245 = vperm.slane %v4242, 1
  %v4246 = vperm.slane %v4242, 2
  %v4247 = vperm.slane %v4242, 3
  %v4380 = vunpack.c.l.b16 %v4113
  %v4381 = vunpack.c.h.b16 %v4113
  %v4382 = vunpack.c.l.b16 %v4114
  %v4383 = vunpack.c.h.b16 %v4114
  %v4384 = vunpack.c.l.b16 %v4115
  %v4385 = vunpack.c.h.b16 %v4115
  %v4386 = vunpack.c.l.b16 %v4116
  %v4387 = vunpack.c.h.b16 %v4116
  %v4388 = vunpack.c.l.b16 %v4117
  %v4389 = vunpack.c.h.b16 %v4117
  %v4390 = vunpack.c.l.b16 %v4118
  %v4391 = vunpack.c.h.b16 %v4118
  %v4392 = vunpack.c.l.b16 %v4119
  %v4393 = vunpack.c.h.b16 %v4119
  %v4394 = vunpack.c.l.b16 %v4120
  %v4395 = vunpack.c.h.b16 %v4120
  %v4396 = vunpack.c.l.b16 %v4121
  %v4397 = vunpack.c.h.b16 %v4121
  %v4398 = vunpack.c.l.b16 %v4122
  %v4399 = vunpack.c.h.b16 %v4122
  %v4400 = vunpack.c.l.b16 %v4123
  %v4401 = vunpack.c.h.b16 %v4123
  %v4402 = vunpack.c.l.b16 %v4124
  %v4403 = vunpack.c.h.b16 %v4124
  %v4404 = vunpack.c.l.b16 %v4125
  %v4405 = vunpack.c.h.b16 %v4125
  %v4406 = vunpack.c.l.b16 %v4126
  %v4407 = vunpack.c.h.b16 %v4126
  %v4408 = vunpack.c.l.b16 %v4127
  %v4409 = vunpack.c.h.b16 %v4127
  %v4410 = vunpack.c.l.b16 %v4128
  %v4411 = vunpack.c.h.b16 %v4128
  %v4412 = vunpack.c.l.b16 %v4129
  %v4413 = vunpack.c.h.b16 %v4129
  %v4414 = vunpack.c.l.b16 %v4130
  %v4415 = vunpack.c.h.b16 %v4130
  %v4416 = vunpack.c.l.b16 %v4131
  %v4417 = vunpack.c.h.b16 %v4131
  %v4418 = vunpack.c.l.b16 %v4132
  %v4419 = vunpack.c.h.b16 %v4132
  %v4420 = vunpack.c.l.b16 %v4133
  %v4421 = vunpack.c.h.b16 %v4133
  %v4422 = vunpack.c.l.b16 %v4134
  %v4423 = vunpack.c.h.b16 %v4134
  %v4424 = vunpack.c.l.b16 %v4135
  %v4425 = vunpack.c.h.b16 %v4135
  %v4426 = vunpack.c.l.b16 %v4136
  %v4427 = vunpack.c.h.b16 %v4136
  %v4428 = vunpack.c.l.b16 %v4137
  %v4429 = vunpack.c.h.b16 %v4137
  %v4430 = vunpack.c.l.b16 %v4138
  %v4431 = vunpack.c.h.b16 %v4138
  %v4432 = vunpack.c.l.b16 %v4139
  %v4433 = vunpack.c.h.b16 %v4139
  %v4434 = vunpack.c.l.b16 %v4140
  %v4435 = vunpack.c.h.b16 %v4140
  %v4436 = vunpack.c.l.b16 %v4141
  %v4437 = vunpack.c.h.b16 %v4141
  %v4438 = vunpack.c.l.b16 %v4142
  %v4439 = vunpack.c.h.b16 %v4142
  %v4440 = vunpack.c.l.b16 %v4143
  %v4441 = vunpack.c.h.b16 %v4143
  %v4442 = vunpack.c.l.b16 %v4144
  %v4443 = vunpack.c.h.b16 %v4144
  %v4444 = vunpack.c.l.b16 %v4145
  %v4445 = vunpack.c.h.b16 %v4145
  %v4446 = vunpack.c.l.b16 %v4146
  %v4447 = vunpack.c.h.b16 %v4146
  %v4448 = vunpack.c.l.b16 %v4147
  %v4449 = vunpack.c.h.b16 %v4147
  %v4450 = vunpack.c.l.b16 %v4148
  %v4451 = vunpack.c.h.b16 %v4148
  %v4452 = vunpack.c.l.b16 %v4149
  %v4453 = vunpack.c.h.b16 %v4149
  %v4454 = vunpack.c.l.b16 %v4150
  %v4455 = vunpack.c.h.b16 %v4150
  %v4456 = vunpack.c.l.b16 %v4151
  %v4457 = vunpack.c.h.b16 %v4151
  %v4458 = vunpack.c.l.b16 %v4152
  %v4459 = vunpack.c.h.b16 %v4152
  %v4460 = vunpack.c.l.b16 %v4153
  %v4461 = vunpack.c.h.b16 %v4153
  %v4462 = vunpack.c.l.b16 %v4154
  %v4463 = vunpack.c.h.b16 %v4154
  %v4464 = vunpack.c.l.b16 %v4155
  %v4465 = vunpack.c.h.b16 %v4155
  %v4466 = vunpack.c.l.b16 %v4156
  %v4467 = vunpack.c.h.b16 %v4156
  %v4468 = vunpack.c.l.b16 %v4157
  %v4469 = vunpack.c.h.b16 %v4157
  %v4470 = vunpack.c.l.b16 %v4158
  %v4471 = vunpack.c.h.b16 %v4158
  %v4472 = vunpack.c.l.b16 %v4159
  %v4473 = vunpack.c.h.b16 %v4159
  %v4474 = vunpack.c.l.b16 %v4160
  %v4475 = vunpack.c.h.b16 %v4160
  %v4476 = vunpack.c.l.b16 %v4161
  %v4477 = vunpack.c.h.b16 %v4161
  %v4478 = vunpack.c.l.b16 %v4162
  %v4479 = vunpack.c.h.b16 %v4162
  %v4480 = vunpack.c.l.b16 %v4163
  %v4481 = vunpack.c.h.b16 %v4163
  %v4482 = vunpack.c.l.b16 %v4164
  %v4483 = vunpack.c.h.b16 %v4164
  %v4484 = vunpack.c.l.b16 %v4165
  %v4485 = vunpack.c.h.b16 %v4165
  %v4486 = vunpack.c.l.b16 %v4166
  %v4487 = vunpack.c.h.b16 %v4166
  %v4488 = vunpack.c.l.b16 %v4167
  %v4489 = vunpack.c.h.b16 %v4167
  %v4490 = vunpack.c.l.b16 %v4168
  %v4491 = vunpack.c.h.b16 %v4168
  %v4492 = vunpack.c.l.b16 %v4169
  %v4493 = vunpack.c.h.b16 %v4169
  %v4494 = vunpack.c.l.b16 %v4170
  %v4495 = vunpack.c.h.b16 %v4170
  %v4496 = vunpack.c.l.b16 %v4171
  %v4497 = vunpack.c.h.b16 %v4171
  %v4498 = vunpack.c.l.b16 %v4172
  %v4499 = vunpack.c.h.b16 %v4172
  %v4500 = vunpack.c.l.b16 %v4173
  %v4501 = vunpack.c.h.b16 %v4173
  %v4502 = vunpack.c.l.b16 %v4174
  %v4503 = vunpack.c.h.b16 %v4174
  %v4504 = vunpack.c.l.b16 %v4175
  %v4505 = vunpack.c.h.b16 %v4175
  %v4506 = vunpack.c.l.b16 %v4176
  %v4507 = vunpack.c.h.b16 %v4176
  %v4508 = vunpack.c.l.b16 %v4177
  %v4509 = vunpack.c.h.b16 %v4177
  %v4510 = vunpack.c.l.b16 %v4178
  %v4511 = vunpack.c.h.b16 %v4178
  %v4512 = vunpack.c.l.b16 %v4179
  %v4513 = vunpack.c.h.b16 %v4179
  %v4514 = vunpack.c.l.b16 %v4180
  %v4515 = vunpack.c.h.b16 %v4180
  %v4516 = vunpack.c.l.b16 %v4181
  %v4517 = vunpack.c.h.b16 %v4181
  %v4518 = vunpack.c.l.b16 %v4182
  %v4519 = vunpack.c.h.b16 %v4182
  %v4520 = vunpack.c.l.b16 %v4183
  %v4521 = vunpack.c.h.b16 %v4183
  %v4522 = vunpack.c.l.b16 %v4184
  %v4523 = vunpack.c.h.b16 %v4184
  %v4524 = vunpack.c.l.b16 %v4185
  %v4525 = vunpack.c.h.b16 %v4185
  %v4526 = vunpack.c.l.b16 %v4186
  %v4527 = vunpack.c.h.b16 %v4186
  %v4528 = vunpack.c.l.b16 %v4187
  %v4529 = vunpack.c.h.b16 %v4187
  %v4530 = vunpack.c.l.b16 %v4188
  %v4531 = vunpack.c.h.b16 %v4188
  %v4532 = vunpack.c.l.b16 %v4189
  %v4533 = vunpack.c.h.b16 %v4189
  %v4534 = vunpack.c.l.b16 %v4190
  %v4535 = vunpack.c.h.b16 %v4190
  %v4536 = vunpack.c.l.b16 %v4191
  %v4537 = vunpack.c.h.b16 %v4191
  %v4538 = vunpack.c.l.b16 %v4192
  %v4539 = vunpack.c.h.b16 %v4192
  %v4540 = vunpack.c.l.b16 %v4193
  %v4541 = vunpack.c.h.b16 %v4193
  %v4542 = vunpack.c.l.b16 %v4194
  %v4543 = vunpack.c.h.b16 %v4194
  %v4544 = vunpack.c.l.b16 %v4195
  %v4545 = vunpack.c.h.b16 %v4195
  %v4546 = vunpack.c.l.b16 %v4196
  %v4547 = vunpack.c.h.b16 %v4196
  %v4548 = vunpack.c.l.b16 %v4197
  %v4549 = vunpack.c.h.b16 %v4197
  %v4550 = vunpack.c.l.b16 %v4198
  %v4551 = vunpack.c.h.b16 %v4198
  %v4552 = vunpack.c.l.b16 %v4199
  %v4553 = vunpack.c.h.b16 %v4199
  %v4554 = vunpack.c.l.b16 %v4200
  %v4555 = vunpack.c.h.b16 %v4200
  %v4556 = vunpack.c.l.b16 %v4201
  %v4557 = vunpack.c.h.b16 %v4201
  %v4558 = vunpack.c.l.b16 %v4202
  %v4559 = vunpack.c.h.b16 %v4202
  %v4560 = vunpack.c.l.b16 %v4203
  %v4561 = vunpack.c.h.b16 %v4203
  %v4562 = vunpack.c.l.b16 %v4204
  %v4563 = vunpack.c.h.b16 %v4204
  %v4564 = vunpack.c.l.b16 %v4205
  %v4565 = vunpack.c.h.b16 %v4205
  %v4566 = vunpack.c.l.b16 %v4206
  %v4567 = vunpack.c.h.b16 %v4206
  %v4568 = vunpack.c.l.b16 %v4207
  %v4569 = vunpack.c.h.b16 %v4207
  %v4570 = vunpack.c.l.b16 %v4208
  %v4571 = vunpack.c.h.b16 %v4208
  %v4572 = vunpack.c.l.b16 %v4209
  %v4573 = vunpack.c.h.b16 %v4209
  %v4574 = vunpack.c.l.b16 %v4210
  %v4575 = vunpack.c.h.b16 %v4210
  %v4576 = vunpack.c.l.b16 %v4211
  %v4577 = vunpack.c.h.b16 %v4211
  %v4578 = vunpack.c.l.b16 %v4212
  %v4579 = vunpack.c.h.b16 %v4212
  %v4580 = vunpack.c.l.b16 %v4213
  %v4581 = vunpack.c.h.b16 %v4213
  %v4582 = vunpack.c.l.b16 %v4214
  %v4583 = vunpack.c.h.b16 %v4214
  %v4584 = vunpack.c.l.b16 %v4215
  %v4585 = vunpack.c.h.b16 %v4215
  %v4586 = vunpack.c.l.b16 %v4216
  %v4587 = vunpack.c.h.b16 %v4216
  %v4588 = vunpack.c.l.b16 %v4217
  %v4589 = vunpack.c.h.b16 %v4217
  %v4590 = vunpack.c.l.b16 %v4218
  %v4591 = vunpack.c.h.b16 %v4218
  %v4592 = vunpack.c.l.b16 %v4219
  %v4593 = vunpack.c.h.b16 %v4219
  %v4594 = vunpack.c.l.b16 %v4220
  %v4595 = vunpack.c.h.b16 %v4220
  %v4596 = vunpack.c.l.b16 %v4221
  %v4597 = vunpack.c.h.b16 %v4221
  %v4598 = vunpack.c.l.b16 %v4222
  %v4599 = vunpack.c.h.b16 %v4222
  %v4600 = vunpack.c.l.b16 %v4223
  %v4601 = vunpack.c.h.b16 %v4223
  %v4602 = vunpack.c.l.b16 %v4224
  %v4603 = vunpack.c.h.b16 %v4224
  %v4604 = vunpack.c.l.b16 %v4225
  %v4605 = vunpack.c.h.b16 %v4225
  %v4606 = vunpack.c.l.b16 %v4226
  %v4607 = vunpack.c.h.b16 %v4226
  %v4608 = vunpack.c.l.b16 %v4227
  %v4609 = vunpack.c.h.b16 %v4227
  %v4610 = vunpack.c.l.b16 %v4228
  %v4611 = vunpack.c.h.b16 %v4228
  %v4612 = vunpack.c.l.b16 %v4229
  %v4613 = vunpack.c.h.b16 %v4229
  %v4614 = vunpack.c.l.b16 %v4230
  %v4615 = vunpack.c.h.b16 %v4230
  %v4616 = vunpack.c.l.b16 %v4231
  %v4617 = vunpack.c.h.b16 %v4231
  %v4618 = vunpack.c.l.b16 %v4232
  %v4619 = vunpack.c.h.b16 %v4232
  %v4620 = vunpack.c.l.b16 %v4233
  %v4621 = vunpack.c.h.b16 %v4233
  %v4622 = vunpack.c.l.b16 %v4234
  %v4623 = vunpack.c.h.b16 %v4234
  %v4624 = vunpack.c.l.b16 %v4235
  %v4625 = vunpack.c.h.b16 %v4235
  %v4626 = vunpack.c.l.b16 %v4236
  %v4627 = vunpack.c.h.b16 %v4236
  %v4628 = vunpack.c.l.b16 %v4237
  %v4629 = vunpack.c.h.b16 %v4237
  %v4630 = vunpack.c.l.b16 %v4238
  %v4631 = vunpack.c.h.b16 %v4238
  %v4632 = vunpack.c.l.b16 %v4239
  %v4633 = vunpack.c.h.b16 %v4239
  %v4634 = vunpack.c.l.b16 %v4240
  %v4635 = vunpack.c.h.b16 %v4240
  %v4636 = vpack.c.b16 %v4384, %v4380
  %v4637 = vpack.c.b16 %v4385, %v4381
  %v4638 = vpack.c.b16 %v4386, %v4382
  %v4639 = vpack.c.b16 %v4387, %v4383
  %v4640 = vpack.c.b16 %v4392, %v4388
  %v4641 = vpack.c.b16 %v4393, %v4389
  %v4642 = vpack.c.b16 %v4394, %v4390
  %v4643 = vpack.c.b16 %v4395, %v4391
  %v4644 = vpack.c.b16 %v4400, %v4396
  %v4645 = vpack.c.b16 %v4401, %v4397
  %v4646 = vpack.c.b16 %v4402, %v4398
  %v4647 = vpack.c.b16 %v4403, %v4399
  %v4648 = vpack.c.b16 %v4408, %v4404
  %v4649 = vpack.c.b16 %v4409, %v4405
  %v4650 = vpack.c.b16 %v4410, %v4406
  %v4651 = vpack.c.b16 %v4411, %v4407
  %v4652 = vpack.c.b16 %v4416, %v4412
  %v4653 = vpack.c.b16 %v4417, %v4413
  %v4654 = vpack.c.b16 %v4418, %v4414
  %v4655 = vpack.c.b16 %v4419, %v4415
  %v4656 = vpack.c.b16 %v4424, %v4420
  %v4657 = vpack.c.b16 %v4425, %v4421
  %v4658 = vpack.c.b16 %v4426, %v4422
  %v4659 = vpack.c.b16 %v4427, %v4423
  %v4660 = vpack.c.b16 %v4432, %v4428
  %v4661 = vpack.c.b16 %v4433, %v4429
  %v4662 = vpack.c.b16 %v4434, %v4430
  %v4663 = vpack.c.b16 %v4435, %v4431
  %v4664 = vpack.c.b16 %v4440, %v4436
  %v4665 = vpack.c.b16 %v4441, %v4437
  %v4666 = vpack.c.b16 %v4442, %v4438
  %v4667 = vpack.c.b16 %v4443, %v4439
  %v4668 = vpack.c.b16 %v4448, %v4444
  %v4669 = vpack.c.b16 %v4449, %v4445
  %v4670 = vpack.c.b16 %v4450, %v4446
  %v4671 = vpack.c.b16 %v4451, %v4447
  %v4672 = vpack.c.b16 %v4456, %v4452
  %v4673 = vpack.c.b16 %v4457, %v4453
  %v4674 = vpack.c.b16 %v4458, %v4454
  %v4675 = vpack.c.b16 %v4459, %v4455
  %v4676 = vpack.c.b16 %v4464, %v4460
  %v4677 = vpack.c.b16 %v4465, %v4461
  %v4678 = vpack.c.b16 %v4466, %v4462
  %v4679 = vpack.c.b16 %v4467, %v4463
  %v4680 = vpack.c.b16 %v4472, %v4468
  %v4681 = vpack.c.b16 %v4473, %v4469
  %v4682 = vpack.c.b16 %v4474, %v4470
  %v4683 = vpack.c.b16 %v4475, %v4471
  %v4684 = vpack.c.b16 %v4480, %v4476
  %v4685 = vpack.c.b16 %v4481, %v4477
  %v4686 = vpack.c.b16 %v4482, %v4478
  %v4687 = vpack.c.b16 %v4483, %v4479
  %v4688 = vpack.c.b16 %v4488, %v4484
  %v4689 = vpack.c.b16 %v4489, %v4485
  %v4690 = vpack.c.b16 %v4490, %v4486
  %v4691 = vpack.c.b16 %v4491, %v4487
  %v4692 = vpack.c.b16 %v4496, %v4492
  %v4693 = vpack.c.b16 %v4497, %v4493
  %v4694 = vpack.c.b16 %v4498, %v4494
  %v4695 = vpack.c.b16 %v4499, %v4495
  %v4696 = vpack.c.b16 %v4504, %v4500
  %v4697 = vpack.c.b16 %v4505, %v4501
  %v4698 = vpack.c.b16 %v4506, %v4502
  %v4699 = vpack.c.b16 %v4507, %v4503
  %v4700 = vpack.c.b16 %v4512, %v4508
  %v4701 = vpack.c.b16 %v4513, %v4509
  %v4702 = vpack.c.b16 %v4514, %v4510
  %v4703 = vpack.c.b16 %v4515, %v4511
  %v4704 = vpack.c.b16 %v4520, %v4516
  %v4705 = vpack.c.b16 %v4521, %v4517
  %v4706 = vpack.c.b16 %v4522, %v4518
  %v4707 = vpack.c.b16 %v4523, %v4519
  %v4708 = vpack.c.b16 %v4528, %v4524
  %v4709 = vpack.c.b16 %v4529, %v4525
  %v4710 = vpack.c.b16 %v4530, %v4526
  %v4711 = vpack.c.b16 %v4531, %v4527
  %v4712 = vpack.c.b16 %v4536, %v4532
  %v4713 = vpack.c.b16 %v4537, %v4533
  %v4714 = vpack.c.b16 %v4538, %v4534
  %v4715 = vpack.c.b16 %v4539, %v4535
  %v4716 = vpack.c.b16 %v4544, %v4540
  %v4717 = vpack.c.b16 %v4545, %v4541
  %v4718 = vpack.c.b16 %v4546, %v4542
  %v4719 = vpack.c.b16 %v4547, %v4543
  %v4720 = vpack.c.b16 %v4552, %v4548
  %v4721 = vpack.c.b16 %v4553, %v4549
  %v4722 = vpack.c.b16 %v4554, %v4550
  %v4723 = vpack.c.b16 %v4555, %v4551
  %v4724 = vpack.c.b16 %v4560, %v4556
  %v4725 = vpack.c.b16 %v4561, %v4557
  %v4726 = vpack.c.b16 %v4562, %v4558
  %v4727 = vpack.c.b16 %v4563, %v4559
  %v4728 = vpack.c.b16 %v4568, %v4564
  %v4729 = vpack.c.b16 %v4569, %v4565
  %v4730 = vpack.c.b16 %v4570, %v4566
  %v4731 = vpack.c.b16 %v4571, %v4567
  %v4732 = vpack.c.b16 %v4576, %v4572
  %v4733 = vpack.c.b16 %v4577, %v4573
  %v4734 = vpack.c.b16 %v4578, %v4574
  %v4735 = vpack.c.b16 %v4579, %v4575
  %v4736 = vpack.c.b16 %v4584, %v4580
  %v4737 = vpack.c.b16 %v4585, %v4581
  %v4738 = vpack.c.b16 %v4586, %v4582
  %v4739 = vpack.c.b16 %v4587, %v4583
  %v4740 = vpack.c.b16 %v4592, %v4588
  %v4741 = vpack.c.b16 %v4593, %v4589
  %v4742 = vpack.c.b16 %v4594, %v4590
  %v4743 = vpack.c.b16 %v4595, %v4591
  %v4744 = vpack.c.b16 %v4600, %v4596
  %v4745 = vpack.c.b16 %v4601, %v4597
  %v4746 = vpack.c.b16 %v4602, %v4598
  %v4747 = vpack.c.b16 %v4603, %v4599
  %v4748 = vpack.c.b16 %v4608, %v4604
  %v4749 = vpack.c.b16 %v4609, %v4605
  %v4750 = vpack.c.b16 %v4610, %v4606
  %v4751 = vpack.c.b16 %v4611, %v4607
  %v4752 = vpack.c.b16 %v4616, %v4612
  %v4753 = vpack.c.b16 %v4617, %v4613
  %v4754 = vpack.c.b16 %v4618, %v4614
  %v4755 = vpack.c.b16 %v4619, %v4615
  %v4756 = vpack.c.b16 %v4624, %v4620
  %v4757 = vpack.c.b16 %v4625, %v4621
  %v4758 = vpack.c.b16 %v4626, %v4622
  %v4759 = vpack.c.b16 %v4627, %v4623
  %v4760 = vpack.c.b16 %v4632, %v4628
  %v4761 = vpack.c.b16 %v4633, %v4629
  %v4762 = vpack.c.b16 %v4634, %v4630
  %v4763 = vpack.c.b16 %v4635, %v4631
  %4892 = vmatpush.bf16.msra.mxu0 %v4664
  %4893 = vmatpush.bf16.msra.mxu0 %v4660
  %4894 = vmatpush.bf16.msra.mxu0 %v4656
  %4895 = vmatpush.bf16.msra.mxu0 %v4652
  %4896 = vmatpush.bf16.msra.mxu0 %v4648
  %4897 = vmatpush.bf16.msra.mxu0 %v4644
  %4898 = vmatpush.bf16.msra.mxu0 %v4640
  %4899 = vmatpush.bf16.msra.mxu0 %v4636
  %4900 = vmatmul.bf16.gmra.mxu0 %v4108
  %v4901 = vpop.f32.mrf.mxu0
  %v4902 = vadd.f32 %v4244, %v4901
  %v4903 = vpop.f32.mrf.mxu0
  %v4904 = vadd.f32 %v4244, %v4903
  %4905 = vdwg.mxu0
  %4906 = vmatpush.bf16.msra.mxu0 %v4696
  %4907 = vmatpush.bf16.msra.mxu0 %v4692
  %4908 = vmatpush.bf16.msra.mxu0 %v4688
  %4909 = vmatpush.bf16.msra.mxu0 %v4684
  %4910 = vmatpush.bf16.msra.mxu0 %v4680
  %4911 = vmatpush.bf16.msra.mxu0 %v4676
  %4912 = vmatpush.bf16.msra.mxu0 %v4672
  %4913 = vmatpush.bf16.msra.mxu0 %v4668
  %4914 = vmatmul.bf16.gmra.mxu0 %v4109
  %v4915 = vpop.f32.mrf.mxu0
  %v4916 = vadd.f32 %v4902, %v4915
  %v4917 = vpop.f32.mrf.mxu0
  %v4918 = vadd.f32 %v4904, %v4917
  %4919 = vdwg.mxu0
  %4920 = vmatpush.bf16.msra.mxu0 %v4728
  %4921 = vmatpush.bf16.msra.mxu0 %v4724
  %4922 = vmatpush.bf16.msra.mxu0 %v4720
  %4923 = vmatpush.bf16.msra.mxu0 %v4716
  %4924 = vmatpush.bf16.msra.mxu0 %v4712
  %4925 = vmatpush.bf16.msra.mxu0 %v4708
  %4926 = vmatpush.bf16.msra.mxu0 %v4704
  %4927 = vmatpush.bf16.msra.mxu0 %v4700
  %4928 = vmatmul.bf16.gmra.mxu0 %v4110
  %v4929 = vpop.f32.mrf.mxu0
  %v4930 = vadd.f32 %v4916, %v4929
  %v4931 = vpop.f32.mrf.mxu0
  %v4932 = vadd.f32 %v4918, %v4931
  %4933 = vdwg.mxu0
  %4934 = vmatpush.bf16.msra.mxu0 %v4760
  %4935 = vmatpush.bf16.msra.mxu0 %v4756
  %4936 = vmatpush.bf16.msra.mxu0 %v4752
  %4937 = vmatpush.bf16.msra.mxu0 %v4748
  %4938 = vmatpush.bf16.msra.mxu0 %v4744
  %4939 = vmatpush.bf16.msra.mxu0 %v4740
  %4940 = vmatpush.bf16.msra.mxu0 %v4736
  %4941 = vmatpush.bf16.msra.mxu0 %v4732
  %4942 = vmatmul.bf16.gmra.mxu0 %v4111
  %v4943 = vpop.f32.mrf.mxu0
  %v4944 = vadd.f32 %v4930, %v4943
  %v4945 = vpop.f32.mrf.mxu0
  %v4946 = vadd.f32 %v4932, %v4945
  %4947 = vdwg.mxu0
  %4948 = vmatpush.bf16.msra.mxu0 %v4665
  %4949 = vmatpush.bf16.msra.mxu0 %v4661
  %4950 = vmatpush.bf16.msra.mxu0 %v4657
  %4951 = vmatpush.bf16.msra.mxu0 %v4653
  %4952 = vmatpush.bf16.msra.mxu0 %v4649
  %4953 = vmatpush.bf16.msra.mxu0 %v4645
  %4954 = vmatpush.bf16.msra.mxu0 %v4641
  %4955 = vmatpush.bf16.msra.mxu0 %v4637
  %4956 = vmatmul.bf16.gmra.mxu0 %v4108
  %v4957 = vpop.f32.mrf.mxu0
  %v4958 = vadd.f32 %v4245, %v4957
  %v4959 = vpop.f32.mrf.mxu0
  %v4960 = vadd.f32 %v4245, %v4959
  %4961 = vdwg.mxu0
  %4962 = vmatpush.bf16.msra.mxu0 %v4697
  %4963 = vmatpush.bf16.msra.mxu0 %v4693
  %4964 = vmatpush.bf16.msra.mxu0 %v4689
  %4965 = vmatpush.bf16.msra.mxu0 %v4685
  %4966 = vmatpush.bf16.msra.mxu0 %v4681
  %4967 = vmatpush.bf16.msra.mxu0 %v4677
  %4968 = vmatpush.bf16.msra.mxu0 %v4673
  %4969 = vmatpush.bf16.msra.mxu0 %v4669
  %4970 = vmatmul.bf16.gmra.mxu0 %v4109
  %v4971 = vpop.f32.mrf.mxu0
  %v4972 = vadd.f32 %v4958, %v4971
  %v4973 = vpop.f32.mrf.mxu0
  %v4974 = vadd.f32 %v4960, %v4973
  %4975 = vdwg.mxu0
  %4976 = vmatpush.bf16.msra.mxu0 %v4729
  %4977 = vmatpush.bf16.msra.mxu0 %v4725
  %4978 = vmatpush.bf16.msra.mxu0 %v4721
  %4979 = vmatpush.bf16.msra.mxu0 %v4717
  %4980 = vmatpush.bf16.msra.mxu0 %v4713
  %4981 = vmatpush.bf16.msra.mxu0 %v4709
  %4982 = vmatpush.bf16.msra.mxu0 %v4705
  %4983 = vmatpush.bf16.msra.mxu0 %v4701
  %4984 = vmatmul.bf16.gmra.mxu0 %v4110
  %v4985 = vpop.f32.mrf.mxu0
  %v4986 = vadd.f32 %v4972, %v4985
  %v4987 = vpop.f32.mrf.mxu0
  %v4988 = vadd.f32 %v4974, %v4987
  %4989 = vdwg.mxu0
  %4990 = vmatpush.bf16.msra.mxu0 %v4761
  %4991 = vmatpush.bf16.msra.mxu0 %v4757
  %4992 = vmatpush.bf16.msra.mxu0 %v4753
  %4993 = vmatpush.bf16.msra.mxu0 %v4749
  %4994 = vmatpush.bf16.msra.mxu0 %v4745
  %4995 = vmatpush.bf16.msra.mxu0 %v4741
  %4996 = vmatpush.bf16.msra.mxu0 %v4737
  %4997 = vmatpush.bf16.msra.mxu0 %v4733
  %4998 = vmatmul.bf16.gmra.mxu0 %v4111
  %v4999 = vpop.f32.mrf.mxu0
  %v5000 = vadd.f32 %v4986, %v4999
  %v5001 = vpop.f32.mrf.mxu0
  %v5002 = vadd.f32 %v4988, %v5001
  %5003 = vdwg.mxu0
  %5004 = vmatpush.bf16.msra.mxu0 %v4666
  %5005 = vmatpush.bf16.msra.mxu0 %v4662
  %5006 = vmatpush.bf16.msra.mxu0 %v4658
  %5007 = vmatpush.bf16.msra.mxu0 %v4654
  %5008 = vmatpush.bf16.msra.mxu0 %v4650
  %5009 = vmatpush.bf16.msra.mxu0 %v4646
  %5010 = vmatpush.bf16.msra.mxu0 %v4642
  %5011 = vmatpush.bf16.msra.mxu0 %v4638
  %5012 = vmatmul.bf16.gmra.mxu0 %v4108
  %v5013 = vpop.f32.mrf.mxu0
  %v5014 = vadd.f32 %v4246, %v5013
  %v5015 = vpop.f32.mrf.mxu0
  %v5016 = vadd.f32 %v4246, %v5015
  %5017 = vdwg.mxu0
  %5018 = vmatpush.bf16.msra.mxu0 %v4698
  %5019 = vmatpush.bf16.msra.mxu0 %v4694
  %5020 = vmatpush.bf16.msra.mxu0 %v4690
  %5021 = vmatpush.bf16.msra.mxu0 %v4686
  %5022 = vmatpush.bf16.msra.mxu0 %v4682
  %5023 = vmatpush.bf16.msra.mxu0 %v4678
  %5024 = vmatpush.bf16.msra.mxu0 %v4674
  %5025 = vmatpush.bf16.msra.mxu0 %v4670
  %5026 = vmatmul.bf16.gmra.mxu0 %v4109
  %v5027 = vpop.f32.mrf.mxu0
  %v5028 = vadd.f32 %v5014, %v5027
  %v5029 = vpop.f32.mrf.mxu0
  %v5030 = vadd.f32 %v5016, %v5029
  %5031 = vdwg.mxu0
  %5032 = vmatpush.bf16.msra.mxu0 %v4730
  %5033 = vmatpush.bf16.msra.mxu0 %v4726
  %5034 = vmatpush.bf16.msra.mxu0 %v4722
  %5035 = vmatpush.bf16.msra.mxu0 %v4718
  %5036 = vmatpush.bf16.msra.mxu0 %v4714
  %5037 = vmatpush.bf16.msra.mxu0 %v4710
  %5038 = vmatpush.bf16.msra.mxu0 %v4706
  %5039 = vmatpush.bf16.msra.mxu0 %v4702
  %5040 = vmatmul.bf16.gmra.mxu0 %v4110
  %v5041 = vpop.f32.mrf.mxu0
  %v5042 = vadd.f32 %v5028, %v5041
  %v5043 = vpop.f32.mrf.mxu0
  %v5044 = vadd.f32 %v5030, %v5043
  %5045 = vdwg.mxu0
  %5046 = vmatpush.bf16.msra.mxu0 %v4762
  %5047 = vmatpush.bf16.msra.mxu0 %v4758
  %5048 = vmatpush.bf16.msra.mxu0 %v4754
  %5049 = vmatpush.bf16.msra.mxu0 %v4750
  %5050 = vmatpush.bf16.msra.mxu0 %v4746
  %5051 = vmatpush.bf16.msra.mxu0 %v4742
  %5052 = vmatpush.bf16.msra.mxu0 %v4738
  %5053 = vmatpush.bf16.msra.mxu0 %v4734
  %5054 = vmatmul.bf16.gmra.mxu0 %v4111
  %v5055 = vpop.f32.mrf.mxu0
  %v5056 = vadd.f32 %v5042, %v5055
  %v5057 = vpop.f32.mrf.mxu0
  %v5058 = vadd.f32 %v5044, %v5057
  %5059 = vdwg.mxu0
  %5060 = vmatpush.bf16.msra.mxu0 %v4667
  %5061 = vmatpush.bf16.msra.mxu0 %v4663
  %5062 = vmatpush.bf16.msra.mxu0 %v4659
  %5063 = vmatpush.bf16.msra.mxu0 %v4655
  %5064 = vmatpush.bf16.msra.mxu0 %v4651
  %5065 = vmatpush.bf16.msra.mxu0 %v4647
  %5066 = vmatpush.bf16.msra.mxu0 %v4643
  %5067 = vmatpush.bf16.msra.mxu0 %v4639
  %5068 = vmatmul.bf16.gmra.mxu0 %v4108
  %v5069 = vpop.f32.mrf.mxu0
  %v5070 = vadd.f32 %v4247, %v5069
  %v5071 = vpop.f32.mrf.mxu0
  %v5072 = vadd.f32 %v4247, %v5071
  %5073 = vdwg.mxu0
  %5074 = vmatpush.bf16.msra.mxu0 %v4699
  %5075 = vmatpush.bf16.msra.mxu0 %v4695
  %5076 = vmatpush.bf16.msra.mxu0 %v4691
  %5077 = vmatpush.bf16.msra.mxu0 %v4687
  %5078 = vmatpush.bf16.msra.mxu0 %v4683
  %5079 = vmatpush.bf16.msra.mxu0 %v4679
  %5080 = vmatpush.bf16.msra.mxu0 %v4675
  %5081 = vmatpush.bf16.msra.mxu0 %v4671
  %5082 = vmatmul.bf16.gmra.mxu0 %v4109
  %v5083 = vpop.f32.mrf.mxu0
  %v5084 = vadd.f32 %v5070, %v5083
  %v5085 = vpop.f32.mrf.mxu0
  %v5086 = vadd.f32 %v5072, %v5085
  %5087 = vdwg.mxu0
  %5088 = vmatpush.bf16.msra.mxu0 %v4731
  %5089 = vmatpush.bf16.msra.mxu0 %v4727
  %5090 = vmatpush.bf16.msra.mxu0 %v4723
  %5091 = vmatpush.bf16.msra.mxu0 %v4719
  %5092 = vmatpush.bf16.msra.mxu0 %v4715
  %5093 = vmatpush.bf16.msra.mxu0 %v4711
  %5094 = vmatpush.bf16.msra.mxu0 %v4707
  %5095 = vmatpush.bf16.msra.mxu0 %v4703
  %5096 = vmatmul.bf16.gmra.mxu0 %v4110
  %v5097 = vpop.f32.mrf.mxu0
  %v5098 = vadd.f32 %v5084, %v5097
  %v5099 = vpop.f32.mrf.mxu0
  %v5100 = vadd.f32 %v5086, %v5099
  %5101 = vdwg.mxu0
  %5102 = vmatpush.bf16.msra.mxu0 %v4763
  %5103 = vmatpush.bf16.msra.mxu0 %v4759
  %5104 = vmatpush.bf16.msra.mxu0 %v4755
  %5105 = vmatpush.bf16.msra.mxu0 %v4751
  %5106 = vmatpush.bf16.msra.mxu0 %v4747
  %5107 = vmatpush.bf16.msra.mxu0 %v4743
  %5108 = vmatpush.bf16.msra.mxu0 %v4739
  %5109 = vmatpush.bf16.msra.mxu0 %v4735
  %5110 = vmatmul.bf16.gmra.mxu0 %v4111
  %v5111 = vpop.f32.mrf.mxu0
  %v5112 = vadd.f32 %v5098, %v5111
  %v5113 = vpop.f32.mrf.mxu0
  %v5114 = vadd.f32 %v5100, %v5113
  %5115 = vdwg.mxu0
  %v5116 = vmax.f32 %v4944, 0.0
  %v5117 = vmax.f32 %v5000, 0.0
  %v5118 = vmax.f32 %v5056, 0.0
  %v5119 = vmax.f32 %v5112, 0.0
  %v5120 = vmax.f32 %v4946, 0.0
  %v5121 = vmax.f32 %v5002, 0.0
  %v5122 = vmax.f32 %v5058, 0.0
  %v5123 = vmax.f32 %v5114, 0.0
  %v5124 = vpack.c.bf16 %v5120, %v5116
  %v5125 = vpack.c.bf16 %v5121, %v5117
  %v5126 = vpack.c.bf16 %v5122, %v5118
  %v5127 = vpack.c.bf16 %v5123, %v5119
  %s5128 = scalar_lea.vmem %s1, 5120
  %v5129 = vld [vmem:[%s5128] sm:$0xff]
  %v5130 = vld [vmem:[%s5128 + $0x8] sm:$0xff]
  %v5131 = vld [vmem:[%s5128 + $0x10] sm:$0xff]
  %v5132 = vld [vmem:[%s5128 + $0x18] sm:$0xff]
  %v5133 = vld [vmem:[%s5128 + $0x20] sm:$0xff]
  %v5134 = vld [vmem:[%s5128 + $0x28] sm:$0xff]
  %v5135 = vld [vmem:[%s5128 + $0x30] sm:$0xff]
  %v5136 = vld [vmem:[%s5128 + $0x38] sm:$0xff]
  %v5137 = vld [vmem:[%s5128 + $0x40] sm:$0xff]
  %v5138 = vld [vmem:[%s5128 + $0x48] sm:$0xff]
  %v5139 = vld [vmem:[%s5128 + $0x50] sm:$0xff]
  %v5140 = vld [vmem:[%s5128 + $0x58] sm:$0xff]
  %v5141 = vld [vmem:[%s5128 + $0x60] sm:$0xff]
  %v5142 = vld [vmem:[%s5128 + $0x68] sm:$0xff]
  %v5143 = vld [vmem:[%s5128 + $0x70] sm:$0xff]
  %v5144 = vld [vmem:[%s5128 + $0x78] sm:$0xff]
  %v5145 = vld [vmem:[%s5128 + $0x80] sm:$0xff]
  %v5146 = vld [vmem:[%s5128 + $0x88] sm:$0xff]
  %v5147 = vld [vmem:[%s5128 + $0x90] sm:$0xff]
  %v5148 = vld [vmem:[%s5128 + $0x98] sm:$0xff]
  %v5149 = vld [vmem:[%s5128 + $0xa0] sm:$0xff]
  %v5150 = vld [vmem:[%s5128 + $0xa8] sm:$0xff]
  %v5151 = vld [vmem:[%s5128 + $0xb0] sm:$0xff]
  %v5152 = vld [vmem:[%s5128 + $0xb8] sm:$0xff]
  %v5153 = vld [vmem:[%s5128 + $0xc0] sm:$0xff]
  %v5154 = vld [vmem:[%s5128 + $0xc8] sm:$0xff]
  %v5155 = vld [vmem:[%s5128 + $0xd0] sm:$0xff]
  %v5156 = vld [vmem:[%s5128 + $0xd8] sm:$0xff]
  %v5157 = vld [vmem:[%s5128 + $0xe0] sm:$0xff]
  %v5158 = vld [vmem:[%s5128 + $0xe8] sm:$0xff]
  %v5159 = vld [vmem:[%s5128 + $0xf0] sm:$0xff]
  %v5160 = vld [vmem:[%s5128 + $0xf8] sm:$0xff]
  %v5161 = vld [vmem:[%s5128 + $0x100] sm:$0xff]
  %v5162 = vld [vmem:[%s5128 + $0x108] sm:$0xff]
  %v5163 = vld [vmem:[%s5128 + $0x110] sm:$0xff]
  %v5164 = vld [vmem:[%s5128 + $0x118] sm:$0xff]
  %v5165 = vld [vmem:[%s5128 + $0x120] sm:$0xff]
  %v5166 = vld [vmem:[%s5128 + $0x128] sm:$0xff]
  %v5167 = vld [vmem:[%s5128 + $0x130] sm:$0xff]
  %v5168 = vld [vmem:[%s5128 + $0x138] sm:$0xff]
  %v5169 = vld [vmem:[%s5128 + $0x140] sm:$0xff]
  %v5170 = vld [vmem:[%s5128 + $0x148] sm:$0xff]
  %v5171 = vld [vmem:[%s5128 + $0x150] sm:$0xff]
  %v5172 = vld [vmem:[%s5128 + $0x158] sm:$0xff]
  %v5173 = vld [vmem:[%s5128 + $0x160] sm:$0xff]
  %v5174 = vld [vmem:[%s5128 + $0x168] sm:$0xff]
  %v5175 = vld [vmem:[%s5128 + $0x170] sm:$0xff]
  %v5176 = vld [vmem:[%s5128 + $0x178] sm:$0xff]
  %v5177 = vld [vmem:[%s5128 + $0x180] sm:$0xff]
  %v5178 = vld [vmem:[%s5128 + $0x188] sm:$0xff]
  %v5179 = vld [vmem:[%s5128 + $0x190] sm:$0xff]
  %v5180 = vld [vmem:[%s5128 + $0x198] sm:$0xff]
  %v5181 = vld [vmem:[%s5128 + $0x1a0] sm:$0xff]
  %v5182 = vld [vmem:[%s5128 + $0x1a8] sm:$0xff]
  %v5183 = vld [vmem:[%s5128 + $0x1b0] sm:$0xff]
  %v5184 = vld [vmem:[%s5128 + $0x1b8] sm:$0xff]
  %v5185 = vld [vmem:[%s5128 + $0x1c0] sm:$0xff]
  %v5186 = vld [vmem:[%s5128 + $0x1c8] sm:$0xff]
  %v5187 = vld [vmem:[%s5128 + $0x1d0] sm:$0xff]
  %v5188 = vld [vmem:[%s5128 + $0x1d8] sm:$0xff]
  %v5189 = vld [vmem:[%s5128 + $0x1e0] sm:$0xff]
  %v5190 = vld [vmem:[%s5128 + $0x1e8] sm:$0xff]
  %v5191 = vld [vmem:[%s5128 + $0x1f0] sm:$0xff]
  %v5192 = vld [vmem:[%s5128 + $0x1f8] sm:$0xff]
  %v5193 = vld [vmem:[%s5128 + $0x200] sm:$0xff]
  %v5194 = vld [vmem:[%s5128 + $0x208] sm:$0xff]
  %v5195 = vld [vmem:[%s5128 + $0x210] sm:$0xff]
  %v5196 = vld [vmem:[%s5128 + $0x218] sm:$0xff]
  %v5197 = vld [vmem:[%s5128 + $0x220] sm:$0xff]
  %v5198 = vld [vmem:[%s5128 + $0x228] sm:$0xff]
  %v5199 = vld [vmem:[%s5128 + $0x230] sm:$0xff]
  %v5200 = vld [vmem:[%s5128 + $0x238] sm:$0xff]
  %v5201 = vld [vmem:[%s5128 + $0x240] sm:$0xff]
  %v5202 = vld [vmem:[%s5128 + $0x248] sm:$0xff]
  %v5203 = vld [vmem:[%s5128 + $0x250] sm:$0xff]
  %v5204 = vld [vmem:[%s5128 + $0x258] sm:$0xff]
  %v5205 = vld [vmem:[%s5128 + $0x260] sm:$0xff]
  %v5206 = vld [vmem:[%s5128 + $0x268] sm:$0xff]
  %v5207 = vld [vmem:[%s5128 + $0x270] sm:$0xff]
  %v5208 = vld [vmem:[%s5128 + $0x278] sm:$0xff]
  %v5209 = vld [vmem:[%s5128 + $0x280] sm:$0xff]
  %v5210 = vld [vmem:[%s5128 + $0x288] sm:$0xff]
  %v5211 = vld [vmem:[%s5128 + $0x290] sm:$0xff]
  %v5212 = vld [vmem:[%s5128 + $0x298] sm:$0xff]
  %v5213 = vld [vmem:[%s5128 + $0x2a0] sm:$0xff]
  %v5214 = vld [vmem:[%s5128 + $0x2a8] sm:$0xff]
  %v5215 = vld [vmem:[%s5128 + $0x2b0] sm:$0xff]
  %v5216 = vld [vmem:[%s5128 + $0x2b8] sm:$0xff]
  %v5217 = vld [vmem:[%s5128 + $0x2c0] sm:$0xff]
  %v5218 = vld [vmem:[%s5128 + $0x2c8] sm:$0xff]
  %v5219 = vld [vmem:[%s5128 + $0x2d0] sm:$0xff]
  %v5220 = vld [vmem:[%s5128 + $0x2d8] sm:$0xff]
  %v5221 = vld [vmem:[%s5128 + $0x2e0] sm:$0xff]
  %v5222 = vld [vmem:[%s5128 + $0x2e8] sm:$0xff]
  %v5223 = vld [vmem:[%s5128 + $0x2f0] sm:$0xff]
  %v5224 = vld [vmem:[%s5128 + $0x2f8] sm:$0xff]
  %v5225 = vld [vmem:[%s5128 + $0x300] sm:$0xff]
  %v5226 = vld [vmem:[%s5128 + $0x308] sm:$0xff]
  %v5227 = vld [vmem:[%s5128 + $0x310] sm:$0xff]
  %v5228 = vld [vmem:[%s5128 + $0x318] sm:$0xff]
  %v5229 = vld [vmem:[%s5128 + $0x320] sm:$0xff]
  %v5230 = vld [vmem:[%s5128 + $0x328] sm:$0xff]
  %v5231 = vld [vmem:[%s5128 + $0x330] sm:$0xff]
  %v5232 = vld [vmem:[%s5128 + $0x338] sm:$0xff]
  %v5233 = vld [vmem:[%s5128 + $0x340] sm:$0xff]
  %v5234 = vld [vmem:[%s5128 + $0x348] sm:$0xff]
  %v5235 = vld [vmem:[%s5128 + $0x350] sm:$0xff]
  %v5236 = vld [vmem:[%s5128 + $0x358] sm:$0xff]
  %v5237 = vld [vmem:[%s5128 + $0x360] sm:$0xff]
  %v5238 = vld [vmem:[%s5128 + $0x368] sm:$0xff]
  %v5239 = vld [vmem:[%s5128 + $0x370] sm:$0xff]
  %v5240 = vld [vmem:[%s5128 + $0x378] sm:$0xff]
  %v5241 = vld [vmem:[%s5128 + $0x380] sm:$0xff]
  %v5242 = vld [vmem:[%s5128 + $0x388] sm:$0xff]
  %v5243 = vld [vmem:[%s5128 + $0x390] sm:$0xff]
  %v5244 = vld [vmem:[%s5128 + $0x398] sm:$0xff]
  %v5245 = vld [vmem:[%s5128 + $0x3a0] sm:$0xff]
  %v5246 = vld [vmem:[%s5128 + $0x3a8] sm:$0xff]
  %v5247 = vld [vmem:[%s5128 + $0x3b0] sm:$0xff]
  %v5248 = vld [vmem:[%s5128 + $0x3b8] sm:$0xff]
  %v5249 = vld [vmem:[%s5128 + $0x3c0] sm:$0xff]
  %v5250 = vld [vmem:[%s5128 + $0x3c8] sm:$0xff]
  %v5251 = vld [vmem:[%s5128 + $0x3d0] sm:$0xff]
  %v5252 = vld [vmem:[%s5128 + $0x3d8] sm:$0xff]
  %v5253 = vld [vmem:[%s5128 + $0x3e0] sm:$0xff]
  %v5254 = vld [vmem:[%s5128 + $0x3e8] sm:$0xff]
  %v5255 = vld [vmem:[%s5128 + $0x3f0] sm:$0xff]
  %v5256 = vld [vmem:[%s5128 + $0x3f8] sm:$0xff]
  %s5257 = scalar_lea.vmem %s2, 20
  %v5258 = vld [vmem:[%s5257] sm:$0xf]
  %v5260 = vperm.slane %v5258, 0
  %v5261 = vperm.slane %v5258, 1
  %v5262 = vperm.slane %v5258, 2
  %v5263 = vperm.slane %v5258, 3
  %v5396 = vunpack.c.l.b16 %v5129
  %v5397 = vunpack.c.h.b16 %v5129
  %v5398 = vunpack.c.l.b16 %v5130
  %v5399 = vunpack.c.h.b16 %v5130
  %v5400 = vunpack.c.l.b16 %v5131
  %v5401 = vunpack.c.h.b16 %v5131
  %v5402 = vunpack.c.l.b16 %v5132
  %v5403 = vunpack.c.h.b16 %v5132
  %v5404 = vunpack.c.l.b16 %v5133
  %v5405 = vunpack.c.h.b16 %v5133
  %v5406 = vunpack.c.l.b16 %v5134
  %v5407 = vunpack.c.h.b16 %v5134
  %v5408 = vunpack.c.l.b16 %v5135
  %v5409 = vunpack.c.h.b16 %v5135
  %v5410 = vunpack.c.l.b16 %v5136
  %v5411 = vunpack.c.h.b16 %v5136
  %v5412 = vunpack.c.l.b16 %v5137
  %v5413 = vunpack.c.h.b16 %v5137
  %v5414 = vunpack.c.l.b16 %v5138
  %v5415 = vunpack.c.h.b16 %v5138
  %v5416 = vunpack.c.l.b16 %v5139
  %v5417 = vunpack.c.h.b16 %v5139
  %v5418 = vunpack.c.l.b16 %v5140
  %v5419 = vunpack.c.h.b16 %v5140
  %v5420 = vunpack.c.l.b16 %v5141
  %v5421 = vunpack.c.h.b16 %v5141
  %v5422 = vunpack.c.l.b16 %v5142
  %v5423 = vunpack.c.h.b16 %v5142
  %v5424 = vunpack.c.l.b16 %v5143
  %v5425 = vunpack.c.h.b16 %v5143
  %v5426 = vunpack.c.l.b16 %v5144
  %v5427 = vunpack.c.h.b16 %v5144
  %v5428 = vunpack.c.l.b16 %v5145
  %v5429 = vunpack.c.h.b16 %v5145
  %v5430 = vunpack.c.l.b16 %v5146
  %v5431 = vunpack.c.h.b16 %v5146
  %v5432 = vunpack.c.l.b16 %v5147
  %v5433 = vunpack.c.h.b16 %v5147
  %v5434 = vunpack.c.l.b16 %v5148
  %v5435 = vunpack.c.h.b16 %v5148
  %v5436 = vunpack.c.l.b16 %v5149
  %v5437 = vunpack.c.h.b16 %v5149
  %v5438 = vunpack.c.l.b16 %v5150
  %v5439 = vunpack.c.h.b16 %v5150
  %v5440 = vunpack.c.l.b16 %v5151
  %v5441 = vunpack.c.h.b16 %v5151
  %v5442 = vunpack.c.l.b16 %v5152
  %v5443 = vunpack.c.h.b16 %v5152
  %v5444 = vunpack.c.l.b16 %v5153
  %v5445 = vunpack.c.h.b16 %v5153
  %v5446 = vunpack.c.l.b16 %v5154
  %v5447 = vunpack.c.h.b16 %v5154
  %v5448 = vunpack.c.l.b16 %v5155
  %v5449 = vunpack.c.h.b16 %v5155
  %v5450 = vunpack.c.l.b16 %v5156
  %v5451 = vunpack.c.h.b16 %v5156
  %v5452 = vunpack.c.l.b16 %v5157
  %v5453 = vunpack.c.h.b16 %v5157
  %v5454 = vunpack.c.l.b16 %v5158
  %v5455 = vunpack.c.h.b16 %v5158
  %v5456 = vunpack.c.l.b16 %v5159
  %v5457 = vunpack.c.h.b16 %v5159
  %v5458 = vunpack.c.l.b16 %v5160
  %v5459 = vunpack.c.h.b16 %v5160
  %v5460 = vunpack.c.l.b16 %v5161
  %v5461 = vunpack.c.h.b16 %v5161
  %v5462 = vunpack.c.l.b16 %v5162
  %v5463 = vunpack.c.h.b16 %v5162
  %v5464 = vunpack.c.l.b16 %v5163
  %v5465 = vunpack.c.h.b16 %v5163
  %v5466 = vunpack.c.l.b16 %v5164
  %v5467 = vunpack.c.h.b16 %v5164
  %v5468 = vunpack.c.l.b16 %v5165
  %v5469 = vunpack.c.h.b16 %v5165
  %v5470 = vunpack.c.l.b16 %v5166
  %v5471 = vunpack.c.h.b16 %v5166
  %v5472 = vunpack.c.l.b16 %v5167
  %v5473 = vunpack.c.h.b16 %v5167
  %v5474 = vunpack.c.l.b16 %v5168
  %v5475 = vunpack.c.h.b16 %v5168
  %v5476 = vunpack.c.l.b16 %v5169
  %v5477 = vunpack.c.h.b16 %v5169
  %v5478 = vunpack.c.l.b16 %v5170
  %v5479 = vunpack.c.h.b16 %v5170
  %v5480 = vunpack.c.l.b16 %v5171
  %v5481 = vunpack.c.h.b16 %v5171
  %v5482 = vunpack.c.l.b16 %v5172
  %v5483 = vunpack.c.h.b16 %v5172
  %v5484 = vunpack.c.l.b16 %v5173
  %v5485 = vunpack.c.h.b16 %v5173
  %v5486 = vunpack.c.l.b16 %v5174
  %v5487 = vunpack.c.h.b16 %v5174
  %v5488 = vunpack.c.l.b16 %v5175
  %v5489 = vunpack.c.h.b16 %v5175
  %v5490 = vunpack.c.l.b16 %v5176
  %v5491 = vunpack.c.h.b16 %v5176
  %v5492 = vunpack.c.l.b16 %v5177
  %v5493 = vunpack.c.h.b16 %v5177
  %v5494 = vunpack.c.l.b16 %v5178
  %v5495 = vunpack.c.h.b16 %v5178
  %v5496 = vunpack.c.l.b16 %v5179
  %v5497 = vunpack.c.h.b16 %v5179
  %v5498 = vunpack.c.l.b16 %v5180
  %v5499 = vunpack.c.h.b16 %v5180
  %v5500 = vunpack.c.l.b16 %v5181
  %v5501 = vunpack.c.h.b16 %v5181
  %v5502 = vunpack.c.l.b16 %v5182
  %v5503 = vunpack.c.h.b16 %v5182
  %v5504 = vunpack.c.l.b16 %v5183
  %v5505 = vunpack.c.h.b16 %v5183
  %v5506 = vunpack.c.l.b16 %v5184
  %v5507 = vunpack.c.h.b16 %v5184
  %v5508 = vunpack.c.l.b16 %v5185
  %v5509 = vunpack.c.h.b16 %v5185
  %v5510 = vunpack.c.l.b16 %v5186
  %v5511 = vunpack.c.h.b16 %v5186
  %v5512 = vunpack.c.l.b16 %v5187
  %v5513 = vunpack.c.h.b16 %v5187
  %v5514 = vunpack.c.l.b16 %v5188
  %v5515 = vunpack.c.h.b16 %v5188
  %v5516 = vunpack.c.l.b16 %v5189
  %v5517 = vunpack.c.h.b16 %v5189
  %v5518 = vunpack.c.l.b16 %v5190
  %v5519 = vunpack.c.h.b16 %v5190
  %v5520 = vunpack.c.l.b16 %v5191
  %v5521 = vunpack.c.h.b16 %v5191
  %v5522 = vunpack.c.l.b16 %v5192
  %v5523 = vunpack.c.h.b16 %v5192
  %v5524 = vunpack.c.l.b16 %v5193
  %v5525 = vunpack.c.h.b16 %v5193
  %v5526 = vunpack.c.l.b16 %v5194
  %v5527 = vunpack.c.h.b16 %v5194
  %v5528 = vunpack.c.l.b16 %v5195
  %v5529 = vunpack.c.h.b16 %v5195
  %v5530 = vunpack.c.l.b16 %v5196
  %v5531 = vunpack.c.h.b16 %v5196
  %v5532 = vunpack.c.l.b16 %v5197
  %v5533 = vunpack.c.h.b16 %v5197
  %v5534 = vunpack.c.l.b16 %v5198
  %v5535 = vunpack.c.h.b16 %v5198
  %v5536 = vunpack.c.l.b16 %v5199
  %v5537 = vunpack.c.h.b16 %v5199
  %v5538 = vunpack.c.l.b16 %v5200
  %v5539 = vunpack.c.h.b16 %v5200
  %v5540 = vunpack.c.l.b16 %v5201
  %v5541 = vunpack.c.h.b16 %v5201
  %v5542 = vunpack.c.l.b16 %v5202
  %v5543 = vunpack.c.h.b16 %v5202
  %v5544 = vunpack.c.l.b16 %v5203
  %v5545 = vunpack.c.h.b16 %v5203
  %v5546 = vunpack.c.l.b16 %v5204
  %v5547 = vunpack.c.h.b16 %v5204
  %v5548 = vunpack.c.l.b16 %v5205
  %v5549 = vunpack.c.h.b16 %v5205
  %v5550 = vunpack.c.l.b16 %v5206
  %v5551 = vunpack.c.h.b16 %v5206
  %v5552 = vunpack.c.l.b16 %v5207
  %v5553 = vunpack.c.h.b16 %v5207
  %v5554 = vunpack.c.l.b16 %v5208
  %v5555 = vunpack.c.h.b16 %v5208
  %v5556 = vunpack.c.l.b16 %v5209
  %v5557 = vunpack.c.h.b16 %v5209
  %v5558 = vunpack.c.l.b16 %v5210
  %v5559 = vunpack.c.h.b16 %v5210
  %v5560 = vunpack.c.l.b16 %v5211
  %v5561 = vunpack.c.h.b16 %v5211
  %v5562 = vunpack.c.l.b16 %v5212
  %v5563 = vunpack.c.h.b16 %v5212
  %v5564 = vunpack.c.l.b16 %v5213
  %v5565 = vunpack.c.h.b16 %v5213
  %v5566 = vunpack.c.l.b16 %v5214
  %v5567 = vunpack.c.h.b16 %v5214
  %v5568 = vunpack.c.l.b16 %v5215
  %v5569 = vunpack.c.h.b16 %v5215
  %v5570 = vunpack.c.l.b16 %v5216
  %v5571 = vunpack.c.h.b16 %v5216
  %v5572 = vunpack.c.l.b16 %v5217
  %v5573 = vunpack.c.h.b16 %v5217
  %v5574 = vunpack.c.l.b16 %v5218
  %v5575 = vunpack.c.h.b16 %v5218
  %v5576 = vunpack.c.l.b16 %v5219
  %v5577 = vunpack.c.h.b16 %v5219
  %v5578 = vunpack.c.l.b16 %v5220
  %v5579 = vunpack.c.h.b16 %v5220
  %v5580 = vunpack.c.l.b16 %v5221
  %v5581 = vunpack.c.h.b16 %v5221
  %v5582 = vunpack.c.l.b16 %v5222
  %v5583 = vunpack.c.h.b16 %v5222
  %v5584 = vunpack.c.l.b16 %v5223
  %v5585 = vunpack.c.h.b16 %v5223
  %v5586 = vunpack.c.l.b16 %v5224
  %v5587 = vunpack.c.h.b16 %v5224
  %v5588 = vunpack.c.l.b16 %v5225
  %v5589 = vunpack.c.h.b16 %v5225
  %v5590 = vunpack.c.l.b16 %v5226
  %v5591 = vunpack.c.h.b16 %v5226
  %v5592 = vunpack.c.l.b16 %v5227
  %v5593 = vunpack.c.h.b16 %v5227
  %v5594 = vunpack.c.l.b16 %v5228
  %v5595 = vunpack.c.h.b16 %v5228
  %v5596 = vunpack.c.l.b16 %v5229
  %v5597 = vunpack.c.h.b16 %v5229
  %v5598 = vunpack.c.l.b16 %v5230
  %v5599 = vunpack.c.h.b16 %v5230
  %v5600 = vunpack.c.l.b16 %v5231
  %v5601 = vunpack.c.h.b16 %v5231
  %v5602 = vunpack.c.l.b16 %v5232
  %v5603 = vunpack.c.h.b16 %v5232
  %v5604 = vunpack.c.l.b16 %v5233
  %v5605 = vunpack.c.h.b16 %v5233
  %v5606 = vunpack.c.l.b16 %v5234
  %v5607 = vunpack.c.h.b16 %v5234
  %v5608 = vunpack.c.l.b16 %v5235
  %v5609 = vunpack.c.h.b16 %v5235
  %v5610 = vunpack.c.l.b16 %v5236
  %v5611 = vunpack.c.h.b16 %v5236
  %v5612 = vunpack.c.l.b16 %v5237
  %v5613 = vunpack.c.h.b16 %v5237
  %v5614 = vunpack.c.l.b16 %v5238
  %v5615 = vunpack.c.h.b16 %v5238
  %v5616 = vunpack.c.l.b16 %v5239
  %v5617 = vunpack.c.h.b16 %v5239
  %v5618 = vunpack.c.l.b16 %v5240
  %v5619 = vunpack.c.h.b16 %v5240
  %v5620 = vunpack.c.l.b16 %v5241
  %v5621 = vunpack.c.h.b16 %v5241
  %v5622 = vunpack.c.l.b16 %v5242
  %v5623 = vunpack.c.h.b16 %v5242
  %v5624 = vunpack.c.l.b16 %v5243
  %v5625 = vunpack.c.h.b16 %v5243
  %v5626 = vunpack.c.l.b16 %v5244
  %v5627 = vunpack.c.h.b16 %v5244
  %v5628 = vunpack.c.l.b16 %v5245
  %v5629 = vunpack.c.h.b16 %v5245
  %v5630 = vunpack.c.l.b16 %v5246
  %v5631 = vunpack.c.h.b16 %v5246
  %v5632 = vunpack.c.l.b16 %v5247
  %v5633 = vunpack.c.h.b16 %v5247
  %v5634 = vunpack.c.l.b16 %v5248
  %v5635 = vunpack.c.h.b16 %v5248
  %v5636 = vunpack.c.l.b16 %v5249
  %v5637 = vunpack.c.h.b16 %v5249
  %v5638 = vunpack.c.l.b16 %v5250
  %v5639 = vunpack.c.h.b16 %v5250
  %v5640 = vunpack.c.l.b16 %v5251
  %v5641 = vunpack.c.h.b16 %v5251
  %v5642 = vunpack.c.l.b16 %v5252
  %v5643 = vunpack.c.h.b16 %v5252
  %v5644 = vunpack.c.l.b16 %v5253
  %v5645 = vunpack.c.h.b16 %v5253
  %v5646 = vunpack.c.l.b16 %v5254
  %v5647 = vunpack.c.h.b16 %v5254
  %v5648 = vunpack.c.l.b16 %v5255
  %v5649 = vunpack.c.h.b16 %v5255
  %v5650 = vunpack.c.l.b16 %v5256
  %v5651 = vunpack.c.h.b16 %v5256
  %v5652 = vpack.c.b16 %v5400, %v5396
  %v5653 = vpack.c.b16 %v5401, %v5397
  %v5654 = vpack.c.b16 %v5402, %v5398
  %v5655 = vpack.c.b16 %v5403, %v5399
  %v5656 = vpack.c.b16 %v5408, %v5404
  %v5657 = vpack.c.b16 %v5409, %v5405
  %v5658 = vpack.c.b16 %v5410, %v5406
  %v5659 = vpack.c.b16 %v5411, %v5407
  %v5660 = vpack.c.b16 %v5416, %v5412
  %v5661 = vpack.c.b16 %v5417, %v5413
  %v5662 = vpack.c.b16 %v5418, %v5414
  %v5663 = vpack.c.b16 %v5419, %v5415
  %v5664 = vpack.c.b16 %v5424, %v5420
  %v5665 = vpack.c.b16 %v5425, %v5421
  %v5666 = vpack.c.b16 %v5426, %v5422
  %v5667 = vpack.c.b16 %v5427, %v5423
  %v5668 = vpack.c.b16 %v5432, %v5428
  %v5669 = vpack.c.b16 %v5433, %v5429
  %v5670 = vpack.c.b16 %v5434, %v5430
  %v5671 = vpack.c.b16 %v5435, %v5431
  %v5672 = vpack.c.b16 %v5440, %v5436
  %v5673 = vpack.c.b16 %v5441, %v5437
  %v5674 = vpack.c.b16 %v5442, %v5438
  %v5675 = vpack.c.b16 %v5443, %v5439
  %v5676 = vpack.c.b16 %v5448, %v5444
  %v5677 = vpack.c.b16 %v5449, %v5445
  %v5678 = vpack.c.b16 %v5450, %v5446
  %v5679 = vpack.c.b16 %v5451, %v5447
  %v5680 = vpack.c.b16 %v5456, %v5452
  %v5681 = vpack.c.b16 %v5457, %v5453
  %v5682 = vpack.c.b16 %v5458, %v5454
  %v5683 = vpack.c.b16 %v5459, %v5455
  %v5684 = vpack.c.b16 %v5464, %v5460
  %v5685 = vpack.c.b16 %v5465, %v5461
  %v5686 = vpack.c.b16 %v5466, %v5462
  %v5687 = vpack.c.b16 %v5467, %v5463
  %v5688 = vpack.c.b16 %v5472, %v5468
  %v5689 = vpack.c.b16 %v5473, %v5469
  %v5690 = vpack.c.b16 %v5474, %v5470
  %v5691 = vpack.c.b16 %v5475, %v5471
  %v5692 = vpack.c.b16 %v5480, %v5476
  %v5693 = vpack.c.b16 %v5481, %v5477
  %v5694 = vpack.c.b16 %v5482, %v5478
  %v5695 = vpack.c.b16 %v5483, %v5479
  %v5696 = vpack.c.b16 %v5488, %v5484
  %v5697 = vpack.c.b16 %v5489, %v5485
  %v5698 = vpack.c.b16 %v5490, %v5486
  %v5699 = vpack.c.b16 %v5491, %v5487
  %v5700 = vpack.c.b16 %v5496, %v5492
  %v5701 = vpack.c.b16 %v5497, %v5493
  %v5702 = vpack.c.b16 %v5498, %v5494
  %v5703 = vpack.c.b16 %v5499, %v5495
  %v5704 = vpack.c.b16 %v5504, %v5500
  %v5705 = vpack.c.b16 %v5505, %v5501
  %v5706 = vpack.c.b16 %v5506, %v5502
  %v5707 = vpack.c.b16 %v5507, %v5503
  %v5708 = vpack.c.b16 %v5512, %v5508
  %v5709 = vpack.c.b16 %v5513, %v5509
  %v5710 = vpack.c.b16 %v5514, %v5510
  %v5711 = vpack.c.b16 %v5515, %v5511
  %v5712 = vpack.c.b16 %v5520, %v5516
  %v5713 = vpack.c.b16 %v5521, %v5517
  %v5714 = vpack.c.b16 %v5522, %v5518
  %v5715 = vpack.c.b16 %v5523, %v5519
  %v5716 = vpack.c.b16 %v5528, %v5524
  %v5717 = vpack.c.b16 %v5529, %v5525
  %v5718 = vpack.c.b16 %v5530, %v5526
  %v5719 = vpack.c.b16 %v5531, %v5527
  %v5720 = vpack.c.b16 %v5536, %v5532
  %v5721 = vpack.c.b16 %v5537, %v5533
  %v5722 = vpack.c.b16 %v5538, %v5534
  %v5723 = vpack.c.b16 %v5539, %v5535
  %v5724 = vpack.c.b16 %v5544, %v5540
  %v5725 = vpack.c.b16 %v5545, %v5541
  %v5726 = vpack.c.b16 %v5546, %v5542
  %v5727 = vpack.c.b16 %v5547, %v5543
  %v5728 = vpack.c.b16 %v5552, %v5548
  %v5729 = vpack.c.b16 %v5553, %v5549
  %v5730 = vpack.c.b16 %v5554, %v5550
  %v5731 = vpack.c.b16 %v5555, %v5551
  %v5732 = vpack.c.b16 %v5560, %v5556
  %v5733 = vpack.c.b16 %v5561, %v5557
  %v5734 = vpack.c.b16 %v5562, %v5558
  %v5735 = vpack.c.b16 %v5563, %v5559
  %v5736 = vpack.c.b16 %v5568, %v5564
  %v5737 = vpack.c.b16 %v5569, %v5565
  %v5738 = vpack.c.b16 %v5570, %v5566
  %v5739 = vpack.c.b16 %v5571, %v5567
  %v5740 = vpack.c.b16 %v5576, %v5572
  %v5741 = vpack.c.b16 %v5577, %v5573
  %v5742 = vpack.c.b16 %v5578, %v5574
  %v5743 = vpack.c.b16 %v5579, %v5575
  %v5744 = vpack.c.b16 %v5584, %v5580
  %v5745 = vpack.c.b16 %v5585, %v5581
  %v5746 = vpack.c.b16 %v5586, %v5582
  %v5747 = vpack.c.b16 %v5587, %v5583
  %v5748 = vpack.c.b16 %v5592, %v5588
  %v5749 = vpack.c.b16 %v5593, %v5589
  %v5750 = vpack.c.b16 %v5594, %v5590
  %v5751 = vpack.c.b16 %v5595, %v5591
  %v5752 = vpack.c.b16 %v5600, %v5596
  %v5753 = vpack.c.b16 %v5601, %v5597
  %v5754 = vpack.c.b16 %v5602, %v5598
  %v5755 = vpack.c.b16 %v5603, %v5599
  %v5756 = vpack.c.b16 %v5608, %v5604
  %v5757 = vpack.c.b16 %v5609, %v5605
  %v5758 = vpack.c.b16 %v5610, %v5606
  %v5759 = vpack.c.b16 %v5611, %v5607
  %v5760 = vpack.c.b16 %v5616, %v5612
  %v5761 = vpack.c.b16 %v5617, %v5613
  %v5762 = vpack.c.b16 %v5618, %v5614
  %v5763 = vpack.c.b16 %v5619, %v5615
  %v5764 = vpack.c.b16 %v5624, %v5620
  %v5765 = vpack.c.b16 %v5625, %v5621
  %v5766 = vpack.c.b16 %v5626, %v5622
  %v5767 = vpack.c.b16 %v5627, %v5623
  %v5768 = vpack.c.b16 %v5632, %v5628
  %v5769 = vpack.c.b16 %v5633, %v5629
  %v5770 = vpack.c.b16 %v5634, %v5630
  %v5771 = vpack.c.b16 %v5635, %v5631
  %v5772 = vpack.c.b16 %v5640, %v5636
  %v5773 = vpack.c.b16 %v5641, %v5637
  %v5774 = vpack.c.b16 %v5642, %v5638
  %v5775 = vpack.c.b16 %v5643, %v5639
  %v5776 = vpack.c.b16 %v5648, %v5644
  %v5777 = vpack.c.b16 %v5649, %v5645
  %v5778 = vpack.c.b16 %v5650, %v5646
  %v5779 = vpack.c.b16 %v5651, %v5647
  %5908 = vmatpush.bf16.msra.mxu0 %v5680
  %5909 = vmatpush.bf16.msra.mxu0 %v5676
  %5910 = vmatpush.bf16.msra.mxu0 %v5672
  %5911 = vmatpush.bf16.msra.mxu0 %v5668
  %5912 = vmatpush.bf16.msra.mxu0 %v5664
  %5913 = vmatpush.bf16.msra.mxu0 %v5660
  %5914 = vmatpush.bf16.msra.mxu0 %v5656
  %5915 = vmatpush.bf16.msra.mxu0 %v5652
  %5916 = vmatmul.bf16.gmra.mxu0 %v5124
  %v5917 = vpop.f32.mrf.mxu0
  %v5918 = vadd.f32 %v5260, %v5917
  %v5919 = vpop.f32.mrf.mxu0
  %v5920 = vadd.f32 %v5260, %v5919
  %5921 = vdwg.mxu0
  %5922 = vmatpush.bf16.msra.mxu0 %v5712
  %5923 = vmatpush.bf16.msra.mxu0 %v5708
  %5924 = vmatpush.bf16.msra.mxu0 %v5704
  %5925 = vmatpush.bf16.msra.mxu0 %v5700
  %5926 = vmatpush.bf16.msra.mxu0 %v5696
  %5927 = vmatpush.bf16.msra.mxu0 %v5692
  %5928 = vmatpush.bf16.msra.mxu0 %v5688
  %5929 = vmatpush.bf16.msra.mxu0 %v5684
  %5930 = vmatmul.bf16.gmra.mxu0 %v5125
  %v5931 = vpop.f32.mrf.mxu0
  %v5932 = vadd.f32 %v5918, %v5931
  %v5933 = vpop.f32.mrf.mxu0
  %v5934 = vadd.f32 %v5920, %v5933
  %5935 = vdwg.mxu0
  %5936 = vmatpush.bf16.msra.mxu0 %v5744
  %5937 = vmatpush.bf16.msra.mxu0 %v5740
  %5938 = vmatpush.bf16.msra.mxu0 %v5736
  %5939 = vmatpush.bf16.msra.mxu0 %v5732
  %5940 = vmatpush.bf16.msra.mxu0 %v5728
  %5941 = vmatpush.bf16.msra.mxu0 %v5724
  %5942 = vmatpush.bf16.msra.mxu0 %v5720
  %5943 = vmatpush.bf16.msra.mxu0 %v5716
  %5944 = vmatmul.bf16.gmra.mxu0 %v5126
  %v5945 = vpop.f32.mrf.mxu0
  %v5946 = vadd.f32 %v5932, %v5945
  %v5947 = vpop.f32.mrf.mxu0
  %v5948 = vadd.f32 %v5934, %v5947
  %5949 = vdwg.mxu0
  %5950 = vmatpush.bf16.msra.mxu0 %v5776
  %5951 = vmatpush.bf16.msra.mxu0 %v5772
  %5952 = vmatpush.bf16.msra.mxu0 %v5768
  %5953 = vmatpush.bf16.msra.mxu0 %v5764
  %5954 = vmatpush.bf16.msra.mxu0 %v5760
  %5955 = vmatpush.bf16.msra.mxu0 %v5756
  %5956 = vmatpush.bf16.msra.mxu0 %v5752
  %5957 = vmatpush.bf16.msra.mxu0 %v5748
  %5958 = vmatmul.bf16.gmra.mxu0 %v5127
  %v5959 = vpop.f32.mrf.mxu0
  %v5960 = vadd.f32 %v5946, %v5959
  %v5961 = vpop.f32.mrf.mxu0
  %v5962 = vadd.f32 %v5948, %v5961
  %5963 = vdwg.mxu0
  %5964 = vmatpush.bf16.msra.mxu0 %v5681
  %5965 = vmatpush.bf16.msra.mxu0 %v5677
  %5966 = vmatpush.bf16.msra.mxu0 %v5673
  %5967 = vmatpush.bf16.msra.mxu0 %v5669
  %5968 = vmatpush.bf16.msra.mxu0 %v5665
  %5969 = vmatpush.bf16.msra.mxu0 %v5661
  %5970 = vmatpush.bf16.msra.mxu0 %v5657
  %5971 = vmatpush.bf16.msra.mxu0 %v5653
  %5972 = vmatmul.bf16.gmra.mxu0 %v5124
  %v5973 = vpop.f32.mrf.mxu0
  %v5974 = vadd.f32 %v5261, %v5973
  %v5975 = vpop.f32.mrf.mxu0
  %v5976 = vadd.f32 %v5261, %v5975
  %5977 = vdwg.mxu0
  %5978 = vmatpush.bf16.msra.mxu0 %v5713
  %5979 = vmatpush.bf16.msra.mxu0 %v5709
  %5980 = vmatpush.bf16.msra.mxu0 %v5705
  %5981 = vmatpush.bf16.msra.mxu0 %v5701
  %5982 = vmatpush.bf16.msra.mxu0 %v5697
  %5983 = vmatpush.bf16.msra.mxu0 %v5693
  %5984 = vmatpush.bf16.msra.mxu0 %v5689
  %5985 = vmatpush.bf16.msra.mxu0 %v5685
  %5986 = vmatmul.bf16.gmra.mxu0 %v5125
  %v5987 = vpop.f32.mrf.mxu0
  %v5988 = vadd.f32 %v5974, %v5987
  %v5989 = vpop.f32.mrf.mxu0
  %v5990 = vadd.f32 %v5976, %v5989
  %5991 = vdwg.mxu0
  %5992 = vmatpush.bf16.msra.mxu0 %v5745
  %5993 = vmatpush.bf16.msra.mxu0 %v5741
  %5994 = vmatpush.bf16.msra.mxu0 %v5737
  %5995 = vmatpush.bf16.msra.mxu0 %v5733
  %5996 = vmatpush.bf16.msra.mxu0 %v5729
  %5997 = vmatpush.bf16.msra.mxu0 %v5725
  %5998 = vmatpush.bf16.msra.mxu0 %v5721
  %5999 = vmatpush.bf16.msra.mxu0 %v5717
  %6000 = vmatmul.bf16.gmra.mxu0 %v5126
  %v6001 = vpop.f32.mrf.mxu0
  %v6002 = vadd.f32 %v5988, %v6001
  %v6003 = vpop.f32.mrf.mxu0
  %v6004 = vadd.f32 %v5990, %v6003
  %6005 = vdwg.mxu0
  %6006 = vmatpush.bf16.msra.mxu0 %v5777
  %6007 = vmatpush.bf16.msra.mxu0 %v5773
  %6008 = vmatpush.bf16.msra.mxu0 %v5769
  %6009 = vmatpush.bf16.msra.mxu0 %v5765
  %6010 = vmatpush.bf16.msra.mxu0 %v5761
  %6011 = vmatpush.bf16.msra.mxu0 %v5757
  %6012 = vmatpush.bf16.msra.mxu0 %v5753
  %6013 = vmatpush.bf16.msra.mxu0 %v5749
  %6014 = vmatmul.bf16.gmra.mxu0 %v5127
  %v6015 = vpop.f32.mrf.mxu0
  %v6016 = vadd.f32 %v6002, %v6015
  %v6017 = vpop.f32.mrf.mxu0
  %v6018 = vadd.f32 %v6004, %v6017
  %6019 = vdwg.mxu0
  %6020 = vmatpush.bf16.msra.mxu0 %v5682
  %6021 = vmatpush.bf16.msra.mxu0 %v5678
  %6022 = vmatpush.bf16.msra.mxu0 %v5674
  %6023 = vmatpush.bf16.msra.mxu0 %v5670
  %6024 = vmatpush.bf16.msra.mxu0 %v5666
  %6025 = vmatpush.bf16.msra.mxu0 %v5662
  %6026 = vmatpush.bf16.msra.mxu0 %v5658
  %6027 = vmatpush.bf16.msra.mxu0 %v5654
  %6028 = vmatmul.bf16.gmra.mxu0 %v5124
  %v6029 = vpop.f32.mrf.mxu0
  %v6030 = vadd.f32 %v5262, %v6029
  %v6031 = vpop.f32.mrf.mxu0
  %v6032 = vadd.f32 %v5262, %v6031
  %6033 = vdwg.mxu0
  %6034 = vmatpush.bf16.msra.mxu0 %v5714
  %6035 = vmatpush.bf16.msra.mxu0 %v5710
  %6036 = vmatpush.bf16.msra.mxu0 %v5706
  %6037 = vmatpush.bf16.msra.mxu0 %v5702
  %6038 = vmatpush.bf16.msra.mxu0 %v5698
  %6039 = vmatpush.bf16.msra.mxu0 %v5694
  %6040 = vmatpush.bf16.msra.mxu0 %v5690
  %6041 = vmatpush.bf16.msra.mxu0 %v5686
  %6042 = vmatmul.bf16.gmra.mxu0 %v5125
  %v6043 = vpop.f32.mrf.mxu0
  %v6044 = vadd.f32 %v6030, %v6043
  %v6045 = vpop.f32.mrf.mxu0
  %v6046 = vadd.f32 %v6032, %v6045
  %6047 = vdwg.mxu0
  %6048 = vmatpush.bf16.msra.mxu0 %v5746
  %6049 = vmatpush.bf16.msra.mxu0 %v5742
  %6050 = vmatpush.bf16.msra.mxu0 %v5738
  %6051 = vmatpush.bf16.msra.mxu0 %v5734
  %6052 = vmatpush.bf16.msra.mxu0 %v5730
  %6053 = vmatpush.bf16.msra.mxu0 %v5726
  %6054 = vmatpush.bf16.msra.mxu0 %v5722
  %6055 = vmatpush.bf16.msra.mxu0 %v5718
  %6056 = vmatmul.bf16.gmra.mxu0 %v5126
  %v6057 = vpop.f32.mrf.mxu0
  %v6058 = vadd.f32 %v6044, %v6057
  %v6059 = vpop.f32.mrf.mxu0
  %v6060 = vadd.f32 %v6046, %v6059
  %6061 = vdwg.mxu0
  %6062 = vmatpush.bf16.msra.mxu0 %v5778
  %6063 = vmatpush.bf16.msra.mxu0 %v5774
  %6064 = vmatpush.bf16.msra.mxu0 %v5770
  %6065 = vmatpush.bf16.msra.mxu0 %v5766
  %6066 = vmatpush.bf16.msra.mxu0 %v5762
  %6067 = vmatpush.bf16.msra.mxu0 %v5758
  %6068 = vmatpush.bf16.msra.mxu0 %v5754
  %6069 = vmatpush.bf16.msra.mxu0 %v5750
  %6070 = vmatmul.bf16.gmra.mxu0 %v5127
  %v6071 = vpop.f32.mrf.mxu0
  %v6072 = vadd.f32 %v6058, %v6071
  %v6073 = vpop.f32.mrf.mxu0
  %v6074 = vadd.f32 %v6060, %v6073
  %6075 = vdwg.mxu0
  %6076 = vmatpush.bf16.msra.mxu0 %v5683
  %6077 = vmatpush.bf16.msra.mxu0 %v5679
  %6078 = vmatpush.bf16.msra.mxu0 %v5675
  %6079 = vmatpush.bf16.msra.mxu0 %v5671
  %6080 = vmatpush.bf16.msra.mxu0 %v5667
  %6081 = vmatpush.bf16.msra.mxu0 %v5663
  %6082 = vmatpush.bf16.msra.mxu0 %v5659
  %6083 = vmatpush.bf16.msra.mxu0 %v5655
  %6084 = vmatmul.bf16.gmra.mxu0 %v5124
  %v6085 = vpop.f32.mrf.mxu0
  %v6086 = vadd.f32 %v5263, %v6085
  %v6087 = vpop.f32.mrf.mxu0
  %v6088 = vadd.f32 %v5263, %v6087
  %6089 = vdwg.mxu0
  %6090 = vmatpush.bf16.msra.mxu0 %v5715
  %6091 = vmatpush.bf16.msra.mxu0 %v5711
  %6092 = vmatpush.bf16.msra.mxu0 %v5707
  %6093 = vmatpush.bf16.msra.mxu0 %v5703
  %6094 = vmatpush.bf16.msra.mxu0 %v5699
  %6095 = vmatpush.bf16.msra.mxu0 %v5695
  %6096 = vmatpush.bf16.msra.mxu0 %v5691
  %6097 = vmatpush.bf16.msra.mxu0 %v5687
  %6098 = vmatmul.bf16.gmra.mxu0 %v5125
  %v6099 = vpop.f32.mrf.mxu0
  %v6100 = vadd.f32 %v6086, %v6099
  %v6101 = vpop.f32.mrf.mxu0
  %v6102 = vadd.f32 %v6088, %v6101
  %6103 = vdwg.mxu0
  %6104 = vmatpush.bf16.msra.mxu0 %v5747
  %6105 = vmatpush.bf16.msra.mxu0 %v5743
  %6106 = vmatpush.bf16.msra.mxu0 %v5739
  %6107 = vmatpush.bf16.msra.mxu0 %v5735
  %6108 = vmatpush.bf16.msra.mxu0 %v5731
  %6109 = vmatpush.bf16.msra.mxu0 %v5727
  %6110 = vmatpush.bf16.msra.mxu0 %v5723
  %6111 = vmatpush.bf16.msra.mxu0 %v5719
  %6112 = vmatmul.bf16.gmra.mxu0 %v5126
  %v6113 = vpop.f32.mrf.mxu0
  %v6114 = vadd.f32 %v6100, %v6113
  %v6115 = vpop.f32.mrf.mxu0
  %v6116 = vadd.f32 %v6102, %v6115
  %6117 = vdwg.mxu0
  %6118 = vmatpush.bf16.msra.mxu0 %v5779
  %6119 = vmatpush.bf16.msra.mxu0 %v5775
  %6120 = vmatpush.bf16.msra.mxu0 %v5771
  %6121 = vmatpush.bf16.msra.mxu0 %v5767
  %6122 = vmatpush.bf16.msra.mxu0 %v5763
  %6123 = vmatpush.bf16.msra.mxu0 %v5759
  %6124 = vmatpush.bf16.msra.mxu0 %v5755
  %6125 = vmatpush.bf16.msra.mxu0 %v5751
  %6126 = vmatmul.bf16.gmra.mxu0 %v5127
  %v6127 = vpop.f32.mrf.mxu0
  %v6128 = vadd.f32 %v6114, %v6127
  %v6129 = vpop.f32.mrf.mxu0
  %v6130 = vadd.f32 %v6116, %v6129
  %6131 = vdwg.mxu0
  %v6132 = vmax.f32 %v5960, 0.0
  %v6133 = vmax.f32 %v6016, 0.0
  %v6134 = vmax.f32 %v6072, 0.0
  %v6135 = vmax.f32 %v6128, 0.0
  %v6136 = vmax.f32 %v5962, 0.0
  %v6137 = vmax.f32 %v6018, 0.0
  %v6138 = vmax.f32 %v6074, 0.0
  %v6139 = vmax.f32 %v6130, 0.0
  %v6140 = vpack.c.bf16 %v6136, %v6132
  %v6141 = vpack.c.bf16 %v6137, %v6133
  %v6142 = vpack.c.bf16 %v6138, %v6134
  %v6143 = vpack.c.bf16 %v6139, %v6135
  %s6144 = scalar_lea.vmem %s1, 6144
  %v6145 = vld [vmem:[%s6144] sm:$0xff]
  %v6146 = vld [vmem:[%s6144 + $0x8] sm:$0xff]
  %v6147 = vld [vmem:[%s6144 + $0x10] sm:$0xff]
  %v6148 = vld [vmem:[%s6144 + $0x18] sm:$0xff]
  %v6149 = vld [vmem:[%s6144 + $0x20] sm:$0xff]
  %v6150 = vld [vmem:[%s6144 + $0x28] sm:$0xff]
  %v6151 = vld [vmem:[%s6144 + $0x30] sm:$0xff]
  %v6152 = vld [vmem:[%s6144 + $0x38] sm:$0xff]
  %v6153 = vld [vmem:[%s6144 + $0x40] sm:$0xff]
  %v6154 = vld [vmem:[%s6144 + $0x48] sm:$0xff]
  %v6155 = vld [vmem:[%s6144 + $0x50] sm:$0xff]
  %v6156 = vld [vmem:[%s6144 + $0x58] sm:$0xff]
  %v6157 = vld [vmem:[%s6144 + $0x60] sm:$0xff]
  %v6158 = vld [vmem:[%s6144 + $0x68] sm:$0xff]
  %v6159 = vld [vmem:[%s6144 + $0x70] sm:$0xff]
  %v6160 = vld [vmem:[%s6144 + $0x78] sm:$0xff]
  %v6161 = vld [vmem:[%s6144 + $0x80] sm:$0xff]
  %v6162 = vld [vmem:[%s6144 + $0x88] sm:$0xff]
  %v6163 = vld [vmem:[%s6144 + $0x90] sm:$0xff]
  %v6164 = vld [vmem:[%s6144 + $0x98] sm:$0xff]
  %v6165 = vld [vmem:[%s6144 + $0xa0] sm:$0xff]
  %v6166 = vld [vmem:[%s6144 + $0xa8] sm:$0xff]
  %v6167 = vld [vmem:[%s6144 + $0xb0] sm:$0xff]
  %v6168 = vld [vmem:[%s6144 + $0xb8] sm:$0xff]
  %v6169 = vld [vmem:[%s6144 + $0xc0] sm:$0xff]
  %v6170 = vld [vmem:[%s6144 + $0xc8] sm:$0xff]
  %v6171 = vld [vmem:[%s6144 + $0xd0] sm:$0xff]
  %v6172 = vld [vmem:[%s6144 + $0xd8] sm:$0xff]
  %v6173 = vld [vmem:[%s6144 + $0xe0] sm:$0xff]
  %v6174 = vld [vmem:[%s6144 + $0xe8] sm:$0xff]
  %v6175 = vld [vmem:[%s6144 + $0xf0] sm:$0xff]
  %v6176 = vld [vmem:[%s6144 + $0xf8] sm:$0xff]
  %v6177 = vld [vmem:[%s6144 + $0x100] sm:$0xff]
  %v6178 = vld [vmem:[%s6144 + $0x108] sm:$0xff]
  %v6179 = vld [vmem:[%s6144 + $0x110] sm:$0xff]
  %v6180 = vld [vmem:[%s6144 + $0x118] sm:$0xff]
  %v6181 = vld [vmem:[%s6144 + $0x120] sm:$0xff]
  %v6182 = vld [vmem:[%s6144 + $0x128] sm:$0xff]
  %v6183 = vld [vmem:[%s6144 + $0x130] sm:$0xff]
  %v6184 = vld [vmem:[%s6144 + $0x138] sm:$0xff]
  %v6185 = vld [vmem:[%s6144 + $0x140] sm:$0xff]
  %v6186 = vld [vmem:[%s6144 + $0x148] sm:$0xff]
  %v6187 = vld [vmem:[%s6144 + $0x150] sm:$0xff]
  %v6188 = vld [vmem:[%s6144 + $0x158] sm:$0xff]
  %v6189 = vld [vmem:[%s6144 + $0x160] sm:$0xff]
  %v6190 = vld [vmem:[%s6144 + $0x168] sm:$0xff]
  %v6191 = vld [vmem:[%s6144 + $0x170] sm:$0xff]
  %v6192 = vld [vmem:[%s6144 + $0x178] sm:$0xff]
  %v6193 = vld [vmem:[%s6144 + $0x180] sm:$0xff]
  %v6194 = vld [vmem:[%s6144 + $0x188] sm:$0xff]
  %v6195 = vld [vmem:[%s6144 + $0x190] sm:$0xff]
  %v6196 = vld [vmem:[%s6144 + $0x198] sm:$0xff]
  %v6197 = vld [vmem:[%s6144 + $0x1a0] sm:$0xff]
  %v6198 = vld [vmem:[%s6144 + $0x1a8] sm:$0xff]
  %v6199 = vld [vmem:[%s6144 + $0x1b0] sm:$0xff]
  %v6200 = vld [vmem:[%s6144 + $0x1b8] sm:$0xff]
  %v6201 = vld [vmem:[%s6144 + $0x1c0] sm:$0xff]
  %v6202 = vld [vmem:[%s6144 + $0x1c8] sm:$0xff]
  %v6203 = vld [vmem:[%s6144 + $0x1d0] sm:$0xff]
  %v6204 = vld [vmem:[%s6144 + $0x1d8] sm:$0xff]
  %v6205 = vld [vmem:[%s6144 + $0x1e0] sm:$0xff]
  %v6206 = vld [vmem:[%s6144 + $0x1e8] sm:$0xff]
  %v6207 = vld [vmem:[%s6144 + $0x1f0] sm:$0xff]
  %v6208 = vld [vmem:[%s6144 + $0x1f8] sm:$0xff]
  %v6209 = vld [vmem:[%s6144 + $0x200] sm:$0xff]
  %v6210 = vld [vmem:[%s6144 + $0x208] sm:$0xff]
  %v6211 = vld [vmem:[%s6144 + $0x210] sm:$0xff]
  %v6212 = vld [vmem:[%s6144 + $0x218] sm:$0xff]
  %v6213 = vld [vmem:[%s6144 + $0x220] sm:$0xff]
  %v6214 = vld [vmem:[%s6144 + $0x228] sm:$0xff]
  %v6215 = vld [vmem:[%s6144 + $0x230] sm:$0xff]
  %v6216 = vld [vmem:[%s6144 + $0x238] sm:$0xff]
  %v6217 = vld [vmem:[%s6144 + $0x240] sm:$0xff]
  %v6218 = vld [vmem:[%s6144 + $0x248] sm:$0xff]
  %v6219 = vld [vmem:[%s6144 + $0x250] sm:$0xff]
  %v6220 = vld [vmem:[%s6144 + $0x258] sm:$0xff]
  %v6221 = vld [vmem:[%s6144 + $0x260] sm:$0xff]
  %v6222 = vld [vmem:[%s6144 + $0x268] sm:$0xff]
  %v6223 = vld [vmem:[%s6144 + $0x270] sm:$0xff]
  %v6224 = vld [vmem:[%s6144 + $0x278] sm:$0xff]
  %v6225 = vld [vmem:[%s6144 + $0x280] sm:$0xff]
  %v6226 = vld [vmem:[%s6144 + $0x288] sm:$0xff]
  %v6227 = vld [vmem:[%s6144 + $0x290] sm:$0xff]
  %v6228 = vld [vmem:[%s6144 + $0x298] sm:$0xff]
  %v6229 = vld [vmem:[%s6144 + $0x2a0] sm:$0xff]
  %v6230 = vld [vmem:[%s6144 + $0x2a8] sm:$0xff]
  %v6231 = vld [vmem:[%s6144 + $0x2b0] sm:$0xff]
  %v6232 = vld [vmem:[%s6144 + $0x2b8] sm:$0xff]
  %v6233 = vld [vmem:[%s6144 + $0x2c0] sm:$0xff]
  %v6234 = vld [vmem:[%s6144 + $0x2c8] sm:$0xff]
  %v6235 = vld [vmem:[%s6144 + $0x2d0] sm:$0xff]
  %v6236 = vld [vmem:[%s6144 + $0x2d8] sm:$0xff]
  %v6237 = vld [vmem:[%s6144 + $0x2e0] sm:$0xff]
  %v6238 = vld [vmem:[%s6144 + $0x2e8] sm:$0xff]
  %v6239 = vld [vmem:[%s6144 + $0x2f0] sm:$0xff]
  %v6240 = vld [vmem:[%s6144 + $0x2f8] sm:$0xff]
  %v6241 = vld [vmem:[%s6144 + $0x300] sm:$0xff]
  %v6242 = vld [vmem:[%s6144 + $0x308] sm:$0xff]
  %v6243 = vld [vmem:[%s6144 + $0x310] sm:$0xff]
  %v6244 = vld [vmem:[%s6144 + $0x318] sm:$0xff]
  %v6245 = vld [vmem:[%s6144 + $0x320] sm:$0xff]
  %v6246 = vld [vmem:[%s6144 + $0x328] sm:$0xff]
  %v6247 = vld [vmem:[%s6144 + $0x330] sm:$0xff]
  %v6248 = vld [vmem:[%s6144 + $0x338] sm:$0xff]
  %v6249 = vld [vmem:[%s6144 + $0x340] sm:$0xff]
  %v6250 = vld [vmem:[%s6144 + $0x348] sm:$0xff]
  %v6251 = vld [vmem:[%s6144 + $0x350] sm:$0xff]
  %v6252 = vld [vmem:[%s6144 + $0x358] sm:$0xff]
  %v6253 = vld [vmem:[%s6144 + $0x360] sm:$0xff]
  %v6254 = vld [vmem:[%s6144 + $0x368] sm:$0xff]
  %v6255 = vld [vmem:[%s6144 + $0x370] sm:$0xff]
  %v6256 = vld [vmem:[%s6144 + $0x378] sm:$0xff]
  %v6257 = vld [vmem:[%s6144 + $0x380] sm:$0xff]
  %v6258 = vld [vmem:[%s6144 + $0x388] sm:$0xff]
  %v6259 = vld [vmem:[%s6144 + $0x390] sm:$0xff]
  %v6260 = vld [vmem:[%s6144 + $0x398] sm:$0xff]
  %v6261 = vld [vmem:[%s6144 + $0x3a0] sm:$0xff]
  %v6262 = vld [vmem:[%s6144 + $0x3a8] sm:$0xff]
  %v6263 = vld [vmem:[%s6144 + $0x3b0] sm:$0xff]
  %v6264 = vld [vmem:[%s6144 + $0x3b8] sm:$0xff]
  %v6265 = vld [vmem:[%s6144 + $0x3c0] sm:$0xff]
  %v6266 = vld [vmem:[%s6144 + $0x3c8] sm:$0xff]
  %v6267 = vld [vmem:[%s6144 + $0x3d0] sm:$0xff]
  %v6268 = vld [vmem:[%s6144 + $0x3d8] sm:$0xff]
  %v6269 = vld [vmem:[%s6144 + $0x3e0] sm:$0xff]
  %v6270 = vld [vmem:[%s6144 + $0x3e8] sm:$0xff]
  %v6271 = vld [vmem:[%s6144 + $0x3f0] sm:$0xff]
  %v6272 = vld [vmem:[%s6144 + $0x3f8] sm:$0xff]
  %s6273 = scalar_lea.vmem %s2, 24
  %v6274 = vld [vmem:[%s6273] sm:$0xf]
  %v6276 = vperm.slane %v6274, 0
  %v6277 = vperm.slane %v6274, 1
  %v6278 = vperm.slane %v6274, 2
  %v6279 = vperm.slane %v6274, 3
  %v6412 = vunpack.c.l.b16 %v6145
  %v6413 = vunpack.c.h.b16 %v6145
  %v6414 = vunpack.c.l.b16 %v6146
  %v6415 = vunpack.c.h.b16 %v6146
  %v6416 = vunpack.c.l.b16 %v6147
  %v6417 = vunpack.c.h.b16 %v6147
  %v6418 = vunpack.c.l.b16 %v6148
  %v6419 = vunpack.c.h.b16 %v6148
  %v6420 = vunpack.c.l.b16 %v6149
  %v6421 = vunpack.c.h.b16 %v6149
  %v6422 = vunpack.c.l.b16 %v6150
  %v6423 = vunpack.c.h.b16 %v6150
  %v6424 = vunpack.c.l.b16 %v6151
  %v6425 = vunpack.c.h.b16 %v6151
  %v6426 = vunpack.c.l.b16 %v6152
  %v6427 = vunpack.c.h.b16 %v6152
  %v6428 = vunpack.c.l.b16 %v6153
  %v6429 = vunpack.c.h.b16 %v6153
  %v6430 = vunpack.c.l.b16 %v6154
  %v6431 = vunpack.c.h.b16 %v6154
  %v6432 = vunpack.c.l.b16 %v6155
  %v6433 = vunpack.c.h.b16 %v6155
  %v6434 = vunpack.c.l.b16 %v6156
  %v6435 = vunpack.c.h.b16 %v6156
  %v6436 = vunpack.c.l.b16 %v6157
  %v6437 = vunpack.c.h.b16 %v6157
  %v6438 = vunpack.c.l.b16 %v6158
  %v6439 = vunpack.c.h.b16 %v6158
  %v6440 = vunpack.c.l.b16 %v6159
  %v6441 = vunpack.c.h.b16 %v6159
  %v6442 = vunpack.c.l.b16 %v6160
  %v6443 = vunpack.c.h.b16 %v6160
  %v6444 = vunpack.c.l.b16 %v6161
  %v6445 = vunpack.c.h.b16 %v6161
  %v6446 = vunpack.c.l.b16 %v6162
  %v6447 = vunpack.c.h.b16 %v6162
  %v6448 = vunpack.c.l.b16 %v6163
  %v6449 = vunpack.c.h.b16 %v6163
  %v6450 = vunpack.c.l.b16 %v6164
  %v6451 = vunpack.c.h.b16 %v6164
  %v6452 = vunpack.c.l.b16 %v6165
  %v6453 = vunpack.c.h.b16 %v6165
  %v6454 = vunpack.c.l.b16 %v6166
  %v6455 = vunpack.c.h.b16 %v6166
  %v6456 = vunpack.c.l.b16 %v6167
  %v6457 = vunpack.c.h.b16 %v6167
  %v6458 = vunpack.c.l.b16 %v6168
  %v6459 = vunpack.c.h.b16 %v6168
  %v6460 = vunpack.c.l.b16 %v6169
  %v6461 = vunpack.c.h.b16 %v6169
  %v6462 = vunpack.c.l.b16 %v6170
  %v6463 = vunpack.c.h.b16 %v6170
  %v6464 = vunpack.c.l.b16 %v6171
  %v6465 = vunpack.c.h.b16 %v6171
  %v6466 = vunpack.c.l.b16 %v6172
  %v6467 = vunpack.c.h.b16 %v6172
  %v6468 = vunpack.c.l.b16 %v6173
  %v6469 = vunpack.c.h.b16 %v6173
  %v6470 = vunpack.c.l.b16 %v6174
  %v6471 = vunpack.c.h.b16 %v6174
  %v6472 = vunpack.c.l.b16 %v6175
  %v6473 = vunpack.c.h.b16 %v6175
  %v6474 = vunpack.c.l.b16 %v6176
  %v6475 = vunpack.c.h.b16 %v6176
  %v6476 = vunpack.c.l.b16 %v6177
  %v6477 = vunpack.c.h.b16 %v6177
  %v6478 = vunpack.c.l.b16 %v6178
  %v6479 = vunpack.c.h.b16 %v6178
  %v6480 = vunpack.c.l.b16 %v6179
  %v6481 = vunpack.c.h.b16 %v6179
  %v6482 = vunpack.c.l.b16 %v6180
  %v6483 = vunpack.c.h.b16 %v6180
  %v6484 = vunpack.c.l.b16 %v6181
  %v6485 = vunpack.c.h.b16 %v6181
  %v6486 = vunpack.c.l.b16 %v6182
  %v6487 = vunpack.c.h.b16 %v6182
  %v6488 = vunpack.c.l.b16 %v6183
  %v6489 = vunpack.c.h.b16 %v6183
  %v6490 = vunpack.c.l.b16 %v6184
  %v6491 = vunpack.c.h.b16 %v6184
  %v6492 = vunpack.c.l.b16 %v6185
  %v6493 = vunpack.c.h.b16 %v6185
  %v6494 = vunpack.c.l.b16 %v6186
  %v6495 = vunpack.c.h.b16 %v6186
  %v6496 = vunpack.c.l.b16 %v6187
  %v6497 = vunpack.c.h.b16 %v6187
  %v6498 = vunpack.c.l.b16 %v6188
  %v6499 = vunpack.c.h.b16 %v6188
  %v6500 = vunpack.c.l.b16 %v6189
  %v6501 = vunpack.c.h.b16 %v6189
  %v6502 = vunpack.c.l.b16 %v6190
  %v6503 = vunpack.c.h.b16 %v6190
  %v6504 = vunpack.c.l.b16 %v6191
  %v6505 = vunpack.c.h.b16 %v6191
  %v6506 = vunpack.c.l.b16 %v6192
  %v6507 = vunpack.c.h.b16 %v6192
  %v6508 = vunpack.c.l.b16 %v6193
  %v6509 = vunpack.c.h.b16 %v6193
  %v6510 = vunpack.c.l.b16 %v6194
  %v6511 = vunpack.c.h.b16 %v6194
  %v6512 = vunpack.c.l.b16 %v6195
  %v6513 = vunpack.c.h.b16 %v6195
  %v6514 = vunpack.c.l.b16 %v6196
  %v6515 = vunpack.c.h.b16 %v6196
  %v6516 = vunpack.c.l.b16 %v6197
  %v6517 = vunpack.c.h.b16 %v6197
  %v6518 = vunpack.c.l.b16 %v6198
  %v6519 = vunpack.c.h.b16 %v6198
  %v6520 = vunpack.c.l.b16 %v6199
  %v6521 = vunpack.c.h.b16 %v6199
  %v6522 = vunpack.c.l.b16 %v6200
  %v6523 = vunpack.c.h.b16 %v6200
  %v6524 = vunpack.c.l.b16 %v6201
  %v6525 = vunpack.c.h.b16 %v6201
  %v6526 = vunpack.c.l.b16 %v6202
  %v6527 = vunpack.c.h.b16 %v6202
  %v6528 = vunpack.c.l.b16 %v6203
  %v6529 = vunpack.c.h.b16 %v6203
  %v6530 = vunpack.c.l.b16 %v6204
  %v6531 = vunpack.c.h.b16 %v6204
  %v6532 = vunpack.c.l.b16 %v6205
  %v6533 = vunpack.c.h.b16 %v6205
  %v6534 = vunpack.c.l.b16 %v6206
  %v6535 = vunpack.c.h.b16 %v6206
  %v6536 = vunpack.c.l.b16 %v6207
  %v6537 = vunpack.c.h.b16 %v6207
  %v6538 = vunpack.c.l.b16 %v6208
  %v6539 = vunpack.c.h.b16 %v6208
  %v6540 = vunpack.c.l.b16 %v6209
  %v6541 = vunpack.c.h.b16 %v6209
  %v6542 = vunpack.c.l.b16 %v6210
  %v6543 = vunpack.c.h.b16 %v6210
  %v6544 = vunpack.c.l.b16 %v6211
  %v6545 = vunpack.c.h.b16 %v6211
  %v6546 = vunpack.c.l.b16 %v6212
  %v6547 = vunpack.c.h.b16 %v6212
  %v6548 = vunpack.c.l.b16 %v6213
  %v6549 = vunpack.c.h.b16 %v6213
  %v6550 = vunpack.c.l.b16 %v6214
  %v6551 = vunpack.c.h.b16 %v6214
  %v6552 = vunpack.c.l.b16 %v6215
  %v6553 = vunpack.c.h.b16 %v6215
  %v6554 = vunpack.c.l.b16 %v6216
  %v6555 = vunpack.c.h.b16 %v6216
  %v6556 = vunpack.c.l.b16 %v6217
  %v6557 = vunpack.c.h.b16 %v6217
  %v6558 = vunpack.c.l.b16 %v6218
  %v6559 = vunpack.c.h.b16 %v6218
  %v6560 = vunpack.c.l.b16 %v6219
  %v6561 = vunpack.c.h.b16 %v6219
  %v6562 = vunpack.c.l.b16 %v6220
  %v6563 = vunpack.c.h.b16 %v6220
  %v6564 = vunpack.c.l.b16 %v6221
  %v6565 = vunpack.c.h.b16 %v6221
  %v6566 = vunpack.c.l.b16 %v6222
  %v6567 = vunpack.c.h.b16 %v6222
  %v6568 = vunpack.c.l.b16 %v6223
  %v6569 = vunpack.c.h.b16 %v6223
  %v6570 = vunpack.c.l.b16 %v6224
  %v6571 = vunpack.c.h.b16 %v6224
  %v6572 = vunpack.c.l.b16 %v6225
  %v6573 = vunpack.c.h.b16 %v6225
  %v6574 = vunpack.c.l.b16 %v6226
  %v6575 = vunpack.c.h.b16 %v6226
  %v6576 = vunpack.c.l.b16 %v6227
  %v6577 = vunpack.c.h.b16 %v6227
  %v6578 = vunpack.c.l.b16 %v6228
  %v6579 = vunpack.c.h.b16 %v6228
  %v6580 = vunpack.c.l.b16 %v6229
  %v6581 = vunpack.c.h.b16 %v6229
  %v6582 = vunpack.c.l.b16 %v6230
  %v6583 = vunpack.c.h.b16 %v6230
  %v6584 = vunpack.c.l.b16 %v6231
  %v6585 = vunpack.c.h.b16 %v6231
  %v6586 = vunpack.c.l.b16 %v6232
  %v6587 = vunpack.c.h.b16 %v6232
  %v6588 = vunpack.c.l.b16 %v6233
  %v6589 = vunpack.c.h.b16 %v6233
  %v6590 = vunpack.c.l.b16 %v6234
  %v6591 = vunpack.c.h.b16 %v6234
  %v6592 = vunpack.c.l.b16 %v6235
  %v6593 = vunpack.c.h.b16 %v6235
  %v6594 = vunpack.c.l.b16 %v6236
  %v6595 = vunpack.c.h.b16 %v6236
  %v6596 = vunpack.c.l.b16 %v6237
  %v6597 = vunpack.c.h.b16 %v6237
  %v6598 = vunpack.c.l.b16 %v6238
  %v6599 = vunpack.c.h.b16 %v6238
  %v6600 = vunpack.c.l.b16 %v6239
  %v6601 = vunpack.c.h.b16 %v6239
  %v6602 = vunpack.c.l.b16 %v6240
  %v6603 = vunpack.c.h.b16 %v6240
  %v6604 = vunpack.c.l.b16 %v6241
  %v6605 = vunpack.c.h.b16 %v6241
  %v6606 = vunpack.c.l.b16 %v6242
  %v6607 = vunpack.c.h.b16 %v6242
  %v6608 = vunpack.c.l.b16 %v6243
  %v6609 = vunpack.c.h.b16 %v6243
  %v6610 = vunpack.c.l.b16 %v6244
  %v6611 = vunpack.c.h.b16 %v6244
  %v6612 = vunpack.c.l.b16 %v6245
  %v6613 = vunpack.c.h.b16 %v6245
  %v6614 = vunpack.c.l.b16 %v6246
  %v6615 = vunpack.c.h.b16 %v6246
  %v6616 = vunpack.c.l.b16 %v6247
  %v6617 = vunpack.c.h.b16 %v6247
  %v6618 = vunpack.c.l.b16 %v6248
  %v6619 = vunpack.c.h.b16 %v6248
  %v6620 = vunpack.c.l.b16 %v6249
  %v6621 = vunpack.c.h.b16 %v6249
  %v6622 = vunpack.c.l.b16 %v6250
  %v6623 = vunpack.c.h.b16 %v6250
  %v6624 = vunpack.c.l.b16 %v6251
  %v6625 = vunpack.c.h.b16 %v6251
  %v6626 = vunpack.c.l.b16 %v6252
  %v6627 = vunpack.c.h.b16 %v6252
  %v6628 = vunpack.c.l.b16 %v6253
  %v6629 = vunpack.c.h.b16 %v6253
  %v6630 = vunpack.c.l.b16 %v6254
  %v6631 = vunpack.c.h.b16 %v6254
  %v6632 = vunpack.c.l.b16 %v6255
  %v6633 = vunpack.c.h.b16 %v6255
  %v6634 = vunpack.c.l.b16 %v6256
  %v6635 = vunpack.c.h.b16 %v6256
  %v6636 = vunpack.c.l.b16 %v6257
  %v6637 = vunpack.c.h.b16 %v6257
  %v6638 = vunpack.c.l.b16 %v6258
  %v6639 = vunpack.c.h.b16 %v6258
  %v6640 = vunpack.c.l.b16 %v6259
  %v6641 = vunpack.c.h.b16 %v6259
  %v6642 = vunpack.c.l.b16 %v6260
  %v6643 = vunpack.c.h.b16 %v6260
  %v6644 = vunpack.c.l.b16 %v6261
  %v6645 = vunpack.c.h.b16 %v6261
  %v6646 = vunpack.c.l.b16 %v6262
  %v6647 = vunpack.c.h.b16 %v6262
  %v6648 = vunpack.c.l.b16 %v6263
  %v6649 = vunpack.c.h.b16 %v6263
  %v6650 = vunpack.c.l.b16 %v6264
  %v6651 = vunpack.c.h.b16 %v6264
  %v6652 = vunpack.c.l.b16 %v6265
  %v6653 = vunpack.c.h.b16 %v6265
  %v6654 = vunpack.c.l.b16 %v6266
  %v6655 = vunpack.c.h.b16 %v6266
  %v6656 = vunpack.c.l.b16 %v6267
  %v6657 = vunpack.c.h.b16 %v6267
  %v6658 = vunpack.c.l.b16 %v6268
  %v6659 = vunpack.c.h.b16 %v6268
  %v6660 = vunpack.c.l.b16 %v6269
  %v6661 = vunpack.c.h.b16 %v6269
  %v6662 = vunpack.c.l.b16 %v6270
  %v6663 = vunpack.c.h.b16 %v6270
  %v6664 = vunpack.c.l.b16 %v6271
  %v6665 = vunpack.c.h.b16 %v6271
  %v6666 = vunpack.c.l.b16 %v6272
  %v6667 = vunpack.c.h.b16 %v6272
  %v6668 = vpack.c.b16 %v6416, %v6412
  %v6669 = vpack.c.b16 %v6417, %v6413
  %v6670 = vpack.c.b16 %v6418, %v6414
  %v6671 = vpack.c.b16 %v6419, %v6415
  %v6672 = vpack.c.b16 %v6424, %v6420
  %v6673 = vpack.c.b16 %v6425, %v6421
  %v6674 = vpack.c.b16 %v6426, %v6422
  %v6675 = vpack.c.b16 %v6427, %v6423
  %v6676 = vpack.c.b16 %v6432, %v6428
  %v6677 = vpack.c.b16 %v6433, %v6429
  %v6678 = vpack.c.b16 %v6434, %v6430
  %v6679 = vpack.c.b16 %v6435, %v6431
  %v6680 = vpack.c.b16 %v6440, %v6436
  %v6681 = vpack.c.b16 %v6441, %v6437
  %v6682 = vpack.c.b16 %v6442, %v6438
  %v6683 = vpack.c.b16 %v6443, %v6439
  %v6684 = vpack.c.b16 %v6448, %v6444
  %v6685 = vpack.c.b16 %v6449, %v6445
  %v6686 = vpack.c.b16 %v6450, %v6446
  %v6687 = vpack.c.b16 %v6451, %v6447
  %v6688 = vpack.c.b16 %v6456, %v6452
  %v6689 = vpack.c.b16 %v6457, %v6453
  %v6690 = vpack.c.b16 %v6458, %v6454
  %v6691 = vpack.c.b16 %v6459, %v6455
  %v6692 = vpack.c.b16 %v6464, %v6460
  %v6693 = vpack.c.b16 %v6465, %v6461
  %v6694 = vpack.c.b16 %v6466, %v6462
  %v6695 = vpack.c.b16 %v6467, %v6463
  %v6696 = vpack.c.b16 %v6472, %v6468
  %v6697 = vpack.c.b16 %v6473, %v6469
  %v6698 = vpack.c.b16 %v6474, %v6470
  %v6699 = vpack.c.b16 %v6475, %v6471
  %v6700 = vpack.c.b16 %v6480, %v6476
  %v6701 = vpack.c.b16 %v6481, %v6477
  %v6702 = vpack.c.b16 %v6482, %v6478
  %v6703 = vpack.c.b16 %v6483, %v6479
  %v6704 = vpack.c.b16 %v6488, %v6484
  %v6705 = vpack.c.b16 %v6489, %v6485
  %v6706 = vpack.c.b16 %v6490, %v6486
  %v6707 = vpack.c.b16 %v6491, %v6487
  %v6708 = vpack.c.b16 %v6496, %v6492
  %v6709 = vpack.c.b16 %v6497, %v6493
  %v6710 = vpack.c.b16 %v6498, %v6494
  %v6711 = vpack.c.b16 %v6499, %v6495
  %v6712 = vpack.c.b16 %v6504, %v6500
  %v6713 = vpack.c.b16 %v6505, %v6501
  %v6714 = vpack.c.b16 %v6506, %v6502
  %v6715 = vpack.c.b16 %v6507, %v6503
  %v6716 = vpack.c.b16 %v6512, %v6508
  %v6717 = vpack.c.b16 %v6513, %v6509
  %v6718 = vpack.c.b16 %v6514, %v6510
  %v6719 = vpack.c.b16 %v6515, %v6511
  %v6720 = vpack.c.b16 %v6520, %v6516
  %v6721 = vpack.c.b16 %v6521, %v6517
  %v6722 = vpack.c.b16 %v6522, %v6518
  %v6723 = vpack.c.b16 %v6523, %v6519
  %v6724 = vpack.c.b16 %v6528, %v6524
  %v6725 = vpack.c.b16 %v6529, %v6525
  %v6726 = vpack.c.b16 %v6530, %v6526
  %v6727 = vpack.c.b16 %v6531, %v6527
  %v6728 = vpack.c.b16 %v6536, %v6532
  %v6729 = vpack.c.b16 %v6537, %v6533
  %v6730 = vpack.c.b16 %v6538, %v6534
  %v6731 = vpack.c.b16 %v6539, %v6535
  %v6732 = vpack.c.b16 %v6544, %v6540
  %v6733 = vpack.c.b16 %v6545, %v6541
  %v6734 = vpack.c.b16 %v6546, %v6542
  %v6735 = vpack.c.b16 %v6547, %v6543
  %v6736 = vpack.c.b16 %v6552, %v6548
  %v6737 = vpack.c.b16 %v6553, %v6549
  %v6738 = vpack.c.b16 %v6554, %v6550
  %v6739 = vpack.c.b16 %v6555, %v6551
  %v6740 = vpack.c.b16 %v6560, %v6556
  %v6741 = vpack.c.b16 %v6561, %v6557
  %v6742 = vpack.c.b16 %v6562, %v6558
  %v6743 = vpack.c.b16 %v6563, %v6559
  %v6744 = vpack.c.b16 %v6568, %v6564
  %v6745 = vpack.c.b16 %v6569, %v6565
  %v6746 = vpack.c.b16 %v6570, %v6566
  %v6747 = vpack.c.b16 %v6571, %v6567
  %v6748 = vpack.c.b16 %v6576, %v6572
  %v6749 = vpack.c.b16 %v6577, %v6573
  %v6750 = vpack.c.b16 %v6578, %v6574
  %v6751 = vpack.c.b16 %v6579, %v6575
  %v6752 = vpack.c.b16 %v6584, %v6580
  %v6753 = vpack.c.b16 %v6585, %v6581
  %v6754 = vpack.c.b16 %v6586, %v6582
  %v6755 = vpack.c.b16 %v6587, %v6583
  %v6756 = vpack.c.b16 %v6592, %v6588
  %v6757 = vpack.c.b16 %v6593, %v6589
  %v6758 = vpack.c.b16 %v6594, %v6590
  %v6759 = vpack.c.b16 %v6595, %v6591
  %v6760 = vpack.c.b16 %v6600, %v6596
  %v6761 = vpack.c.b16 %v6601, %v6597
  %v6762 = vpack.c.b16 %v6602, %v6598
  %v6763 = vpack.c.b16 %v6603, %v6599
  %v6764 = vpack.c.b16 %v6608, %v6604
  %v6765 = vpack.c.b16 %v6609, %v6605
  %v6766 = vpack.c.b16 %v6610, %v6606
  %v6767 = vpack.c.b16 %v6611, %v6607
  %v6768 = vpack.c.b16 %v6616, %v6612
  %v6769 = vpack.c.b16 %v6617, %v6613
  %v6770 = vpack.c.b16 %v6618, %v6614
  %v6771 = vpack.c.b16 %v6619, %v6615
  %v6772 = vpack.c.b16 %v6624, %v6620
  %v6773 = vpack.c.b16 %v6625, %v6621
  %v6774 = vpack.c.b16 %v6626, %v6622
  %v6775 = vpack.c.b16 %v6627, %v6623
  %v6776 = vpack.c.b16 %v6632, %v6628
  %v6777 = vpack.c.b16 %v6633, %v6629
  %v6778 = vpack.c.b16 %v6634, %v6630
  %v6779 = vpack.c.b16 %v6635, %v6631
  %v6780 = vpack.c.b16 %v6640, %v6636
  %v6781 = vpack.c.b16 %v6641, %v6637
  %v6782 = vpack.c.b16 %v6642, %v6638
  %v6783 = vpack.c.b16 %v6643, %v6639
  %v6784 = vpack.c.b16 %v6648, %v6644
  %v6785 = vpack.c.b16 %v6649, %v6645
  %v6786 = vpack.c.b16 %v6650, %v6646
  %v6787 = vpack.c.b16 %v6651, %v6647
  %v6788 = vpack.c.b16 %v6656, %v6652
  %v6789 = vpack.c.b16 %v6657, %v6653
  %v6790 = vpack.c.b16 %v6658, %v6654
  %v6791 = vpack.c.b16 %v6659, %v6655
  %v6792 = vpack.c.b16 %v6664, %v6660
  %v6793 = vpack.c.b16 %v6665, %v6661
  %v6794 = vpack.c.b16 %v6666, %v6662
  %v6795 = vpack.c.b16 %v6667, %v6663
  %6924 = vmatpush.bf16.msra.mxu0 %v6696
  %6925 = vmatpush.bf16.msra.mxu0 %v6692
  %6926 = vmatpush.bf16.msra.mxu0 %v6688
  %6927 = vmatpush.bf16.msra.mxu0 %v6684
  %6928 = vmatpush.bf16.msra.mxu0 %v6680
  %6929 = vmatpush.bf16.msra.mxu0 %v6676
  %6930 = vmatpush.bf16.msra.mxu0 %v6672
  %6931 = vmatpush.bf16.msra.mxu0 %v6668
  %6932 = vmatmul.bf16.gmra.mxu0 %v6140
  %v6933 = vpop.f32.mrf.mxu0
  %v6934 = vadd.f32 %v6276, %v6933
  %v6935 = vpop.f32.mrf.mxu0
  %v6936 = vadd.f32 %v6276, %v6935
  %6937 = vdwg.mxu0
  %6938 = vmatpush.bf16.msra.mxu0 %v6728
  %6939 = vmatpush.bf16.msra.mxu0 %v6724
  %6940 = vmatpush.bf16.msra.mxu0 %v6720
  %6941 = vmatpush.bf16.msra.mxu0 %v6716
  %6942 = vmatpush.bf16.msra.mxu0 %v6712
  %6943 = vmatpush.bf16.msra.mxu0 %v6708
  %6944 = vmatpush.bf16.msra.mxu0 %v6704
  %6945 = vmatpush.bf16.msra.mxu0 %v6700
  %6946 = vmatmul.bf16.gmra.mxu0 %v6141
  %v6947 = vpop.f32.mrf.mxu0
  %v6948 = vadd.f32 %v6934, %v6947
  %v6949 = vpop.f32.mrf.mxu0
  %v6950 = vadd.f32 %v6936, %v6949
  %6951 = vdwg.mxu0
  %6952 = vmatpush.bf16.msra.mxu0 %v6760
  %6953 = vmatpush.bf16.msra.mxu0 %v6756
  %6954 = vmatpush.bf16.msra.mxu0 %v6752
  %6955 = vmatpush.bf16.msra.mxu0 %v6748
  %6956 = vmatpush.bf16.msra.mxu0 %v6744
  %6957 = vmatpush.bf16.msra.mxu0 %v6740
  %6958 = vmatpush.bf16.msra.mxu0 %v6736
  %6959 = vmatpush.bf16.msra.mxu0 %v6732
  %6960 = vmatmul.bf16.gmra.mxu0 %v6142
  %v6961 = vpop.f32.mrf.mxu0
  %v6962 = vadd.f32 %v6948, %v6961
  %v6963 = vpop.f32.mrf.mxu0
  %v6964 = vadd.f32 %v6950, %v6963
  %6965 = vdwg.mxu0
  %6966 = vmatpush.bf16.msra.mxu0 %v6792
  %6967 = vmatpush.bf16.msra.mxu0 %v6788
  %6968 = vmatpush.bf16.msra.mxu0 %v6784
  %6969 = vmatpush.bf16.msra.mxu0 %v6780
  %6970 = vmatpush.bf16.msra.mxu0 %v6776
  %6971 = vmatpush.bf16.msra.mxu0 %v6772
  %6972 = vmatpush.bf16.msra.mxu0 %v6768
  %6973 = vmatpush.bf16.msra.mxu0 %v6764
  %6974 = vmatmul.bf16.gmra.mxu0 %v6143
  %v6975 = vpop.f32.mrf.mxu0
  %v6976 = vadd.f32 %v6962, %v6975
  %v6977 = vpop.f32.mrf.mxu0
  %v6978 = vadd.f32 %v6964, %v6977
  %6979 = vdwg.mxu0
  %6980 = vmatpush.bf16.msra.mxu0 %v6697
  %6981 = vmatpush.bf16.msra.mxu0 %v6693
  %6982 = vmatpush.bf16.msra.mxu0 %v6689
  %6983 = vmatpush.bf16.msra.mxu0 %v6685
  %6984 = vmatpush.bf16.msra.mxu0 %v6681
  %6985 = vmatpush.bf16.msra.mxu0 %v6677
  %6986 = vmatpush.bf16.msra.mxu0 %v6673
  %6987 = vmatpush.bf16.msra.mxu0 %v6669
  %6988 = vmatmul.bf16.gmra.mxu0 %v6140
  %v6989 = vpop.f32.mrf.mxu0
  %v6990 = vadd.f32 %v6277, %v6989
  %v6991 = vpop.f32.mrf.mxu0
  %v6992 = vadd.f32 %v6277, %v6991
  %6993 = vdwg.mxu0
  %6994 = vmatpush.bf16.msra.mxu0 %v6729
  %6995 = vmatpush.bf16.msra.mxu0 %v6725
  %6996 = vmatpush.bf16.msra.mxu0 %v6721
  %6997 = vmatpush.bf16.msra.mxu0 %v6717
  %6998 = vmatpush.bf16.msra.mxu0 %v6713
  %6999 = vmatpush.bf16.msra.mxu0 %v6709
  %7000 = vmatpush.bf16.msra.mxu0 %v6705
  %7001 = vmatpush.bf16.msra.mxu0 %v6701
  %7002 = vmatmul.bf16.gmra.mxu0 %v6141
  %v7003 = vpop.f32.mrf.mxu0
  %v7004 = vadd.f32 %v6990, %v7003
  %v7005 = vpop.f32.mrf.mxu0
  %v7006 = vadd.f32 %v6992, %v7005
  %7007 = vdwg.mxu0
  %7008 = vmatpush.bf16.msra.mxu0 %v6761
  %7009 = vmatpush.bf16.msra.mxu0 %v6757
  %7010 = vmatpush.bf16.msra.mxu0 %v6753
  %7011 = vmatpush.bf16.msra.mxu0 %v6749
  %7012 = vmatpush.bf16.msra.mxu0 %v6745
  %7013 = vmatpush.bf16.msra.mxu0 %v6741
  %7014 = vmatpush.bf16.msra.mxu0 %v6737
  %7015 = vmatpush.bf16.msra.mxu0 %v6733
  %7016 = vmatmul.bf16.gmra.mxu0 %v6142
  %v7017 = vpop.f32.mrf.mxu0
  %v7018 = vadd.f32 %v7004, %v7017
  %v7019 = vpop.f32.mrf.mxu0
  %v7020 = vadd.f32 %v7006, %v7019
  %7021 = vdwg.mxu0
  %7022 = vmatpush.bf16.msra.mxu0 %v6793
  %7023 = vmatpush.bf16.msra.mxu0 %v6789
  %7024 = vmatpush.bf16.msra.mxu0 %v6785
  %7025 = vmatpush.bf16.msra.mxu0 %v6781
  %7026 = vmatpush.bf16.msra.mxu0 %v6777
  %7027 = vmatpush.bf16.msra.mxu0 %v6773
  %7028 = vmatpush.bf16.msra.mxu0 %v6769
  %7029 = vmatpush.bf16.msra.mxu0 %v6765
  %7030 = vmatmul.bf16.gmra.mxu0 %v6143
  %v7031 = vpop.f32.mrf.mxu0
  %v7032 = vadd.f32 %v7018, %v7031
  %v7033 = vpop.f32.mrf.mxu0
  %v7034 = vadd.f32 %v7020, %v7033
  %7035 = vdwg.mxu0
  %7036 = vmatpush.bf16.msra.mxu0 %v6698
  %7037 = vmatpush.bf16.msra.mxu0 %v6694
  %7038 = vmatpush.bf16.msra.mxu0 %v6690
  %7039 = vmatpush.bf16.msra.mxu0 %v6686
  %7040 = vmatpush.bf16.msra.mxu0 %v6682
  %7041 = vmatpush.bf16.msra.mxu0 %v6678
  %7042 = vmatpush.bf16.msra.mxu0 %v6674
  %7043 = vmatpush.bf16.msra.mxu0 %v6670
  %7044 = vmatmul.bf16.gmra.mxu0 %v6140
  %v7045 = vpop.f32.mrf.mxu0
  %v7046 = vadd.f32 %v6278, %v7045
  %v7047 = vpop.f32.mrf.mxu0
  %v7048 = vadd.f32 %v6278, %v7047
  %7049 = vdwg.mxu0
  %7050 = vmatpush.bf16.msra.mxu0 %v6730
  %7051 = vmatpush.bf16.msra.mxu0 %v6726
  %7052 = vmatpush.bf16.msra.mxu0 %v6722
  %7053 = vmatpush.bf16.msra.mxu0 %v6718
  %7054 = vmatpush.bf16.msra.mxu0 %v6714
  %7055 = vmatpush.bf16.msra.mxu0 %v6710
  %7056 = vmatpush.bf16.msra.mxu0 %v6706
  %7057 = vmatpush.bf16.msra.mxu0 %v6702
  %7058 = vmatmul.bf16.gmra.mxu0 %v6141
  %v7059 = vpop.f32.mrf.mxu0
  %v7060 = vadd.f32 %v7046, %v7059
  %v7061 = vpop.f32.mrf.mxu0
  %v7062 = vadd.f32 %v7048, %v7061
  %7063 = vdwg.mxu0
  %7064 = vmatpush.bf16.msra.mxu0 %v6762
  %7065 = vmatpush.bf16.msra.mxu0 %v6758
  %7066 = vmatpush.bf16.msra.mxu0 %v6754
  %7067 = vmatpush.bf16.msra.mxu0 %v6750
  %7068 = vmatpush.bf16.msra.mxu0 %v6746
  %7069 = vmatpush.bf16.msra.mxu0 %v6742
  %7070 = vmatpush.bf16.msra.mxu0 %v6738
  %7071 = vmatpush.bf16.msra.mxu0 %v6734
  %7072 = vmatmul.bf16.gmra.mxu0 %v6142
  %v7073 = vpop.f32.mrf.mxu0
  %v7074 = vadd.f32 %v7060, %v7073
  %v7075 = vpop.f32.mrf.mxu0
  %v7076 = vadd.f32 %v7062, %v7075
  %7077 = vdwg.mxu0
  %7078 = vmatpush.bf16.msra.mxu0 %v6794
  %7079 = vmatpush.bf16.msra.mxu0 %v6790
  %7080 = vmatpush.bf16.msra.mxu0 %v6786
  %7081 = vmatpush.bf16.msra.mxu0 %v6782
  %7082 = vmatpush.bf16.msra.mxu0 %v6778
  %7083 = vmatpush.bf16.msra.mxu0 %v6774
  %7084 = vmatpush.bf16.msra.mxu0 %v6770
  %7085 = vmatpush.bf16.msra.mxu0 %v6766
  %7086 = vmatmul.bf16.gmra.mxu0 %v6143
  %v7087 = vpop.f32.mrf.mxu0
  %v7088 = vadd.f32 %v7074, %v7087
  %v7089 = vpop.f32.mrf.mxu0
  %v7090 = vadd.f32 %v7076, %v7089
  %7091 = vdwg.mxu0
  %7092 = vmatpush.bf16.msra.mxu0 %v6699
  %7093 = vmatpush.bf16.msra.mxu0 %v6695
  %7094 = vmatpush.bf16.msra.mxu0 %v6691
  %7095 = vmatpush.bf16.msra.mxu0 %v6687
  %7096 = vmatpush.bf16.msra.mxu0 %v6683
  %7097 = vmatpush.bf16.msra.mxu0 %v6679
  %7098 = vmatpush.bf16.msra.mxu0 %v6675
  %7099 = vmatpush.bf16.msra.mxu0 %v6671
  %7100 = vmatmul.bf16.gmra.mxu0 %v6140
  %v7101 = vpop.f32.mrf.mxu0
  %v7102 = vadd.f32 %v6279, %v7101
  %v7103 = vpop.f32.mrf.mxu0
  %v7104 = vadd.f32 %v6279, %v7103
  %7105 = vdwg.mxu0
  %7106 = vmatpush.bf16.msra.mxu0 %v6731
  %7107 = vmatpush.bf16.msra.mxu0 %v6727
  %7108 = vmatpush.bf16.msra.mxu0 %v6723
  %7109 = vmatpush.bf16.msra.mxu0 %v6719
  %7110 = vmatpush.bf16.msra.mxu0 %v6715
  %7111 = vmatpush.bf16.msra.mxu0 %v6711
  %7112 = vmatpush.bf16.msra.mxu0 %v6707
  %7113 = vmatpush.bf16.msra.mxu0 %v6703
  %7114 = vmatmul.bf16.gmra.mxu0 %v6141
  %v7115 = vpop.f32.mrf.mxu0
  %v7116 = vadd.f32 %v7102, %v7115
  %v7117 = vpop.f32.mrf.mxu0
  %v7118 = vadd.f32 %v7104, %v7117
  %7119 = vdwg.mxu0
  %7120 = vmatpush.bf16.msra.mxu0 %v6763
  %7121 = vmatpush.bf16.msra.mxu0 %v6759
  %7122 = vmatpush.bf16.msra.mxu0 %v6755
  %7123 = vmatpush.bf16.msra.mxu0 %v6751
  %7124 = vmatpush.bf16.msra.mxu0 %v6747
  %7125 = vmatpush.bf16.msra.mxu0 %v6743
  %7126 = vmatpush.bf16.msra.mxu0 %v6739
  %7127 = vmatpush.bf16.msra.mxu0 %v6735
  %7128 = vmatmul.bf16.gmra.mxu0 %v6142
  %v7129 = vpop.f32.mrf.mxu0
  %v7130 = vadd.f32 %v7116, %v7129
  %v7131 = vpop.f32.mrf.mxu0
  %v7132 = vadd.f32 %v7118, %v7131
  %7133 = vdwg.mxu0
  %7134 = vmatpush.bf16.msra.mxu0 %v6795
  %7135 = vmatpush.bf16.msra.mxu0 %v6791
  %7136 = vmatpush.bf16.msra.mxu0 %v6787
  %7137 = vmatpush.bf16.msra.mxu0 %v6783
  %7138 = vmatpush.bf16.msra.mxu0 %v6779
  %7139 = vmatpush.bf16.msra.mxu0 %v6775
  %7140 = vmatpush.bf16.msra.mxu0 %v6771
  %7141 = vmatpush.bf16.msra.mxu0 %v6767
  %7142 = vmatmul.bf16.gmra.mxu0 %v6143
  %v7143 = vpop.f32.mrf.mxu0
  %v7144 = vadd.f32 %v7130, %v7143
  %v7145 = vpop.f32.mrf.mxu0
  %v7146 = vadd.f32 %v7132, %v7145
  %7147 = vdwg.mxu0
  %v7148 = vmax.f32 %v6976, 0.0
  %v7149 = vmax.f32 %v7032, 0.0
  %v7150 = vmax.f32 %v7088, 0.0
  %v7151 = vmax.f32 %v7144, 0.0
  %v7152 = vmax.f32 %v6978, 0.0
  %v7153 = vmax.f32 %v7034, 0.0
  %v7154 = vmax.f32 %v7090, 0.0
  %v7155 = vmax.f32 %v7146, 0.0
  %v7156 = vpack.c.bf16 %v7152, %v7148
  %v7157 = vpack.c.bf16 %v7153, %v7149
  %v7158 = vpack.c.bf16 %v7154, %v7150
  %v7159 = vpack.c.bf16 %v7155, %v7151
  %s7160 = scalar_lea.vmem %s1, 7168
  %v7161 = vld [vmem:[%s7160] sm:$0xff]
  %v7162 = vld [vmem:[%s7160 + $0x8] sm:$0xff]
  %v7163 = vld [vmem:[%s7160 + $0x10] sm:$0xff]
  %v7164 = vld [vmem:[%s7160 + $0x18] sm:$0xff]
  %v7165 = vld [vmem:[%s7160 + $0x20] sm:$0xff]
  %v7166 = vld [vmem:[%s7160 + $0x28] sm:$0xff]
  %v7167 = vld [vmem:[%s7160 + $0x30] sm:$0xff]
  %v7168 = vld [vmem:[%s7160 + $0x38] sm:$0xff]
  %v7169 = vld [vmem:[%s7160 + $0x40] sm:$0xff]
  %v7170 = vld [vmem:[%s7160 + $0x48] sm:$0xff]
  %v7171 = vld [vmem:[%s7160 + $0x50] sm:$0xff]
  %v7172 = vld [vmem:[%s7160 + $0x58] sm:$0xff]
  %v7173 = vld [vmem:[%s7160 + $0x60] sm:$0xff]
  %v7174 = vld [vmem:[%s7160 + $0x68] sm:$0xff]
  %v7175 = vld [vmem:[%s7160 + $0x70] sm:$0xff]
  %v7176 = vld [vmem:[%s7160 + $0x78] sm:$0xff]
  %v7177 = vld [vmem:[%s7160 + $0x80] sm:$0xff]
  %v7178 = vld [vmem:[%s7160 + $0x88] sm:$0xff]
  %v7179 = vld [vmem:[%s7160 + $0x90] sm:$0xff]
  %v7180 = vld [vmem:[%s7160 + $0x98] sm:$0xff]
  %v7181 = vld [vmem:[%s7160 + $0xa0] sm:$0xff]
  %v7182 = vld [vmem:[%s7160 + $0xa8] sm:$0xff]
  %v7183 = vld [vmem:[%s7160 + $0xb0] sm:$0xff]
  %v7184 = vld [vmem:[%s7160 + $0xb8] sm:$0xff]
  %v7185 = vld [vmem:[%s7160 + $0xc0] sm:$0xff]
  %v7186 = vld [vmem:[%s7160 + $0xc8] sm:$0xff]
  %v7187 = vld [vmem:[%s7160 + $0xd0] sm:$0xff]
  %v7188 = vld [vmem:[%s7160 + $0xd8] sm:$0xff]
  %v7189 = vld [vmem:[%s7160 + $0xe0] sm:$0xff]
  %v7190 = vld [vmem:[%s7160 + $0xe8] sm:$0xff]
  %v7191 = vld [vmem:[%s7160 + $0xf0] sm:$0xff]
  %v7192 = vld [vmem:[%s7160 + $0xf8] sm:$0xff]
  %v7193 = vld [vmem:[%s7160 + $0x100] sm:$0xff]
  %v7194 = vld [vmem:[%s7160 + $0x108] sm:$0xff]
  %v7195 = vld [vmem:[%s7160 + $0x110] sm:$0xff]
  %v7196 = vld [vmem:[%s7160 + $0x118] sm:$0xff]
  %v7197 = vld [vmem:[%s7160 + $0x120] sm:$0xff]
  %v7198 = vld [vmem:[%s7160 + $0x128] sm:$0xff]
  %v7199 = vld [vmem:[%s7160 + $0x130] sm:$0xff]
  %v7200 = vld [vmem:[%s7160 + $0x138] sm:$0xff]
  %v7201 = vld [vmem:[%s7160 + $0x140] sm:$0xff]
  %v7202 = vld [vmem:[%s7160 + $0x148] sm:$0xff]
  %v7203 = vld [vmem:[%s7160 + $0x150] sm:$0xff]
  %v7204 = vld [vmem:[%s7160 + $0x158] sm:$0xff]
  %v7205 = vld [vmem:[%s7160 + $0x160] sm:$0xff]
  %v7206 = vld [vmem:[%s7160 + $0x168] sm:$0xff]
  %v7207 = vld [vmem:[%s7160 + $0x170] sm:$0xff]
  %v7208 = vld [vmem:[%s7160 + $0x178] sm:$0xff]
  %v7209 = vld [vmem:[%s7160 + $0x180] sm:$0xff]
  %v7210 = vld [vmem:[%s7160 + $0x188] sm:$0xff]
  %v7211 = vld [vmem:[%s7160 + $0x190] sm:$0xff]
  %v7212 = vld [vmem:[%s7160 + $0x198] sm:$0xff]
  %v7213 = vld [vmem:[%s7160 + $0x1a0] sm:$0xff]
  %v7214 = vld [vmem:[%s7160 + $0x1a8] sm:$0xff]
  %v7215 = vld [vmem:[%s7160 + $0x1b0] sm:$0xff]
  %v7216 = vld [vmem:[%s7160 + $0x1b8] sm:$0xff]
  %v7217 = vld [vmem:[%s7160 + $0x1c0] sm:$0xff]
  %v7218 = vld [vmem:[%s7160 + $0x1c8] sm:$0xff]
  %v7219 = vld [vmem:[%s7160 + $0x1d0] sm:$0xff]
  %v7220 = vld [vmem:[%s7160 + $0x1d8] sm:$0xff]
  %v7221 = vld [vmem:[%s7160 + $0x1e0] sm:$0xff]
  %v7222 = vld [vmem:[%s7160 + $0x1e8] sm:$0xff]
  %v7223 = vld [vmem:[%s7160 + $0x1f0] sm:$0xff]
  %v7224 = vld [vmem:[%s7160 + $0x1f8] sm:$0xff]
  %v7225 = vld [vmem:[%s7160 + $0x200] sm:$0xff]
  %v7226 = vld [vmem:[%s7160 + $0x208] sm:$0xff]
  %v7227 = vld [vmem:[%s7160 + $0x210] sm:$0xff]
  %v7228 = vld [vmem:[%s7160 + $0x218] sm:$0xff]
  %v7229 = vld [vmem:[%s7160 + $0x220] sm:$0xff]
  %v7230 = vld [vmem:[%s7160 + $0x228] sm:$0xff]
  %v7231 = vld [vmem:[%s7160 + $0x230] sm:$0xff]
  %v7232 = vld [vmem:[%s7160 + $0x238] sm:$0xff]
  %v7233 = vld [vmem:[%s7160 + $0x240] sm:$0xff]
  %v7234 = vld [vmem:[%s7160 + $0x248] sm:$0xff]
  %v7235 = vld [vmem:[%s7160 + $0x250] sm:$0xff]
  %v7236 = vld [vmem:[%s7160 + $0x258] sm:$0xff]
  %v7237 = vld [vmem:[%s7160 + $0x260] sm:$0xff]
  %v7238 = vld [vmem:[%s7160 + $0x268] sm:$0xff]
  %v7239 = vld [vmem:[%s7160 + $0x270] sm:$0xff]
  %v7240 = vld [vmem:[%s7160 + $0x278] sm:$0xff]
  %v7241 = vld [vmem:[%s7160 + $0x280] sm:$0xff]
  %v7242 = vld [vmem:[%s7160 + $0x288] sm:$0xff]
  %v7243 = vld [vmem:[%s7160 + $0x290] sm:$0xff]
  %v7244 = vld [vmem:[%s7160 + $0x298] sm:$0xff]
  %v7245 = vld [vmem:[%s7160 + $0x2a0] sm:$0xff]
  %v7246 = vld [vmem:[%s7160 + $0x2a8] sm:$0xff]
  %v7247 = vld [vmem:[%s7160 + $0x2b0] sm:$0xff]
  %v7248 = vld [vmem:[%s7160 + $0x2b8] sm:$0xff]
  %v7249 = vld [vmem:[%s7160 + $0x2c0] sm:$0xff]
  %v7250 = vld [vmem:[%s7160 + $0x2c8] sm:$0xff]
  %v7251 = vld [vmem:[%s7160 + $0x2d0] sm:$0xff]
  %v7252 = vld [vmem:[%s7160 + $0x2d8] sm:$0xff]
  %v7253 = vld [vmem:[%s7160 + $0x2e0] sm:$0xff]
  %v7254 = vld [vmem:[%s7160 + $0x2e8] sm:$0xff]
  %v7255 = vld [vmem:[%s7160 + $0x2f0] sm:$0xff]
  %v7256 = vld [vmem:[%s7160 + $0x2f8] sm:$0xff]
  %v7257 = vld [vmem:[%s7160 + $0x300] sm:$0xff]
  %v7258 = vld [vmem:[%s7160 + $0x308] sm:$0xff]
  %v7259 = vld [vmem:[%s7160 + $0x310] sm:$0xff]
  %v7260 = vld [vmem:[%s7160 + $0x318] sm:$0xff]
  %v7261 = vld [vmem:[%s7160 + $0x320] sm:$0xff]
  %v7262 = vld [vmem:[%s7160 + $0x328] sm:$0xff]
  %v7263 = vld [vmem:[%s7160 + $0x330] sm:$0xff]
  %v7264 = vld [vmem:[%s7160 + $0x338] sm:$0xff]
  %v7265 = vld [vmem:[%s7160 + $0x340] sm:$0xff]
  %v7266 = vld [vmem:[%s7160 + $0x348] sm:$0xff]
  %v7267 = vld [vmem:[%s7160 + $0x350] sm:$0xff]
  %v7268 = vld [vmem:[%s7160 + $0x358] sm:$0xff]
  %v7269 = vld [vmem:[%s7160 + $0x360] sm:$0xff]
  %v7270 = vld [vmem:[%s7160 + $0x368] sm:$0xff]
  %v7271 = vld [vmem:[%s7160 + $0x370] sm:$0xff]
  %v7272 = vld [vmem:[%s7160 + $0x378] sm:$0xff]
  %v7273 = vld [vmem:[%s7160 + $0x380] sm:$0xff]
  %v7274 = vld [vmem:[%s7160 + $0x388] sm:$0xff]
  %v7275 = vld [vmem:[%s7160 + $0x390] sm:$0xff]
  %v7276 = vld [vmem:[%s7160 + $0x398] sm:$0xff]
  %v7277 = vld [vmem:[%s7160 + $0x3a0] sm:$0xff]
  %v7278 = vld [vmem:[%s7160 + $0x3a8] sm:$0xff]
  %v7279 = vld [vmem:[%s7160 + $0x3b0] sm:$0xff]
  %v7280 = vld [vmem:[%s7160 + $0x3b8] sm:$0xff]
  %v7281 = vld [vmem:[%s7160 + $0x3c0] sm:$0xff]
  %v7282 = vld [vmem:[%s7160 + $0x3c8] sm:$0xff]
  %v7283 = vld [vmem:[%s7160 + $0x3d0] sm:$0xff]
  %v7284 = vld [vmem:[%s7160 + $0x3d8] sm:$0xff]
  %v7285 = vld [vmem:[%s7160 + $0x3e0] sm:$0xff]
  %v7286 = vld [vmem:[%s7160 + $0x3e8] sm:$0xff]
  %v7287 = vld [vmem:[%s7160 + $0x3f0] sm:$0xff]
  %v7288 = vld [vmem:[%s7160 + $0x3f8] sm:$0xff]
  %s7289 = scalar_lea.vmem %s2, 28
  %v7290 = vld [vmem:[%s7289] sm:$0xf]
  %v7292 = vperm.slane %v7290, 0
  %v7293 = vperm.slane %v7290, 1
  %v7294 = vperm.slane %v7290, 2
  %v7295 = vperm.slane %v7290, 3
  %v7428 = vunpack.c.l.b16 %v7161
  %v7429 = vunpack.c.h.b16 %v7161
  %v7430 = vunpack.c.l.b16 %v7162
  %v7431 = vunpack.c.h.b16 %v7162
  %v7432 = vunpack.c.l.b16 %v7163
  %v7433 = vunpack.c.h.b16 %v7163
  %v7434 = vunpack.c.l.b16 %v7164
  %v7435 = vunpack.c.h.b16 %v7164
  %v7436 = vunpack.c.l.b16 %v7165
  %v7437 = vunpack.c.h.b16 %v7165
  %v7438 = vunpack.c.l.b16 %v7166
  %v7439 = vunpack.c.h.b16 %v7166
  %v7440 = vunpack.c.l.b16 %v7167
  %v7441 = vunpack.c.h.b16 %v7167
  %v7442 = vunpack.c.l.b16 %v7168
  %v7443 = vunpack.c.h.b16 %v7168
  %v7444 = vunpack.c.l.b16 %v7169
  %v7445 = vunpack.c.h.b16 %v7169
  %v7446 = vunpack.c.l.b16 %v7170
  %v7447 = vunpack.c.h.b16 %v7170
  %v7448 = vunpack.c.l.b16 %v7171
  %v7449 = vunpack.c.h.b16 %v7171
  %v7450 = vunpack.c.l.b16 %v7172
  %v7451 = vunpack.c.h.b16 %v7172
  %v7452 = vunpack.c.l.b16 %v7173
  %v7453 = vunpack.c.h.b16 %v7173
  %v7454 = vunpack.c.l.b16 %v7174
  %v7455 = vunpack.c.h.b16 %v7174
  %v7456 = vunpack.c.l.b16 %v7175
  %v7457 = vunpack.c.h.b16 %v7175
  %v7458 = vunpack.c.l.b16 %v7176
  %v7459 = vunpack.c.h.b16 %v7176
  %v7460 = vunpack.c.l.b16 %v7177
  %v7461 = vunpack.c.h.b16 %v7177
  %v7462 = vunpack.c.l.b16 %v7178
  %v7463 = vunpack.c.h.b16 %v7178
  %v7464 = vunpack.c.l.b16 %v7179
  %v7465 = vunpack.c.h.b16 %v7179
  %v7466 = vunpack.c.l.b16 %v7180
  %v7467 = vunpack.c.h.b16 %v7180
  %v7468 = vunpack.c.l.b16 %v7181
  %v7469 = vunpack.c.h.b16 %v7181
  %v7470 = vunpack.c.l.b16 %v7182
  %v7471 = vunpack.c.h.b16 %v7182
  %v7472 = vunpack.c.l.b16 %v7183
  %v7473 = vunpack.c.h.b16 %v7183
  %v7474 = vunpack.c.l.b16 %v7184
  %v7475 = vunpack.c.h.b16 %v7184
  %v7476 = vunpack.c.l.b16 %v7185
  %v7477 = vunpack.c.h.b16 %v7185
  %v7478 = vunpack.c.l.b16 %v7186
  %v7479 = vunpack.c.h.b16 %v7186
  %v7480 = vunpack.c.l.b16 %v7187
  %v7481 = vunpack.c.h.b16 %v7187
  %v7482 = vunpack.c.l.b16 %v7188
  %v7483 = vunpack.c.h.b16 %v7188
  %v7484 = vunpack.c.l.b16 %v7189
  %v7485 = vunpack.c.h.b16 %v7189
  %v7486 = vunpack.c.l.b16 %v7190
  %v7487 = vunpack.c.h.b16 %v7190
  %v7488 = vunpack.c.l.b16 %v7191
  %v7489 = vunpack.c.h.b16 %v7191
  %v7490 = vunpack.c.l.b16 %v7192
  %v7491 = vunpack.c.h.b16 %v7192
  %v7492 = vunpack.c.l.b16 %v7193
  %v7493 = vunpack.c.h.b16 %v7193
  %v7494 = vunpack.c.l.b16 %v7194
  %v7495 = vunpack.c.h.b16 %v7194
  %v7496 = vunpack.c.l.b16 %v7195
  %v7497 = vunpack.c.h.b16 %v7195
  %v7498 = vunpack.c.l.b16 %v7196
  %v7499 = vunpack.c.h.b16 %v7196
  %v7500 = vunpack.c.l.b16 %v7197
  %v7501 = vunpack.c.h.b16 %v7197
  %v7502 = vunpack.c.l.b16 %v7198
  %v7503 = vunpack.c.h.b16 %v7198
  %v7504 = vunpack.c.l.b16 %v7199
  %v7505 = vunpack.c.h.b16 %v7199
  %v7506 = vunpack.c.l.b16 %v7200
  %v7507 = vunpack.c.h.b16 %v7200
  %v7508 = vunpack.c.l.b16 %v7201
  %v7509 = vunpack.c.h.b16 %v7201
  %v7510 = vunpack.c.l.b16 %v7202
  %v7511 = vunpack.c.h.b16 %v7202
  %v7512 = vunpack.c.l.b16 %v7203
  %v7513 = vunpack.c.h.b16 %v7203
  %v7514 = vunpack.c.l.b16 %v7204
  %v7515 = vunpack.c.h.b16 %v7204
  %v7516 = vunpack.c.l.b16 %v7205
  %v7517 = vunpack.c.h.b16 %v7205
  %v7518 = vunpack.c.l.b16 %v7206
  %v7519 = vunpack.c.h.b16 %v7206
  %v7520 = vunpack.c.l.b16 %v7207
  %v7521 = vunpack.c.h.b16 %v7207
  %v7522 = vunpack.c.l.b16 %v7208
  %v7523 = vunpack.c.h.b16 %v7208
  %v7524 = vunpack.c.l.b16 %v7209
  %v7525 = vunpack.c.h.b16 %v7209
  %v7526 = vunpack.c.l.b16 %v7210
  %v7527 = vunpack.c.h.b16 %v7210
  %v7528 = vunpack.c.l.b16 %v7211
  %v7529 = vunpack.c.h.b16 %v7211
  %v7530 = vunpack.c.l.b16 %v7212
  %v7531 = vunpack.c.h.b16 %v7212
  %v7532 = vunpack.c.l.b16 %v7213
  %v7533 = vunpack.c.h.b16 %v7213
  %v7534 = vunpack.c.l.b16 %v7214
  %v7535 = vunpack.c.h.b16 %v7214
  %v7536 = vunpack.c.l.b16 %v7215
  %v7537 = vunpack.c.h.b16 %v7215
  %v7538 = vunpack.c.l.b16 %v7216
  %v7539 = vunpack.c.h.b16 %v7216
  %v7540 = vunpack.c.l.b16 %v7217
  %v7541 = vunpack.c.h.b16 %v7217
  %v7542 = vunpack.c.l.b16 %v7218
  %v7543 = vunpack.c.h.b16 %v7218
  %v7544 = vunpack.c.l.b16 %v7219
  %v7545 = vunpack.c.h.b16 %v7219
  %v7546 = vunpack.c.l.b16 %v7220
  %v7547 = vunpack.c.h.b16 %v7220
  %v7548 = vunpack.c.l.b16 %v7221
  %v7549 = vunpack.c.h.b16 %v7221
  %v7550 = vunpack.c.l.b16 %v7222
  %v7551 = vunpack.c.h.b16 %v7222
  %v7552 = vunpack.c.l.b16 %v7223
  %v7553 = vunpack.c.h.b16 %v7223
  %v7554 = vunpack.c.l.b16 %v7224
  %v7555 = vunpack.c.h.b16 %v7224
  %v7556 = vunpack.c.l.b16 %v7225
  %v7557 = vunpack.c.h.b16 %v7225
  %v7558 = vunpack.c.l.b16 %v7226
  %v7559 = vunpack.c.h.b16 %v7226
  %v7560 = vunpack.c.l.b16 %v7227
  %v7561 = vunpack.c.h.b16 %v7227
  %v7562 = vunpack.c.l.b16 %v7228
  %v7563 = vunpack.c.h.b16 %v7228
  %v7564 = vunpack.c.l.b16 %v7229
  %v7565 = vunpack.c.h.b16 %v7229
  %v7566 = vunpack.c.l.b16 %v7230
  %v7567 = vunpack.c.h.b16 %v7230
  %v7568 = vunpack.c.l.b16 %v7231
  %v7569 = vunpack.c.h.b16 %v7231
  %v7570 = vunpack.c.l.b16 %v7232
  %v7571 = vunpack.c.h.b16 %v7232
  %v7572 = vunpack.c.l.b16 %v7233
  %v7573 = vunpack.c.h.b16 %v7233
  %v7574 = vunpack.c.l.b16 %v7234
  %v7575 = vunpack.c.h.b16 %v7234
  %v7576 = vunpack.c.l.b16 %v7235
  %v7577 = vunpack.c.h.b16 %v7235
  %v7578 = vunpack.c.l.b16 %v7236
  %v7579 = vunpack.c.h.b16 %v7236
  %v7580 = vunpack.c.l.b16 %v7237
  %v7581 = vunpack.c.h.b16 %v7237
  %v7582 = vunpack.c.l.b16 %v7238
  %v7583 = vunpack.c.h.b16 %v7238
  %v7584 = vunpack.c.l.b16 %v7239
  %v7585 = vunpack.c.h.b16 %v7239
  %v7586 = vunpack.c.l.b16 %v7240
  %v7587 = vunpack.c.h.b16 %v7240
  %v7588 = vunpack.c.l.b16 %v7241
  %v7589 = vunpack.c.h.b16 %v7241
  %v7590 = vunpack.c.l.b16 %v7242
  %v7591 = vunpack.c.h.b16 %v7242
  %v7592 = vunpack.c.l.b16 %v7243
  %v7593 = vunpack.c.h.b16 %v7243
  %v7594 = vunpack.c.l.b16 %v7244
  %v7595 = vunpack.c.h.b16 %v7244
  %v7596 = vunpack.c.l.b16 %v7245
  %v7597 = vunpack.c.h.b16 %v7245
  %v7598 = vunpack.c.l.b16 %v7246
  %v7599 = vunpack.c.h.b16 %v7246
  %v7600 = vunpack.c.l.b16 %v7247
  %v7601 = vunpack.c.h.b16 %v7247
  %v7602 = vunpack.c.l.b16 %v7248
  %v7603 = vunpack.c.h.b16 %v7248
  %v7604 = vunpack.c.l.b16 %v7249
  %v7605 = vunpack.c.h.b16 %v7249
  %v7606 = vunpack.c.l.b16 %v7250
  %v7607 = vunpack.c.h.b16 %v7250
  %v7608 = vunpack.c.l.b16 %v7251
  %v7609 = vunpack.c.h.b16 %v7251
  %v7610 = vunpack.c.l.b16 %v7252
  %v7611 = vunpack.c.h.b16 %v7252
  %v7612 = vunpack.c.l.b16 %v7253
  %v7613 = vunpack.c.h.b16 %v7253
  %v7614 = vunpack.c.l.b16 %v7254
  %v7615 = vunpack.c.h.b16 %v7254
  %v7616 = vunpack.c.l.b16 %v7255
  %v7617 = vunpack.c.h.b16 %v7255
  %v7618 = vunpack.c.l.b16 %v7256
  %v7619 = vunpack.c.h.b16 %v7256
  %v7620 = vunpack.c.l.b16 %v7257
  %v7621 = vunpack.c.h.b16 %v7257
  %v7622 = vunpack.c.l.b16 %v7258
  %v7623 = vunpack.c.h.b16 %v7258
  %v7624 = vunpack.c.l.b16 %v7259
  %v7625 = vunpack.c.h.b16 %v7259
  %v7626 = vunpack.c.l.b16 %v7260
  %v7627 = vunpack.c.h.b16 %v7260
  %v7628 = vunpack.c.l.b16 %v7261
  %v7629 = vunpack.c.h.b16 %v7261
  %v7630 = vunpack.c.l.b16 %v7262
  %v7631 = vunpack.c.h.b16 %v7262
  %v7632 = vunpack.c.l.b16 %v7263
  %v7633 = vunpack.c.h.b16 %v7263
  %v7634 = vunpack.c.l.b16 %v7264
  %v7635 = vunpack.c.h.b16 %v7264
  %v7636 = vunpack.c.l.b16 %v7265
  %v7637 = vunpack.c.h.b16 %v7265
  %v7638 = vunpack.c.l.b16 %v7266
  %v7639 = vunpack.c.h.b16 %v7266
  %v7640 = vunpack.c.l.b16 %v7267
  %v7641 = vunpack.c.h.b16 %v7267
  %v7642 = vunpack.c.l.b16 %v7268
  %v7643 = vunpack.c.h.b16 %v7268
  %v7644 = vunpack.c.l.b16 %v7269
  %v7645 = vunpack.c.h.b16 %v7269
  %v7646 = vunpack.c.l.b16 %v7270
  %v7647 = vunpack.c.h.b16 %v7270
  %v7648 = vunpack.c.l.b16 %v7271
  %v7649 = vunpack.c.h.b16 %v7271
  %v7650 = vunpack.c.l.b16 %v7272
  %v7651 = vunpack.c.h.b16 %v7272
  %v7652 = vunpack.c.l.b16 %v7273
  %v7653 = vunpack.c.h.b16 %v7273
  %v7654 = vunpack.c.l.b16 %v7274
  %v7655 = vunpack.c.h.b16 %v7274
  %v7656 = vunpack.c.l.b16 %v7275
  %v7657 = vunpack.c.h.b16 %v7275
  %v7658 = vunpack.c.l.b16 %v7276
  %v7659 = vunpack.c.h.b16 %v7276
  %v7660 = vunpack.c.l.b16 %v7277
  %v7661 = vunpack.c.h.b16 %v7277
  %v7662 = vunpack.c.l.b16 %v7278
  %v7663 = vunpack.c.h.b16 %v7278
  %v7664 = vunpack.c.l.b16 %v7279
  %v7665 = vunpack.c.h.b16 %v7279
  %v7666 = vunpack.c.l.b16 %v7280
  %v7667 = vunpack.c.h.b16 %v7280
  %v7668 = vunpack.c.l.b16 %v7281
  %v7669 = vunpack.c.h.b16 %v7281
  %v7670 = vunpack.c.l.b16 %v7282
  %v7671 = vunpack.c.h.b16 %v7282
  %v7672 = vunpack.c.l.b16 %v7283
  %v7673 = vunpack.c.h.b16 %v7283
  %v7674 = vunpack.c.l.b16 %v7284
  %v7675 = vunpack.c.h.b16 %v7284
  %v7676 = vunpack.c.l.b16 %v7285
  %v7677 = vunpack.c.h.b16 %v7285
  %v7678 = vunpack.c.l.b16 %v7286
  %v7679 = vunpack.c.h.b16 %v7286
  %v7680 = vunpack.c.l.b16 %v7287
  %v7681 = vunpack.c.h.b16 %v7287
  %v7682 = vunpack.c.l.b16 %v7288
  %v7683 = vunpack.c.h.b16 %v7288
  %v7684 = vpack.c.b16 %v7432, %v7428
  %v7685 = vpack.c.b16 %v7433, %v7429
  %v7686 = vpack.c.b16 %v7434, %v7430
  %v7687 = vpack.c.b16 %v7435, %v7431
  %v7688 = vpack.c.b16 %v7440, %v7436
  %v7689 = vpack.c.b16 %v7441, %v7437
  %v7690 = vpack.c.b16 %v7442, %v7438
  %v7691 = vpack.c.b16 %v7443, %v7439
  %v7692 = vpack.c.b16 %v7448, %v7444
  %v7693 = vpack.c.b16 %v7449, %v7445
  %v7694 = vpack.c.b16 %v7450, %v7446
  %v7695 = vpack.c.b16 %v7451, %v7447
  %v7696 = vpack.c.b16 %v7456, %v7452
  %v7697 = vpack.c.b16 %v7457, %v7453
  %v7698 = vpack.c.b16 %v7458, %v7454
  %v7699 = vpack.c.b16 %v7459, %v7455
  %v7700 = vpack.c.b16 %v7464, %v7460
  %v7701 = vpack.c.b16 %v7465, %v7461
  %v7702 = vpack.c.b16 %v7466, %v7462
  %v7703 = vpack.c.b16 %v7467, %v7463
  %v7704 = vpack.c.b16 %v7472, %v7468
  %v7705 = vpack.c.b16 %v7473, %v7469
  %v7706 = vpack.c.b16 %v7474, %v7470
  %v7707 = vpack.c.b16 %v7475, %v7471
  %v7708 = vpack.c.b16 %v7480, %v7476
  %v7709 = vpack.c.b16 %v7481, %v7477
  %v7710 = vpack.c.b16 %v7482, %v7478
  %v7711 = vpack.c.b16 %v7483, %v7479
  %v7712 = vpack.c.b16 %v7488, %v7484
  %v7713 = vpack.c.b16 %v7489, %v7485
  %v7714 = vpack.c.b16 %v7490, %v7486
  %v7715 = vpack.c.b16 %v7491, %v7487
  %v7716 = vpack.c.b16 %v7496, %v7492
  %v7717 = vpack.c.b16 %v7497, %v7493
  %v7718 = vpack.c.b16 %v7498, %v7494
  %v7719 = vpack.c.b16 %v7499, %v7495
  %v7720 = vpack.c.b16 %v7504, %v7500
  %v7721 = vpack.c.b16 %v7505, %v7501
  %v7722 = vpack.c.b16 %v7506, %v7502
  %v7723 = vpack.c.b16 %v7507, %v7503
  %v7724 = vpack.c.b16 %v7512, %v7508
  %v7725 = vpack.c.b16 %v7513, %v7509
  %v7726 = vpack.c.b16 %v7514, %v7510
  %v7727 = vpack.c.b16 %v7515, %v7511
  %v7728 = vpack.c.b16 %v7520, %v7516
  %v7729 = vpack.c.b16 %v7521, %v7517
  %v7730 = vpack.c.b16 %v7522, %v7518
  %v7731 = vpack.c.b16 %v7523, %v7519
  %v7732 = vpack.c.b16 %v7528, %v7524
  %v7733 = vpack.c.b16 %v7529, %v7525
  %v7734 = vpack.c.b16 %v7530, %v7526
  %v7735 = vpack.c.b16 %v7531, %v7527
  %v7736 = vpack.c.b16 %v7536, %v7532
  %v7737 = vpack.c.b16 %v7537, %v7533
  %v7738 = vpack.c.b16 %v7538, %v7534
  %v7739 = vpack.c.b16 %v7539, %v7535
  %v7740 = vpack.c.b16 %v7544, %v7540
  %v7741 = vpack.c.b16 %v7545, %v7541
  %v7742 = vpack.c.b16 %v7546, %v7542
  %v7743 = vpack.c.b16 %v7547, %v7543
  %v7744 = vpack.c.b16 %v7552, %v7548
  %v7745 = vpack.c.b16 %v7553, %v7549
  %v7746 = vpack.c.b16 %v7554, %v7550
  %v7747 = vpack.c.b16 %v7555, %v7551
  %v7748 = vpack.c.b16 %v7560, %v7556
  %v7749 = vpack.c.b16 %v7561, %v7557
  %v7750 = vpack.c.b16 %v7562, %v7558
  %v7751 = vpack.c.b16 %v7563, %v7559
  %v7752 = vpack.c.b16 %v7568, %v7564
  %v7753 = vpack.c.b16 %v7569, %v7565
  %v7754 = vpack.c.b16 %v7570, %v7566
  %v7755 = vpack.c.b16 %v7571, %v7567
  %v7756 = vpack.c.b16 %v7576, %v7572
  %v7757 = vpack.c.b16 %v7577, %v7573
  %v7758 = vpack.c.b16 %v7578, %v7574
  %v7759 = vpack.c.b16 %v7579, %v7575
  %v7760 = vpack.c.b16 %v7584, %v7580
  %v7761 = vpack.c.b16 %v7585, %v7581
  %v7762 = vpack.c.b16 %v7586, %v7582
  %v7763 = vpack.c.b16 %v7587, %v7583
  %v7764 = vpack.c.b16 %v7592, %v7588
  %v7765 = vpack.c.b16 %v7593, %v7589
  %v7766 = vpack.c.b16 %v7594, %v7590
  %v7767 = vpack.c.b16 %v7595, %v7591
  %v7768 = vpack.c.b16 %v7600, %v7596
  %v7769 = vpack.c.b16 %v7601, %v7597
  %v7770 = vpack.c.b16 %v7602, %v7598
  %v7771 = vpack.c.b16 %v7603, %v7599
  %v7772 = vpack.c.b16 %v7608, %v7604
  %v7773 = vpack.c.b16 %v7609, %v7605
  %v7774 = vpack.c.b16 %v7610, %v7606
  %v7775 = vpack.c.b16 %v7611, %v7607
  %v7776 = vpack.c.b16 %v7616, %v7612
  %v7777 = vpack.c.b16 %v7617, %v7613
  %v7778 = vpack.c.b16 %v7618, %v7614
  %v7779 = vpack.c.b16 %v7619, %v7615
  %v7780 = vpack.c.b16 %v7624, %v7620
  %v7781 = vpack.c.b16 %v7625, %v7621
  %v7782 = vpack.c.b16 %v7626, %v7622
  %v7783 = vpack.c.b16 %v7627, %v7623
  %v7784 = vpack.c.b16 %v7632, %v7628
  %v7785 = vpack.c.b16 %v7633, %v7629
  %v7786 = vpack.c.b16 %v7634, %v7630
  %v7787 = vpack.c.b16 %v7635, %v7631
  %v7788 = vpack.c.b16 %v7640, %v7636
  %v7789 = vpack.c.b16 %v7641, %v7637
  %v7790 = vpack.c.b16 %v7642, %v7638
  %v7791 = vpack.c.b16 %v7643, %v7639
  %v7792 = vpack.c.b16 %v7648, %v7644
  %v7793 = vpack.c.b16 %v7649, %v7645
  %v7794 = vpack.c.b16 %v7650, %v7646
  %v7795 = vpack.c.b16 %v7651, %v7647
  %v7796 = vpack.c.b16 %v7656, %v7652
  %v7797 = vpack.c.b16 %v7657, %v7653
  %v7798 = vpack.c.b16 %v7658, %v7654
  %v7799 = vpack.c.b16 %v7659, %v7655
  %v7800 = vpack.c.b16 %v7664, %v7660
  %v7801 = vpack.c.b16 %v7665, %v7661
  %v7802 = vpack.c.b16 %v7666, %v7662
  %v7803 = vpack.c.b16 %v7667, %v7663
  %v7804 = vpack.c.b16 %v7672, %v7668
  %v7805 = vpack.c.b16 %v7673, %v7669
  %v7806 = vpack.c.b16 %v7674, %v7670
  %v7807 = vpack.c.b16 %v7675, %v7671
  %v7808 = vpack.c.b16 %v7680, %v7676
  %v7809 = vpack.c.b16 %v7681, %v7677
  %v7810 = vpack.c.b16 %v7682, %v7678
  %v7811 = vpack.c.b16 %v7683, %v7679
  %7940 = vmatpush.bf16.msra.mxu0 %v7712
  %7941 = vmatpush.bf16.msra.mxu0 %v7708
  %7942 = vmatpush.bf16.msra.mxu0 %v7704
  %7943 = vmatpush.bf16.msra.mxu0 %v7700
  %7944 = vmatpush.bf16.msra.mxu0 %v7696
  %7945 = vmatpush.bf16.msra.mxu0 %v7692
  %7946 = vmatpush.bf16.msra.mxu0 %v7688
  %7947 = vmatpush.bf16.msra.mxu0 %v7684
  %7948 = vmatmul.bf16.gmra.mxu0 %v7156
  %v7949 = vpop.f32.mrf.mxu0
  %v7950 = vadd.f32 %v7292, %v7949
  %v7951 = vpop.f32.mrf.mxu0
  %v7952 = vadd.f32 %v7292, %v7951
  %7953 = vdwg.mxu0
  %7954 = vmatpush.bf16.msra.mxu0 %v7744
  %7955 = vmatpush.bf16.msra.mxu0 %v7740
  %7956 = vmatpush.bf16.msra.mxu0 %v7736
  %7957 = vmatpush.bf16.msra.mxu0 %v7732
  %7958 = vmatpush.bf16.msra.mxu0 %v7728
  %7959 = vmatpush.bf16.msra.mxu0 %v7724
  %7960 = vmatpush.bf16.msra.mxu0 %v7720
  %7961 = vmatpush.bf16.msra.mxu0 %v7716
  %7962 = vmatmul.bf16.gmra.mxu0 %v7157
  %v7963 = vpop.f32.mrf.mxu0
  %v7964 = vadd.f32 %v7950, %v7963
  %v7965 = vpop.f32.mrf.mxu0
  %v7966 = vadd.f32 %v7952, %v7965
  %7967 = vdwg.mxu0
  %7968 = vmatpush.bf16.msra.mxu0 %v7776
  %7969 = vmatpush.bf16.msra.mxu0 %v7772
  %7970 = vmatpush.bf16.msra.mxu0 %v7768
  %7971 = vmatpush.bf16.msra.mxu0 %v7764
  %7972 = vmatpush.bf16.msra.mxu0 %v7760
  %7973 = vmatpush.bf16.msra.mxu0 %v7756
  %7974 = vmatpush.bf16.msra.mxu0 %v7752
  %7975 = vmatpush.bf16.msra.mxu0 %v7748
  %7976 = vmatmul.bf16.gmra.mxu0 %v7158
  %v7977 = vpop.f32.mrf.mxu0
  %v7978 = vadd.f32 %v7964, %v7977
  %v7979 = vpop.f32.mrf.mxu0
  %v7980 = vadd.f32 %v7966, %v7979
  %7981 = vdwg.mxu0
  %7982 = vmatpush.bf16.msra.mxu0 %v7808
  %7983 = vmatpush.bf16.msra.mxu0 %v7804
  %7984 = vmatpush.bf16.msra.mxu0 %v7800
  %7985 = vmatpush.bf16.msra.mxu0 %v7796
  %7986 = vmatpush.bf16.msra.mxu0 %v7792
  %7987 = vmatpush.bf16.msra.mxu0 %v7788
  %7988 = vmatpush.bf16.msra.mxu0 %v7784
  %7989 = vmatpush.bf16.msra.mxu0 %v7780
  %7990 = vmatmul.bf16.gmra.mxu0 %v7159
  %v7991 = vpop.f32.mrf.mxu0
  %v7992 = vadd.f32 %v7978, %v7991
  %v7993 = vpop.f32.mrf.mxu0
  %v7994 = vadd.f32 %v7980, %v7993
  %7995 = vdwg.mxu0
  %7996 = vmatpush.bf16.msra.mxu0 %v7713
  %7997 = vmatpush.bf16.msra.mxu0 %v7709
  %7998 = vmatpush.bf16.msra.mxu0 %v7705
  %7999 = vmatpush.bf16.msra.mxu0 %v7701
  %8000 = vmatpush.bf16.msra.mxu0 %v7697
  %8001 = vmatpush.bf16.msra.mxu0 %v7693
  %8002 = vmatpush.bf16.msra.mxu0 %v7689
  %8003 = vmatpush.bf16.msra.mxu0 %v7685
  %8004 = vmatmul.bf16.gmra.mxu0 %v7156
  %v8005 = vpop.f32.mrf.mxu0
  %v8006 = vadd.f32 %v7293, %v8005
  %v8007 = vpop.f32.mrf.mxu0
  %v8008 = vadd.f32 %v7293, %v8007
  %8009 = vdwg.mxu0
  %8010 = vmatpush.bf16.msra.mxu0 %v7745
  %8011 = vmatpush.bf16.msra.mxu0 %v7741
  %8012 = vmatpush.bf16.msra.mxu0 %v7737
  %8013 = vmatpush.bf16.msra.mxu0 %v7733
  %8014 = vmatpush.bf16.msra.mxu0 %v7729
  %8015 = vmatpush.bf16.msra.mxu0 %v7725
  %8016 = vmatpush.bf16.msra.mxu0 %v7721
  %8017 = vmatpush.bf16.msra.mxu0 %v7717
  %8018 = vmatmul.bf16.gmra.mxu0 %v7157
  %v8019 = vpop.f32.mrf.mxu0
  %v8020 = vadd.f32 %v8006, %v8019
  %v8021 = vpop.f32.mrf.mxu0
  %v8022 = vadd.f32 %v8008, %v8021
  %8023 = vdwg.mxu0
  %8024 = vmatpush.bf16.msra.mxu0 %v7777
  %8025 = vmatpush.bf16.msra.mxu0 %v7773
  %8026 = vmatpush.bf16.msra.mxu0 %v7769
  %8027 = vmatpush.bf16.msra.mxu0 %v7765
  %8028 = vmatpush.bf16.msra.mxu0 %v7761
  %8029 = vmatpush.bf16.msra.mxu0 %v7757
  %8030 = vmatpush.bf16.msra.mxu0 %v7753
  %8031 = vmatpush.bf16.msra.mxu0 %v7749
  %8032 = vmatmul.bf16.gmra.mxu0 %v7158
  %v8033 = vpop.f32.mrf.mxu0
  %v8034 = vadd.f32 %v8020, %v8033
  %v8035 = vpop.f32.mrf.mxu0
  %v8036 = vadd.f32 %v8022, %v8035
  %8037 = vdwg.mxu0
  %8038 = vmatpush.bf16.msra.mxu0 %v7809
  %8039 = vmatpush.bf16.msra.mxu0 %v7805
  %8040 = vmatpush.bf16.msra.mxu0 %v7801
  %8041 = vmatpush.bf16.msra.mxu0 %v7797
  %8042 = vmatpush.bf16.msra.mxu0 %v7793
  %8043 = vmatpush.bf16.msra.mxu0 %v7789
  %8044 = vmatpush.bf16.msra.mxu0 %v7785
  %8045 = vmatpush.bf16.msra.mxu0 %v7781
  %8046 = vmatmul.bf16.gmra.mxu0 %v7159
  %v8047 = vpop.f32.mrf.mxu0
  %v8048 = vadd.f32 %v8034, %v8047
  %v8049 = vpop.f32.mrf.mxu0
  %v8050 = vadd.f32 %v8036, %v8049
  %8051 = vdwg.mxu0
  %8052 = vmatpush.bf16.msra.mxu0 %v7714
  %8053 = vmatpush.bf16.msra.mxu0 %v7710
  %8054 = vmatpush.bf16.msra.mxu0 %v7706
  %8055 = vmatpush.bf16.msra.mxu0 %v7702
  %8056 = vmatpush.bf16.msra.mxu0 %v7698
  %8057 = vmatpush.bf16.msra.mxu0 %v7694
  %8058 = vmatpush.bf16.msra.mxu0 %v7690
  %8059 = vmatpush.bf16.msra.mxu0 %v7686
  %8060 = vmatmul.bf16.gmra.mxu0 %v7156
  %v8061 = vpop.f32.mrf.mxu0
  %v8062 = vadd.f32 %v7294, %v8061
  %v8063 = vpop.f32.mrf.mxu0
  %v8064 = vadd.f32 %v7294, %v8063
  %8065 = vdwg.mxu0
  %8066 = vmatpush.bf16.msra.mxu0 %v7746
  %8067 = vmatpush.bf16.msra.mxu0 %v7742
  %8068 = vmatpush.bf16.msra.mxu0 %v7738
  %8069 = vmatpush.bf16.msra.mxu0 %v7734
  %8070 = vmatpush.bf16.msra.mxu0 %v7730
  %8071 = vmatpush.bf16.msra.mxu0 %v7726
  %8072 = vmatpush.bf16.msra.mxu0 %v7722
  %8073 = vmatpush.bf16.msra.mxu0 %v7718
  %8074 = vmatmul.bf16.gmra.mxu0 %v7157
  %v8075 = vpop.f32.mrf.mxu0
  %v8076 = vadd.f32 %v8062, %v8075
  %v8077 = vpop.f32.mrf.mxu0
  %v8078 = vadd.f32 %v8064, %v8077
  %8079 = vdwg.mxu0
  %8080 = vmatpush.bf16.msra.mxu0 %v7778
  %8081 = vmatpush.bf16.msra.mxu0 %v7774
  %8082 = vmatpush.bf16.msra.mxu0 %v7770
  %8083 = vmatpush.bf16.msra.mxu0 %v7766
  %8084 = vmatpush.bf16.msra.mxu0 %v7762
  %8085 = vmatpush.bf16.msra.mxu0 %v7758
  %8086 = vmatpush.bf16.msra.mxu0 %v7754
  %8087 = vmatpush.bf16.msra.mxu0 %v7750
  %8088 = vmatmul.bf16.gmra.mxu0 %v7158
  %v8089 = vpop.f32.mrf.mxu0
  %v8090 = vadd.f32 %v8076, %v8089
  %v8091 = vpop.f32.mrf.mxu0
  %v8092 = vadd.f32 %v8078, %v8091
  %8093 = vdwg.mxu0
  %8094 = vmatpush.bf16.msra.mxu0 %v7810
  %8095 = vmatpush.bf16.msra.mxu0 %v7806
  %8096 = vmatpush.bf16.msra.mxu0 %v7802
  %8097 = vmatpush.bf16.msra.mxu0 %v7798
  %8098 = vmatpush.bf16.msra.mxu0 %v7794
  %8099 = vmatpush.bf16.msra.mxu0 %v7790
  %8100 = vmatpush.bf16.msra.mxu0 %v7786
  %8101 = vmatpush.bf16.msra.mxu0 %v7782
  %8102 = vmatmul.bf16.gmra.mxu0 %v7159
  %v8103 = vpop.f32.mrf.mxu0
  %v8104 = vadd.f32 %v8090, %v8103
  %v8105 = vpop.f32.mrf.mxu0
  %v8106 = vadd.f32 %v8092, %v8105
  %8107 = vdwg.mxu0
  %8108 = vmatpush.bf16.msra.mxu0 %v7715
  %8109 = vmatpush.bf16.msra.mxu0 %v7711
  %8110 = vmatpush.bf16.msra.mxu0 %v7707
  %8111 = vmatpush.bf16.msra.mxu0 %v7703
  %8112 = vmatpush.bf16.msra.mxu0 %v7699
  %8113 = vmatpush.bf16.msra.mxu0 %v7695
  %8114 = vmatpush.bf16.msra.mxu0 %v7691
  %8115 = vmatpush.bf16.msra.mxu0 %v7687
  %8116 = vmatmul.bf16.gmra.mxu0 %v7156
  %v8117 = vpop.f32.mrf.mxu0
  %v8118 = vadd.f32 %v7295, %v8117
  %v8119 = vpop.f32.mrf.mxu0
  %v8120 = vadd.f32 %v7295, %v8119
  %8121 = vdwg.mxu0
  %8122 = vmatpush.bf16.msra.mxu0 %v7747
  %8123 = vmatpush.bf16.msra.mxu0 %v7743
  %8124 = vmatpush.bf16.msra.mxu0 %v7739
  %8125 = vmatpush.bf16.msra.mxu0 %v7735
  %8126 = vmatpush.bf16.msra.mxu0 %v7731
  %8127 = vmatpush.bf16.msra.mxu0 %v7727
  %8128 = vmatpush.bf16.msra.mxu0 %v7723
  %8129 = vmatpush.bf16.msra.mxu0 %v7719
  %8130 = vmatmul.bf16.gmra.mxu0 %v7157
  %v8131 = vpop.f32.mrf.mxu0
  %v8132 = vadd.f32 %v8118, %v8131
  %v8133 = vpop.f32.mrf.mxu0
  %v8134 = vadd.f32 %v8120, %v8133
  %8135 = vdwg.mxu0
  %8136 = vmatpush.bf16.msra.mxu0 %v7779
  %8137 = vmatpush.bf16.msra.mxu0 %v7775
  %8138 = vmatpush.bf16.msra.mxu0 %v7771
  %8139 = vmatpush.bf16.msra.mxu0 %v7767
  %8140 = vmatpush.bf16.msra.mxu0 %v7763
  %8141 = vmatpush.bf16.msra.mxu0 %v7759
  %8142 = vmatpush.bf16.msra.mxu0 %v7755
  %8143 = vmatpush.bf16.msra.mxu0 %v7751
  %8144 = vmatmul.bf16.gmra.mxu0 %v7158
  %v8145 = vpop.f32.mrf.mxu0
  %v8146 = vadd.f32 %v8132, %v8145
  %v8147 = vpop.f32.mrf.mxu0
  %v8148 = vadd.f32 %v8134, %v8147
  %8149 = vdwg.mxu0
  %8150 = vmatpush.bf16.msra.mxu0 %v7811
  %8151 = vmatpush.bf16.msra.mxu0 %v7807
  %8152 = vmatpush.bf16.msra.mxu0 %v7803
  %8153 = vmatpush.bf16.msra.mxu0 %v7799
  %8154 = vmatpush.bf16.msra.mxu0 %v7795
  %8155 = vmatpush.bf16.msra.mxu0 %v7791
  %8156 = vmatpush.bf16.msra.mxu0 %v7787
  %8157 = vmatpush.bf16.msra.mxu0 %v7783
  %8158 = vmatmul.bf16.gmra.mxu0 %v7159
  %v8159 = vpop.f32.mrf.mxu0
  %v8160 = vadd.f32 %v8146, %v8159
  %v8161 = vpop.f32.mrf.mxu0
  %v8162 = vadd.f32 %v8148, %v8161
  %8163 = vdwg.mxu0
  %v8164 = vmax.f32 %v7992, 0.0
  %v8165 = vmax.f32 %v8048, 0.0
  %v8166 = vmax.f32 %v8104, 0.0
  %v8167 = vmax.f32 %v8160, 0.0
  %v8168 = vmax.f32 %v7994, 0.0
  %v8169 = vmax.f32 %v8050, 0.0
  %v8170 = vmax.f32 %v8106, 0.0
  %v8171 = vmax.f32 %v8162, 0.0
  %v8172 = vpack.c.bf16 %v8168, %v8164
  %v8173 = vpack.c.bf16 %v8169, %v8165
  %v8174 = vpack.c.bf16 %v8170, %v8166
  %v8175 = vpack.c.bf16 %v8171, %v8167
  %v8176 = vld [vmem:[%s3] sm:$0xf]
  %v8177 = vld [vmem:[%s3 + $0x4] sm:$0xf]
  %v8178 = vld [vmem:[%s3 + $0x8] sm:$0xf]
  %v8179 = vld [vmem:[%s3 + $0xc] sm:$0xf]
  %v8180 = vld [vmem:[%s3 + $0x10] sm:$0xf]
  %v8181 = vld [vmem:[%s3 + $0x14] sm:$0xf]
  %v8182 = vld [vmem:[%s3 + $0x18] sm:$0xf]
  %v8183 = vld [vmem:[%s3 + $0x1c] sm:$0xf]
  %v8184 = vld [vmem:[%s3 + $0x20] sm:$0xf]
  %v8185 = vld [vmem:[%s3 + $0x24] sm:$0xf]
  %v8186 = vld [vmem:[%s3 + $0x28] sm:$0xf]
  %v8187 = vld [vmem:[%s3 + $0x2c] sm:$0xf]
  %v8188 = vld [vmem:[%s3 + $0x30] sm:$0xf]
  %v8189 = vld [vmem:[%s3 + $0x34] sm:$0xf]
  %v8190 = vld [vmem:[%s3 + $0x38] sm:$0xf]
  %v8191 = vld [vmem:[%s3 + $0x3c] sm:$0xf]
  %v8192 = vld [vmem:[%s3 + $0x40] sm:$0xf]
  %v8193 = vld [vmem:[%s3 + $0x44] sm:$0xf]
  %v8194 = vld [vmem:[%s3 + $0x48] sm:$0xf]
  %v8195 = vld [vmem:[%s3 + $0x4c] sm:$0xf]
  %v8196 = vld [vmem:[%s3 + $0x50] sm:$0xf]
  %v8197 = vld [vmem:[%s3 + $0x54] sm:$0xf]
  %v8198 = vld [vmem:[%s3 + $0x58] sm:$0xf]
  %v8199 = vld [vmem:[%s3 + $0x5c] sm:$0xf]
  %v8200 = vld [vmem:[%s3 + $0x60] sm:$0xf]
  %v8201 = vld [vmem:[%s3 + $0x64] sm:$0xf]
  %v8202 = vld [vmem:[%s3 + $0x68] sm:$0xf]
  %v8203 = vld [vmem:[%s3 + $0x6c] sm:$0xf]
  %v8204 = vld [vmem:[%s3 + $0x70] sm:$0xf]
  %v8205 = vld [vmem:[%s3 + $0x74] sm:$0xf]
  %v8206 = vld [vmem:[%s3 + $0x78] sm:$0xf]
  %v8207 = vld [vmem:[%s3 + $0x7c] sm:$0xf]
  %v8208 = vld [vmem:[%s3 + $0x80] sm:$0xf]
  %v8209 = vld [vmem:[%s3 + $0x84] sm:$0xf]
  %v8210 = vld [vmem:[%s3 + $0x88] sm:$0xf]
  %v8211 = vld [vmem:[%s3 + $0x8c] sm:$0xf]
  %v8212 = vld [vmem:[%s3 + $0x90] sm:$0xf]
  %v8213 = vld [vmem:[%s3 + $0x94] sm:$0xf]
  %v8214 = vld [vmem:[%s3 + $0x98] sm:$0xf]
  %v8215 = vld [vmem:[%s3 + $0x9c] sm:$0xf]
  %v8216 = vld [vmem:[%s3 + $0xa0] sm:$0xf]
  %v8217 = vld [vmem:[%s3 + $0xa4] sm:$0xf]
  %v8218 = vld [vmem:[%s3 + $0xa8] sm:$0xf]
  %v8219 = vld [vmem:[%s3 + $0xac] sm:$0xf]
  %v8220 = vld [vmem:[%s3 + $0xb0] sm:$0xf]
  %v8221 = vld [vmem:[%s3 + $0xb4] sm:$0xf]
  %v8222 = vld [vmem:[%s3 + $0xb8] sm:$0xf]
  %v8223 = vld [vmem:[%s3 + $0xbc] sm:$0xf]
  %v8224 = vld [vmem:[%s3 + $0xc0] sm:$0xf]
  %v8225 = vld [vmem:[%s3 + $0xc4] sm:$0xf]
  %v8226 = vld [vmem:[%s3 + $0xc8] sm:$0xf]
  %v8227 = vld [vmem:[%s3 + $0xcc] sm:$0xf]
  %v8228 = vld [vmem:[%s3 + $0xd0] sm:$0xf]
  %v8229 = vld [vmem:[%s3 + $0xd4] sm:$0xf]
  %v8230 = vld [vmem:[%s3 + $0xd8] sm:$0xf]
  %v8231 = vld [vmem:[%s3 + $0xdc] sm:$0xf]
  %v8232 = vld [vmem:[%s3 + $0xe0] sm:$0xf]
  %v8233 = vld [vmem:[%s3 + $0xe4] sm:$0xf]
  %v8234 = vld [vmem:[%s3 + $0xe8] sm:$0xf]
  %v8235 = vld [vmem:[%s3 + $0xec] sm:$0xf]
  %v8236 = vld [vmem:[%s3 + $0xf0] sm:$0xf]
  %v8237 = vld [vmem:[%s3 + $0xf4] sm:$0xf]
  %v8238 = vld [vmem:[%s3 + $0xf8] sm:$0xf]
  %v8239 = vld [vmem:[%s3 + $0xfc] sm:$0xf]
  %v8240 = vld [vmem:[%s4] sm:$0x1]
  %v8242 = vperm.slane %v8240, 0
  %v8308 = vunpack.c.l.b16 %v8176
  %v8309 = vunpack.c.l.b16 %v8177
  %v8310 = vunpack.c.l.b16 %v8178
  %v8311 = vunpack.c.l.b16 %v8179
  %v8312 = vunpack.c.l.b16 %v8180
  %v8313 = vunpack.c.l.b16 %v8181
  %v8314 = vunpack.c.l.b16 %v8182
  %v8315 = vunpack.c.l.b16 %v8183
  %v8316 = vunpack.c.l.b16 %v8184
  %v8317 = vunpack.c.l.b16 %v8185
  %v8318 = vunpack.c.l.b16 %v8186
  %v8319 = vunpack.c.l.b16 %v8187
  %v8320 = vunpack.c.l.b16 %v8188
  %v8321 = vunpack.c.l.b16 %v8189
  %v8322 = vunpack.c.l.b16 %v8190
  %v8323 = vunpack.c.l.b16 %v8191
  %v8324 = vunpack.c.l.b16 %v8192
  %v8325 = vunpack.c.l.b16 %v8193
  %v8326 = vunpack.c.l.b16 %v8194
  %v8327 = vunpack.c.l.b16 %v8195
  %v8328 = vunpack.c.l.b16 %v8196
  %v8329 = vunpack.c.l.b16 %v8197
  %v8330 = vunpack.c.l.b16 %v8198
  %v8331 = vunpack.c.l.b16 %v8199
  %v8332 = vunpack.c.l.b16 %v8200
  %v8333 = vunpack.c.l.b16 %v8201
  %v8334 = vunpack.c.l.b16 %v8202
  %v8335 = vunpack.c.l.b16 %v8203
  %v8336 = vunpack.c.l.b16 %v8204
  %v8337 = vunpack.c.l.b16 %v8205
  %v8338 = vunpack.c.l.b16 %v8206
  %v8339 = vunpack.c.l.b16 %v8207
  %v8340 = vunpack.c.l.b16 %v8208
  %v8341 = vunpack.c.l.b16 %v8209
  %v8342 = vunpack.c.l.b16 %v8210
  %v8343 = vunpack.c.l.b16 %v8211
  %v8344 = vunpack.c.l.b16 %v8212
  %v8345 = vunpack.c.l.b16 %v8213
  %v8346 = vunpack.c.l.b16 %v8214
  %v8347 = vunpack.c.l.b16 %v8215
  %v8348 = vunpack.c.l.b16 %v8216
  %v8349 = vunpack.c.l.b16 %v8217
  %v8350 = vunpack.c.l.b16 %v8218
  %v8351 = vunpack.c.l.b16 %v8219
  %v8352 = vunpack.c.l.b16 %v8220
  %v8353 = vunpack.c.l.b16 %v8221
  %v8354 = vunpack.c.l.b16 %v8222
  %v8355 = vunpack.c.l.b16 %v8223
  %v8356 = vunpack.c.l.b16 %v8224
  %v8357 = vunpack.c.l.b16 %v8225
  %v8358 = vunpack.c.l.b16 %v8226
  %v8359 = vunpack.c.l.b16 %v8227
  %v8360 = vunpack.c.l.b16 %v8228
  %v8361 = vunpack.c.l.b16 %v8229
  %v8362 = vunpack.c.l.b16 %v8230
  %v8363 = vunpack.c.l.b16 %v8231
  %v8364 = vunpack.c.l.b16 %v8232
  %v8365 = vunpack.c.l.b16 %v8233
  %v8366 = vunpack.c.l.b16 %v8234
  %v8367 = vunpack.c.l.b16 %v8235
  %v8368 = vunpack.c.l.b16 %v8236
  %v8369 = vunpack.c.l.b16 %v8237
  %v8370 = vunpack.c.l.b16 %v8238
  %v8371 = vunpack.c.l.b16 %v8239
  %v8372 = vpack.c.b16 %v8309, %v8308
  %v8373 = vpack.c.b16 %v8311, %v8310
  %v8374 = vpack.c.b16 %v8313, %v8312
  %v8375 = vpack.c.b16 %v8315, %v8314
  %v8376 = vpack.c.b16 %v8317, %v8316
  %v8377 = vpack.c.b16 %v8319, %v8318
  %v8378 = vpack.c.b16 %v8321, %v8320
  %v8379 = vpack.c.b16 %v8323, %v8322
  %v8380 = vpack.c.b16 %v8325, %v8324
  %v8381 = vpack.c.b16 %v8327, %v8326
  %v8382 = vpack.c.b16 %v8329, %v8328
  %v8383 = vpack.c.b16 %v8331, %v8330
  %v8384 = vpack.c.b16 %v8333, %v8332
  %v8385 = vpack.c.b16 %v8335, %v8334
  %v8386 = vpack.c.b16 %v8337, %v8336
  %v8387 = vpack.c.b16 %v8339, %v8338
  %v8388 = vpack.c.b16 %v8341, %v8340
  %v8389 = vpack.c.b16 %v8343, %v8342
  %v8390 = vpack.c.b16 %v8345, %v8344
  %v8391 = vpack.c.b16 %v8347, %v8346
  %v8392 = vpack.c.b16 %v8349, %v8348
  %v8393 = vpack.c.b16 %v8351, %v8350
  %v8394 = vpack.c.b16 %v8353, %v8352
  %v8395 = vpack.c.b16 %v8355, %v8354
  %v8396 = vpack.c.b16 %v8357, %v8356
  %v8397 = vpack.c.b16 %v8359, %v8358
  %v8398 = vpack.c.b16 %v8361, %v8360
  %v8399 = vpack.c.b16 %v8363, %v8362
  %v8400 = vpack.c.b16 %v8365, %v8364
  %v8401 = vpack.c.b16 %v8367, %v8366
  %v8402 = vpack.c.b16 %v8369, %v8368
  %v8403 = vpack.c.b16 %v8371, %v8370
  %8436 = vmatpush.bf16.msra.mxu0 %v8379
  %8437 = vmatpush.bf16.msra.mxu0 %v8378
  %8438 = vmatpush.bf16.msra.mxu0 %v8377
  %8439 = vmatpush.bf16.msra.mxu0 %v8376
  %8440 = vmatpush.bf16.msra.mxu0 %v8375
  %8441 = vmatpush.bf16.msra.mxu0 %v8374
  %8442 = vmatpush.bf16.msra.mxu0 %v8373
  %8443 = vmatpush.bf16.msra.mxu0 %v8372
  %8444 = vmatmul.bf16.gmra.mxu0 %v8172
  %v8445 = vpop.f32.mrf.mxu0
  %v8446 = vadd.f32 %v8242, %v8445
  %v8447 = vpop.f32.mrf.mxu0
  %v8448 = vadd.f32 %v8242, %v8447
  %8449 = vdwg.mxu0
  %8450 = vmatpush.bf16.msra.mxu0 %v8387
  %8451 = vmatpush.bf16.msra.mxu0 %v8386
  %8452 = vmatpush.bf16.msra.mxu0 %v8385
  %8453 = vmatpush.bf16.msra.mxu0 %v8384
  %8454 = vmatpush.bf16.msra.mxu0 %v8383
  %8455 = vmatpush.bf16.msra.mxu0 %v8382
  %8456 = vmatpush.bf16.msra.mxu0 %v8381
  %8457 = vmatpush.bf16.msra.mxu0 %v8380
  %8458 = vmatmul.bf16.gmra.mxu0 %v8173
  %v8459 = vpop.f32.mrf.mxu0
  %v8460 = vadd.f32 %v8446, %v8459
  %v8461 = vpop.f32.mrf.mxu0
  %v8462 = vadd.f32 %v8448, %v8461
  %8463 = vdwg.mxu0
  %8464 = vmatpush.bf16.msra.mxu0 %v8395
  %8465 = vmatpush.bf16.msra.mxu0 %v8394
  %8466 = vmatpush.bf16.msra.mxu0 %v8393
  %8467 = vmatpush.bf16.msra.mxu0 %v8392
  %8468 = vmatpush.bf16.msra.mxu0 %v8391
  %8469 = vmatpush.bf16.msra.mxu0 %v8390
  %8470 = vmatpush.bf16.msra.mxu0 %v8389
  %8471 = vmatpush.bf16.msra.mxu0 %v8388
  %8472 = vmatmul.bf16.gmra.mxu0 %v8174
  %v8473 = vpop.f32.mrf.mxu0
  %v8474 = vadd.f32 %v8460, %v8473
  %v8475 = vpop.f32.mrf.mxu0
  %v8476 = vadd.f32 %v8462, %v8475
  %8477 = vdwg.mxu0
  %8478 = vmatpush.bf16.msra.mxu0 %v8403
  %8479 = vmatpush.bf16.msra.mxu0 %v8402
  %8480 = vmatpush.bf16.msra.mxu0 %v8401
  %8481 = vmatpush.bf16.msra.mxu0 %v8400
  %8482 = vmatpush.bf16.msra.mxu0 %v8399
  %8483 = vmatpush.bf16.msra.mxu0 %v8398
  %8484 = vmatpush.bf16.msra.mxu0 %v8397
  %8485 = vmatpush.bf16.msra.mxu0 %v8396
  %8486 = vmatmul.bf16.gmra.mxu0 %v8175
  %v8487 = vpop.f32.mrf.mxu0
  %v8488 = vadd.f32 %v8474, %v8487
  %v8489 = vpop.f32.mrf.mxu0
  %v8490 = vadd.f32 %v8476, %v8489
  %8491 = vdwg.mxu0
  %v8492 = vmax.f32 %v8488, 0.0
  %v8493 = vmax.f32 %v8490, 0.0
  %v8494 = vpack.c.bf16 %v8493, %v8492
  %v8495 = vld [vmem:[%s5] sm:$0xf]
  %v8496 = vld [vmem:[%s5 + $0x4] sm:$0xf]
  %v8497 = vld [vmem:[%s5 + $0x8] sm:$0xf]
  %v8498 = vld [vmem:[%s5 + $0xc] sm:$0xf]
  %v8499 = vld [vmem:[%s5 + $0x10] sm:$0xf]
  %v8500 = vld [vmem:[%s5 + $0x14] sm:$0xf]
  %v8501 = vld [vmem:[%s5 + $0x18] sm:$0xf]
  %v8502 = vld [vmem:[%s5 + $0x1c] sm:$0xf]
  %v8503 = vld [vmem:[%s5 + $0x20] sm:$0xf]
  %v8504 = vld [vmem:[%s5 + $0x24] sm:$0xf]
  %v8505 = vld [vmem:[%s5 + $0x28] sm:$0xf]
  %v8506 = vld [vmem:[%s5 + $0x2c] sm:$0xf]
  %v8507 = vld [vmem:[%s5 + $0x30] sm:$0xf]
  %v8508 = vld [vmem:[%s5 + $0x34] sm:$0xf]
  %v8509 = vld [vmem:[%s5 + $0x38] sm:$0xf]
  %v8510 = vld [vmem:[%s5 + $0x3c] sm:$0xf]
  %v8511 = vld [vmem:[%s6] sm:$0x1]
  %v8513 = vperm.slane %v8511, 0
  %v8531 = vunpack.c.l.b16 %v8495
  %v8532 = vunpack.c.l.b16 %v8496
  %v8533 = vunpack.c.l.b16 %v8497
  %v8534 = vunpack.c.l.b16 %v8498
  %v8535 = vunpack.c.l.b16 %v8499
  %v8536 = vunpack.c.l.b16 %v8500
  %v8537 = vunpack.c.l.b16 %v8501
  %v8538 = vunpack.c.l.b16 %v8502
  %v8539 = vunpack.c.l.b16 %v8503
  %v8540 = vunpack.c.l.b16 %v8504
  %v8541 = vunpack.c.l.b16 %v8505
  %v8542 = vunpack.c.l.b16 %v8506
  %v8543 = vunpack.c.l.b16 %v8507
  %v8544 = vunpack.c.l.b16 %v8508
  %v8545 = vunpack.c.l.b16 %v8509
  %v8546 = vunpack.c.l.b16 %v8510
  %v8547 = vpack.c.b16 %v8532, %v8531
  %v8548 = vpack.c.b16 %v8534, %v8533
  %v8549 = vpack.c.b16 %v8536, %v8535
  %v8550 = vpack.c.b16 %v8538, %v8537
  %v8551 = vpack.c.b16 %v8540, %v8539
  %v8552 = vpack.c.b16 %v8542, %v8541
  %v8553 = vpack.c.b16 %v8544, %v8543
  %v8554 = vpack.c.b16 %v8546, %v8545
  %8563 = vmatpush.bf16.msra.mxu0 %v8554
  %8564 = vmatpush.bf16.msra.mxu0 %v8553
  %8565 = vmatpush.bf16.msra.mxu0 %v8552
  %8566 = vmatpush.bf16.msra.mxu0 %v8551
  %8567 = vmatpush.bf16.msra.mxu0 %v8550
  %8568 = vmatpush.bf16.msra.mxu0 %v8549
  %8569 = vmatpush.bf16.msra.mxu0 %v8548
  %8570 = vmatpush.bf16.msra.mxu0 %v8547
  %8571 = vmatmul.bf16.gmra.mxu0 %v8494
  %v8572 = vpop.f32.mrf.mxu0
  %v8573 = vadd.f32 %v8513, %v8572
  %v8574 = vpop.f32.mrf.mxu0
  %v8575 = vadd.f32 %v8513, %v8574
  %8576 = vdwg.mxu0
  %8577 = vst [vmem:[%s7] sm:$0xff] %v8573
  %8578 = vst [vmem:[%s7 + $0x8] sm:$0xff] %v8575
  // Predicated region
  $region30: #{projection_net_forward.1} parent=0 // pred_check
    _
  $region31: #{projection_net_forward.1} parent=0 // pred_check_branch
    %8580 = sbr.rel (0) target = $region33
  $region32: #{projection_net_forward.1} parent=0 // pred_region
    _
  $region33: #{projection_net_forward.1} parent=0 // pred_fallthru
    _
  // Predicated region
  $region34: #{projection_net_forward.1} parent=0 // pred_check
    _
  $region35: #{projection_net_forward.1} parent=0 // pred_check_branch
    %8582 = sbr.rel (0) target = $region37
  $region36: #{projection_net_forward.1} parent=0 // pred_region
    _
  $region37: #{projection_net_forward.1} parent=0 // pred_fallthru
    _

</llo_original>
